<compile_context>
chip_gen: v5e
topology: v5e:2x2
jax: 0.10.0
libtpu: 0.0.40
codegen_flags: <defaults>
</compile_context>

<pallas_src>
import functools
import math

import jax
import jax.numpy as jnp
from jax.experimental import pallas as pl
from jax.experimental.pallas import tpu as pltpu

EPS = 1e-5
NEG_INF = -1e9  # finite stand-in for -inf in additive attention masks


# ----------------------------- Pallas kernels ------------------------------

def _mha_block_kernel(xq_ref, xkv_ref, wq_ref, bq_ref, wk_ref, bk_ref,
                      wv_ref, bv_ref, wo_ref, bo_ref, am_ref, kpm_ref,
                      g_ref, b_ref, o_ref, *, nhead):
    """Fused multi-head attention block: proj -> attention -> out proj -> add&norm.

    xq_ref : (Nb, Tq, E)  query-side input (also the residual)
    xkv_ref: (Nb, Tk, E)  key/value-side input (== xq for self-attention)
    wq/wk/wv: (H, E, Dh) bf16 (pre-transposed, split per head), biases (H, 1, Dh) f32
    wo     : (H, Dh, E) bf16, bo (1, E) f32
    am_ref : (Tq, Tk) additive attention mask (f32)
    kpm_ref: (Nb, 1, Tk) additive key-padding mask (f32)
    """
    Nb, Tq, E = xq_ref.shape
    Tk = xkv_ref.shape[1]
    Dh = E // nhead
    scale = 1.0 / math.sqrt(Dh)

    xq = xq_ref[...]                                        # f32, kept for residual
    xq2 = xq.reshape(Nb * Tq, E).astype(jnp.bfloat16)
    xkv2 = xkv_ref[...].reshape(Nb * Tk, E).astype(jnp.bfloat16)

    # Build the additive mask in-kernel from the compact pieces (broadcast on the VPU).
    mask = am_ref[...][None, :, :] + kpm_ref[...]           # (Nb, Tq, Tk) f32

    acc = jnp.zeros((Nb * Tq, E), jnp.float32)
    for h in range(nhead):                                  # static unroll over heads
        qh = (jnp.dot(xq2, wq_ref[h], preferred_element_type=jnp.float32)
              + bq_ref[h]).reshape(Nb, Tq, Dh)
        kh = (jnp.dot(xkv2, wk_ref[h], preferred_element_type=jnp.float32)
              + bk_ref[h]).reshape(Nb, Tk, Dh)
        vh = (jnp.dot(xkv2, wv_ref[h], preferred_element_type=jnp.float32)
              + bv_ref[h]).reshape(Nb, Tk, Dh)

        s = jnp.einsum('nqd,nkd->nqk', qh.astype(jnp.bfloat16), kh.astype(jnp.bfloat16),
                       preferred_element_type=jnp.float32) * scale + mask
        s = s - jnp.max(s, axis=-1, keepdims=True)
        p = jnp.exp(s)
        p = p * pl.reciprocal(jnp.sum(p, axis=-1, keepdims=True), approx=True)

        ctx = jnp.einsum('nqk,nkd->nqd', p.astype(jnp.bfloat16), vh.astype(jnp.bfloat16),
                         preferred_element_type=jnp.float32)         # (Nb, Tq, Dh)
        acc = acc + jnp.dot(ctx.reshape(Nb * Tq, Dh).astype(jnp.bfloat16), wo_ref[h],
                            preferred_element_type=jnp.float32)

    out = acc + bo_ref[...]
    h_res = xq.reshape(Nb * Tq, E) + out                    # residual add (f32)
    mu = jnp.mean(h_res, axis=-1, keepdims=True)
    var = jnp.mean((h_res - mu) ** 2, axis=-1, keepdims=True)
    y = (h_res - mu) * jax.lax.rsqrt(var + EPS) * g_ref[...] + b_ref[...]
    o_ref[...] = y.reshape(Nb, Tq, E)


def _ffn_ln_kernel(x_ref, w1_ref, b1_ref, w2_ref, b2_ref, g_ref, b_ref, o_ref):
    # y = LayerNorm(x + linear2(relu(linear1(x))))  -- dropout is identity in eval mode
    x = x_ref[...]                                           # (bm, E) f32
    h = jnp.dot(x.astype(jnp.bfloat16), w1_ref[...],
                preferred_element_type=jnp.float32) + b1_ref[...]
    h = jnp.maximum(h, 0.0)
    y = jnp.dot(h.astype(jnp.bfloat16), w2_ref[...],
                preferred_element_type=jnp.float32) + b2_ref[...]
    r = x + y
    mu = jnp.mean(r, axis=-1, keepdims=True)
    var = jnp.mean((r - mu) ** 2, axis=-1, keepdims=True)
    o_ref[...] = (r - mu) * jax.lax.rsqrt(var + EPS) * g_ref[...] + b_ref[...]


def _ln_kernel(x_ref, g_ref, b_ref, o_ref):
    x = x_ref[...]
    mu = jnp.mean(x, axis=-1, keepdims=True)
    var = jnp.mean((x - mu) ** 2, axis=-1, keepdims=True)
    o_ref[...] = (x - mu) * jax.lax.rsqrt(var + EPS) * g_ref[...] + b_ref[...]


def _ln_linear_kernel(x_ref, g_ref, b_ref, w_ref, bias_ref, o_ref):
    # logits_block = LayerNorm(x) @ W_block + b_block   (final decoder norm + generator)
    x = x_ref[...]
    mu = jnp.mean(x, axis=-1, keepdims=True)
    var = jnp.mean((x - mu) ** 2, axis=-1, keepdims=True)
    xn = (x - mu) * jax.lax.rsqrt(var + EPS) * g_ref[...] + b_ref[...]
    o_ref[...] = jnp.dot(xn.astype(jnp.bfloat16), w_ref[...],
                         preferred_element_type=jnp.float32) + bias_ref[...]


# ----------------------------- Pallas wrappers ------------------------------

def mha_block(xq, xkv, p, attn_mask, kpm_add, nhead):
    """Fused attention block, grid = (batch,) marked parallel (2 TCs on v7x)."""
    Nb, Tq, E = xq.shape
    Tk = xkv.shape[1]
    H = nhead
    Dh = E // H

    def wfull(shape):
        return pl.BlockSpec(shape, lambda n, _k=len(shape): (0,) * _k)

    kern = functools.partial(_mha_block_kernel, nhead=nhead)
    return pl.pallas_call(
        kern,
        out_shape=jax.ShapeDtypeStruct((Nb, Tq, E), jnp.float32),
        grid=(Nb,),
        in_specs=[
            pl.BlockSpec((1, Tq, E), lambda n: (n, 0, 0)),      # xq
            pl.BlockSpec((1, Tk, E), lambda n: (n, 0, 0)),      # xkv
            wfull((H, E, Dh)), wfull((H, 1, Dh)),               # wq, bq
            wfull((H, E, Dh)), wfull((H, 1, Dh)),               # wk, bk
            wfull((H, E, Dh)), wfull((H, 1, Dh)),               # wv, bv
            wfull((H, Dh, E)), wfull((1, E)),                   # wo, bo
            wfull((Tq, Tk)),                                    # additive attn mask
            pl.BlockSpec((1, 1, Tk), lambda n: (n, 0, 0)),      # additive key-padding mask
            wfull((1, E)), wfull((1, E)),                       # LayerNorm gamma, beta
        ],
        out_specs=pl.BlockSpec((1, Tq, E), lambda n: (n, 0, 0)),
        compiler_params=pltpu.CompilerParams(dimension_semantics=("parallel",)),
    )(xq, xkv, p['wq'], p['bq'], p['wk'], p['bk'], p['wv'], p['bv'],
      p['wo'], p['bo'], attn_mask, kpm_add, p['ln_g'], p['ln_b'])


def ffn_block(x, p, block_rows=256):
    Nb, Tq, E = x.shape
    M = Nb * Tq
    F = p['w1'].shape[1]
    bm = min(M, block_rows)
    out = pl.pallas_call(
        _ffn_ln_kernel,
        out_shape=jax.ShapeDtypeStruct((M, E), jnp.float32),
        grid=(pl.cdiv(M, bm),),
        in_specs=[pl.BlockSpec((bm, E), lambda i: (i, 0)),
                  pl.BlockSpec((E, F), lambda i: (0, 0)),
                  pl.BlockSpec((1, F), lambda i: (0, 0)),
                  pl.BlockSpec((F, E), lambda i: (0, 0)),
                  pl.BlockSpec((1, E), lambda i: (0, 0)),
                  pl.BlockSpec((1, E), lambda i: (0, 0)),
                  pl.BlockSpec((1, E), lambda i: (0, 0))],
        out_specs=pl.BlockSpec((bm, E), lambda i: (i, 0)),
        compiler_params=pltpu.CompilerParams(dimension_semantics=("parallel",)),
    )(x.reshape(M, E), p['w1'], p['b1'], p['w2'], p['b2'], p['ln_g'], p['ln_b'])
    return out.reshape(Nb, Tq, E)


def layernorm(x, g, b, block_rows=256):
    Nb, Tq, E = x.shape
    M = Nb * Tq
    bm = min(M, block_rows)
    out = pl.pallas_call(
        _ln_kernel,
        out_shape=jax.ShapeDtypeStruct((M, E), jnp.float32),
        grid=(pl.cdiv(M, bm),),
        in_specs=[pl.BlockSpec((bm, E), lambda i: (i, 0)),
                  pl.BlockSpec((1, E), lambda i: (0, 0)),
                  pl.BlockSpec((1, E), lambda i: (0, 0))],
        out_specs=pl.BlockSpec((bm, E), lambda i: (i, 0)),
        compiler_params=pltpu.CompilerParams(dimension_semantics=("parallel",)),
    )(x.reshape(M, E), g, b)
    return out.reshape(Nb, Tq, E)


def norm_generator(x, g, b, w, bias, block_rows=256, block_vocab=512):
    """Final decoder LayerNorm fused with the generator linear, tiled (rows, vocab)."""
    Nb, Tq, E = x.shape
    M = Nb * Tq
    V = w.shape[1]
    bm = min(M, block_rows)
    bv = min(V, block_vocab)
    out = pl.pallas_call(
        _ln_linear_kernel,
        out_shape=jax.ShapeDtypeStruct((M, V), jnp.float32),
        grid=(pl.cdiv(M, bm), pl.cdiv(V, bv)),
        in_specs=[pl.BlockSpec((bm, E), lambda i, j: (i, 0)),
                  pl.BlockSpec((1, E), lambda i, j: (0, 0)),
                  pl.BlockSpec((1, E), lambda i, j: (0, 0)),
                  pl.BlockSpec((E, bv), lambda i, j: (0, j)),
                  pl.BlockSpec((1, bv), lambda i, j: (0, j))],
        out_specs=pl.BlockSpec((bm, bv), lambda i, j: (i, j)),
        compiler_params=pltpu.CompilerParams(dimension_semantics=("parallel", "parallel")),
    )(x.reshape(M, E), g, b, w, bias)
    return out.reshape(Nb, Tq, V)


# ------------------------- embedding + forward pass -------------------------

def embed_batch_first(tokens, table, pos_table):
    """tokens (S, N) int32 -> (N, S, E) f32 = table[tok] * sqrt(E) + pos."""
    S, _ = tokens.shape
    E = table.shape[1]
    # TODO(synk): the row gather could be moved into a Pallas kernel with scalar-prefetched
    # token ids + pl.Element row index_map; it is pure data movement, so XLA's gather is used.
    return jnp.take(table, tokens.T, axis=0) * math.sqrt(E) + pos_table[:S][None, :, :]


def seq2seq_forward(params, src, tgt, src_mask, tgt_mask,
                    src_padding_mask, tgt_padding_mask, memory_key_padding_mask, nhead):
    S, N = src.shape
    T = tgt.shape[0]

    src_x = embed_batch_first(src, params['src_emb'], params['pos_emb'])   # (N, S, E)
    tgt_x = embed_batch_first(tgt, params['tgt_emb'], params['pos_emb'])   # (N, T, E)

    # Compact additive masks, built once and broadcast inside the kernels.
    def pad_to_add(kpm, Tk):
        if kpm is None:
            return jnp.zeros((N, 1, Tk), jnp.float32)
        return jnp.where(kpm, NEG_INF, 0.0).astype(jnp.float32).reshape(N, 1, Tk)

    src_kpm = pad_to_add(src_padding_mask, S)
    tgt_kpm = pad_to_add(tgt_padding_mask, T)
    mem_kpm = pad_to_add(memory_key_padding_mask, S)

    src_am = jnp.zeros((S, S), jnp.float32) if src_mask is None else src_mask.astype(jnp.float32)
    tgt_am = jnp.zeros((T, T), jnp.float32) if tgt_mask is None else tgt_mask.astype(jnp.float32)
    mem_am = jnp.zeros((T, S), jnp.float32)   # memory_mask is None in the reference forward

    # Encoder (post-norm, matches nn.Transformer norm_first=False)
    x = src_x
    for lp in params['enc_layers']:
        x = mha_block(x, x, lp['self_attn'], src_am, src_kpm, nhead)
        x = ffn_block(x, lp['ffn'])
    memory = layernorm(x, params['enc_norm_g'], params['enc_norm_b'])

    # Decoder
    y = tgt_x
    for lp in params['dec_layers']:
        y = mha_block(y, y, lp['self_attn'], tgt_am, tgt_kpm, nhead)
        y = mha_block(y, memory, lp['cross_attn'], mem_am, mem_kpm, nhead)
        y = ffn_block(y, lp['ffn'])

    logits = norm_generator(y, params['dec_norm_g'], params['dec_norm_b'],
                            params['gen_w'], params['gen_b'])              # (N, T, V)
    return logits.transpose(1, 0, 2)                                       # (T, N, V)


# ------------------------------- parameters ---------------------------------

def _xavier(key, shape):
    fan_out, fan_in = shape
    a = math.sqrt(6.0 / (fan_in + fan_out))
    return jax.random.uniform(key, shape, jnp.float32, -a, a)


def make_pos_table(emb_size, max_len=5000):
    den = jnp.exp(-jnp.arange(0, emb_size, 2, dtype=jnp.float32)
                  * math.log(10000.0) / emb_size)
    pos = jnp.arange(0, max_len, dtype=jnp.float32).reshape(max_len, 1)
    arg = pos * den
    pe = jnp.zeros((max_len, emb_size), jnp.float32)
    pe = pe.at[:, 0::2].set(jnp.sin(arg))
    pe = pe.at[:, 1::2].set(jnp.cos(arg))
    return pe                                   # (max_len, E)


def init_attn(key, E, H):
    Dh = E // H
    k1, k2 = jax.random.split(key)
    in_proj = _xavier(k1, (3 * E, E))           # PyTorch (3E, E) layout
    out_proj = _xavier(k2, (E, E))

    def heads_cols(w_t):                        # (E_in, E_out) -> (H, E_in, Dh)
        return w_t.reshape(E, H, Dh).transpose(1, 0, 2)

    return dict(
        wq=heads_cols(in_proj[:E].T).astype(jnp.bfloat16),
        wk=heads_cols(in_proj[E:2 * E].T).astype(jnp.bfloat16),
        wv=heads_cols(in_proj[2 * E:].T).astype(jnp.bfloat16),
        bq=jnp.zeros((H, 1, Dh), jnp.float32),
        bk=jnp.zeros((H, 1, Dh), jnp.float32),
        bv=jnp.zeros((H, 1, Dh), jnp.float32),
        wo=out_proj.T.reshape(H, Dh, E).astype(jnp.bfloat16),
        bo=jnp.zeros((1, E), jnp.float32),
        ln_g=jnp.ones((1, E), jnp.float32),
        ln_b=jnp.zeros((1, E), jnp.float32),
    )


def init_ffn(key, E, F):
    k1, k2 = jax.random.split(key)
    return dict(
        w1=_xavier(k1, (F, E)).T.astype(jnp.bfloat16),   # (E, F), pre-transposed
        b1=jnp.zeros((1, F), jnp.float32),
        w2=_xavier(k2, (E, F)).T.astype(jnp.bfloat16),   # (F, E), pre-transposed
        b2=jnp.zeros((1, E), jnp.float32),
        ln_g=jnp.ones((1, E), jnp.float32),
        ln_b=jnp.zeros((1, E), jnp.float32),
    )


def init_params(key, num_enc, num_dec, E, H, F, src_vocab, tgt_vocab):
    keys = jax.random.split(key, 2 * num_enc + 3 * num_dec + 3)
    it = iter(keys)
    enc_layers = [dict(self_attn=init_attn(next(it), E, H),
                       ffn=init_ffn(next(it), E, F)) for _ in range(num_enc)]
    dec_layers = [dict(self_attn=init_attn(next(it), E, H),
                       cross_attn=init_attn(next(it), E, H),
                       ffn=init_ffn(next(it), E, F)) for _ in range(num_dec)]
    return dict(
        src_emb=jax.random.normal(next(it), (src_vocab, E), jnp.float32),
        tgt_emb=jax.random.normal(next(it), (tgt_vocab, E), jnp.float32),
        pos_emb=make_pos_table(E),
        enc_layers=enc_layers,
        dec_layers=dec_layers,
        enc_norm_g=jnp.ones((1, E), jnp.float32),
        enc_norm_b=jnp.zeros((1, E), jnp.float32),
        dec_norm_g=jnp.ones((1, E), jnp.float32),
        dec_norm_b=jnp.zeros((1, E), jnp.float32),
        gen_w=_xavier(next(it), (tgt_vocab, E)).T.astype(jnp.bfloat16),   # (E, V)
        gen_b=jnp.zeros((1, tgt_vocab), jnp.float32),
    )


# ---------------------------------- main -------------------------------------

if __name__ == "__main__":
    # Small config consistent with Seq2Seq(__init__) shapes.
    NUM_ENC, NUM_DEC = 2, 2
    EMB, NHEAD, FFN_DIM = 32, 4, 64
    SRC_VOCAB, TGT_VOCAB = 48, 56
    S, T, N = 10, 8, 2  # src seq len, tgt seq len, batch

    key = jax.random.PRNGKey(0)
    kp, ks, kt = jax.random.split(key, 3)
    params = init_params(kp, NUM_ENC, NUM_DEC, EMB, NHEAD, FFN_DIM, SRC_VOCAB, TGT_VOCAB)

    src = jax.random.randint(ks, (S, N), 0, SRC_VOCAB, dtype=jnp.int32)
    tgt = jax.random.randint(kt, (T, N), 0, TGT_VOCAB, dtype=jnp.int32)

    src_mask = jnp.zeros((S, S), jnp.float32)
    tgt_mask = jnp.where(jnp.triu(jnp.ones((T, T), bool), k=1), NEG_INF, 0.0).astype(jnp.float32)
    src_padding_mask = jnp.zeros((N, S), bool).at[1, S - 2:].set(True)
    tgt_padding_mask = jnp.zeros((N, T), bool).at[1, T - 1:].set(True)
    memory_key_padding_mask = src_padding_mask

    # TODO(synk): dropout is modeled in eval mode (identity); stochastic dropout not implemented.
    fwd = jax.jit(functools.partial(seq2seq_forward, nhead=NHEAD))
    logits = fwd(params, src, tgt, src_mask, tgt_mask,
                 src_padding_mask, tgt_padding_mask, memory_key_padding_mask)
    jax.block_until_ready(logits)

    assert logits.shape == (T, N, TGT_VOCAB)
    assert bool(jnp.all(jnp.isfinite(logits)))
    print("KERNEL_OK")
</pallas_src>

<mosaic_0001>
module attributes {stable_mosaic.version = 11 : i64} {
  func.func @_mha_block_kernel(%arg0: i32, %arg1: memref<1x10x32xf32, #tpu.memory_space<vmem>>, %arg2: memref<1x10x32xf32, #tpu.memory_space<vmem>>, %arg3: memref<4x32x8xbf16, #tpu.memory_space<vmem>>, %arg4: memref<4x1x8xf32, #tpu.memory_space<vmem>>, %arg5: memref<4x32x8xbf16, #tpu.memory_space<vmem>>, %arg6: memref<4x1x8xf32, #tpu.memory_space<vmem>>, %arg7: memref<4x32x8xbf16, #tpu.memory_space<vmem>>, %arg8: memref<4x1x8xf32, #tpu.memory_space<vmem>>, %arg9: memref<4x8x32xbf16, #tpu.memory_space<vmem>>, %arg10: memref<1x32xf32, #tpu.memory_space<vmem>>, %arg11: memref<10x10xf32, #tpu.memory_space<vmem>>, %arg12: memref<1x1x10xf32, #tpu.memory_space<vmem>>, %arg13: memref<1x32xf32, #tpu.memory_space<vmem>>, %arg14: memref<1x32xf32, #tpu.memory_space<vmem>>, %arg15: memref<1x10x32xf32, #tpu.memory_space<vmem>>) attributes {dimension_semantics = [#tpu.dimension_semantics<parallel>], iteration_bounds = array<i64: 2>, scalar_prefetch = 0 : i64, scratch_operands = 0 : i64, tpu.core_type = #tpu.core_type<tc>, window_params = [{transform_indices = @transform_0, window_bounds = array<i64: 1, 10, 32>}, {transform_indices = @transform_1, window_bounds = array<i64: 1, 10, 32>}, {pipeline_mode = #tpu.pipeline_mode<synchronous>, transform_indices = @transform_2, window_bounds = array<i64: 4, 32, 8>}, {pipeline_mode = #tpu.pipeline_mode<synchronous>, transform_indices = @transform_3, window_bounds = array<i64: 4, 1, 8>}, {pipeline_mode = #tpu.pipeline_mode<synchronous>, transform_indices = @transform_4, window_bounds = array<i64: 4, 32, 8>}, {pipeline_mode = #tpu.pipeline_mode<synchronous>, transform_indices = @transform_5, window_bounds = array<i64: 4, 1, 8>}, {pipeline_mode = #tpu.pipeline_mode<synchronous>, transform_indices = @transform_6, window_bounds = array<i64: 4, 32, 8>}, {pipeline_mode = #tpu.pipeline_mode<synchronous>, transform_indices = @transform_7, window_bounds = array<i64: 4, 1, 8>}, {pipeline_mode = #tpu.pipeline_mode<synchronous>, transform_indices = @transform_8, window_bounds = array<i64: 4, 8, 32>}, {pipeline_mode = #tpu.pipeline_mode<synchronous>, transform_indices = @transform_9, window_bounds = array<i64: 1, 32>}, {pipeline_mode = #tpu.pipeline_mode<synchronous>, transform_indices = @transform_10, window_bounds = array<i64: 10, 10>}, {transform_indices = @transform_11, window_bounds = array<i64: 1, 1, 10>}, {pipeline_mode = #tpu.pipeline_mode<synchronous>, transform_indices = @transform_12, window_bounds = array<i64: 1, 32>}, {pipeline_mode = #tpu.pipeline_mode<synchronous>, transform_indices = @transform_13, window_bounds = array<i64: 1, 32>}, {transform_indices = @transform_14, window_bounds = array<i64: 1, 10, 32>}]} {
    %c0 = arith.constant 0 : index
    %c0_0 = arith.constant 0 : index
    %c0_1 = arith.constant 0 : index
    %0 = vector.load %arg1[%c0, %c0_0, %c0_1] : memref<1x10x32xf32, #tpu.memory_space<vmem>>, vector<1x10x32xf32>
    %1 = vector.shape_cast %0 : vector<1x10x32xf32> to vector<10x32xf32>
    %2 = arith.truncf %1 : vector<10x32xf32> to vector<10x32xbf16>
    %c0_2 = arith.constant 0 : index
    %c0_3 = arith.constant 0 : index
    %c0_4 = arith.constant 0 : index
    %3 = vector.load %arg2[%c0_2, %c0_3, %c0_4] : memref<1x10x32xf32, #tpu.memory_space<vmem>>, vector<1x10x32xf32>
    %4 = vector.shape_cast %3 : vector<1x10x32xf32> to vector<10x32xf32>
    %5 = arith.truncf %4 : vector<10x32xf32> to vector<10x32xbf16>
    %c0_5 = arith.constant 0 : index
    %c0_6 = arith.constant 0 : index
    %6 = vector.load %arg11[%c0_5, %c0_6] : memref<10x10xf32, #tpu.memory_space<vmem>>, vector<10x10xf32>
    %7 = vector.shape_cast %6 : vector<10x10xf32> to vector<1x10x10xf32>
    %c0_7 = arith.constant 0 : index
    %c0_8 = arith.constant 0 : index
    %c0_9 = arith.constant 0 : index
    %8 = vector.load %arg12[%c0_7, %c0_8, %c0_9] : memref<1x1x10xf32, #tpu.memory_space<vmem>>, vector<1x1x10xf32>
    %9 = vector.broadcast %8 : vector<1x1x10xf32> to vector<1x10x10xf32>
    %10 = arith.addf %7, %9 : vector<1x10x10xf32>
    %cst = arith.constant 0.000000e+00 : f32
    %11 = vector.broadcast %cst : f32 to vector<10x32xf32>
    %c0_10 = arith.constant 0 : index
    %c0_11 = arith.constant 0 : index
    %c0_12 = arith.constant 0 : index
    %12 = vector.load %arg3[%c0_10, %c0_11, %c0_12] : memref<4x32x8xbf16, #tpu.memory_space<vmem>>, vector<1x32x8xbf16>
    %13 = vector.shape_cast %12 : vector<1x32x8xbf16> to vector<32x8xbf16>
    %cst_13 = arith.constant dense<0.000000e+00> : vector<10x8xf32>
    %14 = tpu.matmul %2, %13, %cst_13 {dimension_numbers = #tpu.dot_dimension_numbers<[1], [0], [0], [1], [0, 0, 1, 1], [], []>} : vector<10x32xbf16>, vector<32x8xbf16>, vector<10x8xf32> -> vector<10x8xf32>
    %c0_14 = arith.constant 0 : index
    %c0_15 = arith.constant 0 : index
    %c0_16 = arith.constant 0 : index
    %15 = vector.load %arg4[%c0_14, %c0_15, %c0_16] : memref<4x1x8xf32, #tpu.memory_space<vmem>>, vector<1x1x8xf32>
    %16 = vector.shape_cast %15 : vector<1x1x8xf32> to vector<1x8xf32>
    %17 = vector.broadcast %16 : vector<1x8xf32> to vector<10x8xf32>
    %18 = arith.addf %14, %17 : vector<10x8xf32>
    %19 = vector.shape_cast %18 : vector<10x8xf32> to vector<1x10x8xf32>
    %c0_17 = arith.constant 0 : index
    %c0_18 = arith.constant 0 : index
    %c0_19 = arith.constant 0 : index
    %20 = vector.load %arg5[%c0_17, %c0_18, %c0_19] : memref<4x32x8xbf16, #tpu.memory_space<vmem>>, vector<1x32x8xbf16>
    %21 = vector.shape_cast %20 : vector<1x32x8xbf16> to vector<32x8xbf16>
    %cst_20 = arith.constant dense<0.000000e+00> : vector<10x8xf32>
    %22 = tpu.matmul %5, %21, %cst_20 {dimension_numbers = #tpu.dot_dimension_numbers<[1], [0], [0], [1], [0, 0, 1, 1], [], []>} : vector<10x32xbf16>, vector<32x8xbf16>, vector<10x8xf32> -> vector<10x8xf32>
    %c0_21 = arith.constant 0 : index
    %c0_22 = arith.constant 0 : index
    %c0_23 = arith.constant 0 : index
    %23 = vector.load %arg6[%c0_21, %c0_22, %c0_23] : memref<4x1x8xf32, #tpu.memory_space<vmem>>, vector<1x1x8xf32>
    %24 = vector.shape_cast %23 : vector<1x1x8xf32> to vector<1x8xf32>
    %25 = vector.broadcast %24 : vector<1x8xf32> to vector<10x8xf32>
    %26 = arith.addf %22, %25 : vector<10x8xf32>
    %27 = vector.shape_cast %26 : vector<10x8xf32> to vector<1x10x8xf32>
    %c0_24 = arith.constant 0 : index
    %c0_25 = arith.constant 0 : index
    %c0_26 = arith.constant 0 : index
    %28 = vector.load %arg7[%c0_24, %c0_25, %c0_26] : memref<4x32x8xbf16, #tpu.memory_space<vmem>>, vector<1x32x8xbf16>
    %29 = vector.shape_cast %28 : vector<1x32x8xbf16> to vector<32x8xbf16>
    %cst_27 = arith.constant dense<0.000000e+00> : vector<10x8xf32>
    %30 = tpu.matmul %5, %29, %cst_27 {dimension_numbers = #tpu.dot_dimension_numbers<[1], [0], [0], [1], [0, 0, 1, 1], [], []>} : vector<10x32xbf16>, vector<32x8xbf16>, vector<10x8xf32> -> vector<10x8xf32>
    %c0_28 = arith.constant 0 : index
    %c0_29 = arith.constant 0 : index
    %c0_30 = arith.constant 0 : index
    %31 = vector.load %arg8[%c0_28, %c0_29, %c0_30] : memref<4x1x8xf32, #tpu.memory_space<vmem>>, vector<1x1x8xf32>
    %32 = vector.shape_cast %31 : vector<1x1x8xf32> to vector<1x8xf32>
    %33 = vector.broadcast %32 : vector<1x8xf32> to vector<10x8xf32>
    %34 = arith.addf %30, %33 : vector<10x8xf32>
    %35 = vector.shape_cast %34 : vector<10x8xf32> to vector<1x10x8xf32>
    %36 = arith.truncf %19 : vector<1x10x8xf32> to vector<1x10x8xbf16>
    %37 = arith.truncf %27 : vector<1x10x8xf32> to vector<1x10x8xbf16>
    "tpu.trace_start"() <{level = 10 : i32, message = "nqd,nkd->nqk"}> : () -> ()
    %cst_31 = arith.constant dense<0.000000e+00> : vector<1x10x10xf32>
    %38 = tpu.matmul %36, %37, %cst_31 {dimension_numbers = #tpu.dot_dimension_numbers<[2], [2], [1], [1], [0, 0, 0, 1, 1, 1], [0], [0]>} : vector<1x10x8xbf16>, vector<1x10x8xbf16>, vector<1x10x10xf32> -> vector<1x10x10xf32>
    "tpu.trace_stop"() : () -> ()
    %cst_32 = arith.constant 0.353553385 : f32
    %39 = vector.broadcast %cst_32 : f32 to vector<1x10x10xf32>
    %40 = arith.mulf %38, %39 : vector<1x10x10xf32>
    %41 = arith.addf %40, %10 : vector<1x10x10xf32>
    %cst_33 = arith.constant dense<0xFF800000> : vector<1x10xf32>
    %42 = vector.multi_reduction <maximumf>, %41, %cst_33 [2] : vector<1x10x10xf32> to vector<1x10xf32>
    %43 = vector.shape_cast %42 : vector<1x10xf32> to vector<1x10x1xf32>
    %44 = vector.broadcast %43 : vector<1x10x1xf32> to vector<1x10x10xf32>
    %45 = arith.subf %41, %44 : vector<1x10x10xf32>
    %46 = math.exp %45 : vector<1x10x10xf32>
    %cst_34 = arith.constant dense<0.000000e+00> : vector<1x10xf32>
    %47 = vector.multi_reduction <add>, %46, %cst_34 [2] : vector<1x10x10xf32> to vector<1x10xf32>
    %48 = vector.shape_cast %47 : vector<1x10xf32> to vector<1x10x1xf32>
    %49 = tpu.reciprocal %48 {approx = true} : vector<1x10x1xf32> -> vector<1x10x1xf32>
    %50 = vector.broadcast %49 : vector<1x10x1xf32> to vector<1x10x10xf32>
    %51 = arith.mulf %46, %50 : vector<1x10x10xf32>
    %52 = arith.truncf %51 : vector<1x10x10xf32> to vector<1x10x10xbf16>
    %53 = arith.truncf %35 : vector<1x10x8xf32> to vector<1x10x8xbf16>
    "tpu.trace_start"() <{level = 10 : i32, message = "nqk,nkd->nqd"}> : () -> ()
    %cst_35 = arith.constant dense<0.000000e+00> : vector<1x10x8xf32>
    %54 = tpu.matmul %52, %53, %cst_35 {dimension_numbers = #tpu.dot_dimension_numbers<[2], [1], [1], [2], [0, 0, 0, 1, 1, 2], [0], [0]>} : vector<1x10x10xbf16>, vector<1x10x8xbf16>, vector<1x10x8xf32> -> vector<1x10x8xf32>
    "tpu.trace_stop"() : () -> ()
    %55 = vector.shape_cast %54 : vector<1x10x8xf32> to vector<10x8xf32>
    %56 = arith.truncf %55 : vector<10x8xf32> to vector<10x8xbf16>
    %c0_36 = arith.constant 0 : index
    %c0_37 = arith.constant 0 : index
    %c0_38 = arith.constant 0 : index
    %57 = vector.load %arg9[%c0_36, %c0_37, %c0_38] : memref<4x8x32xbf16, #tpu.memory_space<vmem>>, vector<1x8x32xbf16>
    %58 = vector.shape_cast %57 : vector<1x8x32xbf16> to vector<8x32xbf16>
    %cst_39 = arith.constant dense<0.000000e+00> : vector<10x32xf32>
    %59 = tpu.matmul %56, %58, %cst_39 {dimension_numbers = #tpu.dot_dimension_numbers<[1], [0], [0], [1], [0, 0, 1, 1], [], []>} : vector<10x8xbf16>, vector<8x32xbf16>, vector<10x32xf32> -> vector<10x32xf32>
    %60 = arith.addf %11, %59 : vector<10x32xf32>
    %c1 = arith.constant 1 : index
    %c0_40 = arith.constant 0 : index
    %c0_41 = arith.constant 0 : index
    %61 = vector.load %arg3[%c1, %c0_40, %c0_41] : memref<4x32x8xbf16, #tpu.memory_space<vmem>>, vector<1x32x8xbf16>
    %62 = vector.shape_cast %61 : vector<1x32x8xbf16> to vector<32x8xbf16>
    %cst_42 = arith.constant dense<0.000000e+00> : vector<10x8xf32>
    %63 = tpu.matmul %2, %62, %cst_42 {dimension_numbers = #tpu.dot_dimension_numbers<[1], [0], [0], [1], [0, 0, 1, 1], [], []>} : vector<10x32xbf16>, vector<32x8xbf16>, vector<10x8xf32> -> vector<10x8xf32>
    %c1_43 = arith.constant 1 : index
    %c0_44 = arith.constant 0 : index
    %c0_45 = arith.constant 0 : index
    %64 = vector.load %arg4[%c1_43, %c0_44, %c0_45] : memref<4x1x8xf32, #tpu.memory_space<vmem>>, vector<1x1x8xf32>
    %65 = vector.shape_cast %64 : vector<1x1x8xf32> to vector<1x8xf32>
    %66 = vector.broadcast %65 : vector<1x8xf32> to vector<10x8xf32>
    %67 = arith.addf %63, %66 : vector<10x8xf32>
    %68 = vector.shape_cast %67 : vector<10x8xf32> to vector<1x10x8xf32>
    %c1_46 = arith.constant 1 : index
    %c0_47 = arith.constant 0 : index
    %c0_48 = arith.constant 0 : index
    %69 = vector.load %arg5[%c1_46, %c0_47, %c0_48] : memref<4x32x8xbf16, #tpu.memory_space<vmem>>, vector<1x32x8xbf16>
    %70 = vector.shape_cast %69 : vector<1x32x8xbf16> to vector<32x8xbf16>
    %cst_49 = arith.constant dense<0.000000e+00> : vector<10x8xf32>
    %71 = tpu.matmul %5, %70, %cst_49 {dimension_numbers = #tpu.dot_dimension_numbers<[1], [0], [0], [1], [0, 0, 1, 1], [], []>} : vector<10x32xbf16>, vector<32x8xbf16>, vector<10x8xf32> -> vector<10x8xf32>
    %c1_50 = arith.constant 1 : index
    %c0_51 = arith.constant 0 : index
    %c0_52 = arith.constant 0 : index
    %72 = vector.load %arg6[%c1_50, %c0_51, %c0_52] : memref<4x1x8xf32, #tpu.memory_space<vmem>>, vector<1x1x8xf32>
    %73 = vector.shape_cast %72 : vector<1x1x8xf32> to vector<1x8xf32>
    %74 = vector.broadcast %73 : vector<1x8xf32> to vector<10x8xf32>
    %75 = arith.addf %71, %74 : vector<10x8xf32>
    %76 = vector.shape_cast %75 : vector<10x8xf32> to vector<1x10x8xf32>
    %c1_53 = arith.constant 1 : index
    %c0_54 = arith.constant 0 : index
    %c0_55 = arith.constant 0 : index
    %77 = vector.load %arg7[%c1_53, %c0_54, %c0_55] : memref<4x32x8xbf16, #tpu.memory_space<vmem>>, vector<1x32x8xbf16>
    %78 = vector.shape_cast %77 : vector<1x32x8xbf16> to vector<32x8xbf16>
    %cst_56 = arith.constant dense<0.000000e+00> : vector<10x8xf32>
    %79 = tpu.matmul %5, %78, %cst_56 {dimension_numbers = #tpu.dot_dimension_numbers<[1], [0], [0], [1], [0, 0, 1, 1], [], []>} : vector<10x32xbf16>, vector<32x8xbf16>, vector<10x8xf32> -> vector<10x8xf32>
    %c1_57 = arith.constant 1 : index
    %c0_58 = arith.constant 0 : index
    %c0_59 = arith.constant 0 : index
    %80 = vector.load %arg8[%c1_57, %c0_58, %c0_59] : memref<4x1x8xf32, #tpu.memory_space<vmem>>, vector<1x1x8xf32>
    %81 = vector.shape_cast %80 : vector<1x1x8xf32> to vector<1x8xf32>
    %82 = vector.broadcast %81 : vector<1x8xf32> to vector<10x8xf32>
    %83 = arith.addf %79, %82 : vector<10x8xf32>
    %84 = vector.shape_cast %83 : vector<10x8xf32> to vector<1x10x8xf32>
    %85 = arith.truncf %68 : vector<1x10x8xf32> to vector<1x10x8xbf16>
    %86 = arith.truncf %76 : vector<1x10x8xf32> to vector<1x10x8xbf16>
    "tpu.trace_start"() <{level = 10 : i32, message = "nqd,nkd->nqk"}> : () -> ()
    %cst_60 = arith.constant dense<0.000000e+00> : vector<1x10x10xf32>
    %87 = tpu.matmul %85, %86, %cst_60 {dimension_numbers = #tpu.dot_dimension_numbers<[2], [2], [1], [1], [0, 0, 0, 1, 1, 1], [0], [0]>} : vector<1x10x8xbf16>, vector<1x10x8xbf16>, vector<1x10x10xf32> -> vector<1x10x10xf32>
    "tpu.trace_stop"() : () -> ()
    %cst_61 = arith.constant 0.353553385 : f32
    %88 = vector.broadcast %cst_61 : f32 to vector<1x10x10xf32>
    %89 = arith.mulf %87, %88 : vector<1x10x10xf32>
    %90 = arith.addf %89, %10 : vector<1x10x10xf32>
    %cst_62 = arith.constant dense<0xFF800000> : vector<1x10xf32>
    %91 = vector.multi_reduction <maximumf>, %90, %cst_62 [2] : vector<1x10x10xf32> to vector<1x10xf32>
    %92 = vector.shape_cast %91 : vector<1x10xf32> to vector<1x10x1xf32>
    %93 = vector.broadcast %92 : vector<1x10x1xf32> to vector<1x10x10xf32>
    %94 = arith.subf %90, %93 : vector<1x10x10xf32>
    %95 = math.exp %94 : vector<1x10x10xf32>
    %cst_63 = arith.constant dense<0.000000e+00> : vector<1x10xf32>
    %96 = vector.multi_reduction <add>, %95, %cst_63 [2] : vector<1x10x10xf32> to vector<1x10xf32>
    %97 = vector.shape_cast %96 : vector<1x10xf32> to vector<1x10x1xf32>
    %98 = tpu.reciprocal %97 {approx = true} : vector<1x10x1xf32> -> vector<1x10x1xf32>
    %99 = vector.broadcast %98 : vector<1x10x1xf32> to vector<1x10x10xf32>
    %100 = arith.mulf %95, %99 : vector<1x10x10xf32>
    %101 = arith.truncf %100 : vector<1x10x10xf32> to vector<1x10x10xbf16>
    %102 = arith.truncf %84 : vector<1x10x8xf32> to vector<1x10x8xbf16>
    "tpu.trace_start"() <{level = 10 : i32, message = "nqk,nkd->nqd"}> : () -> ()
    %cst_64 = arith.constant dense<0.000000e+00> : vector<1x10x8xf32>
    %103 = tpu.matmul %101, %102, %cst_64 {dimension_numbers = #tpu.dot_dimension_numbers<[2], [1], [1], [2], [0, 0, 0, 1, 1, 2], [0], [0]>} : vector<1x10x10xbf16>, vector<1x10x8xbf16>, vector<1x10x8xf32> -> vector<1x10x8xf32>
    "tpu.trace_stop"() : () -> ()
    %104 = vector.shape_cast %103 : vector<1x10x8xf32> to vector<10x8xf32>
    %105 = arith.truncf %104 : vector<10x8xf32> to vector<10x8xbf16>
    %c1_65 = arith.constant 1 : index
    %c0_66 = arith.constant 0 : index
    %c0_67 = arith.constant 0 : index
    %106 = vector.load %arg9[%c1_65, %c0_66, %c0_67] : memref<4x8x32xbf16, #tpu.memory_space<vmem>>, vector<1x8x32xbf16>
    %107 = vector.shape_cast %106 : vector<1x8x32xbf16> to vector<8x32xbf16>
    %cst_68 = arith.constant dense<0.000000e+00> : vector<10x32xf32>
    %108 = tpu.matmul %105, %107, %cst_68 {dimension_numbers = #tpu.dot_dimension_numbers<[1], [0], [0], [1], [0, 0, 1, 1], [], []>} : vector<10x8xbf16>, vector<8x32xbf16>, vector<10x32xf32> -> vector<10x32xf32>
    %109 = arith.addf %60, %108 : vector<10x32xf32>
    %c2 = arith.constant 2 : index
    %c0_69 = arith.constant 0 : index
    %c0_70 = arith.constant 0 : index
    %110 = vector.load %arg3[%c2, %c0_69, %c0_70] : memref<4x32x8xbf16, #tpu.memory_space<vmem>>, vector<1x32x8xbf16>
    %111 = vector.shape_cast %110 : vector<1x32x8xbf16> to vector<32x8xbf16>
    %cst_71 = arith.constant dense<0.000000e+00> : vector<10x8xf32>
    %112 = tpu.matmul %2, %111, %cst_71 {dimension_numbers = #tpu.dot_dimension_numbers<[1], [0], [0], [1], [0, 0, 1, 1], [], []>} : vector<10x32xbf16>, vector<32x8xbf16>, vector<10x8xf32> -> vector<10x8xf32>
    %c2_72 = arith.constant 2 : index
    %c0_73 = arith.constant 0 : index
    %c0_74 = arith.constant 0 : index
    %113 = vector.load %arg4[%c2_72, %c0_73, %c0_74] : memref<4x1x8xf32, #tpu.memory_space<vmem>>, vector<1x1x8xf32>
    %114 = vector.shape_cast %113 : vector<1x1x8xf32> to vector<1x8xf32>
    %115 = vector.broadcast %114 : vector<1x8xf32> to vector<10x8xf32>
    %116 = arith.addf %112, %115 : vector<10x8xf32>
    %117 = vector.shape_cast %116 : vector<10x8xf32> to vector<1x10x8xf32>
    %c2_75 = arith.constant 2 : index
    %c0_76 = arith.constant 0 : index
    %c0_77 = arith.constant 0 : index
    %118 = vector.load %arg5[%c2_75, %c0_76, %c0_77] : memref<4x32x8xbf16, #tpu.memory_space<vmem>>, vector<1x32x8xbf16>
    %119 = vector.shape_cast %118 : vector<1x32x8xbf16> to vector<32x8xbf16>
    %cst_78 = arith.constant dense<0.000000e+00> : vector<10x8xf32>
    %120 = tpu.matmul %5, %119, %cst_78 {dimension_numbers = #tpu.dot_dimension_numbers<[1], [0], [0], [1], [0, 0, 1, 1], [], []>} : vector<10x32xbf16>, vector<32x8xbf16>, vector<10x8xf32> -> vector<10x8xf32>
    %c2_79 = arith.constant 2 : index
    %c0_80 = arith.constant 0 : index
    %c0_81 = arith.constant 0 : index
    %121 = vector.load %arg6[%c2_79, %c0_80, %c0_81] : memref<4x1x8xf32, #tpu.memory_space<vmem>>, vector<1x1x8xf32>
    %122 = vector.shape_cast %121 : vector<1x1x8xf32> to vector<1x8xf32>
    %123 = vector.broadcast %122 : vector<1x8xf32> to vector<10x8xf32>
    %124 = arith.addf %120, %123 : vector<10x8xf32>
    %125 = vector.shape_cast %124 : vector<10x8xf32> to vector<1x10x8xf32>
    %c2_82 = arith.constant 2 : index
    %c0_83 = arith.constant 0 : index
    %c0_84 = arith.constant 0 : index
    %126 = vector.load %arg7[%c2_82, %c0_83, %c0_84] : memref<4x32x8xbf16, #tpu.memory_space<vmem>>, vector<1x32x8xbf16>
    %127 = vector.shape_cast %126 : vector<1x32x8xbf16> to vector<32x8xbf16>
    %cst_85 = arith.constant dense<0.000000e+00> : vector<10x8xf32>
    %128 = tpu.matmul %5, %127, %cst_85 {dimension_numbers = #tpu.dot_dimension_numbers<[1], [0], [0], [1], [0, 0, 1, 1], [], []>} : vector<10x32xbf16>, vector<32x8xbf16>, vector<10x8xf32> -> vector<10x8xf32>
    %c2_86 = arith.constant 2 : index
    %c0_87 = arith.constant 0 : index
    %c0_88 = arith.constant 0 : index
    %129 = vector.load %arg8[%c2_86, %c0_87, %c0_88] : memref<4x1x8xf32, #tpu.memory_space<vmem>>, vector<1x1x8xf32>
    %130 = vector.shape_cast %129 : vector<1x1x8xf32> to vector<1x8xf32>
    %131 = vector.broadcast %130 : vector<1x8xf32> to vector<10x8xf32>
    %132 = arith.addf %128, %131 : vector<10x8xf32>
    %133 = vector.shape_cast %132 : vector<10x8xf32> to vector<1x10x8xf32>
    %134 = arith.truncf %117 : vector<1x10x8xf32> to vector<1x10x8xbf16>
    %135 = arith.truncf %125 : vector<1x10x8xf32> to vector<1x10x8xbf16>
    "tpu.trace_start"() <{level = 10 : i32, message = "nqd,nkd->nqk"}> : () -> ()
    %cst_89 = arith.constant dense<0.000000e+00> : vector<1x10x10xf32>
    %136 = tpu.matmul %134, %135, %cst_89 {dimension_numbers = #tpu.dot_dimension_numbers<[2], [2], [1], [1], [0, 0, 0, 1, 1, 1], [0], [0]>} : vector<1x10x8xbf16>, vector<1x10x8xbf16>, vector<1x10x10xf32> -> vector<1x10x10xf32>
    "tpu.trace_stop"() : () -> ()
    %cst_90 = arith.constant 0.353553385 : f32
    %137 = vector.broadcast %cst_90 : f32 to vector<1x10x10xf32>
    %138 = arith.mulf %136, %137 : vector<1x10x10xf32>
    %139 = arith.addf %138, %10 : vector<1x10x10xf32>
    %cst_91 = arith.constant dense<0xFF800000> : vector<1x10xf32>
    %140 = vector.multi_reduction <maximumf>, %139, %cst_91 [2] : vector<1x10x10xf32> to vector<1x10xf32>
    %141 = vector.shape_cast %140 : vector<1x10xf32> to vector<1x10x1xf32>
    %142 = vector.broadcast %141 : vector<1x10x1xf32> to vector<1x10x10xf32>
    %143 = arith.subf %139, %142 : vector<1x10x10xf32>
    %144 = math.exp %143 : vector<1x10x10xf32>
    %cst_92 = arith.constant dense<0.000000e+00> : vector<1x10xf32>
    %145 = vector.multi_reduction <add>, %144, %cst_92 [2] : vector<1x10x10xf32> to vector<1x10xf32>
    %146 = vector.shape_cast %145 : vector<1x10xf32> to vector<1x10x1xf32>
    %147 = tpu.reciprocal %146 {approx = true} : vector<1x10x1xf32> -> vector<1x10x1xf32>
    %148 = vector.broadcast %147 : vector<1x10x1xf32> to vector<1x10x10xf32>
    %149 = arith.mulf %144, %148 : vector<1x10x10xf32>
    %150 = arith.truncf %149 : vector<1x10x10xf32> to vector<1x10x10xbf16>
    %151 = arith.truncf %133 : vector<1x10x8xf32> to vector<1x10x8xbf16>
    "tpu.trace_start"() <{level = 10 : i32, message = "nqk,nkd->nqd"}> : () -> ()
    %cst_93 = arith.constant dense<0.000000e+00> : vector<1x10x8xf32>
    %152 = tpu.matmul %150, %151, %cst_93 {dimension_numbers = #tpu.dot_dimension_numbers<[2], [1], [1], [2], [0, 0, 0, 1, 1, 2], [0], [0]>} : vector<1x10x10xbf16>, vector<1x10x8xbf16>, vector<1x10x8xf32> -> vector<1x10x8xf32>
    "tpu.trace_stop"() : () -> ()
    %153 = vector.shape_cast %152 : vector<1x10x8xf32> to vector<10x8xf32>
    %154 = arith.truncf %153 : vector<10x8xf32> to vector<10x8xbf16>
    %c2_94 = arith.constant 2 : index
    %c0_95 = arith.constant 0 : index
    %c0_96 = arith.constant 0 : index
    %155 = vector.load %arg9[%c2_94, %c0_95, %c0_96] : memref<4x8x32xbf16, #tpu.memory_space<vmem>>, vector<1x8x32xbf16>
    %156 = vector.shape_cast %155 : vector<1x8x32xbf16> to vector<8x32xbf16>
    %cst_97 = arith.constant dense<0.000000e+00> : vector<10x32xf32>
    %157 = tpu.matmul %154, %156, %cst_97 {dimension_numbers = #tpu.dot_dimension_numbers<[1], [0], [0], [1], [0, 0, 1, 1], [], []>} : vector<10x8xbf16>, vector<8x32xbf16>, vector<10x32xf32> -> vector<10x32xf32>
    %158 = arith.addf %109, %157 : vector<10x32xf32>
    %c3 = arith.constant 3 : index
    %c0_98 = arith.constant 0 : index
    %c0_99 = arith.constant 0 : index
    %159 = vector.load %arg3[%c3, %c0_98, %c0_99] : memref<4x32x8xbf16, #tpu.memory_space<vmem>>, vector<1x32x8xbf16>
    %160 = vector.shape_cast %159 : vector<1x32x8xbf16> to vector<32x8xbf16>
    %cst_100 = arith.constant dense<0.000000e+00> : vector<10x8xf32>
    %161 = tpu.matmul %2, %160, %cst_100 {dimension_numbers = #tpu.dot_dimension_numbers<[1], [0], [0], [1], [0, 0, 1, 1], [], []>} : vector<10x32xbf16>, vector<32x8xbf16>, vector<10x8xf32> -> vector<10x8xf32>
    %c3_101 = arith.constant 3 : index
    %c0_102 = arith.constant 0 : index
    %c0_103 = arith.constant 0 : index
    %162 = vector.load %arg4[%c3_101, %c0_102, %c0_103] : memref<4x1x8xf32, #tpu.memory_space<vmem>>, vector<1x1x8xf32>
    %163 = vector.shape_cast %162 : vector<1x1x8xf32> to vector<1x8xf32>
    %164 = vector.broadcast %163 : vector<1x8xf32> to vector<10x8xf32>
    %165 = arith.addf %161, %164 : vector<10x8xf32>
    %166 = vector.shape_cast %165 : vector<10x8xf32> to vector<1x10x8xf32>
    %c3_104 = arith.constant 3 : index
    %c0_105 = arith.constant 0 : index
    %c0_106 = arith.constant 0 : index
    %167 = vector.load %arg5[%c3_104, %c0_105, %c0_106] : memref<4x32x8xbf16, #tpu.memory_space<vmem>>, vector<1x32x8xbf16>
    %168 = vector.shape_cast %167 : vector<1x32x8xbf16> to vector<32x8xbf16>
    %cst_107 = arith.constant dense<0.000000e+00> : vector<10x8xf32>
    %169 = tpu.matmul %5, %168, %cst_107 {dimension_numbers = #tpu.dot_dimension_numbers<[1], [0], [0], [1], [0, 0, 1, 1], [], []>} : vector<10x32xbf16>, vector<32x8xbf16>, vector<10x8xf32> -> vector<10x8xf32>
    %c3_108 = arith.constant 3 : index
    %c0_109 = arith.constant 0 : index
    %c0_110 = arith.constant 0 : index
    %170 = vector.load %arg6[%c3_108, %c0_109, %c0_110] : memref<4x1x8xf32, #tpu.memory_space<vmem>>, vector<1x1x8xf32>
    %171 = vector.shape_cast %170 : vector<1x1x8xf32> to vector<1x8xf32>
    %172 = vector.broadcast %171 : vector<1x8xf32> to vector<10x8xf32>
    %173 = arith.addf %169, %172 : vector<10x8xf32>
    %174 = vector.shape_cast %173 : vector<10x8xf32> to vector<1x10x8xf32>
    %c3_111 = arith.constant 3 : index
    %c0_112 = arith.constant 0 : index
    %c0_113 = arith.constant 0 : index
    %175 = vector.load %arg7[%c3_111, %c0_112, %c0_113] : memref<4x32x8xbf16, #tpu.memory_space<vmem>>, vector<1x32x8xbf16>
    %176 = vector.shape_cast %175 : vector<1x32x8xbf16> to vector<32x8xbf16>
    %cst_114 = arith.constant dense<0.000000e+00> : vector<10x8xf32>
    %177 = tpu.matmul %5, %176, %cst_114 {dimension_numbers = #tpu.dot_dimension_numbers<[1], [0], [0], [1], [0, 0, 1, 1], [], []>} : vector<10x32xbf16>, vector<32x8xbf16>, vector<10x8xf32> -> vector<10x8xf32>
    %c3_115 = arith.constant 3 : index
    %c0_116 = arith.constant 0 : index
    %c0_117 = arith.constant 0 : index
    %178 = vector.load %arg8[%c3_115, %c0_116, %c0_117] : memref<4x1x8xf32, #tpu.memory_space<vmem>>, vector<1x1x8xf32>
    %179 = vector.shape_cast %178 : vector<1x1x8xf32> to vector<1x8xf32>
    %180 = vector.broadcast %179 : vector<1x8xf32> to vector<10x8xf32>
    %181 = arith.addf %177, %180 : vector<10x8xf32>
    %182 = vector.shape_cast %181 : vector<10x8xf32> to vector<1x10x8xf32>
    %183 = arith.truncf %166 : vector<1x10x8xf32> to vector<1x10x8xbf16>
    %184 = arith.truncf %174 : vector<1x10x8xf32> to vector<1x10x8xbf16>
    "tpu.trace_start"() <{level = 10 : i32, message = "nqd,nkd->nqk"}> : () -> ()
    %cst_118 = arith.constant dense<0.000000e+00> : vector<1x10x10xf32>
    %185 = tpu.matmul %183, %184, %cst_118 {dimension_numbers = #tpu.dot_dimension_numbers<[2], [2], [1], [1], [0, 0, 0, 1, 1, 1], [0], [0]>} : vector<1x10x8xbf16>, vector<1x10x8xbf16>, vector<1x10x10xf32> -> vector<1x10x10xf32>
    "tpu.trace_stop"() : () -> ()
    %cst_119 = arith.constant 0.353553385 : f32
    %186 = vector.broadcast %cst_119 : f32 to vector<1x10x10xf32>
    %187 = arith.mulf %185, %186 : vector<1x10x10xf32>
    %188 = arith.addf %187, %10 : vector<1x10x10xf32>
    %cst_120 = arith.constant dense<0xFF800000> : vector<1x10xf32>
    %189 = vector.multi_reduction <maximumf>, %188, %cst_120 [2] : vector<1x10x10xf32> to vector<1x10xf32>
    %190 = vector.shape_cast %189 : vector<1x10xf32> to vector<1x10x1xf32>
    %191 = vector.broadcast %190 : vector<1x10x1xf32> to vector<1x10x10xf32>
    %192 = arith.subf %188, %191 : vector<1x10x10xf32>
    %193 = math.exp %192 : vector<1x10x10xf32>
    %cst_121 = arith.constant dense<0.000000e+00> : vector<1x10xf32>
    %194 = vector.multi_reduction <add>, %193, %cst_121 [2] : vector<1x10x10xf32> to vector<1x10xf32>
    %195 = vector.shape_cast %194 : vector<1x10xf32> to vector<1x10x1xf32>
    %196 = tpu.reciprocal %195 {approx = true} : vector<1x10x1xf32> -> vector<1x10x1xf32>
    %197 = vector.broadcast %196 : vector<1x10x1xf32> to vector<1x10x10xf32>
    %198 = arith.mulf %193, %197 : vector<1x10x10xf32>
    %199 = arith.truncf %198 : vector<1x10x10xf32> to vector<1x10x10xbf16>
    %200 = arith.truncf %182 : vector<1x10x8xf32> to vector<1x10x8xbf16>
    "tpu.trace_start"() <{level = 10 : i32, message = "nqk,nkd->nqd"}> : () -> ()
    %cst_122 = arith.constant dense<0.000000e+00> : vector<1x10x8xf32>
    %201 = tpu.matmul %199, %200, %cst_122 {dimension_numbers = #tpu.dot_dimension_numbers<[2], [1], [1], [2], [0, 0, 0, 1, 1, 2], [0], [0]>} : vector<1x10x10xbf16>, vector<1x10x8xbf16>, vector<1x10x8xf32> -> vector<1x10x8xf32>
    "tpu.trace_stop"() : () -> ()
    %202 = vector.shape_cast %201 : vector<1x10x8xf32> to vector<10x8xf32>
    %203 = arith.truncf %202 : vector<10x8xf32> to vector<10x8xbf16>
    %c3_123 = arith.constant 3 : index
    %c0_124 = arith.constant 0 : index
    %c0_125 = arith.constant 0 : index
    %204 = vector.load %arg9[%c3_123, %c0_124, %c0_125] : memref<4x8x32xbf16, #tpu.memory_space<vmem>>, vector<1x8x32xbf16>
    %205 = vector.shape_cast %204 : vector<1x8x32xbf16> to vector<8x32xbf16>
    %cst_126 = arith.constant dense<0.000000e+00> : vector<10x32xf32>
    %206 = tpu.matmul %203, %205, %cst_126 {dimension_numbers = #tpu.dot_dimension_numbers<[1], [0], [0], [1], [0, 0, 1, 1], [], []>} : vector<10x8xbf16>, vector<8x32xbf16>, vector<10x32xf32> -> vector<10x32xf32>
    %207 = arith.addf %158, %206 : vector<10x32xf32>
    %c0_127 = arith.constant 0 : index
    %c0_128 = arith.constant 0 : index
    %208 = vector.load %arg10[%c0_127, %c0_128] : memref<1x32xf32, #tpu.memory_space<vmem>>, vector<1x32xf32>
    %209 = vector.broadcast %208 : vector<1x32xf32> to vector<10x32xf32>
    %210 = arith.addf %207, %209 : vector<10x32xf32>
    %211 = vector.shape_cast %0 : vector<1x10x32xf32> to vector<10x32xf32>
    %212 = arith.addf %211, %210 : vector<10x32xf32>
    %cst_129 = arith.constant dense<0.000000e+00> : vector<10xf32>
    %213 = vector.multi_reduction <add>, %212, %cst_129 [1] : vector<10x32xf32> to vector<10xf32>
    %214 = vector.shape_cast %213 : vector<10xf32> to vector<10x1xf32>
    %cst_130 = arith.constant 3.200000e+01 : f32
    %215 = vector.broadcast %cst_130 : f32 to vector<10x1xf32>
    %216 = arith.divf %214, %215 : vector<10x1xf32>
    %217 = vector.broadcast %216 : vector<10x1xf32> to vector<10x32xf32>
    %218 = arith.subf %212, %217 : vector<10x32xf32>
    %219 = arith.mulf %218, %218 : vector<10x32xf32>
    %cst_131 = arith.constant dense<0.000000e+00> : vector<10xf32>
    %220 = vector.multi_reduction <add>, %219, %cst_131 [1] : vector<10x32xf32> to vector<10xf32>
    %221 = vector.shape_cast %220 : vector<10xf32> to vector<10x1xf32>
    %cst_132 = arith.constant 3.200000e+01 : f32
    %222 = vector.broadcast %cst_132 : f32 to vector<10x1xf32>
    %223 = arith.divf %221, %222 : vector<10x1xf32>
    %224 = vector.broadcast %216 : vector<10x1xf32> to vector<10x32xf32>
    %225 = arith.subf %212, %224 : vector<10x32xf32>
    %cst_133 = arith.constant 9.99999974E-6 : f32
    %226 = vector.broadcast %cst_133 : f32 to vector<10x1xf32>
    %227 = arith.addf %223, %226 : vector<10x1xf32>
    %228 = math.rsqrt %227 : vector<10x1xf32>
    %229 = vector.broadcast %228 : vector<10x1xf32> to vector<10x32xf32>
    %230 = arith.mulf %225, %229 : vector<10x32xf32>
    %c0_134 = arith.constant 0 : index
    %c0_135 = arith.constant 0 : index
    %231 = vector.load %arg13[%c0_134, %c0_135] : memref<1x32xf32, #tpu.memory_space<vmem>>, vector<1x32xf32>
    %232 = vector.broadcast %231 : vector<1x32xf32> to vector<10x32xf32>
    %233 = arith.mulf %230, %232 : vector<10x32xf32>
    %c0_136 = arith.constant 0 : index
    %c0_137 = arith.constant 0 : index
    %234 = vector.load %arg14[%c0_136, %c0_137] : memref<1x32xf32, #tpu.memory_space<vmem>>, vector<1x32xf32>
    %235 = vector.broadcast %234 : vector<1x32xf32> to vector<10x32xf32>
    %236 = arith.addf %233, %235 : vector<10x32xf32>
    %237 = vector.shape_cast %236 : vector<10x32xf32> to vector<1x10x32xf32>
    %c0_138 = arith.constant 0 : index
    %c0_139 = arith.constant 0 : index
    %c0_140 = arith.constant 0 : index
    %238 = vector.load %arg15[%c0_138, %c0_139, %c0_140] : memref<1x10x32xf32, #tpu.memory_space<vmem>>, vector<1x10x32xf32>
    tpu.vector_store %arg15[%c0_138, %c0_139, %c0_140], %237 {strides = array<i32>} : memref<1x10x32xf32, #tpu.memory_space<vmem>>, vector<1x10x32xf32>,
    return
  }
  func.func @transform_0(%arg0: i32) -> (i32, i32, i32) {
    %c0_i32 = arith.constant 0 : i32
    %c0_i32_0 = arith.constant 0 : i32
    %c0_i32_1 = arith.constant 0 : i32
    return %arg0, %c0_i32, %c0_i32_0 : i32, i32, i32
  }
  func.func @transform_1(%arg0: i32) -> (i32, i32, i32) {
    %c0_i32 = arith.constant 0 : i32
    %c0_i32_0 = arith.constant 0 : i32
    %c0_i32_1 = arith.constant 0 : i32
    return %arg0, %c0_i32, %c0_i32_0 : i32, i32, i32
  }
  func.func @transform_2(%arg0: i32) -> (i32, i32, i32) {
    %c0_i32 = arith.constant 0 : i32
    %c0_i32_0 = arith.constant 0 : i32
    %c0_i32_1 = arith.constant 0 : i32
    %c0_i32_2 = arith.constant 0 : i32
    return %c0_i32, %c0_i32_0, %c0_i32_1 : i32, i32, i32
  }
  func.func @transform_3(%arg0: i32) -> (i32, i32, i32) {
    %c0_i32 = arith.constant 0 : i32
    %c0_i32_0 = arith.constant 0 : i32
    %c0_i32_1 = arith.constant 0 : i32
    %c0_i32_2 = arith.constant 0 : i32
    return %c0_i32, %c0_i32_0, %c0_i32_1 : i32, i32, i32
  }
  func.func @transform_4(%arg0: i32) -> (i32, i32, i32) {
    %c0_i32 = arith.constant 0 : i32
    %c0_i32_0 = arith.constant 0 : i32
    %c0_i32_1 = arith.constant 0 : i32
    %c0_i32_2 = arith.constant 0 : i32
    return %c0_i32, %c0_i32_0, %c0_i32_1 : i32, i32, i32
  }
  func.func @transform_5(%arg0: i32) -> (i32, i32, i32) {
    %c0_i32 = arith.constant 0 : i32
    %c0_i32_0 = arith.constant 0 : i32
    %c0_i32_1 = arith.constant 0 : i32
    %c0_i32_2 = arith.constant 0 : i32
    return %c0_i32, %c0_i32_0, %c0_i32_1 : i32, i32, i32
  }
  func.func @transform_6(%arg0: i32) -> (i32, i32, i32) {
    %c0_i32 = arith.constant 0 : i32
    %c0_i32_0 = arith.constant 0 : i32
    %c0_i32_1 = arith.constant 0 : i32
    %c0_i32_2 = arith.constant 0 : i32
    return %c0_i32, %c0_i32_0, %c0_i32_1 : i32, i32, i32
  }
  func.func @transform_7(%arg0: i32) -> (i32, i32, i32) {
    %c0_i32 = arith.constant 0 : i32
    %c0_i32_0 = arith.constant 0 : i32
    %c0_i32_1 = arith.constant 0 : i32
    %c0_i32_2 = arith.constant 0 : i32
    return %c0_i32, %c0_i32_0, %c0_i32_1 : i32, i32, i32
  }
  func.func @transform_8(%arg0: i32) -> (i32, i32, i32) {
    %c0_i32 = arith.constant 0 : i32
    %c0_i32_0 = arith.constant 0 : i32
    %c0_i32_1 = arith.constant 0 : i32
    %c0_i32_2 = arith.constant 0 : i32
    return %c0_i32, %c0_i32_0, %c0_i32_1 : i32, i32, i32
  }
  func.func @transform_9(%arg0: i32) -> (i32, i32) {
    %c0_i32 = arith.constant 0 : i32
    %c0_i32_0 = arith.constant 0 : i32
    %c0_i32_1 = arith.constant 0 : i32
    return %c0_i32, %c0_i32_0 : i32, i32
  }
  func.func @transform_10(%arg0: i32) -> (i32, i32) {
    %c0_i32 = arith.constant 0 : i32
    %c0_i32_0 = arith.constant 0 : i32
    %c0_i32_1 = arith.constant 0 : i32
    return %c0_i32, %c0_i32_0 : i32, i32
  }
  func.func @transform_11(%arg0: i32) -> (i32, i32, i32) {
    %c0_i32 = arith.constant 0 : i32
    %c0_i32_0 = arith.constant 0 : i32
    %c0_i32_1 = arith.constant 0 : i32
    return %arg0, %c0_i32, %c0_i32_0 : i32, i32, i32
  }
  func.func @transform_12(%arg0: i32) -> (i32, i32) {
    %c0_i32 = arith.constant 0 : i32
    %c0_i32_0 = arith.constant 0 : i32
    %c0_i32_1 = arith.constant 0 : i32
    return %c0_i32, %c0_i32_0 : i32, i32
  }
  func.func @transform_13(%arg0: i32) -> (i32, i32) {
    %c0_i32 = arith.constant 0 : i32
    %c0_i32_0 = arith.constant 0 : i32
    %c0_i32_1 = arith.constant 0 : i32
    return %c0_i32, %c0_i32_0 : i32, i32
  }
  func.func @transform_14(%arg0: i32) -> (i32, i32, i32) {
    %c0_i32 = arith.constant 0 : i32
    %c0_i32_0 = arith.constant 0 : i32
    %c0_i32_1 = arith.constant 0 : i32
    return %arg0, %c0_i32, %c0_i32_0 : i32, i32, i32
  }
}

module attributes {stable_mosaic.version = 11 : i64} {
  func.func @_ffn_ln_kernel(%arg0: i32, %arg1: memref<20x32xf32, #tpu.memory_space<vmem>>, %arg2: memref<32x64xbf16, #tpu.memory_space<vmem>>, %arg3: memref<1x64xf32, #tpu.memory_space<vmem>>, %arg4: memref<64x32xbf16, #tpu.memory_space<vmem>>, %arg5: memref<1x32xf32, #tpu.memory_space<vmem>>, %arg6: memref<1x32xf32, #tpu.memory_space<vmem>>, %arg7: memref<1x32xf32, #tpu.memory_space<vmem>>, %arg8: memref<20x32xf32, #tpu.memory_space<vmem>>) attributes {dimension_semantics = [#tpu.dimension_semantics<parallel>], iteration_bounds = array<i64: 1>, scalar_prefetch = 0 : i64, scratch_operands = 0 : i64, tpu.core_type = #tpu.core_type<tc>, window_params = [{transform_indices = @transform_0, window_bounds = array<i64: 20, 32>}, {pipeline_mode = #tpu.pipeline_mode<synchronous>, transform_indices = @transform_1, window_bounds = array<i64: 32, 64>}, {pipeline_mode = #tpu.pipeline_mode<synchronous>, transform_indices = @transform_2, window_bounds = array<i64: 1, 64>}, {pipeline_mode = #tpu.pipeline_mode<synchronous>, transform_indices = @transform_3, window_bounds = array<i64: 64, 32>}, {pipeline_mode = #tpu.pipeline_mode<synchronous>, transform_indices = @transform_4, window_bounds = array<i64: 1, 32>}, {pipeline_mode = #tpu.pipeline_mode<synchronous>, transform_indices = @transform_5, window_bounds = array<i64: 1, 32>}, {pipeline_mode = #tpu.pipeline_mode<synchronous>, transform_indices = @transform_6, window_bounds = array<i64: 1, 32>}, {transform_indices = @transform_7, window_bounds = array<i64: 20, 32>}]} {
    %c0 = arith.constant 0 : index
    %c0_0 = arith.constant 0 : index
    %0 = vector.load %arg1[%c0, %c0_0] : memref<20x32xf32, #tpu.memory_space<vmem>>, vector<20x32xf32>
    %1 = arith.truncf %0 : vector<20x32xf32> to vector<20x32xbf16>
    %c0_1 = arith.constant 0 : index
    %c0_2 = arith.constant 0 : index
    %2 = vector.load %arg2[%c0_1, %c0_2] : memref<32x64xbf16, #tpu.memory_space<vmem>>, vector<32x64xbf16>
    %cst = arith.constant dense<0.000000e+00> : vector<20x64xf32>
    %3 = tpu.matmul %1, %2, %cst {dimension_numbers = #tpu.dot_dimension_numbers<[1], [0], [0], [1], [0, 0, 1, 1], [], []>} : vector<20x32xbf16>, vector<32x64xbf16>, vector<20x64xf32> -> vector<20x64xf32>
    %c0_3 = arith.constant 0 : index
    %c0_4 = arith.constant 0 : index
    %4 = vector.load %arg3[%c0_3, %c0_4] : memref<1x64xf32, #tpu.memory_space<vmem>>, vector<1x64xf32>
    %5 = vector.broadcast %4 : vector<1x64xf32> to vector<20x64xf32>
    %6 = arith.addf %3, %5 : vector<20x64xf32>
    %cst_5 = arith.constant 0.000000e+00 : f32
    %7 = vector.broadcast %cst_5 : f32 to vector<20x64xf32>
    %8 = arith.maximumf %6, %7 : vector<20x64xf32>
    %9 = arith.truncf %8 : vector<20x64xf32> to vector<20x64xbf16>
    %c0_6 = arith.constant 0 : index
    %c0_7 = arith.constant 0 : index
    %10 = vector.load %arg4[%c0_6, %c0_7] : memref<64x32xbf16, #tpu.memory_space<vmem>>, vector<64x32xbf16>
    %cst_8 = arith.constant dense<0.000000e+00> : vector<20x32xf32>
    %11 = tpu.matmul %9, %10, %cst_8 {dimension_numbers = #tpu.dot_dimension_numbers<[1], [0], [0], [1], [0, 0, 1, 1], [], []>} : vector<20x64xbf16>, vector<64x32xbf16>, vector<20x32xf32> -> vector<20x32xf32>
    %c0_9 = arith.constant 0 : index
    %c0_10 = arith.constant 0 : index
    %12 = vector.load %arg5[%c0_9, %c0_10] : memref<1x32xf32, #tpu.memory_space<vmem>>, vector<1x32xf32>
    %13 = vector.broadcast %12 : vector<1x32xf32> to vector<20x32xf32>
    %14 = arith.addf %11, %13 : vector<20x32xf32>
    %15 = arith.addf %0, %14 : vector<20x32xf32>
    %cst_11 = arith.constant dense<0.000000e+00> : vector<20xf32>
    %16 = vector.multi_reduction <add>, %15, %cst_11 [1] : vector<20x32xf32> to vector<20xf32>
    %17 = vector.shape_cast %16 : vector<20xf32> to vector<20x1xf32>
    %cst_12 = arith.constant 3.200000e+01 : f32
    %18 = vector.broadcast %cst_12 : f32 to vector<20x1xf32>
    %19 = arith.divf %17, %18 : vector<20x1xf32>
    %20 = vector.broadcast %19 : vector<20x1xf32> to vector<20x32xf32>
    %21 = arith.subf %15, %20 : vector<20x32xf32>
    %22 = arith.mulf %21, %21 : vector<20x32xf32>
    %cst_13 = arith.constant dense<0.000000e+00> : vector<20xf32>
    %23 = vector.multi_reduction <add>, %22, %cst_13 [1] : vector<20x32xf32> to vector<20xf32>
    %24 = vector.shape_cast %23 : vector<20xf32> to vector<20x1xf32>
    %cst_14 = arith.constant 3.200000e+01 : f32
    %25 = vector.broadcast %cst_14 : f32 to vector<20x1xf32>
    %26 = arith.divf %24, %25 : vector<20x1xf32>
    %27 = vector.broadcast %19 : vector<20x1xf32> to vector<20x32xf32>
    %28 = arith.subf %15, %27 : vector<20x32xf32>
    %cst_15 = arith.constant 9.99999974E-6 : f32
    %29 = vector.broadcast %cst_15 : f32 to vector<20x1xf32>
    %30 = arith.addf %26, %29 : vector<20x1xf32>
    %31 = math.rsqrt %30 : vector<20x1xf32>
    %32 = vector.broadcast %31 : vector<20x1xf32> to vector<20x32xf32>
    %33 = arith.mulf %28, %32 : vector<20x32xf32>
    %c0_16 = arith.constant 0 : index
    %c0_17 = arith.constant 0 : index
    %34 = vector.load %arg6[%c0_16, %c0_17] : memref<1x32xf32, #tpu.memory_space<vmem>>, vector<1x32xf32>
    %35 = vector.broadcast %34 : vector<1x32xf32> to vector<20x32xf32>
    %36 = arith.mulf %33, %35 : vector<20x32xf32>
    %c0_18 = arith.constant 0 : index
    %c0_19 = arith.constant 0 : index
    %37 = vector.load %arg7[%c0_18, %c0_19] : memref<1x32xf32, #tpu.memory_space<vmem>>, vector<1x32xf32>
    %38 = vector.broadcast %37 : vector<1x32xf32> to vector<20x32xf32>
    %39 = arith.addf %36, %38 : vector<20x32xf32>
    %c0_20 = arith.constant 0 : index
    %c0_21 = arith.constant 0 : index
    %40 = vector.load %arg8[%c0_20, %c0_21] : memref<20x32xf32, #tpu.memory_space<vmem>>, vector<20x32xf32>
    tpu.vector_store %arg8[%c0_20, %c0_21], %39 {strides = array<i32>} : memref<20x32xf32, #tpu.memory_space<vmem>>, vector<20x32xf32>,
    return
  }
  func.func @transform_0(%arg0: i32) -> (i32, i32) {
    %c0_i32 = arith.constant 0 : i32
    %c0_i32_0 = arith.constant 0 : i32
    return %arg0, %c0_i32 : i32, i32
  }
  func.func @transform_1(%arg0: i32) -> (i32, i32) {
    %c0_i32 = arith.constant 0 : i32
    %c0_i32_0 = arith.constant 0 : i32
    %c0_i32_1 = arith.constant 0 : i32
    return %c0_i32, %c0_i32_0 : i32, i32
  }
  func.func @transform_2(%arg0: i32) -> (i32, i32) {
    %c0_i32 = arith.constant 0 : i32
    %c0_i32_0 = arith.constant 0 : i32
    %c0_i32_1 = arith.constant 0 : i32
    return %c0_i32, %c0_i32_0 : i32, i32
  }
  func.func @transform_3(%arg0: i32) -> (i32, i32) {
    %c0_i32 = arith.constant 0 : i32
    %c0_i32_0 = arith.constant 0 : i32
    %c0_i32_1 = arith.constant 0 : i32
    return %c0_i32, %c0_i32_0 : i32, i32
  }
  func.func @transform_4(%arg0: i32) -> (i32, i32) {
    %c0_i32 = arith.constant 0 : i32
    %c0_i32_0 = arith.constant 0 : i32
    %c0_i32_1 = arith.constant 0 : i32
    return %c0_i32, %c0_i32_0 : i32, i32
  }
  func.func @transform_5(%arg0: i32) -> (i32, i32) {
    %c0_i32 = arith.constant 0 : i32
    %c0_i32_0 = arith.constant 0 : i32
    %c0_i32_1 = arith.constant 0 : i32
    return %c0_i32, %c0_i32_0 : i32, i32
  }
  func.func @transform_6(%arg0: i32) -> (i32, i32) {
    %c0_i32 = arith.constant 0 : i32
    %c0_i32_0 = arith.constant 0 : i32
    %c0_i32_1 = arith.constant 0 : i32
    return %c0_i32, %c0_i32_0 : i32, i32
  }
  func.func @transform_7(%arg0: i32) -> (i32, i32) {
    %c0_i32 = arith.constant 0 : i32
    %c0_i32_0 = arith.constant 0 : i32
    return %arg0, %c0_i32 : i32, i32
  }
}

module attributes {stable_mosaic.version = 11 : i64} {
  func.func @_ln_kernel(%arg0: i32, %arg1: memref<20x32xf32, #tpu.memory_space<vmem>>, %arg2: memref<1x32xf32, #tpu.memory_space<vmem>>, %arg3: memref<1x32xf32, #tpu.memory_space<vmem>>, %arg4: memref<20x32xf32, #tpu.memory_space<vmem>>) attributes {dimension_semantics = [#tpu.dimension_semantics<parallel>], iteration_bounds = array<i64: 1>, scalar_prefetch = 0 : i64, scratch_operands = 0 : i64, tpu.core_type = #tpu.core_type<tc>, window_params = [{transform_indices = @transform_0, window_bounds = array<i64: 20, 32>}, {pipeline_mode = #tpu.pipeline_mode<synchronous>, transform_indices = @transform_1, window_bounds = array<i64: 1, 32>}, {pipeline_mode = #tpu.pipeline_mode<synchronous>, transform_indices = @transform_2, window_bounds = array<i64: 1, 32>}, {transform_indices = @transform_3, window_bounds = array<i64: 20, 32>}]} {
    %c0 = arith.constant 0 : index
    %c0_0 = arith.constant 0 : index
    %0 = vector.load %arg1[%c0, %c0_0] : memref<20x32xf32, #tpu.memory_space<vmem>>, vector<20x32xf32>
    %cst = arith.constant dense<0.000000e+00> : vector<20xf32>
    %1 = vector.multi_reduction <add>, %0, %cst [1] : vector<20x32xf32> to vector<20xf32>
    %2 = vector.shape_cast %1 : vector<20xf32> to vector<20x1xf32>
    %cst_1 = arith.constant 3.200000e+01 : f32
    %3 = vector.broadcast %cst_1 : f32 to vector<20x1xf32>
    %4 = arith.divf %2, %3 : vector<20x1xf32>
    %5 = vector.broadcast %4 : vector<20x1xf32> to vector<20x32xf32>
    %6 = arith.subf %0, %5 : vector<20x32xf32>
    %7 = arith.mulf %6, %6 : vector<20x32xf32>
    %cst_2 = arith.constant dense<0.000000e+00> : vector<20xf32>
    %8 = vector.multi_reduction <add>, %7, %cst_2 [1] : vector<20x32xf32> to vector<20xf32>
    %9 = vector.shape_cast %8 : vector<20xf32> to vector<20x1xf32>
    %cst_3 = arith.constant 3.200000e+01 : f32
    %10 = vector.broadcast %cst_3 : f32 to vector<20x1xf32>
    %11 = arith.divf %9, %10 : vector<20x1xf32>
    %12 = vector.broadcast %4 : vector<20x1xf32> to vector<20x32xf32>
    %13 = arith.subf %0, %12 : vector<20x32xf32>
    %cst_4 = arith.constant 9.99999974E-6 : f32
    %14 = vector.broadcast %cst_4 : f32 to vector<20x1xf32>
    %15 = arith.addf %11, %14 : vector<20x1xf32>
    %16 = math.rsqrt %15 : vector<20x1xf32>
    %17 = vector.broadcast %16 : vector<20x1xf32> to vector<20x32xf32>
    %18 = arith.mulf %13, %17 : vector<20x32xf32>
    %c0_5 = arith.constant 0 : index
    %c0_6 = arith.constant 0 : index
    %19 = vector.load %arg2[%c0_5, %c0_6] : memref<1x32xf32, #tpu.memory_space<vmem>>, vector<1x32xf32>
    %20 = vector.broadcast %19 : vector<1x32xf32> to vector<20x32xf32>
    %21 = arith.mulf %18, %20 : vector<20x32xf32>
    %c0_7 = arith.constant 0 : index
    %c0_8 = arith.constant 0 : index
    %22 = vector.load %arg3[%c0_7, %c0_8] : memref<1x32xf32, #tpu.memory_space<vmem>>, vector<1x32xf32>
    %23 = vector.broadcast %22 : vector<1x32xf32> to vector<20x32xf32>
    %24 = arith.addf %21, %23 : vector<20x32xf32>
    %c0_9 = arith.constant 0 : index
    %c0_10 = arith.constant 0 : index
    %25 = vector.load %arg4[%c0_9, %c0_10] : memref<20x32xf32, #tpu.memory_space<vmem>>, vector<20x32xf32>
    tpu.vector_store %arg4[%c0_9, %c0_10], %24 {strides = array<i32>} : memref<20x32xf32, #tpu.memory_space<vmem>>, vector<20x32xf32>,
    return
  }
  func.func @transform_0(%arg0: i32) -> (i32, i32) {
    %c0_i32 = arith.constant 0 : i32
    %c0_i32_0 = arith.constant 0 : i32
    return %arg0, %c0_i32 : i32, i32
  }
  func.func @transform_1(%arg0: i32) -> (i32, i32) {
    %c0_i32 = arith.constant 0 : i32
    %c0_i32_0 = arith.constant 0 : i32
    %c0_i32_1 = arith.constant 0 : i32
    return %c0_i32, %c0_i32_0 : i32, i32
  }
  func.func @transform_2(%arg0: i32) -> (i32, i32) {
    %c0_i32 = arith.constant 0 : i32
    %c0_i32_0 = arith.constant 0 : i32
    %c0_i32_1 = arith.constant 0 : i32
    return %c0_i32, %c0_i32_0 : i32, i32
  }
  func.func @transform_3(%arg0: i32) -> (i32, i32) {
    %c0_i32 = arith.constant 0 : i32
    %c0_i32_0 = arith.constant 0 : i32
    return %arg0, %c0_i32 : i32, i32
  }
}

module attributes {stable_mosaic.version = 11 : i64} {
  func.func @_mha_block_kernel(%arg0: i32, %arg1: memref<1x8x32xf32, #tpu.memory_space<vmem>>, %arg2: memref<1x8x32xf32, #tpu.memory_space<vmem>>, %arg3: memref<4x32x8xbf16, #tpu.memory_space<vmem>>, %arg4: memref<4x1x8xf32, #tpu.memory_space<vmem>>, %arg5: memref<4x32x8xbf16, #tpu.memory_space<vmem>>, %arg6: memref<4x1x8xf32, #tpu.memory_space<vmem>>, %arg7: memref<4x32x8xbf16, #tpu.memory_space<vmem>>, %arg8: memref<4x1x8xf32, #tpu.memory_space<vmem>>, %arg9: memref<4x8x32xbf16, #tpu.memory_space<vmem>>, %arg10: memref<1x32xf32, #tpu.memory_space<vmem>>, %arg11: memref<8x8xf32, #tpu.memory_space<vmem>>, %arg12: memref<1x1x8xf32, #tpu.memory_space<vmem>>, %arg13: memref<1x32xf32, #tpu.memory_space<vmem>>, %arg14: memref<1x32xf32, #tpu.memory_space<vmem>>, %arg15: memref<1x8x32xf32, #tpu.memory_space<vmem>>) attributes {dimension_semantics = [#tpu.dimension_semantics<parallel>], iteration_bounds = array<i64: 2>, scalar_prefetch = 0 : i64, scratch_operands = 0 : i64, tpu.core_type = #tpu.core_type<tc>, window_params = [{transform_indices = @transform_0, window_bounds = array<i64: 1, 8, 32>}, {transform_indices = @transform_1, window_bounds = array<i64: 1, 8, 32>}, {pipeline_mode = #tpu.pipeline_mode<synchronous>, transform_indices = @transform_2, window_bounds = array<i64: 4, 32, 8>}, {pipeline_mode = #tpu.pipeline_mode<synchronous>, transform_indices = @transform_3, window_bounds = array<i64: 4, 1, 8>}, {pipeline_mode = #tpu.pipeline_mode<synchronous>, transform_indices = @transform_4, window_bounds = array<i64: 4, 32, 8>}, {pipeline_mode = #tpu.pipeline_mode<synchronous>, transform_indices = @transform_5, window_bounds = array<i64: 4, 1, 8>}, {pipeline_mode = #tpu.pipeline_mode<synchronous>, transform_indices = @transform_6, window_bounds = array<i64: 4, 32, 8>}, {pipeline_mode = #tpu.pipeline_mode<synchronous>, transform_indices = @transform_7, window_bounds = array<i64: 4, 1, 8>}, {pipeline_mode = #tpu.pipeline_mode<synchronous>, transform_indices = @transform_8, window_bounds = array<i64: 4, 8, 32>}, {pipeline_mode = #tpu.pipeline_mode<synchronous>, transform_indices = @transform_9, window_bounds = array<i64: 1, 32>}, {pipeline_mode = #tpu.pipeline_mode<synchronous>, transform_indices = @transform_10, window_bounds = array<i64: 8, 8>}, {transform_indices = @transform_11, window_bounds = array<i64: 1, 1, 8>}, {pipeline_mode = #tpu.pipeline_mode<synchronous>, transform_indices = @transform_12, window_bounds = array<i64: 1, 32>}, {pipeline_mode = #tpu.pipeline_mode<synchronous>, transform_indices = @transform_13, window_bounds = array<i64: 1, 32>}, {transform_indices = @transform_14, window_bounds = array<i64: 1, 8, 32>}]} {
    %c0 = arith.constant 0 : index
    %c0_0 = arith.constant 0 : index
    %c0_1 = arith.constant 0 : index
    %0 = vector.load %arg1[%c0, %c0_0, %c0_1] : memref<1x8x32xf32, #tpu.memory_space<vmem>>, vector<1x8x32xf32>
    %1 = vector.shape_cast %0 : vector<1x8x32xf32> to vector<8x32xf32>
    %2 = arith.truncf %1 : vector<8x32xf32> to vector<8x32xbf16>
    %c0_2 = arith.constant 0 : index
    %c0_3 = arith.constant 0 : index
    %c0_4 = arith.constant 0 : index
    %3 = vector.load %arg2[%c0_2, %c0_3, %c0_4] : memref<1x8x32xf32, #tpu.memory_space<vmem>>, vector<1x8x32xf32>
    %4 = vector.shape_cast %3 : vector<1x8x32xf32> to vector<8x32xf32>
    %5 = arith.truncf %4 : vector<8x32xf32> to vector<8x32xbf16>
    %c0_5 = arith.constant 0 : index
    %c0_6 = arith.constant 0 : index
    %6 = vector.load %arg11[%c0_5, %c0_6] : memref<8x8xf32, #tpu.memory_space<vmem>>, vector<8x8xf32>
    %7 = vector.shape_cast %6 : vector<8x8xf32> to vector<1x8x8xf32>
    %c0_7 = arith.constant 0 : index
    %c0_8 = arith.constant 0 : index
    %c0_9 = arith.constant 0 : index
    %8 = vector.load %arg12[%c0_7, %c0_8, %c0_9] : memref<1x1x8xf32, #tpu.memory_space<vmem>>, vector<1x1x8xf32>
    %9 = vector.broadcast %8 : vector<1x1x8xf32> to vector<1x8x8xf32>
    %10 = arith.addf %7, %9 : vector<1x8x8xf32>
    %cst = arith.constant 0.000000e+00 : f32
    %11 = vector.broadcast %cst : f32 to vector<8x32xf32>
    %c0_10 = arith.constant 0 : index
    %c0_11 = arith.constant 0 : index
    %c0_12 = arith.constant 0 : index
    %12 = vector.load %arg3[%c0_10, %c0_11, %c0_12] : memref<4x32x8xbf16, #tpu.memory_space<vmem>>, vector<1x32x8xbf16>
    %13 = vector.shape_cast %12 : vector<1x32x8xbf16> to vector<32x8xbf16>
    %cst_13 = arith.constant dense<0.000000e+00> : vector<8x8xf32>
    %14 = tpu.matmul %2, %13, %cst_13 {dimension_numbers = #tpu.dot_dimension_numbers<[1], [0], [0], [1], [0, 0, 1, 1], [], []>} : vector<8x32xbf16>, vector<32x8xbf16>, vector<8x8xf32> -> vector<8x8xf32>
    %c0_14 = arith.constant 0 : index
    %c0_15 = arith.constant 0 : index
    %c0_16 = arith.constant 0 : index
    %15 = vector.load %arg4[%c0_14, %c0_15, %c0_16] : memref<4x1x8xf32, #tpu.memory_space<vmem>>, vector<1x1x8xf32>
    %16 = vector.shape_cast %15 : vector<1x1x8xf32> to vector<1x8xf32>
    %17 = vector.broadcast %16 : vector<1x8xf32> to vector<8x8xf32>
    %18 = arith.addf %14, %17 : vector<8x8xf32>
    %19 = vector.shape_cast %18 : vector<8x8xf32> to vector<1x8x8xf32>
    %c0_17 = arith.constant 0 : index
    %c0_18 = arith.constant 0 : index
    %c0_19 = arith.constant 0 : index
    %20 = vector.load %arg5[%c0_17, %c0_18, %c0_19] : memref<4x32x8xbf16, #tpu.memory_space<vmem>>, vector<1x32x8xbf16>
    %21 = vector.shape_cast %20 : vector<1x32x8xbf16> to vector<32x8xbf16>
    %cst_20 = arith.constant dense<0.000000e+00> : vector<8x8xf32>
    %22 = tpu.matmul %5, %21, %cst_20 {dimension_numbers = #tpu.dot_dimension_numbers<[1], [0], [0], [1], [0, 0, 1, 1], [], []>} : vector<8x32xbf16>, vector<32x8xbf16>, vector<8x8xf32> -> vector<8x8xf32>
    %c0_21 = arith.constant 0 : index
    %c0_22 = arith.constant 0 : index
    %c0_23 = arith.constant 0 : index
    %23 = vector.load %arg6[%c0_21, %c0_22, %c0_23] : memref<4x1x8xf32, #tpu.memory_space<vmem>>, vector<1x1x8xf32>
    %24 = vector.shape_cast %23 : vector<1x1x8xf32> to vector<1x8xf32>
    %25 = vector.broadcast %24 : vector<1x8xf32> to vector<8x8xf32>
    %26 = arith.addf %22, %25 : vector<8x8xf32>
    %27 = vector.shape_cast %26 : vector<8x8xf32> to vector<1x8x8xf32>
    %c0_24 = arith.constant 0 : index
    %c0_25 = arith.constant 0 : index
    %c0_26 = arith.constant 0 : index
    %28 = vector.load %arg7[%c0_24, %c0_25, %c0_26] : memref<4x32x8xbf16, #tpu.memory_space<vmem>>, vector<1x32x8xbf16>
    %29 = vector.shape_cast %28 : vector<1x32x8xbf16> to vector<32x8xbf16>
    %cst_27 = arith.constant dense<0.000000e+00> : vector<8x8xf32>
    %30 = tpu.matmul %5, %29, %cst_27 {dimension_numbers = #tpu.dot_dimension_numbers<[1], [0], [0], [1], [0, 0, 1, 1], [], []>} : vector<8x32xbf16>, vector<32x8xbf16>, vector<8x8xf32> -> vector<8x8xf32>
    %c0_28 = arith.constant 0 : index
    %c0_29 = arith.constant 0 : index
    %c0_30 = arith.constant 0 : index
    %31 = vector.load %arg8[%c0_28, %c0_29, %c0_30] : memref<4x1x8xf32, #tpu.memory_space<vmem>>, vector<1x1x8xf32>
    %32 = vector.shape_cast %31 : vector<1x1x8xf32> to vector<1x8xf32>
    %33 = vector.broadcast %32 : vector<1x8xf32> to vector<8x8xf32>
    %34 = arith.addf %30, %33 : vector<8x8xf32>
    %35 = vector.shape_cast %34 : vector<8x8xf32> to vector<1x8x8xf32>
    %36 = arith.truncf %19 : vector<1x8x8xf32> to vector<1x8x8xbf16>
    %37 = arith.truncf %27 : vector<1x8x8xf32> to vector<1x8x8xbf16>
    "tpu.trace_start"() <{level = 10 : i32, message = "nqd,nkd->nqk"}> : () -> ()
    %cst_31 = arith.constant dense<0.000000e+00> : vector<1x8x8xf32>
    %38 = tpu.matmul %36, %37, %cst_31 {dimension_numbers = #tpu.dot_dimension_numbers<[2], [2], [1], [1], [0, 0, 0, 1, 1, 1], [0], [0]>} : vector<1x8x8xbf16>, vector<1x8x8xbf16>, vector<1x8x8xf32> -> vector<1x8x8xf32>
    "tpu.trace_stop"() : () -> ()
    %cst_32 = arith.constant 0.353553385 : f32
    %39 = vector.broadcast %cst_32 : f32 to vector<1x8x8xf32>
    %40 = arith.mulf %38, %39 : vector<1x8x8xf32>
    %41 = arith.addf %40, %10 : vector<1x8x8xf32>
    %cst_33 = arith.constant dense<0xFF800000> : vector<1x8xf32>
    %42 = vector.multi_reduction <maximumf>, %41, %cst_33 [2] : vector<1x8x8xf32> to vector<1x8xf32>
    %43 = vector.shape_cast %42 : vector<1x8xf32> to vector<1x8x1xf32>
    %44 = vector.broadcast %43 : vector<1x8x1xf32> to vector<1x8x8xf32>
    %45 = arith.subf %41, %44 : vector<1x8x8xf32>
    %46 = math.exp %45 : vector<1x8x8xf32>
    %cst_34 = arith.constant dense<0.000000e+00> : vector<1x8xf32>
    %47 = vector.multi_reduction <add>, %46, %cst_34 [2] : vector<1x8x8xf32> to vector<1x8xf32>
    %48 = vector.shape_cast %47 : vector<1x8xf32> to vector<1x8x1xf32>
    %49 = tpu.reciprocal %48 {approx = true} : vector<1x8x1xf32> -> vector<1x8x1xf32>
    %50 = vector.broadcast %49 : vector<1x8x1xf32> to vector<1x8x8xf32>
    %51 = arith.mulf %46, %50 : vector<1x8x8xf32>
    %52 = arith.truncf %51 : vector<1x8x8xf32> to vector<1x8x8xbf16>
    %53 = arith.truncf %35 : vector<1x8x8xf32> to vector<1x8x8xbf16>
    "tpu.trace_start"() <{level = 10 : i32, message = "nqk,nkd->nqd"}> : () -> ()
    %cst_35 = arith.constant dense<0.000000e+00> : vector<1x8x8xf32>
    %54 = tpu.matmul %52, %53, %cst_35 {dimension_numbers = #tpu.dot_dimension_numbers<[2], [1], [1], [2], [0, 0, 0, 1, 1, 2], [0], [0]>} : vector<1x8x8xbf16>, vector<1x8x8xbf16>, vector<1x8x8xf32> -> vector<1x8x8xf32>
    "tpu.trace_stop"() : () -> ()
    %55 = vector.shape_cast %54 : vector<1x8x8xf32> to vector<8x8xf32>
    %56 = arith.truncf %55 : vector<8x8xf32> to vector<8x8xbf16>
    %c0_36 = arith.constant 0 : index
    %c0_37 = arith.constant 0 : index
    %c0_38 = arith.constant 0 : index
    %57 = vector.load %arg9[%c0_36, %c0_37, %c0_38] : memref<4x8x32xbf16, #tpu.memory_space<vmem>>, vector<1x8x32xbf16>
    %58 = vector.shape_cast %57 : vector<1x8x32xbf16> to vector<8x32xbf16>
    %cst_39 = arith.constant dense<0.000000e+00> : vector<8x32xf32>
    %59 = tpu.matmul %56, %58, %cst_39 {dimension_numbers = #tpu.dot_dimension_numbers<[1], [0], [0], [1], [0, 0, 1, 1], [], []>} : vector<8x8xbf16>, vector<8x32xbf16>, vector<8x32xf32> -> vector<8x32xf32>
    %60 = arith.addf %11, %59 : vector<8x32xf32>
    %c1 = arith.constant 1 : index
    %c0_40 = arith.constant 0 : index
    %c0_41 = arith.constant 0 : index
    %61 = vector.load %arg3[%c1, %c0_40, %c0_41] : memref<4x32x8xbf16, #tpu.memory_space<vmem>>, vector<1x32x8xbf16>
    %62 = vector.shape_cast %61 : vector<1x32x8xbf16> to vector<32x8xbf16>
    %cst_42 = arith.constant dense<0.000000e+00> : vector<8x8xf32>
    %63 = tpu.matmul %2, %62, %cst_42 {dimension_numbers = #tpu.dot_dimension_numbers<[1], [0], [0], [1], [0, 0, 1, 1], [], []>} : vector<8x32xbf16>, vector<32x8xbf16>, vector<8x8xf32> -> vector<8x8xf32>
    %c1_43 = arith.constant 1 : index
    %c0_44 = arith.constant 0 : index
    %c0_45 = arith.constant 0 : index
    %64 = vector.load %arg4[%c1_43, %c0_44, %c0_45] : memref<4x1x8xf32, #tpu.memory_space<vmem>>, vector<1x1x8xf32>
    %65 = vector.shape_cast %64 : vector<1x1x8xf32> to vector<1x8xf32>
    %66 = vector.broadcast %65 : vector<1x8xf32> to vector<8x8xf32>
    %67 = arith.addf %63, %66 : vector<8x8xf32>
    %68 = vector.shape_cast %67 : vector<8x8xf32> to vector<1x8x8xf32>
    %c1_46 = arith.constant 1 : index
    %c0_47 = arith.constant 0 : index
    %c0_48 = arith.constant 0 : index
    %69 = vector.load %arg5[%c1_46, %c0_47, %c0_48] : memref<4x32x8xbf16, #tpu.memory_space<vmem>>, vector<1x32x8xbf16>
    %70 = vector.shape_cast %69 : vector<1x32x8xbf16> to vector<32x8xbf16>
    %cst_49 = arith.constant dense<0.000000e+00> : vector<8x8xf32>
    %71 = tpu.matmul %5, %70, %cst_49 {dimension_numbers = #tpu.dot_dimension_numbers<[1], [0], [0], [1], [0, 0, 1, 1], [], []>} : vector<8x32xbf16>, vector<32x8xbf16>, vector<8x8xf32> -> vector<8x8xf32>
    %c1_50 = arith.constant 1 : index
    %c0_51 = arith.constant 0 : index
    %c0_52 = arith.constant 0 : index
    %72 = vector.load %arg6[%c1_50, %c0_51, %c0_52] : memref<4x1x8xf32, #tpu.memory_space<vmem>>, vector<1x1x8xf32>
    %73 = vector.shape_cast %72 : vector<1x1x8xf32> to vector<1x8xf32>
    %74 = vector.broadcast %73 : vector<1x8xf32> to vector<8x8xf32>
    %75 = arith.addf %71, %74 : vector<8x8xf32>
    %76 = vector.shape_cast %75 : vector<8x8xf32> to vector<1x8x8xf32>
    %c1_53 = arith.constant 1 : index
    %c0_54 = arith.constant 0 : index
    %c0_55 = arith.constant 0 : index
    %77 = vector.load %arg7[%c1_53, %c0_54, %c0_55] : memref<4x32x8xbf16, #tpu.memory_space<vmem>>, vector<1x32x8xbf16>
    %78 = vector.shape_cast %77 : vector<1x32x8xbf16> to vector<32x8xbf16>
    %cst_56 = arith.constant dense<0.000000e+00> : vector<8x8xf32>
    %79 = tpu.matmul %5, %78, %cst_56 {dimension_numbers = #tpu.dot_dimension_numbers<[1], [0], [0], [1], [0, 0, 1, 1], [], []>} : vector<8x32xbf16>, vector<32x8xbf16>, vector<8x8xf32> -> vector<8x8xf32>
    %c1_57 = arith.constant 1 : index
    %c0_58 = arith.constant 0 : index
    %c0_59 = arith.constant 0 : index
    %80 = vector.load %arg8[%c1_57, %c0_58, %c0_59] : memref<4x1x8xf32, #tpu.memory_space<vmem>>, vector<1x1x8xf32>
    %81 = vector.shape_cast %80 : vector<1x1x8xf32> to vector<1x8xf32>
    %82 = vector.broadcast %81 : vector<1x8xf32> to vector<8x8xf32>
    %83 = arith.addf %79, %82 : vector<8x8xf32>
    %84 = vector.shape_cast %83 : vector<8x8xf32> to vector<1x8x8xf32>
    %85 = arith.truncf %68 : vector<1x8x8xf32> to vector<1x8x8xbf16>
    %86 = arith.truncf %76 : vector<1x8x8xf32> to vector<1x8x8xbf16>
    "tpu.trace_start"() <{level = 10 : i32, message = "nqd,nkd->nqk"}> : () -> ()
    %cst_60 = arith.constant dense<0.000000e+00> : vector<1x8x8xf32>
    %87 = tpu.matmul %85, %86, %cst_60 {dimension_numbers = #tpu.dot_dimension_numbers<[2], [2], [1], [1], [0, 0, 0, 1, 1, 1], [0], [0]>} : vector<1x8x8xbf16>, vector<1x8x8xbf16>, vector<1x8x8xf32> -> vector<1x8x8xf32>
    "tpu.trace_stop"() : () -> ()
    %cst_61 = arith.constant 0.353553385 : f32
    %88 = vector.broadcast %cst_61 : f32 to vector<1x8x8xf32>
    %89 = arith.mulf %87, %88 : vector<1x8x8xf32>
    %90 = arith.addf %89, %10 : vector<1x8x8xf32>
    %cst_62 = arith.constant dense<0xFF800000> : vector<1x8xf32>
    %91 = vector.multi_reduction <maximumf>, %90, %cst_62 [2] : vector<1x8x8xf32> to vector<1x8xf32>
    %92 = vector.shape_cast %91 : vector<1x8xf32> to vector<1x8x1xf32>
    %93 = vector.broadcast %92 : vector<1x8x1xf32> to vector<1x8x8xf32>
    %94 = arith.subf %90, %93 : vector<1x8x8xf32>
    %95 = math.exp %94 : vector<1x8x8xf32>
    %cst_63 = arith.constant dense<0.000000e+00> : vector<1x8xf32>
    %96 = vector.multi_reduction <add>, %95, %cst_63 [2] : vector<1x8x8xf32> to vector<1x8xf32>
    %97 = vector.shape_cast %96 : vector<1x8xf32> to vector<1x8x1xf32>
    %98 = tpu.reciprocal %97 {approx = true} : vector<1x8x1xf32> -> vector<1x8x1xf32>
    %99 = vector.broadcast %98 : vector<1x8x1xf32> to vector<1x8x8xf32>
    %100 = arith.mulf %95, %99 : vector<1x8x8xf32>
    %101 = arith.truncf %100 : vector<1x8x8xf32> to vector<1x8x8xbf16>
    %102 = arith.truncf %84 : vector<1x8x8xf32> to vector<1x8x8xbf16>
    "tpu.trace_start"() <{level = 10 : i32, message = "nqk,nkd->nqd"}> : () -> ()
    %cst_64 = arith.constant dense<0.000000e+00> : vector<1x8x8xf32>
    %103 = tpu.matmul %101, %102, %cst_64 {dimension_numbers = #tpu.dot_dimension_numbers<[2], [1], [1], [2], [0, 0, 0, 1, 1, 2], [0], [0]>} : vector<1x8x8xbf16>, vector<1x8x8xbf16>, vector<1x8x8xf32> -> vector<1x8x8xf32>
    "tpu.trace_stop"() : () -> ()
    %104 = vector.shape_cast %103 : vector<1x8x8xf32> to vector<8x8xf32>
    %105 = arith.truncf %104 : vector<8x8xf32> to vector<8x8xbf16>
    %c1_65 = arith.constant 1 : index
    %c0_66 = arith.constant 0 : index
    %c0_67 = arith.constant 0 : index
    %106 = vector.load %arg9[%c1_65, %c0_66, %c0_67] : memref<4x8x32xbf16, #tpu.memory_space<vmem>>, vector<1x8x32xbf16>
    %107 = vector.shape_cast %106 : vector<1x8x32xbf16> to vector<8x32xbf16>
    %cst_68 = arith.constant dense<0.000000e+00> : vector<8x32xf32>
    %108 = tpu.matmul %105, %107, %cst_68 {dimension_numbers = #tpu.dot_dimension_numbers<[1], [0], [0], [1], [0, 0, 1, 1], [], []>} : vector<8x8xbf16>, vector<8x32xbf16>, vector<8x32xf32> -> vector<8x32xf32>
    %109 = arith.addf %60, %108 : vector<8x32xf32>
    %c2 = arith.constant 2 : index
    %c0_69 = arith.constant 0 : index
    %c0_70 = arith.constant 0 : index
    %110 = vector.load %arg3[%c2, %c0_69, %c0_70] : memref<4x32x8xbf16, #tpu.memory_space<vmem>>, vector<1x32x8xbf16>
    %111 = vector.shape_cast %110 : vector<1x32x8xbf16> to vector<32x8xbf16>
    %cst_71 = arith.constant dense<0.000000e+00> : vector<8x8xf32>
    %112 = tpu.matmul %2, %111, %cst_71 {dimension_numbers = #tpu.dot_dimension_numbers<[1], [0], [0], [1], [0, 0, 1, 1], [], []>} : vector<8x32xbf16>, vector<32x8xbf16>, vector<8x8xf32> -> vector<8x8xf32>
    %c2_72 = arith.constant 2 : index
    %c0_73 = arith.constant 0 : index
    %c0_74 = arith.constant 0 : index
    %113 = vector.load %arg4[%c2_72, %c0_73, %c0_74] : memref<4x1x8xf32, #tpu.memory_space<vmem>>, vector<1x1x8xf32>
    %114 = vector.shape_cast %113 : vector<1x1x8xf32> to vector<1x8xf32>
    %115 = vector.broadcast %114 : vector<1x8xf32> to vector<8x8xf32>
    %116 = arith.addf %112, %115 : vector<8x8xf32>
    %117 = vector.shape_cast %116 : vector<8x8xf32> to vector<1x8x8xf32>
    %c2_75 = arith.constant 2 : index
    %c0_76 = arith.constant 0 : index
    %c0_77 = arith.constant 0 : index
    %118 = vector.load %arg5[%c2_75, %c0_76, %c0_77] : memref<4x32x8xbf16, #tpu.memory_space<vmem>>, vector<1x32x8xbf16>
    %119 = vector.shape_cast %118 : vector<1x32x8xbf16> to vector<32x8xbf16>
    %cst_78 = arith.constant dense<0.000000e+00> : vector<8x8xf32>
    %120 = tpu.matmul %5, %119, %cst_78 {dimension_numbers = #tpu.dot_dimension_numbers<[1], [0], [0], [1], [0, 0, 1, 1], [], []>} : vector<8x32xbf16>, vector<32x8xbf16>, vector<8x8xf32> -> vector<8x8xf32>
    %c2_79 = arith.constant 2 : index
    %c0_80 = arith.constant 0 : index
    %c0_81 = arith.constant 0 : index
    %121 = vector.load %arg6[%c2_79, %c0_80, %c0_81] : memref<4x1x8xf32, #tpu.memory_space<vmem>>, vector<1x1x8xf32>
    %122 = vector.shape_cast %121 : vector<1x1x8xf32> to vector<1x8xf32>
    %123 = vector.broadcast %122 : vector<1x8xf32> to vector<8x8xf32>
    %124 = arith.addf %120, %123 : vector<8x8xf32>
    %125 = vector.shape_cast %124 : vector<8x8xf32> to vector<1x8x8xf32>
    %c2_82 = arith.constant 2 : index
    %c0_83 = arith.constant 0 : index
    %c0_84 = arith.constant 0 : index
    %126 = vector.load %arg7[%c2_82, %c0_83, %c0_84] : memref<4x32x8xbf16, #tpu.memory_space<vmem>>, vector<1x32x8xbf16>
    %127 = vector.shape_cast %126 : vector<1x32x8xbf16> to vector<32x8xbf16>
    %cst_85 = arith.constant dense<0.000000e+00> : vector<8x8xf32>
    %128 = tpu.matmul %5, %127, %cst_85 {dimension_numbers = #tpu.dot_dimension_numbers<[1], [0], [0], [1], [0, 0, 1, 1], [], []>} : vector<8x32xbf16>, vector<32x8xbf16>, vector<8x8xf32> -> vector<8x8xf32>
    %c2_86 = arith.constant 2 : index
    %c0_87 = arith.constant 0 : index
    %c0_88 = arith.constant 0 : index
    %129 = vector.load %arg8[%c2_86, %c0_87, %c0_88] : memref<4x1x8xf32, #tpu.memory_space<vmem>>, vector<1x1x8xf32>
    %130 = vector.shape_cast %129 : vector<1x1x8xf32> to vector<1x8xf32>
    %131 = vector.broadcast %130 : vector<1x8xf32> to vector<8x8xf32>
    %132 = arith.addf %128, %131 : vector<8x8xf32>
    %133 = vector.shape_cast %132 : vector<8x8xf32> to vector<1x8x8xf32>
    %134 = arith.truncf %117 : vector<1x8x8xf32> to vector<1x8x8xbf16>
    %135 = arith.truncf %125 : vector<1x8x8xf32> to vector<1x8x8xbf16>
    "tpu.trace_start"() <{level = 10 : i32, message = "nqd,nkd->nqk"}> : () -> ()
    %cst_89 = arith.constant dense<0.000000e+00> : vector<1x8x8xf32>
    %136 = tpu.matmul %134, %135, %cst_89 {dimension_numbers = #tpu.dot_dimension_numbers<[2], [2], [1], [1], [0, 0, 0, 1, 1, 1], [0], [0]>} : vector<1x8x8xbf16>, vector<1x8x8xbf16>, vector<1x8x8xf32> -> vector<1x8x8xf32>
    "tpu.trace_stop"() : () -> ()
    %cst_90 = arith.constant 0.353553385 : f32
    %137 = vector.broadcast %cst_90 : f32 to vector<1x8x8xf32>
    %138 = arith.mulf %136, %137 : vector<1x8x8xf32>
    %139 = arith.addf %138, %10 : vector<1x8x8xf32>
    %cst_91 = arith.constant dense<0xFF800000> : vector<1x8xf32>
    %140 = vector.multi_reduction <maximumf>, %139, %cst_91 [2] : vector<1x8x8xf32> to vector<1x8xf32>
    %141 = vector.shape_cast %140 : vector<1x8xf32> to vector<1x8x1xf32>
    %142 = vector.broadcast %141 : vector<1x8x1xf32> to vector<1x8x8xf32>
    %143 = arith.subf %139, %142 : vector<1x8x8xf32>
    %144 = math.exp %143 : vector<1x8x8xf32>
    %cst_92 = arith.constant dense<0.000000e+00> : vector<1x8xf32>
    %145 = vector.multi_reduction <add>, %144, %cst_92 [2] : vector<1x8x8xf32> to vector<1x8xf32>
    %146 = vector.shape_cast %145 : vector<1x8xf32> to vector<1x8x1xf32>
    %147 = tpu.reciprocal %146 {approx = true} : vector<1x8x1xf32> -> vector<1x8x1xf32>
    %148 = vector.broadcast %147 : vector<1x8x1xf32> to vector<1x8x8xf32>
    %149 = arith.mulf %144, %148 : vector<1x8x8xf32>
    %150 = arith.truncf %149 : vector<1x8x8xf32> to vector<1x8x8xbf16>
    %151 = arith.truncf %133 : vector<1x8x8xf32> to vector<1x8x8xbf16>
    "tpu.trace_start"() <{level = 10 : i32, message = "nqk,nkd->nqd"}> : () -> ()
    %cst_93 = arith.constant dense<0.000000e+00> : vector<1x8x8xf32>
    %152 = tpu.matmul %150, %151, %cst_93 {dimension_numbers = #tpu.dot_dimension_numbers<[2], [1], [1], [2], [0, 0, 0, 1, 1, 2], [0], [0]>} : vector<1x8x8xbf16>, vector<1x8x8xbf16>, vector<1x8x8xf32> -> vector<1x8x8xf32>
    "tpu.trace_stop"() : () -> ()
    %153 = vector.shape_cast %152 : vector<1x8x8xf32> to vector<8x8xf32>
    %154 = arith.truncf %153 : vector<8x8xf32> to vector<8x8xbf16>
    %c2_94 = arith.constant 2 : index
    %c0_95 = arith.constant 0 : index
    %c0_96 = arith.constant 0 : index
    %155 = vector.load %arg9[%c2_94, %c0_95, %c0_96] : memref<4x8x32xbf16, #tpu.memory_space<vmem>>, vector<1x8x32xbf16>
    %156 = vector.shape_cast %155 : vector<1x8x32xbf16> to vector<8x32xbf16>
    %cst_97 = arith.constant dense<0.000000e+00> : vector<8x32xf32>
    %157 = tpu.matmul %154, %156, %cst_97 {dimension_numbers = #tpu.dot_dimension_numbers<[1], [0], [0], [1], [0, 0, 1, 1], [], []>} : vector<8x8xbf16>, vector<8x32xbf16>, vector<8x32xf32> -> vector<8x32xf32>
    %158 = arith.addf %109, %157 : vector<8x32xf32>
    %c3 = arith.constant 3 : index
    %c0_98 = arith.constant 0 : index
    %c0_99 = arith.constant 0 : index
    %159 = vector.load %arg3[%c3, %c0_98, %c0_99] : memref<4x32x8xbf16, #tpu.memory_space<vmem>>, vector<1x32x8xbf16>
    %160 = vector.shape_cast %159 : vector<1x32x8xbf16> to vector<32x8xbf16>
    %cst_100 = arith.constant dense<0.000000e+00> : vector<8x8xf32>
    %161 = tpu.matmul %2, %160, %cst_100 {dimension_numbers = #tpu.dot_dimension_numbers<[1], [0], [0], [1], [0, 0, 1, 1], [], []>} : vector<8x32xbf16>, vector<32x8xbf16>, vector<8x8xf32> -> vector<8x8xf32>
    %c3_101 = arith.constant 3 : index
    %c0_102 = arith.constant 0 : index
    %c0_103 = arith.constant 0 : index
    %162 = vector.load %arg4[%c3_101, %c0_102, %c0_103] : memref<4x1x8xf32, #tpu.memory_space<vmem>>, vector<1x1x8xf32>
    %163 = vector.shape_cast %162 : vector<1x1x8xf32> to vector<1x8xf32>
    %164 = vector.broadcast %163 : vector<1x8xf32> to vector<8x8xf32>
    %165 = arith.addf %161, %164 : vector<8x8xf32>
    %166 = vector.shape_cast %165 : vector<8x8xf32> to vector<1x8x8xf32>
    %c3_104 = arith.constant 3 : index
    %c0_105 = arith.constant 0 : index
    %c0_106 = arith.constant 0 : index
    %167 = vector.load %arg5[%c3_104, %c0_105, %c0_106] : memref<4x32x8xbf16, #tpu.memory_space<vmem>>, vector<1x32x8xbf16>
    %168 = vector.shape_cast %167 : vector<1x32x8xbf16> to vector<32x8xbf16>
    %cst_107 = arith.constant dense<0.000000e+00> : vector<8x8xf32>
    %169 = tpu.matmul %5, %168, %cst_107 {dimension_numbers = #tpu.dot_dimension_numbers<[1], [0], [0], [1], [0, 0, 1, 1], [], []>} : vector<8x32xbf16>, vector<32x8xbf16>, vector<8x8xf32> -> vector<8x8xf32>
    %c3_108 = arith.constant 3 : index
    %c0_109 = arith.constant 0 : index
    %c0_110 = arith.constant 0 : index
    %170 = vector.load %arg6[%c3_108, %c0_109, %c0_110] : memref<4x1x8xf32, #tpu.memory_space<vmem>>, vector<1x1x8xf32>
    %171 = vector.shape_cast %170 : vector<1x1x8xf32> to vector<1x8xf32>
    %172 = vector.broadcast %171 : vector<1x8xf32> to vector<8x8xf32>
    %173 = arith.addf %169, %172 : vector<8x8xf32>
    %174 = vector.shape_cast %173 : vector<8x8xf32> to vector<1x8x8xf32>
    %c3_111 = arith.constant 3 : index
    %c0_112 = arith.constant 0 : index
    %c0_113 = arith.constant 0 : index
    %175 = vector.load %arg7[%c3_111, %c0_112, %c0_113] : memref<4x32x8xbf16, #tpu.memory_space<vmem>>, vector<1x32x8xbf16>
    %176 = vector.shape_cast %175 : vector<1x32x8xbf16> to vector<32x8xbf16>
    %cst_114 = arith.constant dense<0.000000e+00> : vector<8x8xf32>
    %177 = tpu.matmul %5, %176, %cst_114 {dimension_numbers = #tpu.dot_dimension_numbers<[1], [0], [0], [1], [0, 0, 1, 1], [], []>} : vector<8x32xbf16>, vector<32x8xbf16>, vector<8x8xf32> -> vector<8x8xf32>
    %c3_115 = arith.constant 3 : index
    %c0_116 = arith.constant 0 : index
    %c0_117 = arith.constant 0 : index
    %178 = vector.load %arg8[%c3_115, %c0_116, %c0_117] : memref<4x1x8xf32, #tpu.memory_space<vmem>>, vector<1x1x8xf32>
    %179 = vector.shape_cast %178 : vector<1x1x8xf32> to vector<1x8xf32>
    %180 = vector.broadcast %179 : vector<1x8xf32> to vector<8x8xf32>
    %181 = arith.addf %177, %180 : vector<8x8xf32>
    %182 = vector.shape_cast %181 : vector<8x8xf32> to vector<1x8x8xf32>
    %183 = arith.truncf %166 : vector<1x8x8xf32> to vector<1x8x8xbf16>
    %184 = arith.truncf %174 : vector<1x8x8xf32> to vector<1x8x8xbf16>
    "tpu.trace_start"() <{level = 10 : i32, message = "nqd,nkd->nqk"}> : () -> ()
    %cst_118 = arith.constant dense<0.000000e+00> : vector<1x8x8xf32>
    %185 = tpu.matmul %183, %184, %cst_118 {dimension_numbers = #tpu.dot_dimension_numbers<[2], [2], [1], [1], [0, 0, 0, 1, 1, 1], [0], [0]>} : vector<1x8x8xbf16>, vector<1x8x8xbf16>, vector<1x8x8xf32> -> vector<1x8x8xf32>
    "tpu.trace_stop"() : () -> ()
    %cst_119 = arith.constant 0.353553385 : f32
    %186 = vector.broadcast %cst_119 : f32 to vector<1x8x8xf32>
    %187 = arith.mulf %185, %186 : vector<1x8x8xf32>
    %188 = arith.addf %187, %10 : vector<1x8x8xf32>
    %cst_120 = arith.constant dense<0xFF800000> : vector<1x8xf32>
    %189 = vector.multi_reduction <maximumf>, %188, %cst_120 [2] : vector<1x8x8xf32> to vector<1x8xf32>
    %190 = vector.shape_cast %189 : vector<1x8xf32> to vector<1x8x1xf32>
    %191 = vector.broadcast %190 : vector<1x8x1xf32> to vector<1x8x8xf32>
    %192 = arith.subf %188, %191 : vector<1x8x8xf32>
    %193 = math.exp %192 : vector<1x8x8xf32>
    %cst_121 = arith.constant dense<0.000000e+00> : vector<1x8xf32>
    %194 = vector.multi_reduction <add>, %193, %cst_121 [2] : vector<1x8x8xf32> to vector<1x8xf32>
    %195 = vector.shape_cast %194 : vector<1x8xf32> to vector<1x8x1xf32>
    %196 = tpu.reciprocal %195 {approx = true} : vector<1x8x1xf32> -> vector<1x8x1xf32>
    %197 = vector.broadcast %196 : vector<1x8x1xf32> to vector<1x8x8xf32>
    %198 = arith.mulf %193, %197 : vector<1x8x8xf32>
    %199 = arith.truncf %198 : vector<1x8x8xf32> to vector<1x8x8xbf16>
    %200 = arith.truncf %182 : vector<1x8x8xf32> to vector<1x8x8xbf16>
    "tpu.trace_start"() <{level = 10 : i32, message = "nqk,nkd->nqd"}> : () -> ()
    %cst_122 = arith.constant dense<0.000000e+00> : vector<1x8x8xf32>
    %201 = tpu.matmul %199, %200, %cst_122 {dimension_numbers = #tpu.dot_dimension_numbers<[2], [1], [1], [2], [0, 0, 0, 1, 1, 2], [0], [0]>} : vector<1x8x8xbf16>, vector<1x8x8xbf16>, vector<1x8x8xf32> -> vector<1x8x8xf32>
    "tpu.trace_stop"() : () -> ()
    %202 = vector.shape_cast %201 : vector<1x8x8xf32> to vector<8x8xf32>
    %203 = arith.truncf %202 : vector<8x8xf32> to vector<8x8xbf16>
    %c3_123 = arith.constant 3 : index
    %c0_124 = arith.constant 0 : index
    %c0_125 = arith.constant 0 : index
    %204 = vector.load %arg9[%c3_123, %c0_124, %c0_125] : memref<4x8x32xbf16, #tpu.memory_space<vmem>>, vector<1x8x32xbf16>
    %205 = vector.shape_cast %204 : vector<1x8x32xbf16> to vector<8x32xbf16>
    %cst_126 = arith.constant dense<0.000000e+00> : vector<8x32xf32>
    %206 = tpu.matmul %203, %205, %cst_126 {dimension_numbers = #tpu.dot_dimension_numbers<[1], [0], [0], [1], [0, 0, 1, 1], [], []>} : vector<8x8xbf16>, vector<8x32xbf16>, vector<8x32xf32> -> vector<8x32xf32>
    %207 = arith.addf %158, %206 : vector<8x32xf32>
    %c0_127 = arith.constant 0 : index
    %c0_128 = arith.constant 0 : index
    %208 = vector.load %arg10[%c0_127, %c0_128] : memref<1x32xf32, #tpu.memory_space<vmem>>, vector<1x32xf32>
    %209 = vector.broadcast %208 : vector<1x32xf32> to vector<8x32xf32>
    %210 = arith.addf %207, %209 : vector<8x32xf32>
    %211 = vector.shape_cast %0 : vector<1x8x32xf32> to vector<8x32xf32>
    %212 = arith.addf %211, %210 : vector<8x32xf32>
    %cst_129 = arith.constant dense<0.000000e+00> : vector<8xf32>
    %213 = vector.multi_reduction <add>, %212, %cst_129 [1] : vector<8x32xf32> to vector<8xf32>
    %214 = vector.shape_cast %213 : vector<8xf32> to vector<8x1xf32>
    %cst_130 = arith.constant 3.200000e+01 : f32
    %215 = vector.broadcast %cst_130 : f32 to vector<8x1xf32>
    %216 = arith.divf %214, %215 : vector<8x1xf32>
    %217 = vector.broadcast %216 : vector<8x1xf32> to vector<8x32xf32>
    %218 = arith.subf %212, %217 : vector<8x32xf32>
    %219 = arith.mulf %218, %218 : vector<8x32xf32>
    %cst_131 = arith.constant dense<0.000000e+00> : vector<8xf32>
    %220 = vector.multi_reduction <add>, %219, %cst_131 [1] : vector<8x32xf32> to vector<8xf32>
    %221 = vector.shape_cast %220 : vector<8xf32> to vector<8x1xf32>
    %cst_132 = arith.constant 3.200000e+01 : f32
    %222 = vector.broadcast %cst_132 : f32 to vector<8x1xf32>
    %223 = arith.divf %221, %222 : vector<8x1xf32>
    %224 = vector.broadcast %216 : vector<8x1xf32> to vector<8x32xf32>
    %225 = arith.subf %212, %224 : vector<8x32xf32>
    %cst_133 = arith.constant 9.99999974E-6 : f32
    %226 = vector.broadcast %cst_133 : f32 to vector<8x1xf32>
    %227 = arith.addf %223, %226 : vector<8x1xf32>
    %228 = math.rsqrt %227 : vector<8x1xf32>
    %229 = vector.broadcast %228 : vector<8x1xf32> to vector<8x32xf32>
    %230 = arith.mulf %225, %229 : vector<8x32xf32>
    %c0_134 = arith.constant 0 : index
    %c0_135 = arith.constant 0 : index
    %231 = vector.load %arg13[%c0_134, %c0_135] : memref<1x32xf32, #tpu.memory_space<vmem>>, vector<1x32xf32>
    %232 = vector.broadcast %231 : vector<1x32xf32> to vector<8x32xf32>
    %233 = arith.mulf %230, %232 : vector<8x32xf32>
    %c0_136 = arith.constant 0 : index
    %c0_137 = arith.constant 0 : index
    %234 = vector.load %arg14[%c0_136, %c0_137] : memref<1x32xf32, #tpu.memory_space<vmem>>, vector<1x32xf32>
    %235 = vector.broadcast %234 : vector<1x32xf32> to vector<8x32xf32>
    %236 = arith.addf %233, %235 : vector<8x32xf32>
    %237 = vector.shape_cast %236 : vector<8x32xf32> to vector<1x8x32xf32>
    %c0_138 = arith.constant 0 : index
    %c0_139 = arith.constant 0 : index
    %c0_140 = arith.constant 0 : index
    %238 = vector.load %arg15[%c0_138, %c0_139, %c0_140] : memref<1x8x32xf32, #tpu.memory_space<vmem>>, vector<1x8x32xf32>
    tpu.vector_store %arg15[%c0_138, %c0_139, %c0_140], %237 {strides = array<i32>} : memref<1x8x32xf32, #tpu.memory_space<vmem>>, vector<1x8x32xf32>,
    return
  }
  func.func @transform_0(%arg0: i32) -> (i32, i32, i32) {
    %c0_i32 = arith.constant 0 : i32
    %c0_i32_0 = arith.constant 0 : i32
    %c0_i32_1 = arith.constant 0 : i32
    return %arg0, %c0_i32, %c0_i32_0 : i32, i32, i32
  }
  func.func @transform_1(%arg0: i32) -> (i32, i32, i32) {
    %c0_i32 = arith.constant 0 : i32
    %c0_i32_0 = arith.constant 0 : i32
    %c0_i32_1 = arith.constant 0 : i32
    return %arg0, %c0_i32, %c0_i32_0 : i32, i32, i32
  }
  func.func @transform_2(%arg0: i32) -> (i32, i32, i32) {
    %c0_i32 = arith.constant 0 : i32
    %c0_i32_0 = arith.constant 0 : i32
    %c0_i32_1 = arith.constant 0 : i32
    %c0_i32_2 = arith.constant 0 : i32
    return %c0_i32, %c0_i32_0, %c0_i32_1 : i32, i32, i32
  }
  func.func @transform_3(%arg0: i32) -> (i32, i32, i32) {
    %c0_i32 = arith.constant 0 : i32
    %c0_i32_0 = arith.constant 0 : i32
    %c0_i32_1 = arith.constant 0 : i32
    %c0_i32_2 = arith.constant 0 : i32
    return %c0_i32, %c0_i32_0, %c0_i32_1 : i32, i32, i32
  }
  func.func @transform_4(%arg0: i32) -> (i32, i32, i32) {
    %c0_i32 = arith.constant 0 : i32
    %c0_i32_0 = arith.constant 0 : i32
    %c0_i32_1 = arith.constant 0 : i32
    %c0_i32_2 = arith.constant 0 : i32
    return %c0_i32, %c0_i32_0, %c0_i32_1 : i32, i32, i32
  }
  func.func @transform_5(%arg0: i32) -> (i32, i32, i32) {
    %c0_i32 = arith.constant 0 : i32
    %c0_i32_0 = arith.constant 0 : i32
    %c0_i32_1 = arith.constant 0 : i32
    %c0_i32_2 = arith.constant 0 : i32
    return %c0_i32, %c0_i32_0, %c0_i32_1 : i32, i32, i32
  }
  func.func @transform_6(%arg0: i32) -> (i32, i32, i32) {
    %c0_i32 = arith.constant 0 : i32
    %c0_i32_0 = arith.constant 0 : i32
    %c0_i32_1 = arith.constant 0 : i32
    %c0_i32_2 = arith.constant 0 : i32
    return %c0_i32, %c0_i32_0, %c0_i32_1 : i32, i32, i32
  }
  func.func @transform_7(%arg0: i32) -> (i32, i32, i32) {
    %c0_i32 = arith.constant 0 : i32
    %c0_i32_0 = arith.constant 0 : i32
    %c0_i32_1 = arith.constant 0 : i32
    %c0_i32_2 = arith.constant 0 : i32
    return %c0_i32, %c0_i32_0, %c0_i32_1 : i32, i32, i32
  }
  func.func @transform_8(%arg0: i32) -> (i32, i32, i32) {
    %c0_i32 = arith.constant 0 : i32
    %c0_i32_0 = arith.constant 0 : i32
    %c0_i32_1 = arith.constant 0 : i32
    %c0_i32_2 = arith.constant 0 : i32
    return %c0_i32, %c0_i32_0, %c0_i32_1 : i32, i32, i32
  }
  func.func @transform_9(%arg0: i32) -> (i32, i32) {
    %c0_i32 = arith.constant 0 : i32
    %c0_i32_0 = arith.constant 0 : i32
    %c0_i32_1 = arith.constant 0 : i32
    return %c0_i32, %c0_i32_0 : i32, i32
  }
  func.func @transform_10(%arg0: i32) -> (i32, i32) {
    %c0_i32 = arith.constant 0 : i32
    %c0_i32_0 = arith.constant 0 : i32
    %c0_i32_1 = arith.constant 0 : i32
    return %c0_i32, %c0_i32_0 : i32, i32
  }
  func.func @transform_11(%arg0: i32) -> (i32, i32, i32) {
    %c0_i32 = arith.constant 0 : i32
    %c0_i32_0 = arith.constant 0 : i32
    %c0_i32_1 = arith.constant 0 : i32
    return %arg0, %c0_i32, %c0_i32_0 : i32, i32, i32
  }
  func.func @transform_12(%arg0: i32) -> (i32, i32) {
    %c0_i32 = arith.constant 0 : i32
    %c0_i32_0 = arith.constant 0 : i32
    %c0_i32_1 = arith.constant 0 : i32
    return %c0_i32, %c0_i32_0 : i32, i32
  }
  func.func @transform_13(%arg0: i32) -> (i32, i32) {
    %c0_i32 = arith.constant 0 : i32
    %c0_i32_0 = arith.constant 0 : i32
    %c0_i32_1 = arith.constant 0 : i32
    return %c0_i32, %c0_i32_0 : i32, i32
  }
  func.func @transform_14(%arg0: i32) -> (i32, i32, i32) {
    %c0_i32 = arith.constant 0 : i32
    %c0_i32_0 = arith.constant 0 : i32
    %c0_i32_1 = arith.constant 0 : i32
    return %arg0, %c0_i32, %c0_i32_0 : i32, i32, i32
  }
}

module attributes {stable_mosaic.version = 11 : i64} {
  func.func @_ffn_ln_kernel(%arg0: i32, %arg1: memref<16x32xf32, #tpu.memory_space<vmem>>, %arg2: memref<32x64xbf16, #tpu.memory_space<vmem>>, %arg3: memref<1x64xf32, #tpu.memory_space<vmem>>, %arg4: memref<64x32xbf16, #tpu.memory_space<vmem>>, %arg5: memref<1x32xf32, #tpu.memory_space<vmem>>, %arg6: memref<1x32xf32, #tpu.memory_space<vmem>>, %arg7: memref<1x32xf32, #tpu.memory_space<vmem>>, %arg8: memref<16x32xf32, #tpu.memory_space<vmem>>) attributes {dimension_semantics = [#tpu.dimension_semantics<parallel>], iteration_bounds = array<i64: 1>, scalar_prefetch = 0 : i64, scratch_operands = 0 : i64, tpu.core_type = #tpu.core_type<tc>, window_params = [{transform_indices = @transform_0, window_bounds = array<i64: 16, 32>}, {pipeline_mode = #tpu.pipeline_mode<synchronous>, transform_indices = @transform_1, window_bounds = array<i64: 32, 64>}, {pipeline_mode = #tpu.pipeline_mode<synchronous>, transform_indices = @transform_2, window_bounds = array<i64: 1, 64>}, {pipeline_mode = #tpu.pipeline_mode<synchronous>, transform_indices = @transform_3, window_bounds = array<i64: 64, 32>}, {pipeline_mode = #tpu.pipeline_mode<synchronous>, transform_indices = @transform_4, window_bounds = array<i64: 1, 32>}, {pipeline_mode = #tpu.pipeline_mode<synchronous>, transform_indices = @transform_5, window_bounds = array<i64: 1, 32>}, {pipeline_mode = #tpu.pipeline_mode<synchronous>, transform_indices = @transform_6, window_bounds = array<i64: 1, 32>}, {transform_indices = @transform_7, window_bounds = array<i64: 16, 32>}]} {
    %c0 = arith.constant 0 : index
    %c0_0 = arith.constant 0 : index
    %0 = vector.load %arg1[%c0, %c0_0] : memref<16x32xf32, #tpu.memory_space<vmem>>, vector<16x32xf32>
    %1 = arith.truncf %0 : vector<16x32xf32> to vector<16x32xbf16>
    %c0_1 = arith.constant 0 : index
    %c0_2 = arith.constant 0 : index
    %2 = vector.load %arg2[%c0_1, %c0_2] : memref<32x64xbf16, #tpu.memory_space<vmem>>, vector<32x64xbf16>
    %cst = arith.constant dense<0.000000e+00> : vector<16x64xf32>
    %3 = tpu.matmul %1, %2, %cst {dimension_numbers = #tpu.dot_dimension_numbers<[1], [0], [0], [1], [0, 0, 1, 1], [], []>} : vector<16x32xbf16>, vector<32x64xbf16>, vector<16x64xf32> -> vector<16x64xf32>
    %c0_3 = arith.constant 0 : index
    %c0_4 = arith.constant 0 : index
    %4 = vector.load %arg3[%c0_3, %c0_4] : memref<1x64xf32, #tpu.memory_space<vmem>>, vector<1x64xf32>
    %5 = vector.broadcast %4 : vector<1x64xf32> to vector<16x64xf32>
    %6 = arith.addf %3, %5 : vector<16x64xf32>
    %cst_5 = arith.constant 0.000000e+00 : f32
    %7 = vector.broadcast %cst_5 : f32 to vector<16x64xf32>
    %8 = arith.maximumf %6, %7 : vector<16x64xf32>
    %9 = arith.truncf %8 : vector<16x64xf32> to vector<16x64xbf16>
    %c0_6 = arith.constant 0 : index
    %c0_7 = arith.constant 0 : index
    %10 = vector.load %arg4[%c0_6, %c0_7] : memref<64x32xbf16, #tpu.memory_space<vmem>>, vector<64x32xbf16>
    %cst_8 = arith.constant dense<0.000000e+00> : vector<16x32xf32>
    %11 = tpu.matmul %9, %10, %cst_8 {dimension_numbers = #tpu.dot_dimension_numbers<[1], [0], [0], [1], [0, 0, 1, 1], [], []>} : vector<16x64xbf16>, vector<64x32xbf16>, vector<16x32xf32> -> vector<16x32xf32>
    %c0_9 = arith.constant 0 : index
    %c0_10 = arith.constant 0 : index
    %12 = vector.load %arg5[%c0_9, %c0_10] : memref<1x32xf32, #tpu.memory_space<vmem>>, vector<1x32xf32>
    %13 = vector.broadcast %12 : vector<1x32xf32> to vector<16x32xf32>
    %14 = arith.addf %11, %13 : vector<16x32xf32>
    %15 = arith.addf %0, %14 : vector<16x32xf32>
    %cst_11 = arith.constant dense<0.000000e+00> : vector<16xf32>
    %16 = vector.multi_reduction <add>, %15, %cst_11 [1] : vector<16x32xf32> to vector<16xf32>
    %17 = vector.shape_cast %16 : vector<16xf32> to vector<16x1xf32>
    %cst_12 = arith.constant 3.200000e+01 : f32
    %18 = vector.broadcast %cst_12 : f32 to vector<16x1xf32>
    %19 = arith.divf %17, %18 : vector<16x1xf32>
    %20 = vector.broadcast %19 : vector<16x1xf32> to vector<16x32xf32>
    %21 = arith.subf %15, %20 : vector<16x32xf32>
    %22 = arith.mulf %21, %21 : vector<16x32xf32>
    %cst_13 = arith.constant dense<0.000000e+00> : vector<16xf32>
    %23 = vector.multi_reduction <add>, %22, %cst_13 [1] : vector<16x32xf32> to vector<16xf32>
    %24 = vector.shape_cast %23 : vector<16xf32> to vector<16x1xf32>
    %cst_14 = arith.constant 3.200000e+01 : f32
    %25 = vector.broadcast %cst_14 : f32 to vector<16x1xf32>
    %26 = arith.divf %24, %25 : vector<16x1xf32>
    %27 = vector.broadcast %19 : vector<16x1xf32> to vector<16x32xf32>
    %28 = arith.subf %15, %27 : vector<16x32xf32>
    %cst_15 = arith.constant 9.99999974E-6 : f32
    %29 = vector.broadcast %cst_15 : f32 to vector<16x1xf32>
    %30 = arith.addf %26, %29 : vector<16x1xf32>
    %31 = math.rsqrt %30 : vector<16x1xf32>
    %32 = vector.broadcast %31 : vector<16x1xf32> to vector<16x32xf32>
    %33 = arith.mulf %28, %32 : vector<16x32xf32>
    %c0_16 = arith.constant 0 : index
    %c0_17 = arith.constant 0 : index
    %34 = vector.load %arg6[%c0_16, %c0_17] : memref<1x32xf32, #tpu.memory_space<vmem>>, vector<1x32xf32>
    %35 = vector.broadcast %34 : vector<1x32xf32> to vector<16x32xf32>
    %36 = arith.mulf %33, %35 : vector<16x32xf32>
    %c0_18 = arith.constant 0 : index
    %c0_19 = arith.constant 0 : index
    %37 = vector.load %arg7[%c0_18, %c0_19] : memref<1x32xf32, #tpu.memory_space<vmem>>, vector<1x32xf32>
    %38 = vector.broadcast %37 : vector<1x32xf32> to vector<16x32xf32>
    %39 = arith.addf %36, %38 : vector<16x32xf32>
    %c0_20 = arith.constant 0 : index
    %c0_21 = arith.constant 0 : index
    %40 = vector.load %arg8[%c0_20, %c0_21] : memref<16x32xf32, #tpu.memory_space<vmem>>, vector<16x32xf32>
    tpu.vector_store %arg8[%c0_20, %c0_21], %39 {strides = array<i32>} : memref<16x32xf32, #tpu.memory_space<vmem>>, vector<16x32xf32>,
    return
  }
  func.func @transform_0(%arg0: i32) -> (i32, i32) {
    %c0_i32 = arith.constant 0 : i32
    %c0_i32_0 = arith.constant 0 : i32
    return %arg0, %c0_i32 : i32, i32
  }
  func.func @transform_1(%arg0: i32) -> (i32, i32) {
    %c0_i32 = arith.constant 0 : i32
    %c0_i32_0 = arith.constant 0 : i32
    %c0_i32_1 = arith.constant 0 : i32
    return %c0_i32, %c0_i32_0 : i32, i32
  }
  func.func @transform_2(%arg0: i32) -> (i32, i32) {
    %c0_i32 = arith.constant 0 : i32
    %c0_i32_0 = arith.constant 0 : i32
    %c0_i32_1 = arith.constant 0 : i32
    return %c0_i32, %c0_i32_0 : i32, i32
  }
  func.func @transform_3(%arg0: i32) -> (i32, i32) {
    %c0_i32 = arith.constant 0 : i32
    %c0_i32_0 = arith.constant 0 : i32
    %c0_i32_1 = arith.constant 0 : i32
    return %c0_i32, %c0_i32_0 : i32, i32
  }
  func.func @transform_4(%arg0: i32) -> (i32, i32) {
    %c0_i32 = arith.constant 0 : i32
    %c0_i32_0 = arith.constant 0 : i32
    %c0_i32_1 = arith.constant 0 : i32
    return %c0_i32, %c0_i32_0 : i32, i32
  }
  func.func @transform_5(%arg0: i32) -> (i32, i32) {
    %c0_i32 = arith.constant 0 : i32
    %c0_i32_0 = arith.constant 0 : i32
    %c0_i32_1 = arith.constant 0 : i32
    return %c0_i32, %c0_i32_0 : i32, i32
  }
  func.func @transform_6(%arg0: i32) -> (i32, i32) {
    %c0_i32 = arith.constant 0 : i32
    %c0_i32_0 = arith.constant 0 : i32
    %c0_i32_1 = arith.constant 0 : i32
    return %c0_i32, %c0_i32_0 : i32, i32
  }
  func.func @transform_7(%arg0: i32) -> (i32, i32) {
    %c0_i32 = arith.constant 0 : i32
    %c0_i32_0 = arith.constant 0 : i32
    return %arg0, %c0_i32 : i32, i32
  }
}

module attributes {stable_mosaic.version = 11 : i64} {
  func.func @_mha_block_kernel(%arg0: i32, %arg1: memref<1x8x32xf32, #tpu.memory_space<vmem>>, %arg2: memref<1x10x32xf32, #tpu.memory_space<vmem>>, %arg3: memref<4x32x8xbf16, #tpu.memory_space<vmem>>, %arg4: memref<4x1x8xf32, #tpu.memory_space<vmem>>, %arg5: memref<4x32x8xbf16, #tpu.memory_space<vmem>>, %arg6: memref<4x1x8xf32, #tpu.memory_space<vmem>>, %arg7: memref<4x32x8xbf16, #tpu.memory_space<vmem>>, %arg8: memref<4x1x8xf32, #tpu.memory_space<vmem>>, %arg9: memref<4x8x32xbf16, #tpu.memory_space<vmem>>, %arg10: memref<1x32xf32, #tpu.memory_space<vmem>>, %arg11: memref<8x10xf32, #tpu.memory_space<vmem>>, %arg12: memref<1x1x10xf32, #tpu.memory_space<vmem>>, %arg13: memref<1x32xf32, #tpu.memory_space<vmem>>, %arg14: memref<1x32xf32, #tpu.memory_space<vmem>>, %arg15: memref<1x8x32xf32, #tpu.memory_space<vmem>>) attributes {dimension_semantics = [#tpu.dimension_semantics<parallel>], iteration_bounds = array<i64: 2>, scalar_prefetch = 0 : i64, scratch_operands = 0 : i64, tpu.core_type = #tpu.core_type<tc>, window_params = [{transform_indices = @transform_0, window_bounds = array<i64: 1, 8, 32>}, {transform_indices = @transform_1, window_bounds = array<i64: 1, 10, 32>}, {pipeline_mode = #tpu.pipeline_mode<synchronous>, transform_indices = @transform_2, window_bounds = array<i64: 4, 32, 8>}, {pipeline_mode = #tpu.pipeline_mode<synchronous>, transform_indices = @transform_3, window_bounds = array<i64: 4, 1, 8>}, {pipeline_mode = #tpu.pipeline_mode<synchronous>, transform_indices = @transform_4, window_bounds = array<i64: 4, 32, 8>}, {pipeline_mode = #tpu.pipeline_mode<synchronous>, transform_indices = @transform_5, window_bounds = array<i64: 4, 1, 8>}, {pipeline_mode = #tpu.pipeline_mode<synchronous>, transform_indices = @transform_6, window_bounds = array<i64: 4, 32, 8>}, {pipeline_mode = #tpu.pipeline_mode<synchronous>, transform_indices = @transform_7, window_bounds = array<i64: 4, 1, 8>}, {pipeline_mode = #tpu.pipeline_mode<synchronous>, transform_indices = @transform_8, window_bounds = array<i64: 4, 8, 32>}, {pipeline_mode = #tpu.pipeline_mode<synchronous>, transform_indices = @transform_9, window_bounds = array<i64: 1, 32>}, {pipeline_mode = #tpu.pipeline_mode<synchronous>, transform_indices = @transform_10, window_bounds = array<i64: 8, 10>}, {transform_indices = @transform_11, window_bounds = array<i64: 1, 1, 10>}, {pipeline_mode = #tpu.pipeline_mode<synchronous>, transform_indices = @transform_12, window_bounds = array<i64: 1, 32>}, {pipeline_mode = #tpu.pipeline_mode<synchronous>, transform_indices = @transform_13, window_bounds = array<i64: 1, 32>}, {transform_indices = @transform_14, window_bounds = array<i64: 1, 8, 32>}]} {
    %c0 = arith.constant 0 : index
    %c0_0 = arith.constant 0 : index
    %c0_1 = arith.constant 0 : index
    %0 = vector.load %arg1[%c0, %c0_0, %c0_1] : memref<1x8x32xf32, #tpu.memory_space<vmem>>, vector<1x8x32xf32>
    %1 = vector.shape_cast %0 : vector<1x8x32xf32> to vector<8x32xf32>
    %2 = arith.truncf %1 : vector<8x32xf32> to vector<8x32xbf16>
    %c0_2 = arith.constant 0 : index
    %c0_3 = arith.constant 0 : index
    %c0_4 = arith.constant 0 : index
    %3 = vector.load %arg2[%c0_2, %c0_3, %c0_4] : memref<1x10x32xf32, #tpu.memory_space<vmem>>, vector<1x10x32xf32>
    %4 = vector.shape_cast %3 : vector<1x10x32xf32> to vector<10x32xf32>
    %5 = arith.truncf %4 : vector<10x32xf32> to vector<10x32xbf16>
    %c0_5 = arith.constant 0 : index
    %c0_6 = arith.constant 0 : index
    %6 = vector.load %arg11[%c0_5, %c0_6] : memref<8x10xf32, #tpu.memory_space<vmem>>, vector<8x10xf32>
    %7 = vector.shape_cast %6 : vector<8x10xf32> to vector<1x8x10xf32>
    %c0_7 = arith.constant 0 : index
    %c0_8 = arith.constant 0 : index
    %c0_9 = arith.constant 0 : index
    %8 = vector.load %arg12[%c0_7, %c0_8, %c0_9] : memref<1x1x10xf32, #tpu.memory_space<vmem>>, vector<1x1x10xf32>
    %9 = vector.broadcast %8 : vector<1x1x10xf32> to vector<1x8x10xf32>
    %10 = arith.addf %7, %9 : vector<1x8x10xf32>
    %cst = arith.constant 0.000000e+00 : f32
    %11 = vector.broadcast %cst : f32 to vector<8x32xf32>
    %c0_10 = arith.constant 0 : index
    %c0_11 = arith.constant 0 : index
    %c0_12 = arith.constant 0 : index
    %12 = vector.load %arg3[%c0_10, %c0_11, %c0_12] : memref<4x32x8xbf16, #tpu.memory_space<vmem>>, vector<1x32x8xbf16>
    %13 = vector.shape_cast %12 : vector<1x32x8xbf16> to vector<32x8xbf16>
    %cst_13 = arith.constant dense<0.000000e+00> : vector<8x8xf32>
    %14 = tpu.matmul %2, %13, %cst_13 {dimension_numbers = #tpu.dot_dimension_numbers<[1], [0], [0], [1], [0, 0, 1, 1], [], []>} : vector<8x32xbf16>, vector<32x8xbf16>, vector<8x8xf32> -> vector<8x8xf32>
    %c0_14 = arith.constant 0 : index
    %c0_15 = arith.constant 0 : index
    %c0_16 = arith.constant 0 : index
    %15 = vector.load %arg4[%c0_14, %c0_15, %c0_16] : memref<4x1x8xf32, #tpu.memory_space<vmem>>, vector<1x1x8xf32>
    %16 = vector.shape_cast %15 : vector<1x1x8xf32> to vector<1x8xf32>
    %17 = vector.broadcast %16 : vector<1x8xf32> to vector<8x8xf32>
    %18 = arith.addf %14, %17 : vector<8x8xf32>
    %19 = vector.shape_cast %18 : vector<8x8xf32> to vector<1x8x8xf32>
    %c0_17 = arith.constant 0 : index
    %c0_18 = arith.constant 0 : index
    %c0_19 = arith.constant 0 : index
    %20 = vector.load %arg5[%c0_17, %c0_18, %c0_19] : memref<4x32x8xbf16, #tpu.memory_space<vmem>>, vector<1x32x8xbf16>
    %21 = vector.shape_cast %20 : vector<1x32x8xbf16> to vector<32x8xbf16>
    %cst_20 = arith.constant dense<0.000000e+00> : vector<10x8xf32>
    %22 = tpu.matmul %5, %21, %cst_20 {dimension_numbers = #tpu.dot_dimension_numbers<[1], [0], [0], [1], [0, 0, 1, 1], [], []>} : vector<10x32xbf16>, vector<32x8xbf16>, vector<10x8xf32> -> vector<10x8xf32>
    %c0_21 = arith.constant 0 : index
    %c0_22 = arith.constant 0 : index
    %c0_23 = arith.constant 0 : index
    %23 = vector.load %arg6[%c0_21, %c0_22, %c0_23] : memref<4x1x8xf32, #tpu.memory_space<vmem>>, vector<1x1x8xf32>
    %24 = vector.shape_cast %23 : vector<1x1x8xf32> to vector<1x8xf32>
    %25 = vector.broadcast %24 : vector<1x8xf32> to vector<10x8xf32>
    %26 = arith.addf %22, %25 : vector<10x8xf32>
    %27 = vector.shape_cast %26 : vector<10x8xf32> to vector<1x10x8xf32>
    %c0_24 = arith.constant 0 : index
    %c0_25 = arith.constant 0 : index
    %c0_26 = arith.constant 0 : index
    %28 = vector.load %arg7[%c0_24, %c0_25, %c0_26] : memref<4x32x8xbf16, #tpu.memory_space<vmem>>, vector<1x32x8xbf16>
    %29 = vector.shape_cast %28 : vector<1x32x8xbf16> to vector<32x8xbf16>
    %cst_27 = arith.constant dense<0.000000e+00> : vector<10x8xf32>
    %30 = tpu.matmul %5, %29, %cst_27 {dimension_numbers = #tpu.dot_dimension_numbers<[1], [0], [0], [1], [0, 0, 1, 1], [], []>} : vector<10x32xbf16>, vector<32x8xbf16>, vector<10x8xf32> -> vector<10x8xf32>
    %c0_28 = arith.constant 0 : index
    %c0_29 = arith.constant 0 : index
    %c0_30 = arith.constant 0 : index
    %31 = vector.load %arg8[%c0_28, %c0_29, %c0_30] : memref<4x1x8xf32, #tpu.memory_space<vmem>>, vector<1x1x8xf32>
    %32 = vector.shape_cast %31 : vector<1x1x8xf32> to vector<1x8xf32>
    %33 = vector.broadcast %32 : vector<1x8xf32> to vector<10x8xf32>
    %34 = arith.addf %30, %33 : vector<10x8xf32>
    %35 = vector.shape_cast %34 : vector<10x8xf32> to vector<1x10x8xf32>
    %36 = arith.truncf %19 : vector<1x8x8xf32> to vector<1x8x8xbf16>
    %37 = arith.truncf %27 : vector<1x10x8xf32> to vector<1x10x8xbf16>
    "tpu.trace_start"() <{level = 10 : i32, message = "nqd,nkd->nqk"}> : () -> ()
    %cst_31 = arith.constant dense<0.000000e+00> : vector<1x8x10xf32>
    %38 = tpu.matmul %36, %37, %cst_31 {dimension_numbers = #tpu.dot_dimension_numbers<[2], [2], [1], [1], [0, 0, 0, 1, 1, 1], [0], [0]>} : vector<1x8x8xbf16>, vector<1x10x8xbf16>, vector<1x8x10xf32> -> vector<1x8x10xf32>
    "tpu.trace_stop"() : () -> ()
    %cst_32 = arith.constant 0.353553385 : f32
    %39 = vector.broadcast %cst_32 : f32 to vector<1x8x10xf32>
    %40 = arith.mulf %38, %39 : vector<1x8x10xf32>
    %41 = arith.addf %40, %10 : vector<1x8x10xf32>
    %cst_33 = arith.constant dense<0xFF800000> : vector<1x8xf32>
    %42 = vector.multi_reduction <maximumf>, %41, %cst_33 [2] : vector<1x8x10xf32> to vector<1x8xf32>
    %43 = vector.shape_cast %42 : vector<1x8xf32> to vector<1x8x1xf32>
    %44 = vector.broadcast %43 : vector<1x8x1xf32> to vector<1x8x10xf32>
    %45 = arith.subf %41, %44 : vector<1x8x10xf32>
    %46 = math.exp %45 : vector<1x8x10xf32>
    %cst_34 = arith.constant dense<0.000000e+00> : vector<1x8xf32>
    %47 = vector.multi_reduction <add>, %46, %cst_34 [2] : vector<1x8x10xf32> to vector<1x8xf32>
    %48 = vector.shape_cast %47 : vector<1x8xf32> to vector<1x8x1xf32>
    %49 = tpu.reciprocal %48 {approx = true} : vector<1x8x1xf32> -> vector<1x8x1xf32>
    %50 = vector.broadcast %49 : vector<1x8x1xf32> to vector<1x8x10xf32>
    %51 = arith.mulf %46, %50 : vector<1x8x10xf32>
    %52 = arith.truncf %51 : vector<1x8x10xf32> to vector<1x8x10xbf16>
    %53 = arith.truncf %35 : vector<1x10x8xf32> to vector<1x10x8xbf16>
    "tpu.trace_start"() <{level = 10 : i32, message = "nqk,nkd->nqd"}> : () -> ()
    %cst_35 = arith.constant dense<0.000000e+00> : vector<1x8x8xf32>
    %54 = tpu.matmul %52, %53, %cst_35 {dimension_numbers = #tpu.dot_dimension_numbers<[2], [1], [1], [2], [0, 0, 0, 1, 1, 2], [0], [0]>} : vector<1x8x10xbf16>, vector<1x10x8xbf16>, vector<1x8x8xf32> -> vector<1x8x8xf32>
    "tpu.trace_stop"() : () -> ()
    %55 = vector.shape_cast %54 : vector<1x8x8xf32> to vector<8x8xf32>
    %56 = arith.truncf %55 : vector<8x8xf32> to vector<8x8xbf16>
    %c0_36 = arith.constant 0 : index
    %c0_37 = arith.constant 0 : index
    %c0_38 = arith.constant 0 : index
    %57 = vector.load %arg9[%c0_36, %c0_37, %c0_38] : memref<4x8x32xbf16, #tpu.memory_space<vmem>>, vector<1x8x32xbf16>
    %58 = vector.shape_cast %57 : vector<1x8x32xbf16> to vector<8x32xbf16>
    %cst_39 = arith.constant dense<0.000000e+00> : vector<8x32xf32>
    %59 = tpu.matmul %56, %58, %cst_39 {dimension_numbers = #tpu.dot_dimension_numbers<[1], [0], [0], [1], [0, 0, 1, 1], [], []>} : vector<8x8xbf16>, vector<8x32xbf16>, vector<8x32xf32> -> vector<8x32xf32>
    %60 = arith.addf %11, %59 : vector<8x32xf32>
    %c1 = arith.constant 1 : index
    %c0_40 = arith.constant 0 : index
    %c0_41 = arith.constant 0 : index
    %61 = vector.load %arg3[%c1, %c0_40, %c0_41] : memref<4x32x8xbf16, #tpu.memory_space<vmem>>, vector<1x32x8xbf16>
    %62 = vector.shape_cast %61 : vector<1x32x8xbf16> to vector<32x8xbf16>
    %cst_42 = arith.constant dense<0.000000e+00> : vector<8x8xf32>
    %63 = tpu.matmul %2, %62, %cst_42 {dimension_numbers = #tpu.dot_dimension_numbers<[1], [0], [0], [1], [0, 0, 1, 1], [], []>} : vector<8x32xbf16>, vector<32x8xbf16>, vector<8x8xf32> -> vector<8x8xf32>
    %c1_43 = arith.constant 1 : index
    %c0_44 = arith.constant 0 : index
    %c0_45 = arith.constant 0 : index
    %64 = vector.load %arg4[%c1_43, %c0_44, %c0_45] : memref<4x1x8xf32, #tpu.memory_space<vmem>>, vector<1x1x8xf32>
    %65 = vector.shape_cast %64 : vector<1x1x8xf32> to vector<1x8xf32>
    %66 = vector.broadcast %65 : vector<1x8xf32> to vector<8x8xf32>
    %67 = arith.addf %63, %66 : vector<8x8xf32>
    %68 = vector.shape_cast %67 : vector<8x8xf32> to vector<1x8x8xf32>
    %c1_46 = arith.constant 1 : index
    %c0_47 = arith.constant 0 : index
    %c0_48 = arith.constant 0 : index
    %69 = vector.load %arg5[%c1_46, %c0_47, %c0_48] : memref<4x32x8xbf16, #tpu.memory_space<vmem>>, vector<1x32x8xbf16>
    %70 = vector.shape_cast %69 : vector<1x32x8xbf16> to vector<32x8xbf16>
    %cst_49 = arith.constant dense<0.000000e+00> : vector<10x8xf32>
    %71 = tpu.matmul %5, %70, %cst_49 {dimension_numbers = #tpu.dot_dimension_numbers<[1], [0], [0], [1], [0, 0, 1, 1], [], []>} : vector<10x32xbf16>, vector<32x8xbf16>, vector<10x8xf32> -> vector<10x8xf32>
    %c1_50 = arith.constant 1 : index
    %c0_51 = arith.constant 0 : index
    %c0_52 = arith.constant 0 : index
    %72 = vector.load %arg6[%c1_50, %c0_51, %c0_52] : memref<4x1x8xf32, #tpu.memory_space<vmem>>, vector<1x1x8xf32>
    %73 = vector.shape_cast %72 : vector<1x1x8xf32> to vector<1x8xf32>
    %74 = vector.broadcast %73 : vector<1x8xf32> to vector<10x8xf32>
    %75 = arith.addf %71, %74 : vector<10x8xf32>
    %76 = vector.shape_cast %75 : vector<10x8xf32> to vector<1x10x8xf32>
    %c1_53 = arith.constant 1 : index
    %c0_54 = arith.constant 0 : index
    %c0_55 = arith.constant 0 : index
    %77 = vector.load %arg7[%c1_53, %c0_54, %c0_55] : memref<4x32x8xbf16, #tpu.memory_space<vmem>>, vector<1x32x8xbf16>
    %78 = vector.shape_cast %77 : vector<1x32x8xbf16> to vector<32x8xbf16>
    %cst_56 = arith.constant dense<0.000000e+00> : vector<10x8xf32>
    %79 = tpu.matmul %5, %78, %cst_56 {dimension_numbers = #tpu.dot_dimension_numbers<[1], [0], [0], [1], [0, 0, 1, 1], [], []>} : vector<10x32xbf16>, vector<32x8xbf16>, vector<10x8xf32> -> vector<10x8xf32>
    %c1_57 = arith.constant 1 : index
    %c0_58 = arith.constant 0 : index
    %c0_59 = arith.constant 0 : index
    %80 = vector.load %arg8[%c1_57, %c0_58, %c0_59] : memref<4x1x8xf32, #tpu.memory_space<vmem>>, vector<1x1x8xf32>
    %81 = vector.shape_cast %80 : vector<1x1x8xf32> to vector<1x8xf32>
    %82 = vector.broadcast %81 : vector<1x8xf32> to vector<10x8xf32>
    %83 = arith.addf %79, %82 : vector<10x8xf32>
    %84 = vector.shape_cast %83 : vector<10x8xf32> to vector<1x10x8xf32>
    %85 = arith.truncf %68 : vector<1x8x8xf32> to vector<1x8x8xbf16>
    %86 = arith.truncf %76 : vector<1x10x8xf32> to vector<1x10x8xbf16>
    "tpu.trace_start"() <{level = 10 : i32, message = "nqd,nkd->nqk"}> : () -> ()
    %cst_60 = arith.constant dense<0.000000e+00> : vector<1x8x10xf32>
    %87 = tpu.matmul %85, %86, %cst_60 {dimension_numbers = #tpu.dot_dimension_numbers<[2], [2], [1], [1], [0, 0, 0, 1, 1, 1], [0], [0]>} : vector<1x8x8xbf16>, vector<1x10x8xbf16>, vector<1x8x10xf32> -> vector<1x8x10xf32>
    "tpu.trace_stop"() : () -> ()
    %cst_61 = arith.constant 0.353553385 : f32
    %88 = vector.broadcast %cst_61 : f32 to vector<1x8x10xf32>
    %89 = arith.mulf %87, %88 : vector<1x8x10xf32>
    %90 = arith.addf %89, %10 : vector<1x8x10xf32>
    %cst_62 = arith.constant dense<0xFF800000> : vector<1x8xf32>
    %91 = vector.multi_reduction <maximumf>, %90, %cst_62 [2] : vector<1x8x10xf32> to vector<1x8xf32>
    %92 = vector.shape_cast %91 : vector<1x8xf32> to vector<1x8x1xf32>
    %93 = vector.broadcast %92 : vector<1x8x1xf32> to vector<1x8x10xf32>
    %94 = arith.subf %90, %93 : vector<1x8x10xf32>
    %95 = math.exp %94 : vector<1x8x10xf32>
    %cst_63 = arith.constant dense<0.000000e+00> : vector<1x8xf32>
    %96 = vector.multi_reduction <add>, %95, %cst_63 [2] : vector<1x8x10xf32> to vector<1x8xf32>
    %97 = vector.shape_cast %96 : vector<1x8xf32> to vector<1x8x1xf32>
    %98 = tpu.reciprocal %97 {approx = true} : vector<1x8x1xf32> -> vector<1x8x1xf32>
    %99 = vector.broadcast %98 : vector<1x8x1xf32> to vector<1x8x10xf32>
    %100 = arith.mulf %95, %99 : vector<1x8x10xf32>
    %101 = arith.truncf %100 : vector<1x8x10xf32> to vector<1x8x10xbf16>
    %102 = arith.truncf %84 : vector<1x10x8xf32> to vector<1x10x8xbf16>
    "tpu.trace_start"() <{level = 10 : i32, message = "nqk,nkd->nqd"}> : () -> ()
    %cst_64 = arith.constant dense<0.000000e+00> : vector<1x8x8xf32>
    %103 = tpu.matmul %101, %102, %cst_64 {dimension_numbers = #tpu.dot_dimension_numbers<[2], [1], [1], [2], [0, 0, 0, 1, 1, 2], [0], [0]>} : vector<1x8x10xbf16>, vector<1x10x8xbf16>, vector<1x8x8xf32> -> vector<1x8x8xf32>
    "tpu.trace_stop"() : () -> ()
    %104 = vector.shape_cast %103 : vector<1x8x8xf32> to vector<8x8xf32>
    %105 = arith.truncf %104 : vector<8x8xf32> to vector<8x8xbf16>
    %c1_65 = arith.constant 1 : index
    %c0_66 = arith.constant 0 : index
    %c0_67 = arith.constant 0 : index
    %106 = vector.load %arg9[%c1_65, %c0_66, %c0_67] : memref<4x8x32xbf16, #tpu.memory_space<vmem>>, vector<1x8x32xbf16>
    %107 = vector.shape_cast %106 : vector<1x8x32xbf16> to vector<8x32xbf16>
    %cst_68 = arith.constant dense<0.000000e+00> : vector<8x32xf32>
    %108 = tpu.matmul %105, %107, %cst_68 {dimension_numbers = #tpu.dot_dimension_numbers<[1], [0], [0], [1], [0, 0, 1, 1], [], []>} : vector<8x8xbf16>, vector<8x32xbf16>, vector<8x32xf32> -> vector<8x32xf32>
    %109 = arith.addf %60, %108 : vector<8x32xf32>
    %c2 = arith.constant 2 : index
    %c0_69 = arith.constant 0 : index
    %c0_70 = arith.constant 0 : index
    %110 = vector.load %arg3[%c2, %c0_69, %c0_70] : memref<4x32x8xbf16, #tpu.memory_space<vmem>>, vector<1x32x8xbf16>
    %111 = vector.shape_cast %110 : vector<1x32x8xbf16> to vector<32x8xbf16>
    %cst_71 = arith.constant dense<0.000000e+00> : vector<8x8xf32>
    %112 = tpu.matmul %2, %111, %cst_71 {dimension_numbers = #tpu.dot_dimension_numbers<[1], [0], [0], [1], [0, 0, 1, 1], [], []>} : vector<8x32xbf16>, vector<32x8xbf16>, vector<8x8xf32> -> vector<8x8xf32>
    %c2_72 = arith.constant 2 : index
    %c0_73 = arith.constant 0 : index
    %c0_74 = arith.constant 0 : index
    %113 = vector.load %arg4[%c2_72, %c0_73, %c0_74] : memref<4x1x8xf32, #tpu.memory_space<vmem>>, vector<1x1x8xf32>
    %114 = vector.shape_cast %113 : vector<1x1x8xf32> to vector<1x8xf32>
    %115 = vector.broadcast %114 : vector<1x8xf32> to vector<8x8xf32>
    %116 = arith.addf %112, %115 : vector<8x8xf32>
    %117 = vector.shape_cast %116 : vector<8x8xf32> to vector<1x8x8xf32>
    %c2_75 = arith.constant 2 : index
    %c0_76 = arith.constant 0 : index
    %c0_77 = arith.constant 0 : index
    %118 = vector.load %arg5[%c2_75, %c0_76, %c0_77] : memref<4x32x8xbf16, #tpu.memory_space<vmem>>, vector<1x32x8xbf16>
    %119 = vector.shape_cast %118 : vector<1x32x8xbf16> to vector<32x8xbf16>
    %cst_78 = arith.constant dense<0.000000e+00> : vector<10x8xf32>
    %120 = tpu.matmul %5, %119, %cst_78 {dimension_numbers = #tpu.dot_dimension_numbers<[1], [0], [0], [1], [0, 0, 1, 1], [], []>} : vector<10x32xbf16>, vector<32x8xbf16>, vector<10x8xf32> -> vector<10x8xf32>
    %c2_79 = arith.constant 2 : index
    %c0_80 = arith.constant 0 : index
    %c0_81 = arith.constant 0 : index
    %121 = vector.load %arg6[%c2_79, %c0_80, %c0_81] : memref<4x1x8xf32, #tpu.memory_space<vmem>>, vector<1x1x8xf32>
    %122 = vector.shape_cast %121 : vector<1x1x8xf32> to vector<1x8xf32>
    %123 = vector.broadcast %122 : vector<1x8xf32> to vector<10x8xf32>
    %124 = arith.addf %120, %123 : vector<10x8xf32>
    %125 = vector.shape_cast %124 : vector<10x8xf32> to vector<1x10x8xf32>
    %c2_82 = arith.constant 2 : index
    %c0_83 = arith.constant 0 : index
    %c0_84 = arith.constant 0 : index
    %126 = vector.load %arg7[%c2_82, %c0_83, %c0_84] : memref<4x32x8xbf16, #tpu.memory_space<vmem>>, vector<1x32x8xbf16>
    %127 = vector.shape_cast %126 : vector<1x32x8xbf16> to vector<32x8xbf16>
    %cst_85 = arith.constant dense<0.000000e+00> : vector<10x8xf32>
    %128 = tpu.matmul %5, %127, %cst_85 {dimension_numbers = #tpu.dot_dimension_numbers<[1], [0], [0], [1], [0, 0, 1, 1], [], []>} : vector<10x32xbf16>, vector<32x8xbf16>, vector<10x8xf32> -> vector<10x8xf32>
    %c2_86 = arith.constant 2 : index
    %c0_87 = arith.constant 0 : index
    %c0_88 = arith.constant 0 : index
    %129 = vector.load %arg8[%c2_86, %c0_87, %c0_88] : memref<4x1x8xf32, #tpu.memory_space<vmem>>, vector<1x1x8xf32>
    %130 = vector.shape_cast %129 : vector<1x1x8xf32> to vector<1x8xf32>
    %131 = vector.broadcast %130 : vector<1x8xf32> to vector<10x8xf32>
    %132 = arith.addf %128, %131 : vector<10x8xf32>
    %133 = vector.shape_cast %132 : vector<10x8xf32> to vector<1x10x8xf32>
    %134 = arith.truncf %117 : vector<1x8x8xf32> to vector<1x8x8xbf16>
    %135 = arith.truncf %125 : vector<1x10x8xf32> to vector<1x10x8xbf16>
    "tpu.trace_start"() <{level = 10 : i32, message = "nqd,nkd->nqk"}> : () -> ()
    %cst_89 = arith.constant dense<0.000000e+00> : vector<1x8x10xf32>
    %136 = tpu.matmul %134, %135, %cst_89 {dimension_numbers = #tpu.dot_dimension_numbers<[2], [2], [1], [1], [0, 0, 0, 1, 1, 1], [0], [0]>} : vector<1x8x8xbf16>, vector<1x10x8xbf16>, vector<1x8x10xf32> -> vector<1x8x10xf32>
    "tpu.trace_stop"() : () -> ()
    %cst_90 = arith.constant 0.353553385 : f32
    %137 = vector.broadcast %cst_90 : f32 to vector<1x8x10xf32>
    %138 = arith.mulf %136, %137 : vector<1x8x10xf32>
    %139 = arith.addf %138, %10 : vector<1x8x10xf32>
    %cst_91 = arith.constant dense<0xFF800000> : vector<1x8xf32>
    %140 = vector.multi_reduction <maximumf>, %139, %cst_91 [2] : vector<1x8x10xf32> to vector<1x8xf32>
    %141 = vector.shape_cast %140 : vector<1x8xf32> to vector<1x8x1xf32>
    %142 = vector.broadcast %141 : vector<1x8x1xf32> to vector<1x8x10xf32>
    %143 = arith.subf %139, %142 : vector<1x8x10xf32>
    %144 = math.exp %143 : vector<1x8x10xf32>
    %cst_92 = arith.constant dense<0.000000e+00> : vector<1x8xf32>
    %145 = vector.multi_reduction <add>, %144, %cst_92 [2] : vector<1x8x10xf32> to vector<1x8xf32>
    %146 = vector.shape_cast %145 : vector<1x8xf32> to vector<1x8x1xf32>
    %147 = tpu.reciprocal %146 {approx = true} : vector<1x8x1xf32> -> vector<1x8x1xf32>
    %148 = vector.broadcast %147 : vector<1x8x1xf32> to vector<1x8x10xf32>
    %149 = arith.mulf %144, %148 : vector<1x8x10xf32>
    %150 = arith.truncf %149 : vector<1x8x10xf32> to vector<1x8x10xbf16>
    %151 = arith.truncf %133 : vector<1x10x8xf32> to vector<1x10x8xbf16>
    "tpu.trace_start"() <{level = 10 : i32, message = "nqk,nkd->nqd"}> : () -> ()
    %cst_93 = arith.constant dense<0.000000e+00> : vector<1x8x8xf32>
    %152 = tpu.matmul %150, %151, %cst_93 {dimension_numbers = #tpu.dot_dimension_numbers<[2], [1], [1], [2], [0, 0, 0, 1, 1, 2], [0], [0]>} : vector<1x8x10xbf16>, vector<1x10x8xbf16>, vector<1x8x8xf32> -> vector<1x8x8xf32>
    "tpu.trace_stop"() : () -> ()
    %153 = vector.shape_cast %152 : vector<1x8x8xf32> to vector<8x8xf32>
    %154 = arith.truncf %153 : vector<8x8xf32> to vector<8x8xbf16>
    %c2_94 = arith.constant 2 : index
    %c0_95 = arith.constant 0 : index
    %c0_96 = arith.constant 0 : index
    %155 = vector.load %arg9[%c2_94, %c0_95, %c0_96] : memref<4x8x32xbf16, #tpu.memory_space<vmem>>, vector<1x8x32xbf16>
    %156 = vector.shape_cast %155 : vector<1x8x32xbf16> to vector<8x32xbf16>
    %cst_97 = arith.constant dense<0.000000e+00> : vector<8x32xf32>
    %157 = tpu.matmul %154, %156, %cst_97 {dimension_numbers = #tpu.dot_dimension_numbers<[1], [0], [0], [1], [0, 0, 1, 1], [], []>} : vector<8x8xbf16>, vector<8x32xbf16>, vector<8x32xf32> -> vector<8x32xf32>
    %158 = arith.addf %109, %157 : vector<8x32xf32>
    %c3 = arith.constant 3 : index
    %c0_98 = arith.constant 0 : index
    %c0_99 = arith.constant 0 : index
    %159 = vector.load %arg3[%c3, %c0_98, %c0_99] : memref<4x32x8xbf16, #tpu.memory_space<vmem>>, vector<1x32x8xbf16>
    %160 = vector.shape_cast %159 : vector<1x32x8xbf16> to vector<32x8xbf16>
    %cst_100 = arith.constant dense<0.000000e+00> : vector<8x8xf32>
    %161 = tpu.matmul %2, %160, %cst_100 {dimension_numbers = #tpu.dot_dimension_numbers<[1], [0], [0], [1], [0, 0, 1, 1], [], []>} : vector<8x32xbf16>, vector<32x8xbf16>, vector<8x8xf32> -> vector<8x8xf32>
    %c3_101 = arith.constant 3 : index
    %c0_102 = arith.constant 0 : index
    %c0_103 = arith.constant 0 : index
    %162 = vector.load %arg4[%c3_101, %c0_102, %c0_103] : memref<4x1x8xf32, #tpu.memory_space<vmem>>, vector<1x1x8xf32>
    %163 = vector.shape_cast %162 : vector<1x1x8xf32> to vector<1x8xf32>
    %164 = vector.broadcast %163 : vector<1x8xf32> to vector<8x8xf32>
    %165 = arith.addf %161, %164 : vector<8x8xf32>
    %166 = vector.shape_cast %165 : vector<8x8xf32> to vector<1x8x8xf32>
    %c3_104 = arith.constant 3 : index
    %c0_105 = arith.constant 0 : index
    %c0_106 = arith.constant 0 : index
    %167 = vector.load %arg5[%c3_104, %c0_105, %c0_106] : memref<4x32x8xbf16, #tpu.memory_space<vmem>>, vector<1x32x8xbf16>
    %168 = vector.shape_cast %167 : vector<1x32x8xbf16> to vector<32x8xbf16>
    %cst_107 = arith.constant dense<0.000000e+00> : vector<10x8xf32>
    %169 = tpu.matmul %5, %168, %cst_107 {dimension_numbers = #tpu.dot_dimension_numbers<[1], [0], [0], [1], [0, 0, 1, 1], [], []>} : vector<10x32xbf16>, vector<32x8xbf16>, vector<10x8xf32> -> vector<10x8xf32>
    %c3_108 = arith.constant 3 : index
    %c0_109 = arith.constant 0 : index
    %c0_110 = arith.constant 0 : index
    %170 = vector.load %arg6[%c3_108, %c0_109, %c0_110] : memref<4x1x8xf32, #tpu.memory_space<vmem>>, vector<1x1x8xf32>
    %171 = vector.shape_cast %170 : vector<1x1x8xf32> to vector<1x8xf32>
    %172 = vector.broadcast %171 : vector<1x8xf32> to vector<10x8xf32>
    %173 = arith.addf %169, %172 : vector<10x8xf32>
    %174 = vector.shape_cast %173 : vector<10x8xf32> to vector<1x10x8xf32>
    %c3_111 = arith.constant 3 : index
    %c0_112 = arith.constant 0 : index
    %c0_113 = arith.constant 0 : index
    %175 = vector.load %arg7[%c3_111, %c0_112, %c0_113] : memref<4x32x8xbf16, #tpu.memory_space<vmem>>, vector<1x32x8xbf16>
    %176 = vector.shape_cast %175 : vector<1x32x8xbf16> to vector<32x8xbf16>
    %cst_114 = arith.constant dense<0.000000e+00> : vector<10x8xf32>
    %177 = tpu.matmul %5, %176, %cst_114 {dimension_numbers = #tpu.dot_dimension_numbers<[1], [0], [0], [1], [0, 0, 1, 1], [], []>} : vector<10x32xbf16>, vector<32x8xbf16>, vector<10x8xf32> -> vector<10x8xf32>
    %c3_115 = arith.constant 3 : index
    %c0_116 = arith.constant 0 : index
    %c0_117 = arith.constant 0 : index
    %178 = vector.load %arg8[%c3_115, %c0_116, %c0_117] : memref<4x1x8xf32, #tpu.memory_space<vmem>>, vector<1x1x8xf32>
    %179 = vector.shape_cast %178 : vector<1x1x8xf32> to vector<1x8xf32>
    %180 = vector.broadcast %179 : vector<1x8xf32> to vector<10x8xf32>
    %181 = arith.addf %177, %180 : vector<10x8xf32>
    %182 = vector.shape_cast %181 : vector<10x8xf32> to vector<1x10x8xf32>
    %183 = arith.truncf %166 : vector<1x8x8xf32> to vector<1x8x8xbf16>
    %184 = arith.truncf %174 : vector<1x10x8xf32> to vector<1x10x8xbf16>
    "tpu.trace_start"() <{level = 10 : i32, message = "nqd,nkd->nqk"}> : () -> ()
    %cst_118 = arith.constant dense<0.000000e+00> : vector<1x8x10xf32>
    %185 = tpu.matmul %183, %184, %cst_118 {dimension_numbers = #tpu.dot_dimension_numbers<[2], [2], [1], [1], [0, 0, 0, 1, 1, 1], [0], [0]>} : vector<1x8x8xbf16>, vector<1x10x8xbf16>, vector<1x8x10xf32> -> vector<1x8x10xf32>
    "tpu.trace_stop"() : () -> ()
    %cst_119 = arith.constant 0.353553385 : f32
    %186 = vector.broadcast %cst_119 : f32 to vector<1x8x10xf32>
    %187 = arith.mulf %185, %186 : vector<1x8x10xf32>
    %188 = arith.addf %187, %10 : vector<1x8x10xf32>
    %cst_120 = arith.constant dense<0xFF800000> : vector<1x8xf32>
    %189 = vector.multi_reduction <maximumf>, %188, %cst_120 [2] : vector<1x8x10xf32> to vector<1x8xf32>
    %190 = vector.shape_cast %189 : vector<1x8xf32> to vector<1x8x1xf32>
    %191 = vector.broadcast %190 : vector<1x8x1xf32> to vector<1x8x10xf32>
    %192 = arith.subf %188, %191 : vector<1x8x10xf32>
    %193 = math.exp %192 : vector<1x8x10xf32>
    %cst_121 = arith.constant dense<0.000000e+00> : vector<1x8xf32>
    %194 = vector.multi_reduction <add>, %193, %cst_121 [2] : vector<1x8x10xf32> to vector<1x8xf32>
    %195 = vector.shape_cast %194 : vector<1x8xf32> to vector<1x8x1xf32>
    %196 = tpu.reciprocal %195 {approx = true} : vector<1x8x1xf32> -> vector<1x8x1xf32>
    %197 = vector.broadcast %196 : vector<1x8x1xf32> to vector<1x8x10xf32>
    %198 = arith.mulf %193, %197 : vector<1x8x10xf32>
    %199 = arith.truncf %198 : vector<1x8x10xf32> to vector<1x8x10xbf16>
    %200 = arith.truncf %182 : vector<1x10x8xf32> to vector<1x10x8xbf16>
    "tpu.trace_start"() <{level = 10 : i32, message = "nqk,nkd->nqd"}> : () -> ()
    %cst_122 = arith.constant dense<0.000000e+00> : vector<1x8x8xf32>
    %201 = tpu.matmul %199, %200, %cst_122 {dimension_numbers = #tpu.dot_dimension_numbers<[2], [1], [1], [2], [0, 0, 0, 1, 1, 2], [0], [0]>} : vector<1x8x10xbf16>, vector<1x10x8xbf16>, vector<1x8x8xf32> -> vector<1x8x8xf32>
    "tpu.trace_stop"() : () -> ()
    %202 = vector.shape_cast %201 : vector<1x8x8xf32> to vector<8x8xf32>
    %203 = arith.truncf %202 : vector<8x8xf32> to vector<8x8xbf16>
    %c3_123 = arith.constant 3 : index
    %c0_124 = arith.constant 0 : index
    %c0_125 = arith.constant 0 : index
    %204 = vector.load %arg9[%c3_123, %c0_124, %c0_125] : memref<4x8x32xbf16, #tpu.memory_space<vmem>>, vector<1x8x32xbf16>
    %205 = vector.shape_cast %204 : vector<1x8x32xbf16> to vector<8x32xbf16>
    %cst_126 = arith.constant dense<0.000000e+00> : vector<8x32xf32>
    %206 = tpu.matmul %203, %205, %cst_126 {dimension_numbers = #tpu.dot_dimension_numbers<[1], [0], [0], [1], [0, 0, 1, 1], [], []>} : vector<8x8xbf16>, vector<8x32xbf16>, vector<8x32xf32> -> vector<8x32xf32>
    %207 = arith.addf %158, %206 : vector<8x32xf32>
    %c0_127 = arith.constant 0 : index
    %c0_128 = arith.constant 0 : index
    %208 = vector.load %arg10[%c0_127, %c0_128] : memref<1x32xf32, #tpu.memory_space<vmem>>, vector<1x32xf32>
    %209 = vector.broadcast %208 : vector<1x32xf32> to vector<8x32xf32>
    %210 = arith.addf %207, %209 : vector<8x32xf32>
    %211 = vector.shape_cast %0 : vector<1x8x32xf32> to vector<8x32xf32>
    %212 = arith.addf %211, %210 : vector<8x32xf32>
    %cst_129 = arith.constant dense<0.000000e+00> : vector<8xf32>
    %213 = vector.multi_reduction <add>, %212, %cst_129 [1] : vector<8x32xf32> to vector<8xf32>
    %214 = vector.shape_cast %213 : vector<8xf32> to vector<8x1xf32>
    %cst_130 = arith.constant 3.200000e+01 : f32
    %215 = vector.broadcast %cst_130 : f32 to vector<8x1xf32>
    %216 = arith.divf %214, %215 : vector<8x1xf32>
    %217 = vector.broadcast %216 : vector<8x1xf32> to vector<8x32xf32>
    %218 = arith.subf %212, %217 : vector<8x32xf32>
    %219 = arith.mulf %218, %218 : vector<8x32xf32>
    %cst_131 = arith.constant dense<0.000000e+00> : vector<8xf32>
    %220 = vector.multi_reduction <add>, %219, %cst_131 [1] : vector<8x32xf32> to vector<8xf32>
    %221 = vector.shape_cast %220 : vector<8xf32> to vector<8x1xf32>
    %cst_132 = arith.constant 3.200000e+01 : f32
    %222 = vector.broadcast %cst_132 : f32 to vector<8x1xf32>
    %223 = arith.divf %221, %222 : vector<8x1xf32>
    %224 = vector.broadcast %216 : vector<8x1xf32> to vector<8x32xf32>
    %225 = arith.subf %212, %224 : vector<8x32xf32>
    %cst_133 = arith.constant 9.99999974E-6 : f32
    %226 = vector.broadcast %cst_133 : f32 to vector<8x1xf32>
    %227 = arith.addf %223, %226 : vector<8x1xf32>
    %228 = math.rsqrt %227 : vector<8x1xf32>
    %229 = vector.broadcast %228 : vector<8x1xf32> to vector<8x32xf32>
    %230 = arith.mulf %225, %229 : vector<8x32xf32>
    %c0_134 = arith.constant 0 : index
    %c0_135 = arith.constant 0 : index
    %231 = vector.load %arg13[%c0_134, %c0_135] : memref<1x32xf32, #tpu.memory_space<vmem>>, vector<1x32xf32>
    %232 = vector.broadcast %231 : vector<1x32xf32> to vector<8x32xf32>
    %233 = arith.mulf %230, %232 : vector<8x32xf32>
    %c0_136 = arith.constant 0 : index
    %c0_137 = arith.constant 0 : index
    %234 = vector.load %arg14[%c0_136, %c0_137] : memref<1x32xf32, #tpu.memory_space<vmem>>, vector<1x32xf32>
    %235 = vector.broadcast %234 : vector<1x32xf32> to vector<8x32xf32>
    %236 = arith.addf %233, %235 : vector<8x32xf32>
    %237 = vector.shape_cast %236 : vector<8x32xf32> to vector<1x8x32xf32>
    %c0_138 = arith.constant 0 : index
    %c0_139 = arith.constant 0 : index
    %c0_140 = arith.constant 0 : index
    %238 = vector.load %arg15[%c0_138, %c0_139, %c0_140] : memref<1x8x32xf32, #tpu.memory_space<vmem>>, vector<1x8x32xf32>
    tpu.vector_store %arg15[%c0_138, %c0_139, %c0_140], %237 {strides = array<i32>} : memref<1x8x32xf32, #tpu.memory_space<vmem>>, vector<1x8x32xf32>,
    return
  }
  func.func @transform_0(%arg0: i32) -> (i32, i32, i32) {
    %c0_i32 = arith.constant 0 : i32
    %c0_i32_0 = arith.constant 0 : i32
    %c0_i32_1 = arith.constant 0 : i32
    return %arg0, %c0_i32, %c0_i32_0 : i32, i32, i32
  }
  func.func @transform_1(%arg0: i32) -> (i32, i32, i32) {
    %c0_i32 = arith.constant 0 : i32
    %c0_i32_0 = arith.constant 0 : i32
    %c0_i32_1 = arith.constant 0 : i32
    return %arg0, %c0_i32, %c0_i32_0 : i32, i32, i32
  }
  func.func @transform_2(%arg0: i32) -> (i32, i32, i32) {
    %c0_i32 = arith.constant 0 : i32
    %c0_i32_0 = arith.constant 0 : i32
    %c0_i32_1 = arith.constant 0 : i32
    %c0_i32_2 = arith.constant 0 : i32
    return %c0_i32, %c0_i32_0, %c0_i32_1 : i32, i32, i32
  }
  func.func @transform_3(%arg0: i32) -> (i32, i32, i32) {
    %c0_i32 = arith.constant 0 : i32
    %c0_i32_0 = arith.constant 0 : i32
    %c0_i32_1 = arith.constant 0 : i32
    %c0_i32_2 = arith.constant 0 : i32
    return %c0_i32, %c0_i32_0, %c0_i32_1 : i32, i32, i32
  }
  func.func @transform_4(%arg0: i32) -> (i32, i32, i32) {
    %c0_i32 = arith.constant 0 : i32
    %c0_i32_0 = arith.constant 0 : i32
    %c0_i32_1 = arith.constant 0 : i32
    %c0_i32_2 = arith.constant 0 : i32
    return %c0_i32, %c0_i32_0, %c0_i32_1 : i32, i32, i32
  }
  func.func @transform_5(%arg0: i32) -> (i32, i32, i32) {
    %c0_i32 = arith.constant 0 : i32
    %c0_i32_0 = arith.constant 0 : i32
    %c0_i32_1 = arith.constant 0 : i32
    %c0_i32_2 = arith.constant 0 : i32
    return %c0_i32, %c0_i32_0, %c0_i32_1 : i32, i32, i32
  }
  func.func @transform_6(%arg0: i32) -> (i32, i32, i32) {
    %c0_i32 = arith.constant 0 : i32
    %c0_i32_0 = arith.constant 0 : i32
    %c0_i32_1 = arith.constant 0 : i32
    %c0_i32_2 = arith.constant 0 : i32
    return %c0_i32, %c0_i32_0, %c0_i32_1 : i32, i32, i32
  }
  func.func @transform_7(%arg0: i32) -> (i32, i32, i32) {
    %c0_i32 = arith.constant 0 : i32
    %c0_i32_0 = arith.constant 0 : i32
    %c0_i32_1 = arith.constant 0 : i32
    %c0_i32_2 = arith.constant 0 : i32
    return %c0_i32, %c0_i32_0, %c0_i32_1 : i32, i32, i32
  }
  func.func @transform_8(%arg0: i32) -> (i32, i32, i32) {
    %c0_i32 = arith.constant 0 : i32
    %c0_i32_0 = arith.constant 0 : i32
    %c0_i32_1 = arith.constant 0 : i32
    %c0_i32_2 = arith.constant 0 : i32
    return %c0_i32, %c0_i32_0, %c0_i32_1 : i32, i32, i32
  }
  func.func @transform_9(%arg0: i32) -> (i32, i32) {
    %c0_i32 = arith.constant 0 : i32
    %c0_i32_0 = arith.constant 0 : i32
    %c0_i32_1 = arith.constant 0 : i32
    return %c0_i32, %c0_i32_0 : i32, i32
  }
  func.func @transform_10(%arg0: i32) -> (i32, i32) {
    %c0_i32 = arith.constant 0 : i32
    %c0_i32_0 = arith.constant 0 : i32
    %c0_i32_1 = arith.constant 0 : i32
    return %c0_i32, %c0_i32_0 : i32, i32
  }
  func.func @transform_11(%arg0: i32) -> (i32, i32, i32) {
    %c0_i32 = arith.constant 0 : i32
    %c0_i32_0 = arith.constant 0 : i32
    %c0_i32_1 = arith.constant 0 : i32
    return %arg0, %c0_i32, %c0_i32_0 : i32, i32, i32
  }
  func.func @transform_12(%arg0: i32) -> (i32, i32) {
    %c0_i32 = arith.constant 0 : i32
    %c0_i32_0 = arith.constant 0 : i32
    %c0_i32_1 = arith.constant 0 : i32
    return %c0_i32, %c0_i32_0 : i32, i32
  }
  func.func @transform_13(%arg0: i32) -> (i32, i32) {
    %c0_i32 = arith.constant 0 : i32
    %c0_i32_0 = arith.constant 0 : i32
    %c0_i32_1 = arith.constant 0 : i32
    return %c0_i32, %c0_i32_0 : i32, i32
  }
  func.func @transform_14(%arg0: i32) -> (i32, i32, i32) {
    %c0_i32 = arith.constant 0 : i32
    %c0_i32_0 = arith.constant 0 : i32
    %c0_i32_1 = arith.constant 0 : i32
    return %arg0, %c0_i32, %c0_i32_0 : i32, i32, i32
  }
}

module attributes {stable_mosaic.version = 11 : i64} {
  func.func @_ln_linear_kernel(%arg0: i32, %arg1: i32, %arg2: memref<16x32xf32, #tpu.memory_space<vmem>>, %arg3: memref<1x32xf32, #tpu.memory_space<vmem>>, %arg4: memref<1x32xf32, #tpu.memory_space<vmem>>, %arg5: memref<32x56xbf16, #tpu.memory_space<vmem>>, %arg6: memref<1x56xf32, #tpu.memory_space<vmem>>, %arg7: memref<16x56xf32, #tpu.memory_space<vmem>>) attributes {dimension_semantics = [#tpu.dimension_semantics<parallel>, #tpu.dimension_semantics<parallel>], iteration_bounds = array<i64: 1, 1>, scalar_prefetch = 0 : i64, scratch_operands = 0 : i64, tpu.core_type = #tpu.core_type<tc>, window_params = [{transform_indices = @transform_0, window_bounds = array<i64: 16, 32>}, {pipeline_mode = #tpu.pipeline_mode<synchronous>, transform_indices = @transform_1, window_bounds = array<i64: 1, 32>}, {pipeline_mode = #tpu.pipeline_mode<synchronous>, transform_indices = @transform_2, window_bounds = array<i64: 1, 32>}, {transform_indices = @transform_3, window_bounds = array<i64: 32, 56>}, {transform_indices = @transform_4, window_bounds = array<i64: 1, 56>}, {transform_indices = @transform_5, window_bounds = array<i64: 16, 56>}]} {
    %c0 = arith.constant 0 : index
    %c0_0 = arith.constant 0 : index
    %0 = vector.load %arg2[%c0, %c0_0] : memref<16x32xf32, #tpu.memory_space<vmem>>, vector<16x32xf32>
    %cst = arith.constant dense<0.000000e+00> : vector<16xf32>
    %1 = vector.multi_reduction <add>, %0, %cst [1] : vector<16x32xf32> to vector<16xf32>
    %2 = vector.shape_cast %1 : vector<16xf32> to vector<16x1xf32>
    %cst_1 = arith.constant 3.200000e+01 : f32
    %3 = vector.broadcast %cst_1 : f32 to vector<16x1xf32>
    %4 = arith.divf %2, %3 : vector<16x1xf32>
    %5 = vector.broadcast %4 : vector<16x1xf32> to vector<16x32xf32>
    %6 = arith.subf %0, %5 : vector<16x32xf32>
    %7 = arith.mulf %6, %6 : vector<16x32xf32>
    %cst_2 = arith.constant dense<0.000000e+00> : vector<16xf32>
    %8 = vector.multi_reduction <add>, %7, %cst_2 [1] : vector<16x32xf32> to vector<16xf32>
    %9 = vector.shape_cast %8 : vector<16xf32> to vector<16x1xf32>
    %cst_3 = arith.constant 3.200000e+01 : f32
    %10 = vector.broadcast %cst_3 : f32 to vector<16x1xf32>
    %11 = arith.divf %9, %10 : vector<16x1xf32>
    %12 = vector.broadcast %4 : vector<16x1xf32> to vector<16x32xf32>
    %13 = arith.subf %0, %12 : vector<16x32xf32>
    %cst_4 = arith.constant 9.99999974E-6 : f32
    %14 = vector.broadcast %cst_4 : f32 to vector<16x1xf32>
    %15 = arith.addf %11, %14 : vector<16x1xf32>
    %16 = math.rsqrt %15 : vector<16x1xf32>
    %17 = vector.broadcast %16 : vector<16x1xf32> to vector<16x32xf32>
    %18 = arith.mulf %13, %17 : vector<16x32xf32>
    %c0_5 = arith.constant 0 : index
    %c0_6 = arith.constant 0 : index
    %19 = vector.load %arg3[%c0_5, %c0_6] : memref<1x32xf32, #tpu.memory_space<vmem>>, vector<1x32xf32>
    %20 = vector.broadcast %19 : vector<1x32xf32> to vector<16x32xf32>
    %21 = arith.mulf %18, %20 : vector<16x32xf32>
    %c0_7 = arith.constant 0 : index
    %c0_8 = arith.constant 0 : index
    %22 = vector.load %arg4[%c0_7, %c0_8] : memref<1x32xf32, #tpu.memory_space<vmem>>, vector<1x32xf32>
    %23 = vector.broadcast %22 : vector<1x32xf32> to vector<16x32xf32>
    %24 = arith.addf %21, %23 : vector<16x32xf32>
    %25 = arith.truncf %24 : vector<16x32xf32> to vector<16x32xbf16>
    %c0_9 = arith.constant 0 : index
    %c0_10 = arith.constant 0 : index
    %26 = vector.load %arg5[%c0_9, %c0_10] : memref<32x56xbf16, #tpu.memory_space<vmem>>, vector<32x56xbf16>
    %cst_11 = arith.constant dense<0.000000e+00> : vector<16x56xf32>
    %27 = tpu.matmul %25, %26, %cst_11 {dimension_numbers = #tpu.dot_dimension_numbers<[1], [0], [0], [1], [0, 0, 1, 1], [], []>} : vector<16x32xbf16>, vector<32x56xbf16>, vector<16x56xf32> -> vector<16x56xf32>
    %c0_12 = arith.constant 0 : index
    %c0_13 = arith.constant 0 : index
    %28 = vector.load %arg6[%c0_12, %c0_13] : memref<1x56xf32, #tpu.memory_space<vmem>>, vector<1x56xf32>
    %29 = vector.broadcast %28 : vector<1x56xf32> to vector<16x56xf32>
    %30 = arith.addf %27, %29 : vector<16x56xf32>
    %c0_14 = arith.constant 0 : index
    %c0_15 = arith.constant 0 : index
    %31 = vector.load %arg7[%c0_14, %c0_15] : memref<16x56xf32, #tpu.memory_space<vmem>>, vector<16x56xf32>
    tpu.vector_store %arg7[%c0_14, %c0_15], %30 {strides = array<i32>} : memref<16x56xf32, #tpu.memory_space<vmem>>, vector<16x56xf32>,
    return
  }
  func.func @transform_0(%arg0: i32, %arg1: i32) -> (i32, i32) {
    %c0_i32 = arith.constant 0 : i32
    %c0_i32_0 = arith.constant 0 : i32
    return %arg0, %c0_i32 : i32, i32
  }
  func.func @transform_1(%arg0: i32, %arg1: i32) -> (i32, i32) {
    %c0_i32 = arith.constant 0 : i32
    %c0_i32_0 = arith.constant 0 : i32
    %c0_i32_1 = arith.constant 0 : i32
    return %c0_i32, %c0_i32_0 : i32, i32
  }
  func.func @transform_2(%arg0: i32, %arg1: i32) -> (i32, i32) {
    %c0_i32 = arith.constant 0 : i32
    %c0_i32_0 = arith.constant 0 : i32
    %c0_i32_1 = arith.constant 0 : i32
    return %c0_i32, %c0_i32_0 : i32, i32
  }
  func.func @transform_3(%arg0: i32, %arg1: i32) -> (i32, i32) {
    %c0_i32 = arith.constant 0 : i32
    %c0_i32_0 = arith.constant 0 : i32
    return %c0_i32, %arg1 : i32, i32
  }
  func.func @transform_4(%arg0: i32, %arg1: i32) -> (i32, i32) {
    %c0_i32 = arith.constant 0 : i32
    %c0_i32_0 = arith.constant 0 : i32
    return %c0_i32, %arg1 : i32, i32
  }
  func.func @transform_5(%arg0: i32, %arg1: i32) -> (i32, i32) {
    %c0_i32 = arith.constant 0 : i32
    return %arg0, %arg1 : i32, i32
  }
}

</mosaic_0001>

<llo_original>
// kernel: seq2seq_forward.16
$region0: #{seq2seq_forward.16}
  #allocation0 [shape = 'u32[]', space=smem, size = 0x4, offset = 0x4, fixed_abs, tag = 'smem constant byte address 0x4 - core index']
  #allocation1 [shape = 'u32[72,128]{1,0:T(1,128)}', space=vmem, size = 0x9000, scoped, tag = 'internal scratch']
  %s0 = inlined_call_operand.vmem [shape: f32[20,32], index: 0, kind: input, shape index: {}]
  %s1 = inlined_call_operand.vmem [shape: f32[1,32], index: 1, kind: input, shape index: {}]
  %s2 = inlined_call_operand.vmem [shape: f32[1,32], index: 2, kind: input, shape index: {}]
  %s3 = inlined_call_operand.vmem [shape: f32[20,32], index: 3, kind: output, shape index: {}]
  %s4 = sld [smem:[#allocation0]]
  $region22: #{seq2seq_forward.16} parent=0
    _
  %s6 = ssub.s32 1, %s4
  %s7 = scalar_select 0, %s6, %s4
  // Predicated region
  $region2: #{seq2seq_forward.16} parent=0 // pred_check
    _
  $region3: #{seq2seq_forward.16} parent=0 // pred_check_branch
    %9 = sbr.rel (0) target = $region5
  $region4: #{seq2seq_forward.16} parent=0 // pred_region
    _
  $region5: #{seq2seq_forward.16} parent=0 // pred_fallthru
    _
  // Predicated region
  $region6: #{seq2seq_forward.16} parent=0 // pred_check
    _
  $region7: #{seq2seq_forward.16} parent=0 // pred_check_branch
    %11 = sbr.rel (0) target = $region9
  $region8: #{seq2seq_forward.16} parent=0 // pred_region
    _
  $region9: #{seq2seq_forward.16} parent=0 // pred_fallthru
    _
  // Predicated region
  $region10: #{seq2seq_forward.16} parent=0 // pred_check
    _
  $region11: #{seq2seq_forward.16} parent=0 // pred_check_branch
    %13 = sbr.rel (0) target = $region13
  $region12: #{seq2seq_forward.16} parent=0 // pred_region
    _
  $region13: #{seq2seq_forward.16} parent=0 // pred_fallthru
    _
  %v14 = vld [vmem:[%s0] sm:$0xff]
  %v15 = vld [vmem:[%s0 + $0x8] sm:$0xff]
  %v16 = vld [vmem:[%s0 + $0x10] sm:$0xf]
  %vm17 = vcmask 261120
  %v18 = vsel %vm17, %v14, 0.0
  %19 = vadd.xlane.f32.xlu0 %v18
  %v20 = vpop.xlane.xlu0 %19
  %v21 = vsel %vm17, %v15, 0.0
  %22 = vadd.xlane.f32.xlu0 %v21
  %v23 = vpop.xlane.xlu0 %22
  %vm24 = vcmask 257024
  %v25 = vsel %vm24, %v16, 0.0
  %26 = vadd.xlane.f32.xlu0 %v25
  %v27 = vpop.xlane.xlu0 %26
  %v28 = vrcp.pop 32.0
  %v29 = vmul.f32 32.0, %v28
  %v30 = vsub.f32 1.0, %v29
  %v31 = vmul.f32 %v28, %v30
  %v32 = vadd.f32 %v28, %v31
  %vm33 = vweird.f32 %v28
  %v34 = vsel %vm33, %v28, %v32
  %v35 = vmul.f32 %v20, %v34
  %v36 = vmul.f32 %v23, %v34
  %v37 = vmul.f32 %v27, %v34
  %v38 = vsub.f32 %v14, %v35
  %v39 = vsub.f32 %v15, %v36
  %v40 = vsub.f32 %v16, %v37
  %v41 = vmul.f32 %v38, %v38
  %v42 = vmul.f32 %v39, %v39
  %v43 = vmul.f32 %v40, %v40
  %v44 = vsel %vm17, %v41, 0.0
  %45 = vadd.xlane.f32.xlu0 %v44
  %v46 = vpop.xlane.xlu0 %45
  %v47 = vsel %vm17, %v42, 0.0
  %48 = vadd.xlane.f32.xlu0 %v47
  %v49 = vpop.xlane.xlu0 %48
  %v50 = vsel %vm24, %v43, 0.0
  %51 = vadd.xlane.f32.xlu0 %v50
  %v52 = vpop.xlane.xlu0 %51
  %v53 = vmul.f32 %v46, %v34
  %v54 = vmul.f32 %v49, %v34
  %v55 = vmul.f32 %v52, %v34
  %v56 = vadd.f32 %v53, 1e-05
  %v57 = vadd.f32 %v54, 1e-05
  %v58 = vadd.f32 %v55, 1e-05
  %v59 = vrsqrt.pop %v56
  %v60 = vmul.f32 %v59, %v56
  %v61 = vmul.f32 %v60, %v59
  %v62 = vmul.f32 0.5, %v61
  %v63 = vsub.f32 1.5, %v62
  %v64 = vmul.f32 %v59, %v63
  %vm65 = vweird.f32 %v56
  %vm66 = vweird.f32 %v59
  %vm67 = vmor %vm65, %vm66
  %v68 = vsel %vm67, %v59, %v64
  %v69 = vrsqrt.pop %v57
  %v70 = vmul.f32 %v69, %v57
  %v71 = vmul.f32 %v70, %v69
  %v72 = vmul.f32 0.5, %v71
  %v73 = vsub.f32 1.5, %v72
  %v74 = vmul.f32 %v69, %v73
  %vm75 = vweird.f32 %v57
  %vm76 = vweird.f32 %v69
  %vm77 = vmor %vm75, %vm76
  %v78 = vsel %vm77, %v69, %v74
  %v79 = vrsqrt.pop %v58
  %v80 = vmul.f32 %v79, %v58
  %v81 = vmul.f32 %v80, %v79
  %v82 = vmul.f32 0.5, %v81
  %v83 = vsub.f32 1.5, %v82
  %v84 = vmul.f32 %v79, %v83
  %vm85 = vweird.f32 %v58
  %vm86 = vweird.f32 %v79
  %vm87 = vmor %vm85, %vm86
  %v88 = vsel %vm87, %v79, %v84
  %v89 = vmul.f32 %v38, %v68
  %v90 = vmul.f32 %v39, %v78
  %v91 = vmul.f32 %v40, %v88
  %v92 = vld [vmem:[%s1] sm:$0x1]
  %v94 = vperm.slane %v92, 0
  %v96 = vmul.f32 %v89, %v94
  %v97 = vmul.f32 %v90, %v94
  %v98 = vmul.f32 %v91, %v94
  %v99 = vld [vmem:[%s2] sm:$0x1]
  %v101 = vperm.slane %v99, 0
  %v103 = vadd.f32 %v96, %v101
  %v104 = vadd.f32 %v97, %v101
  %v105 = vadd.f32 %v98, %v101
  %106 = vst.msk [vmem:[%s3] sm:$0xff] %vm17, %v103
  %107 = vst.msk [vmem:[%s3 + $0x8] sm:$0xff] %vm17, %v104
  %108 = vst.msk [vmem:[%s3 + $0x10] sm:$0xf] %vm24, %v105
  // Predicated region
  $region14: #{seq2seq_forward.16} parent=0 // pred_check
    _
  $region15: #{seq2seq_forward.16} parent=0 // pred_check_branch
    %110 = sbr.rel (0) target = $region17
  $region16: #{seq2seq_forward.16} parent=0 // pred_region
    _
  $region17: #{seq2seq_forward.16} parent=0 // pred_fallthru
    _
  // Predicated region
  $region18: #{seq2seq_forward.16} parent=0 // pred_check
    _
  $region19: #{seq2seq_forward.16} parent=0 // pred_check_branch
    %112 = sbr.rel (0) target = $region21
  $region20: #{seq2seq_forward.16} parent=0 // pred_region
    _
  $region21: #{seq2seq_forward.16} parent=0 // pred_fallthru
    _

// kernel: seq2seq_forward.13
$region0: #{seq2seq_forward.13}
  #allocation0 [shape = 'u32[]', space=smem, size = 0x4, offset = 0x4, fixed_abs, tag = 'smem constant byte address 0x4 - core index']
  #allocation1 [shape = 'u32[72,128]{1,0:T(1,128)}', space=vmem, size = 0x9000, scoped, tag = 'internal scratch']
  %s0 = inlined_call_operand.vmem [shape: f32[20,32], index: 0, kind: input, shape index: {}]
  %s1 = inlined_call_operand.vmem [shape: bf16[32,64], index: 1, kind: input, shape index: {}]
  %s2 = inlined_call_operand.vmem [shape: f32[1,64], index: 2, kind: input, shape index: {}]
  %s3 = inlined_call_operand.vmem [shape: bf16[64,32], index: 3, kind: input, shape index: {}]
  %s4 = inlined_call_operand.vmem [shape: f32[1,32], index: 4, kind: input, shape index: {}]
  %s5 = inlined_call_operand.vmem [shape: f32[1,32], index: 5, kind: input, shape index: {}]
  %s6 = inlined_call_operand.vmem [shape: f32[1,32], index: 6, kind: input, shape index: {}]
  %s7 = inlined_call_operand.vmem [shape: f32[20,32], index: 7, kind: output, shape index: {}]
  %s8 = sld [smem:[#allocation0]]
  $region38: #{seq2seq_forward.13} parent=0
    _
  %s10 = ssub.s32 1, %s8
  %s11 = scalar_select 0, %s10, %s8
  // Predicated region
  $region2: #{seq2seq_forward.13} parent=0 // pred_check
    _
  $region3: #{seq2seq_forward.13} parent=0 // pred_check_branch
    %13 = sbr.rel (0) target = $region5
  $region4: #{seq2seq_forward.13} parent=0 // pred_region
    _
  $region5: #{seq2seq_forward.13} parent=0 // pred_fallthru
    _
  // Predicated region
  $region6: #{seq2seq_forward.13} parent=0 // pred_check
    _
  $region7: #{seq2seq_forward.13} parent=0 // pred_check_branch
    %15 = sbr.rel (0) target = $region9
  $region8: #{seq2seq_forward.13} parent=0 // pred_region
    _
  $region9: #{seq2seq_forward.13} parent=0 // pred_fallthru
    _
  // Predicated region
  $region10: #{seq2seq_forward.13} parent=0 // pred_check
    _
  $region11: #{seq2seq_forward.13} parent=0 // pred_check_branch
    %17 = sbr.rel (0) target = $region13
  $region12: #{seq2seq_forward.13} parent=0 // pred_region
    _
  $region13: #{seq2seq_forward.13} parent=0 // pred_fallthru
    _
  // Predicated region
  $region14: #{seq2seq_forward.13} parent=0 // pred_check
    _
  $region15: #{seq2seq_forward.13} parent=0 // pred_check_branch
    %19 = sbr.rel (0) target = $region17
  $region16: #{seq2seq_forward.13} parent=0 // pred_region
    _
  $region17: #{seq2seq_forward.13} parent=0 // pred_fallthru
    _
  // Predicated region
  $region18: #{seq2seq_forward.13} parent=0 // pred_check
    _
  $region19: #{seq2seq_forward.13} parent=0 // pred_check_branch
    %21 = sbr.rel (0) target = $region21
  $region20: #{seq2seq_forward.13} parent=0 // pred_region
    _
  $region21: #{seq2seq_forward.13} parent=0 // pred_fallthru
    _
  // Predicated region
  $region22: #{seq2seq_forward.13} parent=0 // pred_check
    _
  $region23: #{seq2seq_forward.13} parent=0 // pred_check_branch
    %23 = sbr.rel (0) target = $region25
  $region24: #{seq2seq_forward.13} parent=0 // pred_region
    _
  $region25: #{seq2seq_forward.13} parent=0 // pred_fallthru
    _
  // Predicated region
  $region26: #{seq2seq_forward.13} parent=0 // pred_check
    _
  $region27: #{seq2seq_forward.13} parent=0 // pred_check_branch
    %25 = sbr.rel (0) target = $region29
  $region28: #{seq2seq_forward.13} parent=0 // pred_region
    _
  $region29: #{seq2seq_forward.13} parent=0 // pred_fallthru
    _
  %v27 = vld [vmem:[%s0] sm:$0xff]
  %v28 = vld [vmem:[%s0 + $0x8] sm:$0xff]
  %v29 = vld [vmem:[%s0 + $0x10] sm:$0xf]
  %v30 = vpack.c.bf16 %v28, %v27
  %v31 = vpack.c.bf16 %v29, %v29
  %v32 = vld [vmem:[%s1] sm:$0xf]
  %v33 = vld [vmem:[%s1 + $0x4] sm:$0xf]
  %v34 = vld [vmem:[%s1 + $0x8] sm:$0xf]
  %v35 = vld [vmem:[%s1 + $0xc] sm:$0xf]
  %v36 = vld [vmem:[%s2] sm:$0x1]
  %v38 = vperm.slane %v36, 0
  %v44 = vunpack.c.l.b16 %v32
  %v45 = vunpack.c.l.b16 %v33
  %v46 = vunpack.c.l.b16 %v34
  %v47 = vunpack.c.l.b16 %v35
  %v48 = vpack.c.b16 %v45, %v44
  %v49 = vpack.c.b16 %v47, %v46
  %vm52 = vcmask 261120
  %v54 = vsel %vm52, %v30, 0
  %v57 = vsel %vm52, %v31, 0
  %59 = vmatpush.bf16.msra.mxu0 0
  %60 = vmatpush.bf16.msra.mxu0 0
  %61 = vmatpush.bf16.msra.mxu0 0
  %62 = vmatpush.bf16.msra.mxu0 0
  %63 = vmatpush.bf16.msra.mxu0 0
  %64 = vmatpush.bf16.msra.mxu0 0
  %65 = vmatpush.bf16.msra.mxu0 %v49
  %66 = vmatpush.bf16.msra.mxu0 %v48
  %67 = vmatmul.bf16.gmra.mxu0 %v54
  %v68 = vpop.f32.mrf.mxu0
  %v69 = vadd.f32 %v38, %v68
  %v70 = vpop.f32.mrf.mxu0
  %v71 = vadd.f32 %v38, %v70
  %72 = vmatmul.bf16.gmra.mxu0 %v57
  %v73 = vpop.f32.mrf.mxu0
  %v74 = vadd.f32 %v38, %v73
  %v75 = vpop.f32.mrf.mxu0
  %76 = vdwg.mxu0
  %v77 = vmax.f32 %v69, 0.0
  %v78 = vmax.f32 %v71, 0.0
  %v79 = vmax.f32 %v74, 0.0
  %v80 = vpack.c.bf16 %v78, %v77
  %v81 = vpack.c.bf16 %v79, %v79
  %v82 = vld [vmem:[%s3] sm:$0xf]
  %v83 = vld [vmem:[%s3 + $0x4] sm:$0xf]
  %v84 = vld [vmem:[%s3 + $0x8] sm:$0xf]
  %v85 = vld [vmem:[%s3 + $0xc] sm:$0xf]
  %v86 = vld [vmem:[%s3 + $0x10] sm:$0xf]
  %v87 = vld [vmem:[%s3 + $0x14] sm:$0xf]
  %v88 = vld [vmem:[%s3 + $0x18] sm:$0xf]
  %v89 = vld [vmem:[%s3 + $0x1c] sm:$0xf]
  %v90 = vld [vmem:[%s4] sm:$0x1]
  %v92 = vperm.slane %v90, 0
  %v102 = vunpack.c.l.b16 %v82
  %v103 = vunpack.c.l.b16 %v83
  %v104 = vunpack.c.l.b16 %v84
  %v105 = vunpack.c.l.b16 %v85
  %v106 = vunpack.c.l.b16 %v86
  %v107 = vunpack.c.l.b16 %v87
  %v108 = vunpack.c.l.b16 %v88
  %v109 = vunpack.c.l.b16 %v89
  %v110 = vpack.c.b16 %v103, %v102
  %v111 = vpack.c.b16 %v105, %v104
  %v112 = vpack.c.b16 %v107, %v106
  %v113 = vpack.c.b16 %v109, %v108
  %vm118 = vcmask 523264
  %v120 = vsel %vm118, %v80, 0
  %v123 = vsel %vm118, %v81, 0
  %125 = vmatpush.bf16.msra.mxu0 0
  %126 = vmatpush.bf16.msra.mxu0 0
  %127 = vmatpush.bf16.msra.mxu0 0
  %128 = vmatpush.bf16.msra.mxu0 0
  %129 = vmatpush.bf16.msra.mxu0 %v113
  %130 = vmatpush.bf16.msra.mxu0 %v112
  %131 = vmatpush.bf16.msra.mxu0 %v111
  %132 = vmatpush.bf16.msra.mxu0 %v110
  %133 = vmatmul.bf16.gmra.mxu0 %v120
  %v134 = vpop.f32.mrf.mxu0
  %v135 = vadd.f32 %v92, %v134
  %v136 = vpop.f32.mrf.mxu0
  %v137 = vadd.f32 %v92, %v136
  %138 = vmatmul.bf16.gmra.mxu0 %v123
  %v139 = vpop.f32.mrf.mxu0
  %v140 = vadd.f32 %v92, %v139
  %v141 = vpop.f32.mrf.mxu0
  %142 = vdwg.mxu0
  %v143 = vadd.f32 %v27, %v135
  %v144 = vadd.f32 %v28, %v137
  %v145 = vadd.f32 %v29, %v140
  %v146 = vsel %vm52, %v143, 0.0
  %147 = vadd.xlane.f32.xlu0 %v146
  %v148 = vpop.xlane.xlu0 %147
  %v149 = vsel %vm52, %v144, 0.0
  %150 = vadd.xlane.f32.xlu0 %v149
  %v151 = vpop.xlane.xlu0 %150
  %vm152 = vcmask 257024
  %v153 = vsel %vm152, %v145, 0.0
  %154 = vadd.xlane.f32.xlu0 %v153
  %v155 = vpop.xlane.xlu0 %154
  %v156 = vrcp.pop 32.0
  %v157 = vmul.f32 32.0, %v156
  %v158 = vsub.f32 1.0, %v157
  %v159 = vmul.f32 %v156, %v158
  %v160 = vadd.f32 %v156, %v159
  %vm161 = vweird.f32 %v156
  %v162 = vsel %vm161, %v156, %v160
  %v163 = vmul.f32 %v148, %v162
  %v164 = vmul.f32 %v151, %v162
  %v165 = vmul.f32 %v155, %v162
  %v166 = vsub.f32 %v143, %v163
  %v167 = vsub.f32 %v144, %v164
  %v168 = vsub.f32 %v145, %v165
  %v169 = vmul.f32 %v166, %v166
  %v170 = vmul.f32 %v167, %v167
  %v171 = vmul.f32 %v168, %v168
  %v172 = vsel %vm52, %v169, 0.0
  %173 = vadd.xlane.f32.xlu0 %v172
  %v174 = vpop.xlane.xlu0 %173
  %v175 = vsel %vm52, %v170, 0.0
  %176 = vadd.xlane.f32.xlu0 %v175
  %v177 = vpop.xlane.xlu0 %176
  %v178 = vsel %vm152, %v171, 0.0
  %179 = vadd.xlane.f32.xlu0 %v178
  %v180 = vpop.xlane.xlu0 %179
  %v181 = vmul.f32 %v174, %v162
  %v182 = vmul.f32 %v177, %v162
  %v183 = vmul.f32 %v180, %v162
  %v184 = vadd.f32 %v181, 1e-05
  %v185 = vadd.f32 %v182, 1e-05
  %v186 = vadd.f32 %v183, 1e-05
  %v187 = vrsqrt.pop %v184
  %v188 = vmul.f32 %v187, %v184
  %v189 = vmul.f32 %v188, %v187
  %v190 = vmul.f32 0.5, %v189
  %v191 = vsub.f32 1.5, %v190
  %v192 = vmul.f32 %v187, %v191
  %vm193 = vweird.f32 %v184
  %vm194 = vweird.f32 %v187
  %vm195 = vmor %vm193, %vm194
  %v196 = vsel %vm195, %v187, %v192
  %v197 = vrsqrt.pop %v185
  %v198 = vmul.f32 %v197, %v185
  %v199 = vmul.f32 %v198, %v197
  %v200 = vmul.f32 0.5, %v199
  %v201 = vsub.f32 1.5, %v200
  %v202 = vmul.f32 %v197, %v201
  %vm203 = vweird.f32 %v185
  %vm204 = vweird.f32 %v197
  %vm205 = vmor %vm203, %vm204
  %v206 = vsel %vm205, %v197, %v202
  %v207 = vrsqrt.pop %v186
  %v208 = vmul.f32 %v207, %v186
  %v209 = vmul.f32 %v208, %v207
  %v210 = vmul.f32 0.5, %v209
  %v211 = vsub.f32 1.5, %v210
  %v212 = vmul.f32 %v207, %v211
  %vm213 = vweird.f32 %v186
  %vm214 = vweird.f32 %v207
  %vm215 = vmor %vm213, %vm214
  %v216 = vsel %vm215, %v207, %v212
  %v217 = vmul.f32 %v166, %v196
  %v218 = vmul.f32 %v167, %v206
  %v219 = vmul.f32 %v168, %v216
  %v220 = vld [vmem:[%s5] sm:$0x1]
  %v222 = vperm.slane %v220, 0
  %v224 = vmul.f32 %v217, %v222
  %v225 = vmul.f32 %v218, %v222
  %v226 = vmul.f32 %v219, %v222
  %v227 = vld [vmem:[%s6] sm:$0x1]
  %v229 = vperm.slane %v227, 0
  %v231 = vadd.f32 %v224, %v229
  %v232 = vadd.f32 %v225, %v229
  %v233 = vadd.f32 %v226, %v229
  %234 = vst.msk [vmem:[%s7] sm:$0xff] %vm52, %v231
  %235 = vst.msk [vmem:[%s7 + $0x8] sm:$0xff] %vm52, %v232
  %236 = vst.msk [vmem:[%s7 + $0x10] sm:$0xf] %vm152, %v233
  // Predicated region
  $region30: #{seq2seq_forward.13} parent=0 // pred_check
    _
  $region31: #{seq2seq_forward.13} parent=0 // pred_check_branch
    %238 = sbr.rel (0) target = $region33
  $region32: #{seq2seq_forward.13} parent=0 // pred_region
    _
  $region33: #{seq2seq_forward.13} parent=0 // pred_fallthru
    _
  // Predicated region
  $region34: #{seq2seq_forward.13} parent=0 // pred_check
    _
  $region35: #{seq2seq_forward.13} parent=0 // pred_check_branch
    %240 = sbr.rel (0) target = $region37
  $region36: #{seq2seq_forward.13} parent=0 // pred_region
    _
  $region37: #{seq2seq_forward.13} parent=0 // pred_fallthru
    _

// kernel: seq2seq_forward.12
$region0: #{seq2seq_forward.12}
  #allocation0 [shape = 'u32[]', space=smem, size = 0x4, offset = 0x4, fixed_abs, tag = 'smem constant byte address 0x4 - core index']
  #allocation1 [shape = 'u32[72,128]{1,0:T(1,128)}', space=vmem, size = 0x9000, scoped, tag = 'internal scratch']
  %s0 = inlined_call_operand.vmem [shape: f32[2,10,32], index: 0, kind: input, shape index: {}, may-alias: {0,1}]
  %s1 = inlined_call_operand.vmem [shape: f32[2,10,32], index: 1, kind: input, shape index: {}, may-alias: {0,1}]
  %s2 = inlined_call_operand.vmem [shape: bf16[4,32,8], index: 2, kind: input, shape index: {}]
  %s3 = inlined_call_operand.vmem [shape: f32[4,1,8], index: 3, kind: input, shape index: {}]
  %s4 = inlined_call_operand.vmem [shape: bf16[4,32,8], index: 4, kind: input, shape index: {}]
  %s5 = inlined_call_operand.vmem [shape: f32[4,1,8], index: 5, kind: input, shape index: {}]
  %s6 = inlined_call_operand.vmem [shape: bf16[4,32,8], index: 6, kind: input, shape index: {}]
  %s7 = inlined_call_operand.vmem [shape: f32[4,1,8], index: 7, kind: input, shape index: {}]
  %s8 = inlined_call_operand.vmem [shape: bf16[4,8,32], index: 8, kind: input, shape index: {}]
  %s9 = inlined_call_operand.vmem [shape: f32[1,32], index: 9, kind: input, shape index: {}]
  %s10 = inlined_call_operand.vmem [shape: f32[10,10], index: 10, kind: input, shape index: {}]
  %s11 = inlined_call_operand.vmem [shape: f32[2,1,10], index: 11, kind: input, shape index: {}]
  %s12 = inlined_call_operand.vmem [shape: f32[1,32], index: 12, kind: input, shape index: {}]
  %s13 = inlined_call_operand.vmem [shape: f32[1,32], index: 13, kind: input, shape index: {}]
  %s14 = inlined_call_operand.vmem [shape: f32[2,10,32], index: 14, kind: output, shape index: {}]
  %s15 = sld [smem:[#allocation0]]
  $region89: #{seq2seq_forward.12} parent=0
    _
  %s17 = ssub.s32 1, %s15
  %s18 = scalar_select 0, %s17, %s15
  loop: start=0, step=1, limit=4
  $region2: #{seq2seq_forward.12} parent=0 // loop_pre_header
    _
  $region3: #{seq2seq_forward.12} parent=0 // loop_header
    %s20 = sphi 0, %s24
    %p21 = scmp.ge.s32.totalorder %s20, 4
    %s30 = sphi 0, %s32
    %s33 = sphi 0, %s30
    %s34 = sphi 0, %s33
    %s50 = sphi 0, %s34
    %s56 = sphi 0, %s58
    %s59 = sphi 0, %s56
    %s60 = sphi 0, %s59
    %s76 = sphi 0, %s60
    %s80 = sphi 0, %s80
    %s82 = sphi 0, %s80
    %s83 = sphi 0, %s82
    %s97 = sphi 0, %s83
    %s101 = sphi 0, %s101
    %s103 = sphi 0, %s101
    %s104 = sphi 0, %s103
    %s118 = sphi 0, %s104
    %s122 = sphi 0, %s122
    %s124 = sphi 0, %s122
    %s125 = sphi 0, %s124
    %s139 = sphi 0, %s125
    %s143 = sphi 0, %s143
    %s145 = sphi 0, %s143
    %s146 = sphi 0, %s145
    %s160 = sphi 0, %s146
    %s164 = sphi 0, %s164
    %s166 = sphi 0, %s164
    %s167 = sphi 0, %s166
    %s181 = sphi 0, %s167
    %s185 = sphi 0, %s185
    %s187 = sphi 0, %s185
    %s188 = sphi 0, %s187
    %s202 = sphi 0, %s188
    %s206 = sphi 0, %s206
    %s208 = sphi 0, %s206
    %s209 = sphi 0, %s208
    %s223 = sphi 0, %s209
    %s227 = sphi 0, %s227
    %s229 = sphi 0, %s227
    %s230 = sphi 0, %s229
    %s244 = sphi 0, %s230
    %s248 = sphi 0, %s248
    %s250 = sphi 0, %s248
    %s251 = sphi 0, %s250
    %s265 = sphi 0, %s251
    %s271 = sphi 0, %s273
    %s274 = sphi 0, %s271
    %s275 = sphi 0, %s274
    %s291 = sphi 0, %s275
    %s295 = sphi 0, %s295
    %s297 = sphi 0, %s295
    %s298 = sphi 0, %s297
    %s312 = sphi 0, %s298
    %s316 = sphi 0, %s316
    %s318 = sphi 0, %s316
    %s319 = sphi 0, %s318
    %s333 = sphi 0, %s319
    %s339 = sphi 0, %s341
    %s342 = sphi 0, %s339
    %s343 = sphi 0, %s342
    %s359 = sphi 0, %s343
  $region4: #{seq2seq_forward.12} parent=0 // loop_header_branch
    %23 = sbr.rel (%p21) target = $region8
  $region5: #{seq2seq_forward.12} parent=0 // loop_body
    %s25 = ssub.s32 %s20, 1
    %s26 = ssub.s32 %s20, 2
    %s27 = sadd.s32 %s20, 1
    %s28 = ssub.s32 %s20, %s27
    %p29 = scmp.eq.s32.totalorder %s28, 0
    %s31 = sadd.s32 %s30, 1
    %s32 = scalar_select %p29, %s30, %s31
    %p35 = pneg %p29
    %p36 = scmp.eq.s32.totalorder %s20, 1
    %p37 = por %p35, %p36
    %p38 = scmp.ne.s32.totalorder %s30, %s33
    %p39 = scmp.eq.s32.totalorder %s20, 0
    %p40 = por %p38, %p39
    %p41 = scmp.ne.s32.totalorder %s30, %s33
    %p42 = scmp.eq.s32.totalorder %s25, 1
    %p43 = por %p41, %p42
    %p44 = scmp.ne.s32.totalorder %s33, %s34
    %p45 = scmp.eq.s32.totalorder %s25, 0
    %p46 = por %p44, %p45
    %p47 = scmp.ne.s32.totalorder %s33, %s34
    %p48 = scmp.eq.s32.totalorder %s26, 1
    %p49 = por %p47, %p48
    %p51 = scmp.ne.s32.totalorder %s34, %s50
    %p52 = scmp.eq.s32.totalorder %s26, 0
    %p53 = por %p51, %p52
    %s54 = ssub.s32 %s20, %s27
    %p55 = scmp.eq.s32.totalorder %s54, 0
    %s57 = sadd.s32 %s56, 1
    %s58 = scalar_select %p55, %s56, %s57
    %p61 = pneg %p55
    %p62 = scmp.eq.s32.totalorder %s20, 1
    %p63 = por %p61, %p62
    %p64 = scmp.ne.s32.totalorder %s56, %s59
    %p65 = scmp.eq.s32.totalorder %s20, 0
    %p66 = por %p64, %p65
    %p67 = scmp.ne.s32.totalorder %s56, %s59
    %p68 = scmp.eq.s32.totalorder %s25, 1
    %p69 = por %p67, %p68
    %p70 = scmp.ne.s32.totalorder %s59, %s60
    %p71 = scmp.eq.s32.totalorder %s25, 0
    %p72 = por %p70, %p71
    %p73 = scmp.ne.s32.totalorder %s59, %s60
    %p74 = scmp.eq.s32.totalorder %s26, 1
    %p75 = por %p73, %p74
    %p77 = scmp.ne.s32.totalorder %s60, %s76
    %p78 = scmp.eq.s32.totalorder %s26, 0
    %p79 = por %p77, %p78
    %s81 = sadd.s32 %s80, 1
    %p84 = scmp.eq.s32.totalorder %s20, 1
    %p85 = scmp.ne.s32.totalorder %s80, %s82
    %p86 = scmp.eq.s32.totalorder %s20, 0
    %p87 = por %p85, %p86
    %p88 = scmp.ne.s32.totalorder %s80, %s82
    %p89 = scmp.eq.s32.totalorder %s25, 1
    %p90 = por %p88, %p89
    %p91 = scmp.ne.s32.totalorder %s82, %s83
    %p92 = scmp.eq.s32.totalorder %s25, 0
    %p93 = por %p91, %p92
    %p94 = scmp.ne.s32.totalorder %s82, %s83
    %p95 = scmp.eq.s32.totalorder %s26, 1
    %p96 = por %p94, %p95
    %p98 = scmp.ne.s32.totalorder %s83, %s97
    %p99 = scmp.eq.s32.totalorder %s26, 0
    %p100 = por %p98, %p99
    %s102 = sadd.s32 %s101, 1
    %p105 = scmp.eq.s32.totalorder %s20, 1
    %p106 = scmp.ne.s32.totalorder %s101, %s103
    %p107 = scmp.eq.s32.totalorder %s20, 0
    %p108 = por %p106, %p107
    %p109 = scmp.ne.s32.totalorder %s101, %s103
    %p110 = scmp.eq.s32.totalorder %s25, 1
    %p111 = por %p109, %p110
    %p112 = scmp.ne.s32.totalorder %s103, %s104
    %p113 = scmp.eq.s32.totalorder %s25, 0
    %p114 = por %p112, %p113
    %p115 = scmp.ne.s32.totalorder %s103, %s104
    %p116 = scmp.eq.s32.totalorder %s26, 1
    %p117 = por %p115, %p116
    %p119 = scmp.ne.s32.totalorder %s104, %s118
    %p120 = scmp.eq.s32.totalorder %s26, 0
    %p121 = por %p119, %p120
    %s123 = sadd.s32 %s122, 1
    %p126 = scmp.eq.s32.totalorder %s20, 1
    %p127 = scmp.ne.s32.totalorder %s122, %s124
    %p128 = scmp.eq.s32.totalorder %s20, 0
    %p129 = por %p127, %p128
    %p130 = scmp.ne.s32.totalorder %s122, %s124
    %p131 = scmp.eq.s32.totalorder %s25, 1
    %p132 = por %p130, %p131
    %p133 = scmp.ne.s32.totalorder %s124, %s125
    %p134 = scmp.eq.s32.totalorder %s25, 0
    %p135 = por %p133, %p134
    %p136 = scmp.ne.s32.totalorder %s124, %s125
    %p137 = scmp.eq.s32.totalorder %s26, 1
    %p138 = por %p136, %p137
    %p140 = scmp.ne.s32.totalorder %s125, %s139
    %p141 = scmp.eq.s32.totalorder %s26, 0
    %p142 = por %p140, %p141
    %s144 = sadd.s32 %s143, 1
    %p147 = scmp.eq.s32.totalorder %s20, 1
    %p148 = scmp.ne.s32.totalorder %s143, %s145
    %p149 = scmp.eq.s32.totalorder %s20, 0
    %p150 = por %p148, %p149
    %p151 = scmp.ne.s32.totalorder %s143, %s145
    %p152 = scmp.eq.s32.totalorder %s25, 1
    %p153 = por %p151, %p152
    %p154 = scmp.ne.s32.totalorder %s145, %s146
    %p155 = scmp.eq.s32.totalorder %s25, 0
    %p156 = por %p154, %p155
    %p157 = scmp.ne.s32.totalorder %s145, %s146
    %p158 = scmp.eq.s32.totalorder %s26, 1
    %p159 = por %p157, %p158
    %p161 = scmp.ne.s32.totalorder %s146, %s160
    %p162 = scmp.eq.s32.totalorder %s26, 0
    %p163 = por %p161, %p162
    %s165 = sadd.s32 %s164, 1
    %p168 = scmp.eq.s32.totalorder %s20, 1
    %p169 = scmp.ne.s32.totalorder %s164, %s166
    %p170 = scmp.eq.s32.totalorder %s20, 0
    %p171 = por %p169, %p170
    %p172 = scmp.ne.s32.totalorder %s164, %s166
    %p173 = scmp.eq.s32.totalorder %s25, 1
    %p174 = por %p172, %p173
    %p175 = scmp.ne.s32.totalorder %s166, %s167
    %p176 = scmp.eq.s32.totalorder %s25, 0
    %p177 = por %p175, %p176
    %p178 = scmp.ne.s32.totalorder %s166, %s167
    %p179 = scmp.eq.s32.totalorder %s26, 1
    %p180 = por %p178, %p179
    %p182 = scmp.ne.s32.totalorder %s167, %s181
    %p183 = scmp.eq.s32.totalorder %s26, 0
    %p184 = por %p182, %p183
    %s186 = sadd.s32 %s185, 1
    %p189 = scmp.eq.s32.totalorder %s20, 1
    %p190 = scmp.ne.s32.totalorder %s185, %s187
    %p191 = scmp.eq.s32.totalorder %s20, 0
    %p192 = por %p190, %p191
    %p193 = scmp.ne.s32.totalorder %s185, %s187
    %p194 = scmp.eq.s32.totalorder %s25, 1
    %p195 = por %p193, %p194
    %p196 = scmp.ne.s32.totalorder %s187, %s188
    %p197 = scmp.eq.s32.totalorder %s25, 0
    %p198 = por %p196, %p197
    %p199 = scmp.ne.s32.totalorder %s187, %s188
    %p200 = scmp.eq.s32.totalorder %s26, 1
    %p201 = por %p199, %p200
    %p203 = scmp.ne.s32.totalorder %s188, %s202
    %p204 = scmp.eq.s32.totalorder %s26, 0
    %p205 = por %p203, %p204
    %s207 = sadd.s32 %s206, 1
    %p210 = scmp.eq.s32.totalorder %s20, 1
    %p211 = scmp.ne.s32.totalorder %s206, %s208
    %p212 = scmp.eq.s32.totalorder %s20, 0
    %p213 = por %p211, %p212
    %p214 = scmp.ne.s32.totalorder %s206, %s208
    %p215 = scmp.eq.s32.totalorder %s25, 1
    %p216 = por %p214, %p215
    %p217 = scmp.ne.s32.totalorder %s208, %s209
    %p218 = scmp.eq.s32.totalorder %s25, 0
    %p219 = por %p217, %p218
    %p220 = scmp.ne.s32.totalorder %s208, %s209
    %p221 = scmp.eq.s32.totalorder %s26, 1
    %p222 = por %p220, %p221
    %p224 = scmp.ne.s32.totalorder %s209, %s223
    %p225 = scmp.eq.s32.totalorder %s26, 0
    %p226 = por %p224, %p225
    %s228 = sadd.s32 %s227, 1
    %p231 = scmp.eq.s32.totalorder %s20, 1
    %p232 = scmp.ne.s32.totalorder %s227, %s229
    %p233 = scmp.eq.s32.totalorder %s20, 0
    %p234 = por %p232, %p233
    %p235 = scmp.ne.s32.totalorder %s227, %s229
    %p236 = scmp.eq.s32.totalorder %s25, 1
    %p237 = por %p235, %p236
    %p238 = scmp.ne.s32.totalorder %s229, %s230
    %p239 = scmp.eq.s32.totalorder %s25, 0
    %p240 = por %p238, %p239
    %p241 = scmp.ne.s32.totalorder %s229, %s230
    %p242 = scmp.eq.s32.totalorder %s26, 1
    %p243 = por %p241, %p242
    %p245 = scmp.ne.s32.totalorder %s230, %s244
    %p246 = scmp.eq.s32.totalorder %s26, 0
    %p247 = por %p245, %p246
    %s249 = sadd.s32 %s248, 1
    %p252 = scmp.eq.s32.totalorder %s20, 1
    %p253 = scmp.ne.s32.totalorder %s248, %s250
    %p254 = scmp.eq.s32.totalorder %s20, 0
    %p255 = por %p253, %p254
    %p256 = scmp.ne.s32.totalorder %s248, %s250
    %p257 = scmp.eq.s32.totalorder %s25, 1
    %p258 = por %p256, %p257
    %p259 = scmp.ne.s32.totalorder %s250, %s251
    %p260 = scmp.eq.s32.totalorder %s25, 0
    %p261 = por %p259, %p260
    %p262 = scmp.ne.s32.totalorder %s250, %s251
    %p263 = scmp.eq.s32.totalorder %s26, 1
    %p264 = por %p262, %p263
    %p266 = scmp.ne.s32.totalorder %s251, %s265
    %p267 = scmp.eq.s32.totalorder %s26, 0
    %p268 = por %p266, %p267
    %s269 = ssub.s32 %s20, %s27
    %p270 = scmp.eq.s32.totalorder %s269, 0
    %s272 = sadd.s32 %s271, 1
    %s273 = scalar_select %p270, %s271, %s272
    %p276 = pneg %p270
    %p277 = scmp.eq.s32.totalorder %s20, 1
    %p278 = por %p276, %p277
    %p279 = scmp.ne.s32.totalorder %s271, %s274
    %p280 = scmp.eq.s32.totalorder %s20, 0
    %p281 = por %p279, %p280
    %p282 = scmp.ne.s32.totalorder %s271, %s274
    %p283 = scmp.eq.s32.totalorder %s25, 1
    %p284 = por %p282, %p283
    %p285 = scmp.ne.s32.totalorder %s274, %s275
    %p286 = scmp.eq.s32.totalorder %s25, 0
    %p287 = por %p285, %p286
    %p288 = scmp.ne.s32.totalorder %s274, %s275
    %p289 = scmp.eq.s32.totalorder %s26, 1
    %p290 = por %p288, %p289
    %p292 = scmp.ne.s32.totalorder %s275, %s291
    %p293 = scmp.eq.s32.totalorder %s26, 0
    %p294 = por %p292, %p293
    %s296 = sadd.s32 %s295, 1
    %p299 = scmp.eq.s32.totalorder %s20, 1
    %p300 = scmp.ne.s32.totalorder %s295, %s297
    %p301 = scmp.eq.s32.totalorder %s20, 0
    %p302 = por %p300, %p301
    %p303 = scmp.ne.s32.totalorder %s295, %s297
    %p304 = scmp.eq.s32.totalorder %s25, 1
    %p305 = por %p303, %p304
    %p306 = scmp.ne.s32.totalorder %s297, %s298
    %p307 = scmp.eq.s32.totalorder %s25, 0
    %p308 = por %p306, %p307
    %p309 = scmp.ne.s32.totalorder %s297, %s298
    %p310 = scmp.eq.s32.totalorder %s26, 1
    %p311 = por %p309, %p310
    %p313 = scmp.ne.s32.totalorder %s298, %s312
    %p314 = scmp.eq.s32.totalorder %s26, 0
    %p315 = por %p313, %p314
    %s317 = sadd.s32 %s316, 1
    %p320 = scmp.eq.s32.totalorder %s20, 1
    %p321 = scmp.ne.s32.totalorder %s316, %s318
    %p322 = scmp.eq.s32.totalorder %s20, 0
    %p323 = por %p321, %p322
    %p324 = scmp.ne.s32.totalorder %s316, %s318
    %p325 = scmp.eq.s32.totalorder %s25, 1
    %p326 = por %p324, %p325
    %p327 = scmp.ne.s32.totalorder %s318, %s319
    %p328 = scmp.eq.s32.totalorder %s25, 0
    %p329 = por %p327, %p328
    %p330 = scmp.ne.s32.totalorder %s318, %s319
    %p331 = scmp.eq.s32.totalorder %s26, 1
    %p332 = por %p330, %p331
    %p334 = scmp.ne.s32.totalorder %s319, %s333
    %p335 = scmp.eq.s32.totalorder %s26, 0
    %p336 = por %p334, %p335
    %s337 = ssub.s32 %s20, %s27
    %p338 = scmp.eq.s32.totalorder %s337, 0
    %s340 = sadd.s32 %s339, 1
    %s341 = scalar_select %p338, %s339, %s340
    %p344 = pneg %p338
    %p345 = scmp.eq.s32.totalorder %s20, 1
    %p346 = por %p344, %p345
    %p347 = scmp.ne.s32.totalorder %s339, %s342
    %p348 = scmp.eq.s32.totalorder %s20, 0
    %p349 = por %p347, %p348
    %p350 = scmp.ne.s32.totalorder %s339, %s342
    %p351 = scmp.eq.s32.totalorder %s25, 1
    %p352 = por %p350, %p351
    %p353 = scmp.ne.s32.totalorder %s342, %s343
    %p354 = scmp.eq.s32.totalorder %s25, 0
    %p355 = por %p353, %p354
    %p356 = scmp.ne.s32.totalorder %s342, %s343
    %p357 = scmp.eq.s32.totalorder %s26, 1
    %p358 = por %p356, %p357
    %p360 = scmp.ne.s32.totalorder %s343, %s359
    %p361 = scmp.eq.s32.totalorder %s26, 0
    %p362 = por %p360, %p361
    %p363 = scmp.le.s32.totalorder 1, %s20
    %p364 = scmp.lt.s32.totalorder %s20, 3
    %p365 = pnand %p363, %p364
    %p366 = pneg %p365
    // Predicated region
    $region9: #{seq2seq_forward.12} parent=5 // pred_check
      _
    $region10: #{seq2seq_forward.12} parent=5 // pred_check_branch
      %368 = sbr.rel (%p365) target = $region12
    $region11: #{seq2seq_forward.12} parent=5 // pred_region
      %s369 = ssub.s32 %s20, 1
      // Predicated region
      $region13: #{seq2seq_forward.12} parent=11 // pred_check
        %p370 = pneg %p93
      $region14: #{seq2seq_forward.12} parent=11 // pred_check_branch
        %372 = sbr.rel (%p370) target = $region16
      $region15: #{seq2seq_forward.12} parent=11 // pred_region
        _
      $region16: #{seq2seq_forward.12} parent=11 // pred_fallthru
        _
      // Predicated region
      $region17: #{seq2seq_forward.12} parent=11 // pred_check
        %p373 = pneg %p114
      $region18: #{seq2seq_forward.12} parent=11 // pred_check_branch
        %375 = sbr.rel (%p373) target = $region20
      $region19: #{seq2seq_forward.12} parent=11 // pred_region
        _
      $region20: #{seq2seq_forward.12} parent=11 // pred_fallthru
        _
      // Predicated region
      $region21: #{seq2seq_forward.12} parent=11 // pred_check
        %p376 = pneg %p135
      $region22: #{seq2seq_forward.12} parent=11 // pred_check_branch
        %378 = sbr.rel (%p376) target = $region24
      $region23: #{seq2seq_forward.12} parent=11 // pred_region
        _
      $region24: #{seq2seq_forward.12} parent=11 // pred_fallthru
        _
      // Predicated region
      $region25: #{seq2seq_forward.12} parent=11 // pred_check
        %p379 = pneg %p156
      $region26: #{seq2seq_forward.12} parent=11 // pred_check_branch
        %381 = sbr.rel (%p379) target = $region28
      $region27: #{seq2seq_forward.12} parent=11 // pred_region
        _
      $region28: #{seq2seq_forward.12} parent=11 // pred_fallthru
        _
      // Predicated region
      $region29: #{seq2seq_forward.12} parent=11 // pred_check
        %p382 = pneg %p177
      $region30: #{seq2seq_forward.12} parent=11 // pred_check_branch
        %384 = sbr.rel (%p382) target = $region32
      $region31: #{seq2seq_forward.12} parent=11 // pred_region
        _
      $region32: #{seq2seq_forward.12} parent=11 // pred_fallthru
        _
      // Predicated region
      $region33: #{seq2seq_forward.12} parent=11 // pred_check
        %p385 = pneg %p198
      $region34: #{seq2seq_forward.12} parent=11 // pred_check_branch
        %387 = sbr.rel (%p385) target = $region36
      $region35: #{seq2seq_forward.12} parent=11 // pred_region
        _
      $region36: #{seq2seq_forward.12} parent=11 // pred_fallthru
        _
      // Predicated region
      $region37: #{seq2seq_forward.12} parent=11 // pred_check
        %p388 = pneg %p219
      $region38: #{seq2seq_forward.12} parent=11 // pred_check_branch
        %390 = sbr.rel (%p388) target = $region40
      $region39: #{seq2seq_forward.12} parent=11 // pred_region
        _
      $region40: #{seq2seq_forward.12} parent=11 // pred_fallthru
        _
      // Predicated region
      $region41: #{seq2seq_forward.12} parent=11 // pred_check
        %p391 = pneg %p240
      $region42: #{seq2seq_forward.12} parent=11 // pred_check_branch
        %393 = sbr.rel (%p391) target = $region44
      $region43: #{seq2seq_forward.12} parent=11 // pred_region
        _
      $region44: #{seq2seq_forward.12} parent=11 // pred_fallthru
        _
      // Predicated region
      $region45: #{seq2seq_forward.12} parent=11 // pred_check
        %p394 = pneg %p261
      $region46: #{seq2seq_forward.12} parent=11 // pred_check_branch
        %396 = sbr.rel (%p394) target = $region48
      $region47: #{seq2seq_forward.12} parent=11 // pred_region
        _
      $region48: #{seq2seq_forward.12} parent=11 // pred_fallthru
        _
      // Predicated region
      $region49: #{seq2seq_forward.12} parent=11 // pred_check
        %p397 = pneg %p308
      $region50: #{seq2seq_forward.12} parent=11 // pred_check_branch
        %399 = sbr.rel (%p397) target = $region52
      $region51: #{seq2seq_forward.12} parent=11 // pred_region
        _
      $region52: #{seq2seq_forward.12} parent=11 // pred_fallthru
        _
      // Predicated region
      $region53: #{seq2seq_forward.12} parent=11 // pred_check
        %p400 = pneg %p329
      $region54: #{seq2seq_forward.12} parent=11 // pred_check_branch
        %402 = sbr.rel (%p400) target = $region56
      $region55: #{seq2seq_forward.12} parent=11 // pred_region
        _
      $region56: #{seq2seq_forward.12} parent=11 // pred_fallthru
        _
    $region12: #{seq2seq_forward.12} parent=5 // pred_fallthru
      _
    %p403 = scmp.lt.s32.totalorder %s20, 2
    // Predicated region
    $region57: #{seq2seq_forward.12} parent=5 // pred_check
      %p404 = pneg %p403
    $region58: #{seq2seq_forward.12} parent=5 // pred_check_branch
      %406 = sbr.rel (%p404) target = $region60
    $region59: #{seq2seq_forward.12} parent=5 // pred_region
      // Predicated region
      $region61: #{seq2seq_forward.12} parent=59 // pred_check
        %p407 = pneg %p40
      $region62: #{seq2seq_forward.12} parent=59 // pred_check_branch
        %409 = sbr.rel (%p407) target = $region64
      $region63: #{seq2seq_forward.12} parent=59 // pred_region
        %p410 = scmp.lt.s32.totalorder %s20, 1
        %s411 = scalar_select %p410, %s20, 1
        %s412 = smul.addr %s411, 2
        %s413 = smul.addr %s412, 8
        %s414 = scalar_lea.vmem %s0, %s413
      $region64: #{seq2seq_forward.12} parent=59 // pred_fallthru
        _
      // Predicated region
      $region65: #{seq2seq_forward.12} parent=59 // pred_check
        %p415 = pneg %p66
      $region66: #{seq2seq_forward.12} parent=59 // pred_check_branch
        %417 = sbr.rel (%p415) target = $region68
      $region67: #{seq2seq_forward.12} parent=59 // pred_region
        %p418 = scmp.lt.s32.totalorder %s20, 1
        %s419 = scalar_select %p418, %s20, 1
        %s420 = smul.addr %s419, 2
        %s421 = smul.addr %s420, 8
        %s422 = scalar_lea.vmem %s1, %s421
      $region68: #{seq2seq_forward.12} parent=59 // pred_fallthru
        _
      // Predicated region
      $region69: #{seq2seq_forward.12} parent=59 // pred_check
        %p423 = pneg %p281
      $region70: #{seq2seq_forward.12} parent=59 // pred_check_branch
        %425 = sbr.rel (%p423) target = $region72
      $region71: #{seq2seq_forward.12} parent=59 // pred_region
        %p426 = scmp.lt.s32.totalorder %s20, 1
        %s427 = scalar_select %p426, %s20, 1
        %s428 = scalar_lea.vmem %s11, %s427
      $region72: #{seq2seq_forward.12} parent=59 // pred_fallthru
        _
    $region60: #{seq2seq_forward.12} parent=5 // pred_fallthru
      _
    %p429 = scmp.le.s32.totalorder 1, %s20
    %p430 = scmp.lt.s32.totalorder %s20, 3
    %p431 = pnand %p429, %p430
    %p432 = pneg %p431
    // Predicated region
    $region73: #{seq2seq_forward.12} parent=5 // pred_check
      _
    $region74: #{seq2seq_forward.12} parent=5 // pred_check_branch
      %434 = sbr.rel (%p431) target = $region76
    $region75: #{seq2seq_forward.12} parent=5 // pred_region
      %s435 = ssub.s32 %s20, 1
      %p436 = scmp.lt.s32.totalorder %s25, 1
      %s437 = scalar_select %p436, %s25, 1
      %s438 = smul.addr %s437, 2
      %s439 = smul.addr %s438, 8
      %s440 = scalar_lea.vmem %s0, %s439
      %p441 = pneg %p46
      %p442 = pneg %p43
      %p443 = scmp.lt.s32.totalorder %s25, 1
      %s444 = scalar_select %p443, %s25, 1
      %s445 = smul.addr %s444, 2
      %s446 = smul.addr %s445, 8
      %s447 = scalar_lea.vmem %s1, %s446
      %p448 = pneg %p72
      %p449 = pneg %p69
      %p450 = pneg %p93
      %p451 = pneg %p90
      %p452 = pneg %p114
      %p453 = pneg %p111
      %p454 = pneg %p135
      %p455 = pneg %p132
      %p456 = pneg %p156
      %p457 = pneg %p153
      %p458 = pneg %p177
      %p459 = pneg %p174
      %p460 = pneg %p198
      %p461 = pneg %p195
      %p462 = pneg %p219
      %p463 = pneg %p216
      %p464 = pneg %p240
      %p465 = pneg %p237
      %p466 = pneg %p261
      %p467 = pneg %p258
      %p468 = scmp.lt.s32.totalorder %s25, 1
      %s469 = scalar_select %p468, %s25, 1
      %s470 = scalar_lea.vmem %s11, %s469
      %p471 = pneg %p287
      %p472 = pneg %p284
      %p473 = pneg %p308
      %p474 = pneg %p305
      %p475 = pneg %p329
      %p476 = pneg %p326
      %p477 = pneg %p355
      %p478 = pneg %p352
      %p479 = scmp.lt.s32.totalorder %s25, 1
      %s480 = scalar_select %p479, %s25, 1
      %s481 = smul.addr %s480, 2
      %s482 = smul.addr %s481, 8
      %s483 = scalar_lea.vmem %s14, %s482
      %p484 = scmp.lt.s32.totalorder %s25, 1
      %s485 = scalar_select %p484, %s25, 1
      %s486 = smul.addr %s485, 2
      %s487 = smul.addr %s486, 8
      %s488 = scalar_lea.vmem %s0, %s487
      %p489 = scmp.lt.s32.totalorder %s25, 1
      %s490 = scalar_select %p489, %s25, 1
      %s491 = smul.addr %s490, 2
      %s492 = smul.addr %s491, 8
      %s493 = scalar_lea.vmem %s1, %s492
      %p494 = scmp.lt.s32.totalorder %s25, 1
      %s495 = scalar_select %p494, %s25, 1
      %s496 = scalar_lea.vmem %s11, %s495
      %p497 = scmp.lt.s32.totalorder %s25, 1
      %s498 = scalar_select %p497, %s25, 1
      %s499 = smul.addr %s498, 2
      %s500 = smul.addr %s499, 8
      %s501 = scalar_lea.vmem %s14, %s500
      %v503 = vld [vmem:[%s488] sm:$0xff]
      %v504 = vld [vmem:[%s488 + $0x8] sm:$0x3]
      %v505 = vpack.c.bf16 %v504, %v503
      %v506 = vld [vmem:[%s493] sm:$0xff]
      %v507 = vld [vmem:[%s493 + $0x8] sm:$0x3]
      %v508 = vpack.c.bf16 %v507, %v506
      %v509 = vld [vmem:[%s10] sm:$0xff]
      %v510 = vld [vmem:[%s10 + $0x8] sm:$0x3]
      %v511 = vld [vmem:[%s496] sm:$0x1]
      %v513 = vperm.slane %v511, 0
      %v515 = vadd.f32 %v509, %v513
      %v516 = vadd.f32 %v510, %v513
      %v517 = vld [vmem:[%s2] sm:$0xf]
      %v518 = vld [vmem:[%s2 + $0x4] sm:$0xf]
      %v519 = vld [vmem:[%s2 + $0x8] sm:$0xf]
      %v520 = vld [vmem:[%s2 + $0xc] sm:$0xf]
      %v521 = vld [vmem:[%s3] sm:$0x1]
      %v523 = vperm.slane %v521, 0
      %v529 = vunpack.c.l.b16 %v517
      %v530 = vunpack.c.l.b16 %v518
      %v531 = vunpack.c.l.b16 %v519
      %v532 = vunpack.c.l.b16 %v520
      %v533 = vpack.c.b16 %v530, %v529
      %v534 = vpack.c.b16 %v532, %v531
      %vm537 = vcmask 261120
      %v539 = vsel %vm537, %v505, 0
      %541 = vmatpush.bf16.msra.mxu0 0
      %542 = vmatpush.bf16.msra.mxu0 0
      %543 = vmatpush.bf16.msra.mxu0 0
      %544 = vmatpush.bf16.msra.mxu0 0
      %545 = vmatpush.bf16.msra.mxu0 0
      %546 = vmatpush.bf16.msra.mxu0 0
      %547 = vmatpush.bf16.msra.mxu0 %v534
      %548 = vmatpush.bf16.msra.mxu0 %v533
      %549 = vmatmul.bf16.gmra.mxu0 %v539
      %v550 = vpop.f32.mrf.mxu0
      %v551 = vadd.f32 %v523, %v550
      %v552 = vpop.f32.mrf.mxu0
      %v553 = vadd.f32 %v523, %v552
      %554 = vdwg.mxu0
      %v555 = vld [vmem:[%s4] sm:$0xf]
      %v556 = vld [vmem:[%s4 + $0x4] sm:$0xf]
      %v557 = vld [vmem:[%s4 + $0x8] sm:$0xf]
      %v558 = vld [vmem:[%s4 + $0xc] sm:$0xf]
      %v559 = vld [vmem:[%s5] sm:$0x1]
      %v561 = vperm.slane %v559, 0
      %v567 = vunpack.c.l.b16 %v555
      %v568 = vunpack.c.l.b16 %v556
      %v569 = vunpack.c.l.b16 %v557
      %v570 = vunpack.c.l.b16 %v558
      %v571 = vpack.c.b16 %v568, %v567
      %v572 = vpack.c.b16 %v570, %v569
      %v576 = vsel %vm537, %v508, 0
      %578 = vmatpush.bf16.msra.mxu0 0
      %579 = vmatpush.bf16.msra.mxu0 0
      %580 = vmatpush.bf16.msra.mxu0 0
      %581 = vmatpush.bf16.msra.mxu0 0
      %582 = vmatpush.bf16.msra.mxu0 0
      %583 = vmatpush.bf16.msra.mxu0 0
      %584 = vmatpush.bf16.msra.mxu0 %v572
      %585 = vmatpush.bf16.msra.mxu0 %v571
      %586 = vmatmul.bf16.gmra.mxu0 %v576
      %v587 = vpop.f32.mrf.mxu0
      %v588 = vadd.f32 %v561, %v587
      %v589 = vpop.f32.mrf.mxu0
      %v590 = vadd.f32 %v561, %v589
      %591 = vdwg.mxu0
      %v592 = vld [vmem:[%s6] sm:$0xf]
      %v593 = vld [vmem:[%s6 + $0x4] sm:$0xf]
      %v594 = vld [vmem:[%s6 + $0x8] sm:$0xf]
      %v595 = vld [vmem:[%s6 + $0xc] sm:$0xf]
      %v596 = vld [vmem:[%s7] sm:$0x1]
      %v598 = vperm.slane %v596, 0
      %v604 = vunpack.c.l.b16 %v592
      %v605 = vunpack.c.l.b16 %v593
      %v606 = vunpack.c.l.b16 %v594
      %v607 = vunpack.c.l.b16 %v595
      %v608 = vpack.c.b16 %v605, %v604
      %v609 = vpack.c.b16 %v607, %v606
      %612 = vmatpush.bf16.msra.mxu0 0
      %613 = vmatpush.bf16.msra.mxu0 0
      %614 = vmatpush.bf16.msra.mxu0 0
      %615 = vmatpush.bf16.msra.mxu0 0
      %616 = vmatpush.bf16.msra.mxu0 0
      %617 = vmatpush.bf16.msra.mxu0 0
      %618 = vmatpush.bf16.msra.mxu0 %v609
      %619 = vmatpush.bf16.msra.mxu0 %v608
      %620 = vmatmul.bf16.gmra.mxu0 %v576
      %v621 = vpop.f32.mrf.mxu0
      %v622 = vadd.f32 %v598, %v621
      %v623 = vpop.f32.mrf.mxu0
      %v624 = vadd.f32 %v598, %v623
      %625 = vdwg.mxu0
      %v626 = vpack.c.bf16 %v551, %v551
      %v627 = vpack.c.bf16 %v553, %v553
      %v628 = vpack.c.bf16 %v588, %v588
      %v629 = vpack.c.bf16 %v590, %v590
      %v632 = vunpack.c.l.b16 %v626
      %v633 = vunpack.c.l.b16 %v627
      %v634 = vpack.c.b16 %v633, %v632
      %v637 = vunpack.c.l.b16 %v628
      %v638 = vunpack.c.l.b16 %v629
      %v639 = vpack.c.b16 %v638, %v637
      %vm640 = vcmask 64512
      %v642 = vsel %vm640, %v634, 0
      %v645 = vsel %vm640, %v639, 0
      %647 = vmatpush.bf16.xpose.msra.mxu0 0
      %648 = vmatpush.bf16.xpose.msra.mxu0 0
      %649 = vmatpush.bf16.xpose.msra.mxu0 0
      %650 = vmatpush.bf16.xpose.msra.mxu0 0
      %651 = vmatpush.bf16.xpose.msra.mxu0 0
      %652 = vmatpush.bf16.xpose.msra.mxu0 0
      %653 = vmatpush.bf16.xpose.msra.mxu0 0
      %654 = vmatpush.bf16.xpose.msra.mxu0 %v645
      %655 = vmatmul.bf16.gmra.mxu0 %v642
      %v656 = vpop.f32.mrf.mxu0
      %v657 = vadd.f32 0.0, %v656
      %v658 = vpop.f32.mrf.mxu0
      %v659 = vadd.f32 0.0, %v658
      %660 = vdwg.mxu0
      %v661 = vmul.f32 %v657, 0.35355338
      %v662 = vmul.f32 %v659, 0.35355338
      %v663 = vadd.f32 %v661, %v515
      %v664 = vadd.f32 %v662, %v516
      %vm665 = vcmask 80896
      %v666 = vsel %vm665, %v663, -inf
      %667 = vmax.xlane.f32.xlu0 %v666
      %v668 = vpop.xlane.xlu0 %667
      %vm669 = vcmask 74752
      %v670 = vsel %vm669, %v664, -inf
      %671 = vmax.xlane.f32.xlu0 %v670
      %v672 = vpop.xlane.xlu0 %671
      %v673 = vsub.f32 %v663, %v668
      %v674 = vsub.f32 %v664, %v672
      %v675 = vmul.f32 %v673, 1.442695
      %v676 = vpow.pop %v675
      %v677 = vmul.f32 %v674, 1.442695
      %v678 = vpow.pop %v677
      %v679 = vsel %vm665, %v676, 0.0
      %680 = vadd.xlane.f32.xlu0 %v679
      %v681 = vpop.xlane.xlu0 %680
      %v682 = vsel %vm669, %v678, 0.0
      %683 = vadd.xlane.f32.xlu0 %v682
      %v684 = vpop.xlane.xlu0 %683
      %v685 = vrcp.pop %v681
      %v686 = vrcp.pop %v684
      %v687 = vmul.f32 %v676, %v685
      %v688 = vmul.f32 %v678, %v686
      %v689 = vpack.c.bf16 %v687, %v687
      %v690 = vpack.c.bf16 %v688, %v688
      %v691 = vpack.c.bf16 %v622, %v622
      %v692 = vpack.c.bf16 %v624, %v624
      %v695 = vunpack.c.l.b16 %v689
      %v696 = vunpack.c.l.b16 %v690
      %v697 = vpack.c.b16 %v696, %v695
      %v700 = vunpack.c.l.b16 %v691
      %v701 = vunpack.c.l.b16 %v692
      %v702 = vpack.c.b16 %v701, %v700
      %v704 = vsel %vm665, %v697, 0
      %vm706 = vcmask 1044480
      %v708 = vsel %vm706, %v702, 0
      %710 = vmatpush.bf16.msra.mxu0 0
      %711 = vmatpush.bf16.msra.mxu0 0
      %712 = vmatpush.bf16.msra.mxu0 0
      %713 = vmatpush.bf16.msra.mxu0 0
      %714 = vmatpush.bf16.msra.mxu0 0
      %715 = vmatpush.bf16.msra.mxu0 0
      %716 = vmatpush.bf16.msra.mxu0 0
      %717 = vmatpush.bf16.msra.mxu0 %v708
      %718 = vmatmul.bf16.gmra.mxu0 %v704
      %v719 = vpop.f32.mrf.mxu0
      %v720 = vadd.f32 0.0, %v719
      %v721 = vpop.f32.mrf.mxu0
      %v722 = vadd.f32 0.0, %v721
      %723 = vdwg.mxu0
      %v724 = vpack.c.bf16 %v722, %v720
      %v725 = vld [vmem:[%s8] sm:$0xf]
      %s726 = scalar_lea.vmem %s2, 16
      %v727 = vld [vmem:[%s726] sm:$0xf]
      %v728 = vld [vmem:[%s726 + $0x4] sm:$0xf]
      %v729 = vld [vmem:[%s726 + $0x8] sm:$0xf]
      %v730 = vld [vmem:[%s726 + $0xc] sm:$0xf]
      %s731 = scalar_lea.vmem %s3, 1
      %v732 = vld [vmem:[%s731] sm:$0x1]
      %v734 = vperm.slane %v732, 0
      %v740 = vunpack.c.l.b16 %v727
      %v741 = vunpack.c.l.b16 %v728
      %v742 = vunpack.c.l.b16 %v729
      %v743 = vunpack.c.l.b16 %v730
      %v744 = vpack.c.b16 %v741, %v740
      %v745 = vpack.c.b16 %v743, %v742
      %748 = vmatpush.bf16.msra.mxu0 0
      %749 = vmatpush.bf16.msra.mxu0 0
      %750 = vmatpush.bf16.msra.mxu0 0
      %751 = vmatpush.bf16.msra.mxu0 0
      %752 = vmatpush.bf16.msra.mxu0 0
      %753 = vmatpush.bf16.msra.mxu0 0
      %754 = vmatpush.bf16.msra.mxu0 %v745
      %755 = vmatpush.bf16.msra.mxu0 %v744
      %756 = vmatmul.bf16.gmra.mxu0 %v539
      %v757 = vpop.f32.mrf.mxu0
      %v758 = vadd.f32 %v734, %v757
      %v759 = vpop.f32.mrf.mxu0
      %v760 = vadd.f32 %v734, %v759
      %761 = vdwg.mxu0
      %s762 = scalar_lea.vmem %s4, 16
      %v763 = vld [vmem:[%s762] sm:$0xf]
      %v764 = vld [vmem:[%s762 + $0x4] sm:$0xf]
      %v765 = vld [vmem:[%s762 + $0x8] sm:$0xf]
      %v766 = vld [vmem:[%s762 + $0xc] sm:$0xf]
      %s767 = scalar_lea.vmem %s5, 1
      %v768 = vld [vmem:[%s767] sm:$0x1]
      %v770 = vperm.slane %v768, 0
      %v776 = vunpack.c.l.b16 %v763
      %v777 = vunpack.c.l.b16 %v764
      %v778 = vunpack.c.l.b16 %v765
      %v779 = vunpack.c.l.b16 %v766
      %v780 = vpack.c.b16 %v777, %v776
      %v781 = vpack.c.b16 %v779, %v778
      %784 = vmatpush.bf16.msra.mxu0 0
      %785 = vmatpush.bf16.msra.mxu0 0
      %786 = vmatpush.bf16.msra.mxu0 0
      %787 = vmatpush.bf16.msra.mxu0 0
      %788 = vmatpush.bf16.msra.mxu0 0
      %789 = vmatpush.bf16.msra.mxu0 0
      %790 = vmatpush.bf16.msra.mxu0 %v781
      %791 = vmatpush.bf16.msra.mxu0 %v780
      %792 = vmatmul.bf16.gmra.mxu0 %v576
      %v793 = vpop.f32.mrf.mxu0
      %v794 = vadd.f32 %v770, %v793
      %v795 = vpop.f32.mrf.mxu0
      %v796 = vadd.f32 %v770, %v795
      %797 = vdwg.mxu0
      %s798 = scalar_lea.vmem %s6, 16
      %v799 = vld [vmem:[%s798] sm:$0xf]
      %v800 = vld [vmem:[%s798 + $0x4] sm:$0xf]
      %v801 = vld [vmem:[%s798 + $0x8] sm:$0xf]
      %v802 = vld [vmem:[%s798 + $0xc] sm:$0xf]
      %s803 = scalar_lea.vmem %s7, 1
      %v804 = vld [vmem:[%s803] sm:$0x1]
      %v806 = vperm.slane %v804, 0
      %v812 = vunpack.c.l.b16 %v799
      %v813 = vunpack.c.l.b16 %v800
      %v814 = vunpack.c.l.b16 %v801
      %v815 = vunpack.c.l.b16 %v802
      %v816 = vpack.c.b16 %v813, %v812
      %v817 = vpack.c.b16 %v815, %v814
      %820 = vmatpush.bf16.msra.mxu0 0
      %821 = vmatpush.bf16.msra.mxu0 0
      %822 = vmatpush.bf16.msra.mxu0 0
      %823 = vmatpush.bf16.msra.mxu0 0
      %824 = vmatpush.bf16.msra.mxu0 0
      %825 = vmatpush.bf16.msra.mxu0 0
      %826 = vmatpush.bf16.msra.mxu0 %v817
      %827 = vmatpush.bf16.msra.mxu0 %v816
      %828 = vmatmul.bf16.gmra.mxu0 %v576
      %v829 = vpop.f32.mrf.mxu0
      %v830 = vadd.f32 %v806, %v829
      %v831 = vpop.f32.mrf.mxu0
      %v832 = vadd.f32 %v806, %v831
      %833 = vdwg.mxu0
      %v834 = vpack.c.bf16 %v758, %v758
      %v835 = vpack.c.bf16 %v760, %v760
      %v836 = vpack.c.bf16 %v794, %v794
      %v837 = vpack.c.bf16 %v796, %v796
      %v840 = vunpack.c.l.b16 %v834
      %v841 = vunpack.c.l.b16 %v835
      %v842 = vpack.c.b16 %v841, %v840
      %v845 = vunpack.c.l.b16 %v836
      %v846 = vunpack.c.l.b16 %v837
      %v847 = vpack.c.b16 %v846, %v845
      %v849 = vsel %vm640, %v842, 0
      %v852 = vsel %vm640, %v847, 0
      %854 = vmatpush.bf16.xpose.msra.mxu0 0
      %855 = vmatpush.bf16.xpose.msra.mxu0 0
      %856 = vmatpush.bf16.xpose.msra.mxu0 0
      %857 = vmatpush.bf16.xpose.msra.mxu0 0
      %858 = vmatpush.bf16.xpose.msra.mxu0 0
      %859 = vmatpush.bf16.xpose.msra.mxu0 0
      %860 = vmatpush.bf16.xpose.msra.mxu0 0
      %861 = vmatpush.bf16.xpose.msra.mxu0 %v852
      %862 = vmatmul.bf16.gmra.mxu0 %v849
      %v863 = vpop.f32.mrf.mxu0
      %v864 = vadd.f32 0.0, %v863
      %v865 = vpop.f32.mrf.mxu0
      %v866 = vadd.f32 0.0, %v865
      %867 = vdwg.mxu0
      %v868 = vmul.f32 %v864, 0.35355338
      %v869 = vmul.f32 %v866, 0.35355338
      %v870 = vadd.f32 %v868, %v515
      %v871 = vadd.f32 %v869, %v516
      %v872 = vsel %vm665, %v870, -inf
      %873 = vmax.xlane.f32.xlu0 %v872
      %v874 = vpop.xlane.xlu0 %873
      %v875 = vsel %vm669, %v871, -inf
      %876 = vmax.xlane.f32.xlu0 %v875
      %v877 = vpop.xlane.xlu0 %876
      %v878 = vsub.f32 %v870, %v874
      %v879 = vsub.f32 %v871, %v877
      %v880 = vmul.f32 %v878, 1.442695
      %v881 = vpow.pop %v880
      %v882 = vmul.f32 %v879, 1.442695
      %v883 = vpow.pop %v882
      %v884 = vsel %vm665, %v881, 0.0
      %885 = vadd.xlane.f32.xlu0 %v884
      %v886 = vpop.xlane.xlu0 %885
      %v887 = vsel %vm669, %v883, 0.0
      %888 = vadd.xlane.f32.xlu0 %v887
      %v889 = vpop.xlane.xlu0 %888
      %v890 = vrcp.pop %v886
      %v891 = vrcp.pop %v889
      %v892 = vmul.f32 %v881, %v890
      %v893 = vmul.f32 %v883, %v891
      %v894 = vpack.c.bf16 %v892, %v892
      %v895 = vpack.c.bf16 %v893, %v893
      %v896 = vpack.c.bf16 %v830, %v830
      %v897 = vpack.c.bf16 %v832, %v832
      %v900 = vunpack.c.l.b16 %v894
      %v901 = vunpack.c.l.b16 %v895
      %v902 = vpack.c.b16 %v901, %v900
      %v905 = vunpack.c.l.b16 %v896
      %v906 = vunpack.c.l.b16 %v897
      %v907 = vpack.c.b16 %v906, %v905
      %v909 = vsel %vm665, %v902, 0
      %v912 = vsel %vm706, %v907, 0
      %914 = vmatpush.bf16.msra.mxu0 0
      %915 = vmatpush.bf16.msra.mxu0 0
      %916 = vmatpush.bf16.msra.mxu0 0
      %917 = vmatpush.bf16.msra.mxu0 0
      %918 = vmatpush.bf16.msra.mxu0 0
      %919 = vmatpush.bf16.msra.mxu0 0
      %920 = vmatpush.bf16.msra.mxu0 0
      %921 = vmatpush.bf16.msra.mxu0 %v912
      %922 = vmatmul.bf16.gmra.mxu0 %v909
      %v923 = vpop.f32.mrf.mxu0
      %v924 = vadd.f32 0.0, %v923
      %v925 = vpop.f32.mrf.mxu0
      %v926 = vadd.f32 0.0, %v925
      %927 = vdwg.mxu0
      %v928 = vpack.c.bf16 %v926, %v924
      %s929 = scalar_lea.vmem %s8, 4
      %v930 = vld [vmem:[%s929] sm:$0xf]
      %v932 = vsel %vm640, %v928, 0
      %vm934 = vcmask 1043456
      %v936 = vsel %vm934, %v930, 0
      %938 = vmatpush.bf16.msra.mxu0 0
      %939 = vmatpush.bf16.msra.mxu0 0
      %940 = vmatpush.bf16.msra.mxu0 0
      %941 = vmatpush.bf16.msra.mxu0 0
      %942 = vmatpush.bf16.msra.mxu0 0
      %943 = vmatpush.bf16.msra.mxu0 0
      %944 = vmatpush.bf16.msra.mxu0 0
      %945 = vmatpush.bf16.msra.mxu0 %v936
      %946 = vmatmul.bf16.gmra.mxu0 %v932
      %v947 = vpop.f32.mrf.mxu0
      %v948 = vadd.f32 0.0, %v947
      %v949 = vpop.f32.mrf.mxu0
      %v950 = vadd.f32 0.0, %v949
      %951 = vdwg.mxu0
      %v953 = vsel %vm640, %v724, 0
      %v956 = vsel %vm934, %v725, 0
      %958 = vmatpush.bf16.msra.mxu0 0
      %959 = vmatpush.bf16.msra.mxu0 0
      %960 = vmatpush.bf16.msra.mxu0 0
      %961 = vmatpush.bf16.msra.mxu0 0
      %962 = vmatpush.bf16.msra.mxu0 0
      %963 = vmatpush.bf16.msra.mxu0 0
      %964 = vmatpush.bf16.msra.mxu0 0
      %965 = vmatpush.bf16.msra.mxu0 %v956
      %966 = vmatmul.bf16.gmra.mxu0 %v953
      %v967 = vpop.f32.mrf.mxu0
      %v968 = vadd.f32 %v948, %v967
      %v969 = vpop.f32.mrf.mxu0
      %v970 = vadd.f32 %v950, %v969
      %971 = vdwg.mxu0
      %s972 = scalar_lea.vmem %s2, 32
      %v973 = vld [vmem:[%s972] sm:$0xf]
      %v974 = vld [vmem:[%s972 + $0x4] sm:$0xf]
      %v975 = vld [vmem:[%s972 + $0x8] sm:$0xf]
      %v976 = vld [vmem:[%s972 + $0xc] sm:$0xf]
      %s977 = scalar_lea.vmem %s3, 2
      %v978 = vld [vmem:[%s977] sm:$0x1]
      %v980 = vperm.slane %v978, 0
      %v986 = vunpack.c.l.b16 %v973
      %v987 = vunpack.c.l.b16 %v974
      %v988 = vunpack.c.l.b16 %v975
      %v989 = vunpack.c.l.b16 %v976
      %v990 = vpack.c.b16 %v987, %v986
      %v991 = vpack.c.b16 %v989, %v988
      %994 = vmatpush.bf16.msra.mxu0 0
      %995 = vmatpush.bf16.msra.mxu0 0
      %996 = vmatpush.bf16.msra.mxu0 0
      %997 = vmatpush.bf16.msra.mxu0 0
      %998 = vmatpush.bf16.msra.mxu0 0
      %999 = vmatpush.bf16.msra.mxu0 0
      %1000 = vmatpush.bf16.msra.mxu0 %v991
      %1001 = vmatpush.bf16.msra.mxu0 %v990
      %1002 = vmatmul.bf16.gmra.mxu0 %v539
      %v1003 = vpop.f32.mrf.mxu0
      %v1004 = vadd.f32 %v980, %v1003
      %v1005 = vpop.f32.mrf.mxu0
      %v1006 = vadd.f32 %v980, %v1005
      %1007 = vdwg.mxu0
      %s1008 = scalar_lea.vmem %s4, 32
      %v1009 = vld [vmem:[%s1008] sm:$0xf]
      %v1010 = vld [vmem:[%s1008 + $0x4] sm:$0xf]
      %v1011 = vld [vmem:[%s1008 + $0x8] sm:$0xf]
      %v1012 = vld [vmem:[%s1008 + $0xc] sm:$0xf]
      %s1013 = scalar_lea.vmem %s5, 2
      %v1014 = vld [vmem:[%s1013] sm:$0x1]
      %v1016 = vperm.slane %v1014, 0
      %v1022 = vunpack.c.l.b16 %v1009
      %v1023 = vunpack.c.l.b16 %v1010
      %v1024 = vunpack.c.l.b16 %v1011
      %v1025 = vunpack.c.l.b16 %v1012
      %v1026 = vpack.c.b16 %v1023, %v1022
      %v1027 = vpack.c.b16 %v1025, %v1024
      %1030 = vmatpush.bf16.msra.mxu0 0
      %1031 = vmatpush.bf16.msra.mxu0 0
      %1032 = vmatpush.bf16.msra.mxu0 0
      %1033 = vmatpush.bf16.msra.mxu0 0
      %1034 = vmatpush.bf16.msra.mxu0 0
      %1035 = vmatpush.bf16.msra.mxu0 0
      %1036 = vmatpush.bf16.msra.mxu0 %v1027
      %1037 = vmatpush.bf16.msra.mxu0 %v1026
      %1038 = vmatmul.bf16.gmra.mxu0 %v576
      %v1039 = vpop.f32.mrf.mxu0
      %v1040 = vadd.f32 %v1016, %v1039
      %v1041 = vpop.f32.mrf.mxu0
      %v1042 = vadd.f32 %v1016, %v1041
      %1043 = vdwg.mxu0
      %s1044 = scalar_lea.vmem %s6, 32
      %v1045 = vld [vmem:[%s1044] sm:$0xf]
      %v1046 = vld [vmem:[%s1044 + $0x4] sm:$0xf]
      %v1047 = vld [vmem:[%s1044 + $0x8] sm:$0xf]
      %v1048 = vld [vmem:[%s1044 + $0xc] sm:$0xf]
      %s1049 = scalar_lea.vmem %s7, 2
      %v1050 = vld [vmem:[%s1049] sm:$0x1]
      %v1052 = vperm.slane %v1050, 0
      %v1058 = vunpack.c.l.b16 %v1045
      %v1059 = vunpack.c.l.b16 %v1046
      %v1060 = vunpack.c.l.b16 %v1047
      %v1061 = vunpack.c.l.b16 %v1048
      %v1062 = vpack.c.b16 %v1059, %v1058
      %v1063 = vpack.c.b16 %v1061, %v1060
      %1066 = vmatpush.bf16.msra.mxu0 0
      %1067 = vmatpush.bf16.msra.mxu0 0
      %1068 = vmatpush.bf16.msra.mxu0 0
      %1069 = vmatpush.bf16.msra.mxu0 0
      %1070 = vmatpush.bf16.msra.mxu0 0
      %1071 = vmatpush.bf16.msra.mxu0 0
      %1072 = vmatpush.bf16.msra.mxu0 %v1063
      %1073 = vmatpush.bf16.msra.mxu0 %v1062
      %1074 = vmatmul.bf16.gmra.mxu0 %v576
      %v1075 = vpop.f32.mrf.mxu0
      %v1076 = vadd.f32 %v1052, %v1075
      %v1077 = vpop.f32.mrf.mxu0
      %v1078 = vadd.f32 %v1052, %v1077
      %1079 = vdwg.mxu0
      %v1080 = vpack.c.bf16 %v1004, %v1004
      %v1081 = vpack.c.bf16 %v1006, %v1006
      %v1082 = vpack.c.bf16 %v1040, %v1040
      %v1083 = vpack.c.bf16 %v1042, %v1042
      %v1086 = vunpack.c.l.b16 %v1080
      %v1087 = vunpack.c.l.b16 %v1081
      %v1088 = vpack.c.b16 %v1087, %v1086
      %v1091 = vunpack.c.l.b16 %v1082
      %v1092 = vunpack.c.l.b16 %v1083
      %v1093 = vpack.c.b16 %v1092, %v1091
      %v1095 = vsel %vm640, %v1088, 0
      %v1098 = vsel %vm640, %v1093, 0
      %1100 = vmatpush.bf16.xpose.msra.mxu0 0
      %1101 = vmatpush.bf16.xpose.msra.mxu0 0
      %1102 = vmatpush.bf16.xpose.msra.mxu0 0
      %1103 = vmatpush.bf16.xpose.msra.mxu0 0
      %1104 = vmatpush.bf16.xpose.msra.mxu0 0
      %1105 = vmatpush.bf16.xpose.msra.mxu0 0
      %1106 = vmatpush.bf16.xpose.msra.mxu0 0
      %1107 = vmatpush.bf16.xpose.msra.mxu0 %v1098
      %1108 = vmatmul.bf16.gmra.mxu0 %v1095
      %v1109 = vpop.f32.mrf.mxu0
      %v1110 = vadd.f32 0.0, %v1109
      %v1111 = vpop.f32.mrf.mxu0
      %v1112 = vadd.f32 0.0, %v1111
      %1113 = vdwg.mxu0
      %v1114 = vmul.f32 %v1110, 0.35355338
      %v1115 = vmul.f32 %v1112, 0.35355338
      %v1116 = vadd.f32 %v1114, %v515
      %v1117 = vadd.f32 %v1115, %v516
      %v1118 = vsel %vm665, %v1116, -inf
      %1119 = vmax.xlane.f32.xlu0 %v1118
      %v1120 = vpop.xlane.xlu0 %1119
      %v1121 = vsel %vm669, %v1117, -inf
      %1122 = vmax.xlane.f32.xlu0 %v1121
      %v1123 = vpop.xlane.xlu0 %1122
      %v1124 = vsub.f32 %v1116, %v1120
      %v1125 = vsub.f32 %v1117, %v1123
      %v1126 = vmul.f32 %v1124, 1.442695
      %v1127 = vpow.pop %v1126
      %v1128 = vmul.f32 %v1125, 1.442695
      %v1129 = vpow.pop %v1128
      %v1130 = vsel %vm665, %v1127, 0.0
      %1131 = vadd.xlane.f32.xlu0 %v1130
      %v1132 = vpop.xlane.xlu0 %1131
      %v1133 = vsel %vm669, %v1129, 0.0
      %1134 = vadd.xlane.f32.xlu0 %v1133
      %v1135 = vpop.xlane.xlu0 %1134
      %v1136 = vrcp.pop %v1132
      %v1137 = vrcp.pop %v1135
      %v1138 = vmul.f32 %v1127, %v1136
      %v1139 = vmul.f32 %v1129, %v1137
      %v1140 = vpack.c.bf16 %v1138, %v1138
      %v1141 = vpack.c.bf16 %v1139, %v1139
      %v1142 = vpack.c.bf16 %v1076, %v1076
      %v1143 = vpack.c.bf16 %v1078, %v1078
      %v1146 = vunpack.c.l.b16 %v1140
      %v1147 = vunpack.c.l.b16 %v1141
      %v1148 = vpack.c.b16 %v1147, %v1146
      %v1151 = vunpack.c.l.b16 %v1142
      %v1152 = vunpack.c.l.b16 %v1143
      %v1153 = vpack.c.b16 %v1152, %v1151
      %v1155 = vsel %vm665, %v1148, 0
      %v1158 = vsel %vm706, %v1153, 0
      %1160 = vmatpush.bf16.msra.mxu0 0
      %1161 = vmatpush.bf16.msra.mxu0 0
      %1162 = vmatpush.bf16.msra.mxu0 0
      %1163 = vmatpush.bf16.msra.mxu0 0
      %1164 = vmatpush.bf16.msra.mxu0 0
      %1165 = vmatpush.bf16.msra.mxu0 0
      %1166 = vmatpush.bf16.msra.mxu0 0
      %1167 = vmatpush.bf16.msra.mxu0 %v1158
      %1168 = vmatmul.bf16.gmra.mxu0 %v1155
      %v1169 = vpop.f32.mrf.mxu0
      %v1170 = vadd.f32 0.0, %v1169
      %v1171 = vpop.f32.mrf.mxu0
      %v1172 = vadd.f32 0.0, %v1171
      %1173 = vdwg.mxu0
      %v1174 = vpack.c.bf16 %v1172, %v1170
      %s1175 = scalar_lea.vmem %s8, 8
      %v1176 = vld [vmem:[%s1175] sm:$0xf]
      %v1178 = vsel %vm640, %v1174, 0
      %v1181 = vsel %vm934, %v1176, 0
      %1183 = vmatpush.bf16.msra.mxu0 0
      %1184 = vmatpush.bf16.msra.mxu0 0
      %1185 = vmatpush.bf16.msra.mxu0 0
      %1186 = vmatpush.bf16.msra.mxu0 0
      %1187 = vmatpush.bf16.msra.mxu0 0
      %1188 = vmatpush.bf16.msra.mxu0 0
      %1189 = vmatpush.bf16.msra.mxu0 0
      %1190 = vmatpush.bf16.msra.mxu0 %v1181
      %1191 = vmatmul.bf16.gmra.mxu0 %v1178
      %v1192 = vpop.f32.mrf.mxu0
      %v1193 = vadd.f32 0.0, %v1192
      %v1194 = vpop.f32.mrf.mxu0
      %v1195 = vadd.f32 0.0, %v1194
      %1196 = vdwg.mxu0
      %v1197 = vadd.f32 %v968, %v1193
      %v1198 = vadd.f32 %v970, %v1195
      %s1199 = scalar_lea.vmem %s2, 48
      %v1200 = vld [vmem:[%s1199] sm:$0xf]
      %v1201 = vld [vmem:[%s1199 + $0x4] sm:$0xf]
      %v1202 = vld [vmem:[%s1199 + $0x8] sm:$0xf]
      %v1203 = vld [vmem:[%s1199 + $0xc] sm:$0xf]
      %s1204 = scalar_lea.vmem %s3, 3
      %v1205 = vld [vmem:[%s1204] sm:$0x1]
      %v1207 = vperm.slane %v1205, 0
      %v1213 = vunpack.c.l.b16 %v1200
      %v1214 = vunpack.c.l.b16 %v1201
      %v1215 = vunpack.c.l.b16 %v1202
      %v1216 = vunpack.c.l.b16 %v1203
      %v1217 = vpack.c.b16 %v1214, %v1213
      %v1218 = vpack.c.b16 %v1216, %v1215
      %1221 = vmatpush.bf16.msra.mxu0 0
      %1222 = vmatpush.bf16.msra.mxu0 0
      %1223 = vmatpush.bf16.msra.mxu0 0
      %1224 = vmatpush.bf16.msra.mxu0 0
      %1225 = vmatpush.bf16.msra.mxu0 0
      %1226 = vmatpush.bf16.msra.mxu0 0
      %1227 = vmatpush.bf16.msra.mxu0 %v1218
      %1228 = vmatpush.bf16.msra.mxu0 %v1217
      %1229 = vmatmul.bf16.gmra.mxu0 %v539
      %v1230 = vpop.f32.mrf.mxu0
      %v1231 = vadd.f32 %v1207, %v1230
      %v1232 = vpop.f32.mrf.mxu0
      %v1233 = vadd.f32 %v1207, %v1232
      %1234 = vdwg.mxu0
      %s1235 = scalar_lea.vmem %s4, 48
      %v1236 = vld [vmem:[%s1235] sm:$0xf]
      %v1237 = vld [vmem:[%s1235 + $0x4] sm:$0xf]
      %v1238 = vld [vmem:[%s1235 + $0x8] sm:$0xf]
      %v1239 = vld [vmem:[%s1235 + $0xc] sm:$0xf]
      %s1240 = scalar_lea.vmem %s5, 3
      %v1241 = vld [vmem:[%s1240] sm:$0x1]
      %v1243 = vperm.slane %v1241, 0
      %v1249 = vunpack.c.l.b16 %v1236
      %v1250 = vunpack.c.l.b16 %v1237
      %v1251 = vunpack.c.l.b16 %v1238
      %v1252 = vunpack.c.l.b16 %v1239
      %v1253 = vpack.c.b16 %v1250, %v1249
      %v1254 = vpack.c.b16 %v1252, %v1251
      %1257 = vmatpush.bf16.msra.mxu0 0
      %1258 = vmatpush.bf16.msra.mxu0 0
      %1259 = vmatpush.bf16.msra.mxu0 0
      %1260 = vmatpush.bf16.msra.mxu0 0
      %1261 = vmatpush.bf16.msra.mxu0 0
      %1262 = vmatpush.bf16.msra.mxu0 0
      %1263 = vmatpush.bf16.msra.mxu0 %v1254
      %1264 = vmatpush.bf16.msra.mxu0 %v1253
      %1265 = vmatmul.bf16.gmra.mxu0 %v576
      %v1266 = vpop.f32.mrf.mxu0
      %v1267 = vadd.f32 %v1243, %v1266
      %v1268 = vpop.f32.mrf.mxu0
      %v1269 = vadd.f32 %v1243, %v1268
      %1270 = vdwg.mxu0
      %s1271 = scalar_lea.vmem %s6, 48
      %v1272 = vld [vmem:[%s1271] sm:$0xf]
      %v1273 = vld [vmem:[%s1271 + $0x4] sm:$0xf]
      %v1274 = vld [vmem:[%s1271 + $0x8] sm:$0xf]
      %v1275 = vld [vmem:[%s1271 + $0xc] sm:$0xf]
      %s1276 = scalar_lea.vmem %s7, 3
      %v1277 = vld [vmem:[%s1276] sm:$0x1]
      %v1279 = vperm.slane %v1277, 0
      %v1285 = vunpack.c.l.b16 %v1272
      %v1286 = vunpack.c.l.b16 %v1273
      %v1287 = vunpack.c.l.b16 %v1274
      %v1288 = vunpack.c.l.b16 %v1275
      %v1289 = vpack.c.b16 %v1286, %v1285
      %v1290 = vpack.c.b16 %v1288, %v1287
      %1293 = vmatpush.bf16.msra.mxu0 0
      %1294 = vmatpush.bf16.msra.mxu0 0
      %1295 = vmatpush.bf16.msra.mxu0 0
      %1296 = vmatpush.bf16.msra.mxu0 0
      %1297 = vmatpush.bf16.msra.mxu0 0
      %1298 = vmatpush.bf16.msra.mxu0 0
      %1299 = vmatpush.bf16.msra.mxu0 %v1290
      %1300 = vmatpush.bf16.msra.mxu0 %v1289
      %1301 = vmatmul.bf16.gmra.mxu0 %v576
      %v1302 = vpop.f32.mrf.mxu0
      %v1303 = vadd.f32 %v1279, %v1302
      %v1304 = vpop.f32.mrf.mxu0
      %v1305 = vadd.f32 %v1279, %v1304
      %1306 = vdwg.mxu0
      %v1307 = vpack.c.bf16 %v1231, %v1231
      %v1308 = vpack.c.bf16 %v1233, %v1233
      %v1309 = vpack.c.bf16 %v1267, %v1267
      %v1310 = vpack.c.bf16 %v1269, %v1269
      %v1313 = vunpack.c.l.b16 %v1307
      %v1314 = vunpack.c.l.b16 %v1308
      %v1315 = vpack.c.b16 %v1314, %v1313
      %v1318 = vunpack.c.l.b16 %v1309
      %v1319 = vunpack.c.l.b16 %v1310
      %v1320 = vpack.c.b16 %v1319, %v1318
      %v1322 = vsel %vm640, %v1315, 0
      %v1325 = vsel %vm640, %v1320, 0
      %1327 = vmatpush.bf16.xpose.msra.mxu0 0
      %1328 = vmatpush.bf16.xpose.msra.mxu0 0
      %1329 = vmatpush.bf16.xpose.msra.mxu0 0
      %1330 = vmatpush.bf16.xpose.msra.mxu0 0
      %1331 = vmatpush.bf16.xpose.msra.mxu0 0
      %1332 = vmatpush.bf16.xpose.msra.mxu0 0
      %1333 = vmatpush.bf16.xpose.msra.mxu0 0
      %1334 = vmatpush.bf16.xpose.msra.mxu0 %v1325
      %1335 = vmatmul.bf16.gmra.mxu0 %v1322
      %v1336 = vpop.f32.mrf.mxu0
      %v1337 = vadd.f32 0.0, %v1336
      %v1338 = vpop.f32.mrf.mxu0
      %v1339 = vadd.f32 0.0, %v1338
      %1340 = vdwg.mxu0
      %v1341 = vmul.f32 %v1337, 0.35355338
      %v1342 = vmul.f32 %v1339, 0.35355338
      %v1343 = vadd.f32 %v1341, %v515
      %v1344 = vadd.f32 %v1342, %v516
      %v1345 = vsel %vm665, %v1343, -inf
      %1346 = vmax.xlane.f32.xlu0 %v1345
      %v1347 = vpop.xlane.xlu0 %1346
      %v1348 = vsel %vm669, %v1344, -inf
      %1349 = vmax.xlane.f32.xlu0 %v1348
      %v1350 = vpop.xlane.xlu0 %1349
      %v1351 = vsub.f32 %v1343, %v1347
      %v1352 = vsub.f32 %v1344, %v1350
      %v1353 = vmul.f32 %v1351, 1.442695
      %v1354 = vpow.pop %v1353
      %v1355 = vmul.f32 %v1352, 1.442695
      %v1356 = vpow.pop %v1355
      %v1357 = vsel %vm665, %v1354, 0.0
      %1358 = vadd.xlane.f32.xlu0 %v1357
      %v1359 = vpop.xlane.xlu0 %1358
      %v1360 = vsel %vm669, %v1356, 0.0
      %1361 = vadd.xlane.f32.xlu0 %v1360
      %v1362 = vpop.xlane.xlu0 %1361
      %v1363 = vrcp.pop %v1359
      %v1364 = vrcp.pop %v1362
      %v1365 = vmul.f32 %v1354, %v1363
      %v1366 = vmul.f32 %v1356, %v1364
      %v1367 = vpack.c.bf16 %v1365, %v1365
      %v1368 = vpack.c.bf16 %v1366, %v1366
      %v1369 = vpack.c.bf16 %v1303, %v1303
      %v1370 = vpack.c.bf16 %v1305, %v1305
      %v1373 = vunpack.c.l.b16 %v1367
      %v1374 = vunpack.c.l.b16 %v1368
      %v1375 = vpack.c.b16 %v1374, %v1373
      %v1378 = vunpack.c.l.b16 %v1369
      %v1379 = vunpack.c.l.b16 %v1370
      %v1380 = vpack.c.b16 %v1379, %v1378
      %v1382 = vsel %vm665, %v1375, 0
      %v1385 = vsel %vm706, %v1380, 0
      %1387 = vmatpush.bf16.msra.mxu0 0
      %1388 = vmatpush.bf16.msra.mxu0 0
      %1389 = vmatpush.bf16.msra.mxu0 0
      %1390 = vmatpush.bf16.msra.mxu0 0
      %1391 = vmatpush.bf16.msra.mxu0 0
      %1392 = vmatpush.bf16.msra.mxu0 0
      %1393 = vmatpush.bf16.msra.mxu0 0
      %1394 = vmatpush.bf16.msra.mxu0 %v1385
      %1395 = vmatmul.bf16.gmra.mxu0 %v1382
      %v1396 = vpop.f32.mrf.mxu0
      %v1397 = vadd.f32 0.0, %v1396
      %v1398 = vpop.f32.mrf.mxu0
      %v1399 = vadd.f32 0.0, %v1398
      %1400 = vdwg.mxu0
      %v1401 = vpack.c.bf16 %v1399, %v1397
      %s1402 = scalar_lea.vmem %s8, 12
      %v1403 = vld [vmem:[%s1402] sm:$0xf]
      %v1405 = vsel %vm640, %v1401, 0
      %v1408 = vsel %vm934, %v1403, 0
      %1410 = vmatpush.bf16.msra.mxu0 0
      %1411 = vmatpush.bf16.msra.mxu0 0
      %1412 = vmatpush.bf16.msra.mxu0 0
      %1413 = vmatpush.bf16.msra.mxu0 0
      %1414 = vmatpush.bf16.msra.mxu0 0
      %1415 = vmatpush.bf16.msra.mxu0 0
      %1416 = vmatpush.bf16.msra.mxu0 0
      %1417 = vmatpush.bf16.msra.mxu0 %v1408
      %1418 = vmatmul.bf16.gmra.mxu0 %v1405
      %v1419 = vpop.f32.mrf.mxu0
      %v1420 = vadd.f32 0.0, %v1419
      %v1421 = vpop.f32.mrf.mxu0
      %v1422 = vadd.f32 0.0, %v1421
      %1423 = vdwg.mxu0
      %v1424 = vadd.f32 %v1197, %v1420
      %v1425 = vadd.f32 %v1198, %v1422
      %v1426 = vld [vmem:[%s9] sm:$0x1]
      %v1428 = vperm.slane %v1426, 0
      %v1430 = vadd.f32 %v1424, %v1428
      %v1431 = vadd.f32 %v1425, %v1428
      %v1432 = vadd.f32 %v503, %v1430
      %v1433 = vadd.f32 %v504, %v1431
      %v1434 = vsel %vm537, %v1432, 0.0
      %1435 = vadd.xlane.f32.xlu0 %v1434
      %v1436 = vpop.xlane.xlu0 %1435
      %vm1437 = vcmask 254976
      %v1438 = vsel %vm1437, %v1433, 0.0
      %1439 = vadd.xlane.f32.xlu0 %v1438
      %v1440 = vpop.xlane.xlu0 %1439
      %v1441 = vrcp.pop 32.0
      %v1442 = vmul.f32 32.0, %v1441
      %v1443 = vsub.f32 1.0, %v1442
      %v1444 = vmul.f32 %v1441, %v1443
      %v1445 = vadd.f32 %v1441, %v1444
      %vm1446 = vweird.f32 %v1441
      %v1447 = vsel %vm1446, %v1441, %v1445
      %v1448 = vmul.f32 %v1436, %v1447
      %v1449 = vmul.f32 %v1440, %v1447
      %v1450 = vsub.f32 %v1432, %v1448
      %v1451 = vsub.f32 %v1433, %v1449
      %v1452 = vmul.f32 %v1450, %v1450
      %v1453 = vmul.f32 %v1451, %v1451
      %v1454 = vsel %vm537, %v1452, 0.0
      %1455 = vadd.xlane.f32.xlu0 %v1454
      %v1456 = vpop.xlane.xlu0 %1455
      %v1457 = vsel %vm1437, %v1453, 0.0
      %1458 = vadd.xlane.f32.xlu0 %v1457
      %v1459 = vpop.xlane.xlu0 %1458
      %v1460 = vmul.f32 %v1456, %v1447
      %v1461 = vmul.f32 %v1459, %v1447
      %v1462 = vadd.f32 %v1460, 1e-05
      %v1463 = vadd.f32 %v1461, 1e-05
      %v1464 = vrsqrt.pop %v1462
      %v1465 = vmul.f32 %v1464, %v1462
      %v1466 = vmul.f32 %v1465, %v1464
      %v1467 = vmul.f32 0.5, %v1466
      %v1468 = vsub.f32 1.5, %v1467
      %v1469 = vmul.f32 %v1464, %v1468
      %vm1470 = vweird.f32 %v1462
      %vm1471 = vweird.f32 %v1464
      %vm1472 = vmor %vm1470, %vm1471
      %v1473 = vsel %vm1472, %v1464, %v1469
      %v1474 = vrsqrt.pop %v1463
      %v1475 = vmul.f32 %v1474, %v1463
      %v1476 = vmul.f32 %v1475, %v1474
      %v1477 = vmul.f32 0.5, %v1476
      %v1478 = vsub.f32 1.5, %v1477
      %v1479 = vmul.f32 %v1474, %v1478
      %vm1480 = vweird.f32 %v1463
      %vm1481 = vweird.f32 %v1474
      %vm1482 = vmor %vm1480, %vm1481
      %v1483 = vsel %vm1482, %v1474, %v1479
      %v1484 = vmul.f32 %v1450, %v1473
      %v1485 = vmul.f32 %v1451, %v1483
      %v1486 = vld [vmem:[%s12] sm:$0x1]
      %v1488 = vperm.slane %v1486, 0
      %v1490 = vmul.f32 %v1484, %v1488
      %v1491 = vmul.f32 %v1485, %v1488
      %v1492 = vld [vmem:[%s13] sm:$0x1]
      %v1494 = vperm.slane %v1492, 0
      %v1496 = vadd.f32 %v1490, %v1494
      %v1497 = vadd.f32 %v1491, %v1494
      %1498 = vst.msk [vmem:[%s501] sm:$0xff] %vm537, %v1496
      %1499 = vst.msk [vmem:[%s501 + $0x8] sm:$0x3] %vm1437, %v1497
      %p1500 = scmp.lt.s32.totalorder %s25, 1
      %s1501 = scalar_select %p1500, %s25, 1
      %s1502 = smul.addr %s1501, 2
      %s1503 = smul.addr %s1502, 8
      %s1504 = scalar_lea.vmem %s14, %s1503
      // Predicated region
      $region77: #{seq2seq_forward.12} parent=75 // pred_check
        %p1505 = pneg %p352
      $region78: #{seq2seq_forward.12} parent=75 // pred_check_branch
        %1507 = sbr.rel (%p1505) target = $region80
      $region79: #{seq2seq_forward.12} parent=75 // pred_region
        _
      $region80: #{seq2seq_forward.12} parent=75 // pred_fallthru
        _
    $region76: #{seq2seq_forward.12} parent=5 // pred_fallthru
      _
    %p1508 = scmp.le.s32.totalorder 2, %s20
    // Predicated region
    $region81: #{seq2seq_forward.12} parent=5 // pred_check
      %p1509 = pneg %p1508
    $region82: #{seq2seq_forward.12} parent=5 // pred_check_branch
      %1511 = sbr.rel (%p1509) target = $region84
    $region83: #{seq2seq_forward.12} parent=5 // pred_region
      %s1512 = ssub.s32 %s20, 2
      // Predicated region
      $region85: #{seq2seq_forward.12} parent=83 // pred_check
        %p1513 = pneg %p358
      $region86: #{seq2seq_forward.12} parent=83 // pred_check_branch
        %1515 = sbr.rel (%p1513) target = $region88
      $region87: #{seq2seq_forward.12} parent=83 // pred_region
        %p1516 = scmp.lt.s32.totalorder %s26, 1
        %s1517 = scalar_select %p1516, %s26, 1
        %s1518 = smul.addr %s1517, 2
        %s1519 = smul.addr %s1518, 8
        %s1520 = scalar_lea.vmem %s14, %s1519
      $region88: #{seq2seq_forward.12} parent=83 // pred_fallthru
        _
    $region84: #{seq2seq_forward.12} parent=5 // pred_fallthru
      _
  $region6: #{seq2seq_forward.12} parent=0 // loop_footer
    %s24 = sadd.s32 1, %s20
  $region7: #{seq2seq_forward.12} parent=0 // loop_footer_branch
    %19 = sbr.rel target = $region3
  $region8: #{seq2seq_forward.12} parent=0 // loop_exit
    _

// kernel: seq2seq_forward.19
$region0: #{seq2seq_forward.19}
  #allocation0 [shape = 'u32[]', space=smem, size = 0x4, offset = 0x4, fixed_abs, tag = 'smem constant byte address 0x4 - core index']
  #allocation1 [shape = 'u32[72,128]{1,0:T(1,128)}', space=vmem, size = 0x9000, scoped, tag = 'internal scratch']
  %s0 = inlined_call_operand.vmem [shape: f32[16,32], index: 0, kind: input, shape index: {}]
  %s1 = inlined_call_operand.vmem [shape: bf16[32,64], index: 1, kind: input, shape index: {}]
  %s2 = inlined_call_operand.vmem [shape: f32[1,64], index: 2, kind: input, shape index: {}]
  %s3 = inlined_call_operand.vmem [shape: bf16[64,32], index: 3, kind: input, shape index: {}]
  %s4 = inlined_call_operand.vmem [shape: f32[1,32], index: 4, kind: input, shape index: {}]
  %s5 = inlined_call_operand.vmem [shape: f32[1,32], index: 5, kind: input, shape index: {}]
  %s6 = inlined_call_operand.vmem [shape: f32[1,32], index: 6, kind: input, shape index: {}]
  %s7 = inlined_call_operand.vmem [shape: f32[16,32], index: 7, kind: output, shape index: {}]
  %s8 = sld [smem:[#allocation0]]
  $region38: #{seq2seq_forward.19} parent=0
    _
  %s10 = ssub.s32 1, %s8
  %s11 = scalar_select 0, %s10, %s8
  // Predicated region
  $region2: #{seq2seq_forward.19} parent=0 // pred_check
    _
  $region3: #{seq2seq_forward.19} parent=0 // pred_check_branch
    %13 = sbr.rel (0) target = $region5
  $region4: #{seq2seq_forward.19} parent=0 // pred_region
    _
  $region5: #{seq2seq_forward.19} parent=0 // pred_fallthru
    _
  // Predicated region
  $region6: #{seq2seq_forward.19} parent=0 // pred_check
    _
  $region7: #{seq2seq_forward.19} parent=0 // pred_check_branch
    %15 = sbr.rel (0) target = $region9
  $region8: #{seq2seq_forward.19} parent=0 // pred_region
    _
  $region9: #{seq2seq_forward.19} parent=0 // pred_fallthru
    _
  // Predicated region
  $region10: #{seq2seq_forward.19} parent=0 // pred_check
    _
  $region11: #{seq2seq_forward.19} parent=0 // pred_check_branch
    %17 = sbr.rel (0) target = $region13
  $region12: #{seq2seq_forward.19} parent=0 // pred_region
    _
  $region13: #{seq2seq_forward.19} parent=0 // pred_fallthru
    _
  // Predicated region
  $region14: #{seq2seq_forward.19} parent=0 // pred_check
    _
  $region15: #{seq2seq_forward.19} parent=0 // pred_check_branch
    %19 = sbr.rel (0) target = $region17
  $region16: #{seq2seq_forward.19} parent=0 // pred_region
    _
  $region17: #{seq2seq_forward.19} parent=0 // pred_fallthru
    _
  // Predicated region
  $region18: #{seq2seq_forward.19} parent=0 // pred_check
    _
  $region19: #{seq2seq_forward.19} parent=0 // pred_check_branch
    %21 = sbr.rel (0) target = $region21
  $region20: #{seq2seq_forward.19} parent=0 // pred_region
    _
  $region21: #{seq2seq_forward.19} parent=0 // pred_fallthru
    _
  // Predicated region
  $region22: #{seq2seq_forward.19} parent=0 // pred_check
    _
  $region23: #{seq2seq_forward.19} parent=0 // pred_check_branch
    %23 = sbr.rel (0) target = $region25
  $region24: #{seq2seq_forward.19} parent=0 // pred_region
    _
  $region25: #{seq2seq_forward.19} parent=0 // pred_fallthru
    _
  // Predicated region
  $region26: #{seq2seq_forward.19} parent=0 // pred_check
    _
  $region27: #{seq2seq_forward.19} parent=0 // pred_check_branch
    %25 = sbr.rel (0) target = $region29
  $region28: #{seq2seq_forward.19} parent=0 // pred_region
    _
  $region29: #{seq2seq_forward.19} parent=0 // pred_fallthru
    _
  %v27 = vld [vmem:[%s0] sm:$0xff]
  %v28 = vld [vmem:[%s0 + $0x8] sm:$0xff]
  %v29 = vpack.c.bf16 %v28, %v27
  %v30 = vld [vmem:[%s1] sm:$0xf]
  %v31 = vld [vmem:[%s1 + $0x4] sm:$0xf]
  %v32 = vld [vmem:[%s1 + $0x8] sm:$0xf]
  %v33 = vld [vmem:[%s1 + $0xc] sm:$0xf]
  %v34 = vld [vmem:[%s2] sm:$0x1]
  %v36 = vperm.slane %v34, 0
  %v42 = vunpack.c.l.b16 %v30
  %v43 = vunpack.c.l.b16 %v31
  %v44 = vunpack.c.l.b16 %v32
  %v45 = vunpack.c.l.b16 %v33
  %v46 = vpack.c.b16 %v43, %v42
  %v47 = vpack.c.b16 %v45, %v44
  %vm50 = vcmask 261120
  %v52 = vsel %vm50, %v29, 0
  %54 = vmatpush.bf16.msra.mxu0 0
  %55 = vmatpush.bf16.msra.mxu0 0
  %56 = vmatpush.bf16.msra.mxu0 0
  %57 = vmatpush.bf16.msra.mxu0 0
  %58 = vmatpush.bf16.msra.mxu0 0
  %59 = vmatpush.bf16.msra.mxu0 0
  %60 = vmatpush.bf16.msra.mxu0 %v47
  %61 = vmatpush.bf16.msra.mxu0 %v46
  %62 = vmatmul.bf16.gmra.mxu0 %v52
  %v63 = vpop.f32.mrf.mxu0
  %v64 = vadd.f32 %v36, %v63
  %v65 = vpop.f32.mrf.mxu0
  %v66 = vadd.f32 %v36, %v65
  %67 = vdwg.mxu0
  %v68 = vmax.f32 %v64, 0.0
  %v69 = vmax.f32 %v66, 0.0
  %v70 = vpack.c.bf16 %v69, %v68
  %v71 = vld [vmem:[%s3] sm:$0xf]
  %v72 = vld [vmem:[%s3 + $0x4] sm:$0xf]
  %v73 = vld [vmem:[%s3 + $0x8] sm:$0xf]
  %v74 = vld [vmem:[%s3 + $0xc] sm:$0xf]
  %v75 = vld [vmem:[%s3 + $0x10] sm:$0xf]
  %v76 = vld [vmem:[%s3 + $0x14] sm:$0xf]
  %v77 = vld [vmem:[%s3 + $0x18] sm:$0xf]
  %v78 = vld [vmem:[%s3 + $0x1c] sm:$0xf]
  %v79 = vld [vmem:[%s4] sm:$0x1]
  %v81 = vperm.slane %v79, 0
  %v91 = vunpack.c.l.b16 %v71
  %v92 = vunpack.c.l.b16 %v72
  %v93 = vunpack.c.l.b16 %v73
  %v94 = vunpack.c.l.b16 %v74
  %v95 = vunpack.c.l.b16 %v75
  %v96 = vunpack.c.l.b16 %v76
  %v97 = vunpack.c.l.b16 %v77
  %v98 = vunpack.c.l.b16 %v78
  %v99 = vpack.c.b16 %v92, %v91
  %v100 = vpack.c.b16 %v94, %v93
  %v101 = vpack.c.b16 %v96, %v95
  %v102 = vpack.c.b16 %v98, %v97
  %vm107 = vcmask 523264
  %v109 = vsel %vm107, %v70, 0
  %111 = vmatpush.bf16.msra.mxu0 0
  %112 = vmatpush.bf16.msra.mxu0 0
  %113 = vmatpush.bf16.msra.mxu0 0
  %114 = vmatpush.bf16.msra.mxu0 0
  %115 = vmatpush.bf16.msra.mxu0 %v102
  %116 = vmatpush.bf16.msra.mxu0 %v101
  %117 = vmatpush.bf16.msra.mxu0 %v100
  %118 = vmatpush.bf16.msra.mxu0 %v99
  %119 = vmatmul.bf16.gmra.mxu0 %v109
  %v120 = vpop.f32.mrf.mxu0
  %v121 = vadd.f32 %v81, %v120
  %v122 = vpop.f32.mrf.mxu0
  %v123 = vadd.f32 %v81, %v122
  %124 = vdwg.mxu0
  %v125 = vadd.f32 %v27, %v121
  %v126 = vadd.f32 %v28, %v123
  %v127 = vsel %vm50, %v125, 0.0
  %128 = vadd.xlane.f32.xlu0 %v127
  %v129 = vpop.xlane.xlu0 %128
  %v130 = vsel %vm50, %v126, 0.0
  %131 = vadd.xlane.f32.xlu0 %v130
  %v132 = vpop.xlane.xlu0 %131
  %v133 = vrcp.pop 32.0
  %v134 = vmul.f32 32.0, %v133
  %v135 = vsub.f32 1.0, %v134
  %v136 = vmul.f32 %v133, %v135
  %v137 = vadd.f32 %v133, %v136
  %vm138 = vweird.f32 %v133
  %v139 = vsel %vm138, %v133, %v137
  %v140 = vmul.f32 %v129, %v139
  %v141 = vmul.f32 %v132, %v139
  %v142 = vsub.f32 %v125, %v140
  %v143 = vsub.f32 %v126, %v141
  %v144 = vmul.f32 %v142, %v142
  %v145 = vmul.f32 %v143, %v143
  %v146 = vsel %vm50, %v144, 0.0
  %147 = vadd.xlane.f32.xlu0 %v146
  %v148 = vpop.xlane.xlu0 %147
  %v149 = vsel %vm50, %v145, 0.0
  %150 = vadd.xlane.f32.xlu0 %v149
  %v151 = vpop.xlane.xlu0 %150
  %v152 = vmul.f32 %v148, %v139
  %v153 = vmul.f32 %v151, %v139
  %v154 = vadd.f32 %v152, 1e-05
  %v155 = vadd.f32 %v153, 1e-05
  %v156 = vrsqrt.pop %v154
  %v157 = vmul.f32 %v156, %v154
  %v158 = vmul.f32 %v157, %v156
  %v159 = vmul.f32 0.5, %v158
  %v160 = vsub.f32 1.5, %v159
  %v161 = vmul.f32 %v156, %v160
  %vm162 = vweird.f32 %v154
  %vm163 = vweird.f32 %v156
  %vm164 = vmor %vm162, %vm163
  %v165 = vsel %vm164, %v156, %v161
  %v166 = vrsqrt.pop %v155
  %v167 = vmul.f32 %v166, %v155
  %v168 = vmul.f32 %v167, %v166
  %v169 = vmul.f32 0.5, %v168
  %v170 = vsub.f32 1.5, %v169
  %v171 = vmul.f32 %v166, %v170
  %vm172 = vweird.f32 %v155
  %vm173 = vweird.f32 %v166
  %vm174 = vmor %vm172, %vm173
  %v175 = vsel %vm174, %v166, %v171
  %v176 = vmul.f32 %v142, %v165
  %v177 = vmul.f32 %v143, %v175
  %v178 = vld [vmem:[%s5] sm:$0x1]
  %v180 = vperm.slane %v178, 0
  %v182 = vmul.f32 %v176, %v180
  %v183 = vmul.f32 %v177, %v180
  %v184 = vld [vmem:[%s6] sm:$0x1]
  %v186 = vperm.slane %v184, 0
  %v188 = vadd.f32 %v182, %v186
  %v189 = vadd.f32 %v183, %v186
  %190 = vst.msk [vmem:[%s7] sm:$0xff] %vm50, %v188
  %191 = vst.msk [vmem:[%s7 + $0x8] sm:$0xff] %vm50, %v189
  // Predicated region
  $region30: #{seq2seq_forward.19} parent=0 // pred_check
    _
  $region31: #{seq2seq_forward.19} parent=0 // pred_check_branch
    %193 = sbr.rel (0) target = $region33
  $region32: #{seq2seq_forward.19} parent=0 // pred_region
    _
  $region33: #{seq2seq_forward.19} parent=0 // pred_fallthru
    _
  // Predicated region
  $region34: #{seq2seq_forward.19} parent=0 // pred_check
    _
  $region35: #{seq2seq_forward.19} parent=0 // pred_check_branch
    %195 = sbr.rel (0) target = $region37
  $region36: #{seq2seq_forward.19} parent=0 // pred_region
    _
  $region37: #{seq2seq_forward.19} parent=0 // pred_fallthru
    _

// kernel: seq2seq_forward.23
$region0: #{seq2seq_forward.23}
  #allocation0 [shape = 'u32[]', space=smem, size = 0x4, offset = 0x4, fixed_abs, tag = 'smem constant byte address 0x4 - core index']
  #allocation1 [shape = 'u32[72,128]{1,0:T(1,128)}', space=vmem, size = 0x9000, scoped, tag = 'internal scratch']
  %s0 = inlined_call_operand.vmem [shape: f32[16,32], index: 0, kind: input, shape index: {}]
  %s1 = inlined_call_operand.vmem [shape: f32[1,32], index: 1, kind: input, shape index: {}]
  %s2 = inlined_call_operand.vmem [shape: f32[1,32], index: 2, kind: input, shape index: {}]
  %s3 = inlined_call_operand.vmem [shape: bf16[32,56], index: 3, kind: input, shape index: {}]
  %s4 = inlined_call_operand.vmem [shape: f32[1,56], index: 4, kind: input, shape index: {}]
  %s5 = inlined_call_operand.vmem [shape: f32[16,56], index: 5, kind: output, shape index: {}]
  %s6 = sld [smem:[#allocation0]]
  $region30: #{seq2seq_forward.23} parent=0
    _
  %s8 = ssub.s32 1, %s6
  %s9 = scalar_select 0, %s8, %s6
  // Predicated region
  $region2: #{seq2seq_forward.23} parent=0 // pred_check
    _
  $region3: #{seq2seq_forward.23} parent=0 // pred_check_branch
    %11 = sbr.rel (0) target = $region5
  $region4: #{seq2seq_forward.23} parent=0 // pred_region
    _
  $region5: #{seq2seq_forward.23} parent=0 // pred_fallthru
    _
  // Predicated region
  $region6: #{seq2seq_forward.23} parent=0 // pred_check
    _
  $region7: #{seq2seq_forward.23} parent=0 // pred_check_branch
    %13 = sbr.rel (0) target = $region9
  $region8: #{seq2seq_forward.23} parent=0 // pred_region
    _
  $region9: #{seq2seq_forward.23} parent=0 // pred_fallthru
    _
  // Predicated region
  $region10: #{seq2seq_forward.23} parent=0 // pred_check
    _
  $region11: #{seq2seq_forward.23} parent=0 // pred_check_branch
    %15 = sbr.rel (0) target = $region13
  $region12: #{seq2seq_forward.23} parent=0 // pred_region
    _
  $region13: #{seq2seq_forward.23} parent=0 // pred_fallthru
    _
  // Predicated region
  $region14: #{seq2seq_forward.23} parent=0 // pred_check
    _
  $region15: #{seq2seq_forward.23} parent=0 // pred_check_branch
    %17 = sbr.rel (0) target = $region17
  $region16: #{seq2seq_forward.23} parent=0 // pred_region
    _
  $region17: #{seq2seq_forward.23} parent=0 // pred_fallthru
    _
  // Predicated region
  $region18: #{seq2seq_forward.23} parent=0 // pred_check
    _
  $region19: #{seq2seq_forward.23} parent=0 // pred_check_branch
    %19 = sbr.rel (0) target = $region21
  $region20: #{seq2seq_forward.23} parent=0 // pred_region
    _
  $region21: #{seq2seq_forward.23} parent=0 // pred_fallthru
    _
  %v21 = vld [vmem:[%s0] sm:$0xff]
  %v22 = vld [vmem:[%s0 + $0x8] sm:$0xff]
  %vm23 = vcmask 261120
  %v24 = vsel %vm23, %v21, 0.0
  %25 = vadd.xlane.f32.xlu0 %v24
  %v26 = vpop.xlane.xlu0 %25
  %v27 = vsel %vm23, %v22, 0.0
  %28 = vadd.xlane.f32.xlu0 %v27
  %v29 = vpop.xlane.xlu0 %28
  %v30 = vrcp.pop 32.0
  %v31 = vmul.f32 32.0, %v30
  %v32 = vsub.f32 1.0, %v31
  %v33 = vmul.f32 %v30, %v32
  %v34 = vadd.f32 %v30, %v33
  %vm35 = vweird.f32 %v30
  %v36 = vsel %vm35, %v30, %v34
  %v37 = vmul.f32 %v26, %v36
  %v38 = vmul.f32 %v29, %v36
  %v39 = vsub.f32 %v21, %v37
  %v40 = vsub.f32 %v22, %v38
  %v41 = vmul.f32 %v39, %v39
  %v42 = vmul.f32 %v40, %v40
  %v43 = vsel %vm23, %v41, 0.0
  %44 = vadd.xlane.f32.xlu0 %v43
  %v45 = vpop.xlane.xlu0 %44
  %v46 = vsel %vm23, %v42, 0.0
  %47 = vadd.xlane.f32.xlu0 %v46
  %v48 = vpop.xlane.xlu0 %47
  %v49 = vmul.f32 %v45, %v36
  %v50 = vmul.f32 %v48, %v36
  %v51 = vadd.f32 %v49, 1e-05
  %v52 = vadd.f32 %v50, 1e-05
  %v53 = vrsqrt.pop %v51
  %v54 = vmul.f32 %v53, %v51
  %v55 = vmul.f32 %v54, %v53
  %v56 = vmul.f32 0.5, %v55
  %v57 = vsub.f32 1.5, %v56
  %v58 = vmul.f32 %v53, %v57
  %vm59 = vweird.f32 %v51
  %vm60 = vweird.f32 %v53
  %vm61 = vmor %vm59, %vm60
  %v62 = vsel %vm61, %v53, %v58
  %v63 = vrsqrt.pop %v52
  %v64 = vmul.f32 %v63, %v52
  %v65 = vmul.f32 %v64, %v63
  %v66 = vmul.f32 0.5, %v65
  %v67 = vsub.f32 1.5, %v66
  %v68 = vmul.f32 %v63, %v67
  %vm69 = vweird.f32 %v52
  %vm70 = vweird.f32 %v63
  %vm71 = vmor %vm69, %vm70
  %v72 = vsel %vm71, %v63, %v68
  %v73 = vmul.f32 %v39, %v62
  %v74 = vmul.f32 %v40, %v72
  %v75 = vld [vmem:[%s1] sm:$0x1]
  %v77 = vperm.slane %v75, 0
  %v79 = vmul.f32 %v73, %v77
  %v80 = vmul.f32 %v74, %v77
  %v81 = vld [vmem:[%s2] sm:$0x1]
  %v83 = vperm.slane %v81, 0
  %v85 = vadd.f32 %v79, %v83
  %v86 = vadd.f32 %v80, %v83
  %v87 = vpack.c.bf16 %v86, %v85
  %v88 = vld [vmem:[%s3] sm:$0xf]
  %v89 = vld [vmem:[%s3 + $0x4] sm:$0xf]
  %v90 = vld [vmem:[%s3 + $0x8] sm:$0xf]
  %v91 = vld [vmem:[%s3 + $0xc] sm:$0xf]
  %v92 = vld [vmem:[%s4] sm:$0x1]
  %v94 = vperm.slane %v92, 0
  %v100 = vunpack.c.l.b16 %v88
  %v101 = vunpack.c.l.b16 %v89
  %v102 = vunpack.c.l.b16 %v90
  %v103 = vunpack.c.l.b16 %v91
  %v104 = vpack.c.b16 %v101, %v100
  %v105 = vpack.c.b16 %v103, %v102
  %v109 = vsel %vm23, %v87, 0
  %111 = vmatpush.bf16.msra.mxu0 0
  %112 = vmatpush.bf16.msra.mxu0 0
  %113 = vmatpush.bf16.msra.mxu0 0
  %114 = vmatpush.bf16.msra.mxu0 0
  %115 = vmatpush.bf16.msra.mxu0 0
  %116 = vmatpush.bf16.msra.mxu0 0
  %117 = vmatpush.bf16.msra.mxu0 %v105
  %118 = vmatpush.bf16.msra.mxu0 %v104
  %119 = vmatmul.bf16.gmra.mxu0 %v109
  %v120 = vpop.f32.mrf.mxu0
  %v121 = vadd.f32 %v94, %v120
  %v122 = vpop.f32.mrf.mxu0
  %v123 = vadd.f32 %v94, %v122
  %124 = vdwg.mxu0
  %vm125 = vcmask 457728
  %126 = vst.msk [vmem:[%s5] sm:$0xff] %vm125, %v121
  %127 = vst.msk [vmem:[%s5 + $0x8] sm:$0xff] %vm125, %v123
  // Predicated region
  $region22: #{seq2seq_forward.23} parent=0 // pred_check
    _
  $region23: #{seq2seq_forward.23} parent=0 // pred_check_branch
    %129 = sbr.rel (0) target = $region25
  $region24: #{seq2seq_forward.23} parent=0 // pred_region
    _
  $region25: #{seq2seq_forward.23} parent=0 // pred_fallthru
    _
  // Predicated region
  $region26: #{seq2seq_forward.23} parent=0 // pred_check
    _
  $region27: #{seq2seq_forward.23} parent=0 // pred_check_branch
    %131 = sbr.rel (0) target = $region29
  $region28: #{seq2seq_forward.23} parent=0 // pred_region
    _
  $region29: #{seq2seq_forward.23} parent=0 // pred_fallthru
    _

// kernel: seq2seq_forward.17
$region0: #{seq2seq_forward.17}
  #allocation0 [shape = 'u32[]', space=smem, size = 0x4, offset = 0x4, fixed_abs, tag = 'smem constant byte address 0x4 - core index']
  #allocation1 [shape = 'u32[72,128]{1,0:T(1,128)}', space=vmem, size = 0x9000, scoped, tag = 'internal scratch']
  %s0 = inlined_call_operand.vmem [shape: f32[2,8,32], index: 0, kind: input, shape index: {}, may-alias: {0,1}]
  %s1 = inlined_call_operand.vmem [shape: f32[2,8,32], index: 1, kind: input, shape index: {}, may-alias: {0,1}]
  %s2 = inlined_call_operand.vmem [shape: bf16[4,32,8], index: 2, kind: input, shape index: {}]
  %s3 = inlined_call_operand.vmem [shape: f32[4,1,8], index: 3, kind: input, shape index: {}]
  %s4 = inlined_call_operand.vmem [shape: bf16[4,32,8], index: 4, kind: input, shape index: {}]
  %s5 = inlined_call_operand.vmem [shape: f32[4,1,8], index: 5, kind: input, shape index: {}]
  %s6 = inlined_call_operand.vmem [shape: bf16[4,32,8], index: 6, kind: input, shape index: {}]
  %s7 = inlined_call_operand.vmem [shape: f32[4,1,8], index: 7, kind: input, shape index: {}]
  %s8 = inlined_call_operand.vmem [shape: bf16[4,8,32], index: 8, kind: input, shape index: {}]
  %s9 = inlined_call_operand.vmem [shape: f32[1,32], index: 9, kind: input, shape index: {}]
  %s10 = inlined_call_operand.vmem [shape: f32[8,8], index: 10, kind: input, shape index: {}]
  %s11 = inlined_call_operand.vmem [shape: f32[2,1,8], index: 11, kind: input, shape index: {}]
  %s12 = inlined_call_operand.vmem [shape: f32[1,32], index: 12, kind: input, shape index: {}]
  %s13 = inlined_call_operand.vmem [shape: f32[1,32], index: 13, kind: input, shape index: {}]
  %s14 = inlined_call_operand.vmem [shape: f32[2,8,32], index: 14, kind: output, shape index: {}]
  %s15 = sld [smem:[#allocation0]]
  $region89: #{seq2seq_forward.17} parent=0
    _
  %s17 = ssub.s32 1, %s15
  %s18 = scalar_select 0, %s17, %s15
  loop: start=0, step=1, limit=4
  $region2: #{seq2seq_forward.17} parent=0 // loop_pre_header
    _
  $region3: #{seq2seq_forward.17} parent=0 // loop_header
    %s20 = sphi 0, %s24
    %p21 = scmp.ge.s32.totalorder %s20, 4
    %s30 = sphi 0, %s32
    %s33 = sphi 0, %s30
    %s34 = sphi 0, %s33
    %s50 = sphi 0, %s34
    %s56 = sphi 0, %s58
    %s59 = sphi 0, %s56
    %s60 = sphi 0, %s59
    %s76 = sphi 0, %s60
    %s80 = sphi 0, %s80
    %s82 = sphi 0, %s80
    %s83 = sphi 0, %s82
    %s97 = sphi 0, %s83
    %s101 = sphi 0, %s101
    %s103 = sphi 0, %s101
    %s104 = sphi 0, %s103
    %s118 = sphi 0, %s104
    %s122 = sphi 0, %s122
    %s124 = sphi 0, %s122
    %s125 = sphi 0, %s124
    %s139 = sphi 0, %s125
    %s143 = sphi 0, %s143
    %s145 = sphi 0, %s143
    %s146 = sphi 0, %s145
    %s160 = sphi 0, %s146
    %s164 = sphi 0, %s164
    %s166 = sphi 0, %s164
    %s167 = sphi 0, %s166
    %s181 = sphi 0, %s167
    %s185 = sphi 0, %s185
    %s187 = sphi 0, %s185
    %s188 = sphi 0, %s187
    %s202 = sphi 0, %s188
    %s206 = sphi 0, %s206
    %s208 = sphi 0, %s206
    %s209 = sphi 0, %s208
    %s223 = sphi 0, %s209
    %s227 = sphi 0, %s227
    %s229 = sphi 0, %s227
    %s230 = sphi 0, %s229
    %s244 = sphi 0, %s230
    %s248 = sphi 0, %s248
    %s250 = sphi 0, %s248
    %s251 = sphi 0, %s250
    %s265 = sphi 0, %s251
    %s271 = sphi 0, %s273
    %s274 = sphi 0, %s271
    %s275 = sphi 0, %s274
    %s291 = sphi 0, %s275
    %s295 = sphi 0, %s295
    %s297 = sphi 0, %s295
    %s298 = sphi 0, %s297
    %s312 = sphi 0, %s298
    %s316 = sphi 0, %s316
    %s318 = sphi 0, %s316
    %s319 = sphi 0, %s318
    %s333 = sphi 0, %s319
    %s339 = sphi 0, %s341
    %s342 = sphi 0, %s339
    %s343 = sphi 0, %s342
    %s359 = sphi 0, %s343
  $region4: #{seq2seq_forward.17} parent=0 // loop_header_branch
    %23 = sbr.rel (%p21) target = $region8
  $region5: #{seq2seq_forward.17} parent=0 // loop_body
    %s25 = ssub.s32 %s20, 1
    %s26 = ssub.s32 %s20, 2
    %s27 = sadd.s32 %s20, 1
    %s28 = ssub.s32 %s20, %s27
    %p29 = scmp.eq.s32.totalorder %s28, 0
    %s31 = sadd.s32 %s30, 1
    %s32 = scalar_select %p29, %s30, %s31
    %p35 = pneg %p29
    %p36 = scmp.eq.s32.totalorder %s20, 1
    %p37 = por %p35, %p36
    %p38 = scmp.ne.s32.totalorder %s30, %s33
    %p39 = scmp.eq.s32.totalorder %s20, 0
    %p40 = por %p38, %p39
    %p41 = scmp.ne.s32.totalorder %s30, %s33
    %p42 = scmp.eq.s32.totalorder %s25, 1
    %p43 = por %p41, %p42
    %p44 = scmp.ne.s32.totalorder %s33, %s34
    %p45 = scmp.eq.s32.totalorder %s25, 0
    %p46 = por %p44, %p45
    %p47 = scmp.ne.s32.totalorder %s33, %s34
    %p48 = scmp.eq.s32.totalorder %s26, 1
    %p49 = por %p47, %p48
    %p51 = scmp.ne.s32.totalorder %s34, %s50
    %p52 = scmp.eq.s32.totalorder %s26, 0
    %p53 = por %p51, %p52
    %s54 = ssub.s32 %s20, %s27
    %p55 = scmp.eq.s32.totalorder %s54, 0
    %s57 = sadd.s32 %s56, 1
    %s58 = scalar_select %p55, %s56, %s57
    %p61 = pneg %p55
    %p62 = scmp.eq.s32.totalorder %s20, 1
    %p63 = por %p61, %p62
    %p64 = scmp.ne.s32.totalorder %s56, %s59
    %p65 = scmp.eq.s32.totalorder %s20, 0
    %p66 = por %p64, %p65
    %p67 = scmp.ne.s32.totalorder %s56, %s59
    %p68 = scmp.eq.s32.totalorder %s25, 1
    %p69 = por %p67, %p68
    %p70 = scmp.ne.s32.totalorder %s59, %s60
    %p71 = scmp.eq.s32.totalorder %s25, 0
    %p72 = por %p70, %p71
    %p73 = scmp.ne.s32.totalorder %s59, %s60
    %p74 = scmp.eq.s32.totalorder %s26, 1
    %p75 = por %p73, %p74
    %p77 = scmp.ne.s32.totalorder %s60, %s76
    %p78 = scmp.eq.s32.totalorder %s26, 0
    %p79 = por %p77, %p78
    %s81 = sadd.s32 %s80, 1
    %p84 = scmp.eq.s32.totalorder %s20, 1
    %p85 = scmp.ne.s32.totalorder %s80, %s82
    %p86 = scmp.eq.s32.totalorder %s20, 0
    %p87 = por %p85, %p86
    %p88 = scmp.ne.s32.totalorder %s80, %s82
    %p89 = scmp.eq.s32.totalorder %s25, 1
    %p90 = por %p88, %p89
    %p91 = scmp.ne.s32.totalorder %s82, %s83
    %p92 = scmp.eq.s32.totalorder %s25, 0
    %p93 = por %p91, %p92
    %p94 = scmp.ne.s32.totalorder %s82, %s83
    %p95 = scmp.eq.s32.totalorder %s26, 1
    %p96 = por %p94, %p95
    %p98 = scmp.ne.s32.totalorder %s83, %s97
    %p99 = scmp.eq.s32.totalorder %s26, 0
    %p100 = por %p98, %p99
    %s102 = sadd.s32 %s101, 1
    %p105 = scmp.eq.s32.totalorder %s20, 1
    %p106 = scmp.ne.s32.totalorder %s101, %s103
    %p107 = scmp.eq.s32.totalorder %s20, 0
    %p108 = por %p106, %p107
    %p109 = scmp.ne.s32.totalorder %s101, %s103
    %p110 = scmp.eq.s32.totalorder %s25, 1
    %p111 = por %p109, %p110
    %p112 = scmp.ne.s32.totalorder %s103, %s104
    %p113 = scmp.eq.s32.totalorder %s25, 0
    %p114 = por %p112, %p113
    %p115 = scmp.ne.s32.totalorder %s103, %s104
    %p116 = scmp.eq.s32.totalorder %s26, 1
    %p117 = por %p115, %p116
    %p119 = scmp.ne.s32.totalorder %s104, %s118
    %p120 = scmp.eq.s32.totalorder %s26, 0
    %p121 = por %p119, %p120
    %s123 = sadd.s32 %s122, 1
    %p126 = scmp.eq.s32.totalorder %s20, 1
    %p127 = scmp.ne.s32.totalorder %s122, %s124
    %p128 = scmp.eq.s32.totalorder %s20, 0
    %p129 = por %p127, %p128
    %p130 = scmp.ne.s32.totalorder %s122, %s124
    %p131 = scmp.eq.s32.totalorder %s25, 1
    %p132 = por %p130, %p131
    %p133 = scmp.ne.s32.totalorder %s124, %s125
    %p134 = scmp.eq.s32.totalorder %s25, 0
    %p135 = por %p133, %p134
    %p136 = scmp.ne.s32.totalorder %s124, %s125
    %p137 = scmp.eq.s32.totalorder %s26, 1
    %p138 = por %p136, %p137
    %p140 = scmp.ne.s32.totalorder %s125, %s139
    %p141 = scmp.eq.s32.totalorder %s26, 0
    %p142 = por %p140, %p141
    %s144 = sadd.s32 %s143, 1
    %p147 = scmp.eq.s32.totalorder %s20, 1
    %p148 = scmp.ne.s32.totalorder %s143, %s145
    %p149 = scmp.eq.s32.totalorder %s20, 0
    %p150 = por %p148, %p149
    %p151 = scmp.ne.s32.totalorder %s143, %s145
    %p152 = scmp.eq.s32.totalorder %s25, 1
    %p153 = por %p151, %p152
    %p154 = scmp.ne.s32.totalorder %s145, %s146
    %p155 = scmp.eq.s32.totalorder %s25, 0
    %p156 = por %p154, %p155
    %p157 = scmp.ne.s32.totalorder %s145, %s146
    %p158 = scmp.eq.s32.totalorder %s26, 1
    %p159 = por %p157, %p158
    %p161 = scmp.ne.s32.totalorder %s146, %s160
    %p162 = scmp.eq.s32.totalorder %s26, 0
    %p163 = por %p161, %p162
    %s165 = sadd.s32 %s164, 1
    %p168 = scmp.eq.s32.totalorder %s20, 1
    %p169 = scmp.ne.s32.totalorder %s164, %s166
    %p170 = scmp.eq.s32.totalorder %s20, 0
    %p171 = por %p169, %p170
    %p172 = scmp.ne.s32.totalorder %s164, %s166
    %p173 = scmp.eq.s32.totalorder %s25, 1
    %p174 = por %p172, %p173
    %p175 = scmp.ne.s32.totalorder %s166, %s167
    %p176 = scmp.eq.s32.totalorder %s25, 0
    %p177 = por %p175, %p176
    %p178 = scmp.ne.s32.totalorder %s166, %s167
    %p179 = scmp.eq.s32.totalorder %s26, 1
    %p180 = por %p178, %p179
    %p182 = scmp.ne.s32.totalorder %s167, %s181
    %p183 = scmp.eq.s32.totalorder %s26, 0
    %p184 = por %p182, %p183
    %s186 = sadd.s32 %s185, 1
    %p189 = scmp.eq.s32.totalorder %s20, 1
    %p190 = scmp.ne.s32.totalorder %s185, %s187
    %p191 = scmp.eq.s32.totalorder %s20, 0
    %p192 = por %p190, %p191
    %p193 = scmp.ne.s32.totalorder %s185, %s187
    %p194 = scmp.eq.s32.totalorder %s25, 1
    %p195 = por %p193, %p194
    %p196 = scmp.ne.s32.totalorder %s187, %s188
    %p197 = scmp.eq.s32.totalorder %s25, 0
    %p198 = por %p196, %p197
    %p199 = scmp.ne.s32.totalorder %s187, %s188
    %p200 = scmp.eq.s32.totalorder %s26, 1
    %p201 = por %p199, %p200
    %p203 = scmp.ne.s32.totalorder %s188, %s202
    %p204 = scmp.eq.s32.totalorder %s26, 0
    %p205 = por %p203, %p204
    %s207 = sadd.s32 %s206, 1
    %p210 = scmp.eq.s32.totalorder %s20, 1
    %p211 = scmp.ne.s32.totalorder %s206, %s208
    %p212 = scmp.eq.s32.totalorder %s20, 0
    %p213 = por %p211, %p212
    %p214 = scmp.ne.s32.totalorder %s206, %s208
    %p215 = scmp.eq.s32.totalorder %s25, 1
    %p216 = por %p214, %p215
    %p217 = scmp.ne.s32.totalorder %s208, %s209
    %p218 = scmp.eq.s32.totalorder %s25, 0
    %p219 = por %p217, %p218
    %p220 = scmp.ne.s32.totalorder %s208, %s209
    %p221 = scmp.eq.s32.totalorder %s26, 1
    %p222 = por %p220, %p221
    %p224 = scmp.ne.s32.totalorder %s209, %s223
    %p225 = scmp.eq.s32.totalorder %s26, 0
    %p226 = por %p224, %p225
    %s228 = sadd.s32 %s227, 1
    %p231 = scmp.eq.s32.totalorder %s20, 1
    %p232 = scmp.ne.s32.totalorder %s227, %s229
    %p233 = scmp.eq.s32.totalorder %s20, 0
    %p234 = por %p232, %p233
    %p235 = scmp.ne.s32.totalorder %s227, %s229
    %p236 = scmp.eq.s32.totalorder %s25, 1
    %p237 = por %p235, %p236
    %p238 = scmp.ne.s32.totalorder %s229, %s230
    %p239 = scmp.eq.s32.totalorder %s25, 0
    %p240 = por %p238, %p239
    %p241 = scmp.ne.s32.totalorder %s229, %s230
    %p242 = scmp.eq.s32.totalorder %s26, 1
    %p243 = por %p241, %p242
    %p245 = scmp.ne.s32.totalorder %s230, %s244
    %p246 = scmp.eq.s32.totalorder %s26, 0
    %p247 = por %p245, %p246
    %s249 = sadd.s32 %s248, 1
    %p252 = scmp.eq.s32.totalorder %s20, 1
    %p253 = scmp.ne.s32.totalorder %s248, %s250
    %p254 = scmp.eq.s32.totalorder %s20, 0
    %p255 = por %p253, %p254
    %p256 = scmp.ne.s32.totalorder %s248, %s250
    %p257 = scmp.eq.s32.totalorder %s25, 1
    %p258 = por %p256, %p257
    %p259 = scmp.ne.s32.totalorder %s250, %s251
    %p260 = scmp.eq.s32.totalorder %s25, 0
    %p261 = por %p259, %p260
    %p262 = scmp.ne.s32.totalorder %s250, %s251
    %p263 = scmp.eq.s32.totalorder %s26, 1
    %p264 = por %p262, %p263
    %p266 = scmp.ne.s32.totalorder %s251, %s265
    %p267 = scmp.eq.s32.totalorder %s26, 0
    %p268 = por %p266, %p267
    %s269 = ssub.s32 %s20, %s27
    %p270 = scmp.eq.s32.totalorder %s269, 0
    %s272 = sadd.s32 %s271, 1
    %s273 = scalar_select %p270, %s271, %s272
    %p276 = pneg %p270
    %p277 = scmp.eq.s32.totalorder %s20, 1
    %p278 = por %p276, %p277
    %p279 = scmp.ne.s32.totalorder %s271, %s274
    %p280 = scmp.eq.s32.totalorder %s20, 0
    %p281 = por %p279, %p280
    %p282 = scmp.ne.s32.totalorder %s271, %s274
    %p283 = scmp.eq.s32.totalorder %s25, 1
    %p284 = por %p282, %p283
    %p285 = scmp.ne.s32.totalorder %s274, %s275
    %p286 = scmp.eq.s32.totalorder %s25, 0
    %p287 = por %p285, %p286
    %p288 = scmp.ne.s32.totalorder %s274, %s275
    %p289 = scmp.eq.s32.totalorder %s26, 1
    %p290 = por %p288, %p289
    %p292 = scmp.ne.s32.totalorder %s275, %s291
    %p293 = scmp.eq.s32.totalorder %s26, 0
    %p294 = por %p292, %p293
    %s296 = sadd.s32 %s295, 1
    %p299 = scmp.eq.s32.totalorder %s20, 1
    %p300 = scmp.ne.s32.totalorder %s295, %s297
    %p301 = scmp.eq.s32.totalorder %s20, 0
    %p302 = por %p300, %p301
    %p303 = scmp.ne.s32.totalorder %s295, %s297
    %p304 = scmp.eq.s32.totalorder %s25, 1
    %p305 = por %p303, %p304
    %p306 = scmp.ne.s32.totalorder %s297, %s298
    %p307 = scmp.eq.s32.totalorder %s25, 0
    %p308 = por %p306, %p307
    %p309 = scmp.ne.s32.totalorder %s297, %s298
    %p310 = scmp.eq.s32.totalorder %s26, 1
    %p311 = por %p309, %p310
    %p313 = scmp.ne.s32.totalorder %s298, %s312
    %p314 = scmp.eq.s32.totalorder %s26, 0
    %p315 = por %p313, %p314
    %s317 = sadd.s32 %s316, 1
    %p320 = scmp.eq.s32.totalorder %s20, 1
    %p321 = scmp.ne.s32.totalorder %s316, %s318
    %p322 = scmp.eq.s32.totalorder %s20, 0
    %p323 = por %p321, %p322
    %p324 = scmp.ne.s32.totalorder %s316, %s318
    %p325 = scmp.eq.s32.totalorder %s25, 1
    %p326 = por %p324, %p325
    %p327 = scmp.ne.s32.totalorder %s318, %s319
    %p328 = scmp.eq.s32.totalorder %s25, 0
    %p329 = por %p327, %p328
    %p330 = scmp.ne.s32.totalorder %s318, %s319
    %p331 = scmp.eq.s32.totalorder %s26, 1
    %p332 = por %p330, %p331
    %p334 = scmp.ne.s32.totalorder %s319, %s333
    %p335 = scmp.eq.s32.totalorder %s26, 0
    %p336 = por %p334, %p335
    %s337 = ssub.s32 %s20, %s27
    %p338 = scmp.eq.s32.totalorder %s337, 0
    %s340 = sadd.s32 %s339, 1
    %s341 = scalar_select %p338, %s339, %s340
    %p344 = pneg %p338
    %p345 = scmp.eq.s32.totalorder %s20, 1
    %p346 = por %p344, %p345
    %p347 = scmp.ne.s32.totalorder %s339, %s342
    %p348 = scmp.eq.s32.totalorder %s20, 0
    %p349 = por %p347, %p348
    %p350 = scmp.ne.s32.totalorder %s339, %s342
    %p351 = scmp.eq.s32.totalorder %s25, 1
    %p352 = por %p350, %p351
    %p353 = scmp.ne.s32.totalorder %s342, %s343
    %p354 = scmp.eq.s32.totalorder %s25, 0
    %p355 = por %p353, %p354
    %p356 = scmp.ne.s32.totalorder %s342, %s343
    %p357 = scmp.eq.s32.totalorder %s26, 1
    %p358 = por %p356, %p357
    %p360 = scmp.ne.s32.totalorder %s343, %s359
    %p361 = scmp.eq.s32.totalorder %s26, 0
    %p362 = por %p360, %p361
    %p363 = scmp.le.s32.totalorder 1, %s20
    %p364 = scmp.lt.s32.totalorder %s20, 3
    %p365 = pnand %p363, %p364
    %p366 = pneg %p365
    // Predicated region
    $region9: #{seq2seq_forward.17} parent=5 // pred_check
      _
    $region10: #{seq2seq_forward.17} parent=5 // pred_check_branch
      %368 = sbr.rel (%p365) target = $region12
    $region11: #{seq2seq_forward.17} parent=5 // pred_region
      %s369 = ssub.s32 %s20, 1
      // Predicated region
      $region13: #{seq2seq_forward.17} parent=11 // pred_check
        %p370 = pneg %p93
      $region14: #{seq2seq_forward.17} parent=11 // pred_check_branch
        %372 = sbr.rel (%p370) target = $region16
      $region15: #{seq2seq_forward.17} parent=11 // pred_region
        _
      $region16: #{seq2seq_forward.17} parent=11 // pred_fallthru
        _
      // Predicated region
      $region17: #{seq2seq_forward.17} parent=11 // pred_check
        %p373 = pneg %p114
      $region18: #{seq2seq_forward.17} parent=11 // pred_check_branch
        %375 = sbr.rel (%p373) target = $region20
      $region19: #{seq2seq_forward.17} parent=11 // pred_region
        _
      $region20: #{seq2seq_forward.17} parent=11 // pred_fallthru
        _
      // Predicated region
      $region21: #{seq2seq_forward.17} parent=11 // pred_check
        %p376 = pneg %p135
      $region22: #{seq2seq_forward.17} parent=11 // pred_check_branch
        %378 = sbr.rel (%p376) target = $region24
      $region23: #{seq2seq_forward.17} parent=11 // pred_region
        _
      $region24: #{seq2seq_forward.17} parent=11 // pred_fallthru
        _
      // Predicated region
      $region25: #{seq2seq_forward.17} parent=11 // pred_check
        %p379 = pneg %p156
      $region26: #{seq2seq_forward.17} parent=11 // pred_check_branch
        %381 = sbr.rel (%p379) target = $region28
      $region27: #{seq2seq_forward.17} parent=11 // pred_region
        _
      $region28: #{seq2seq_forward.17} parent=11 // pred_fallthru
        _
      // Predicated region
      $region29: #{seq2seq_forward.17} parent=11 // pred_check
        %p382 = pneg %p177
      $region30: #{seq2seq_forward.17} parent=11 // pred_check_branch
        %384 = sbr.rel (%p382) target = $region32
      $region31: #{seq2seq_forward.17} parent=11 // pred_region
        _
      $region32: #{seq2seq_forward.17} parent=11 // pred_fallthru
        _
      // Predicated region
      $region33: #{seq2seq_forward.17} parent=11 // pred_check
        %p385 = pneg %p198
      $region34: #{seq2seq_forward.17} parent=11 // pred_check_branch
        %387 = sbr.rel (%p385) target = $region36
      $region35: #{seq2seq_forward.17} parent=11 // pred_region
        _
      $region36: #{seq2seq_forward.17} parent=11 // pred_fallthru
        _
      // Predicated region
      $region37: #{seq2seq_forward.17} parent=11 // pred_check
        %p388 = pneg %p219
      $region38: #{seq2seq_forward.17} parent=11 // pred_check_branch
        %390 = sbr.rel (%p388) target = $region40
      $region39: #{seq2seq_forward.17} parent=11 // pred_region
        _
      $region40: #{seq2seq_forward.17} parent=11 // pred_fallthru
        _
      // Predicated region
      $region41: #{seq2seq_forward.17} parent=11 // pred_check
        %p391 = pneg %p240
      $region42: #{seq2seq_forward.17} parent=11 // pred_check_branch
        %393 = sbr.rel (%p391) target = $region44
      $region43: #{seq2seq_forward.17} parent=11 // pred_region
        _
      $region44: #{seq2seq_forward.17} parent=11 // pred_fallthru
        _
      // Predicated region
      $region45: #{seq2seq_forward.17} parent=11 // pred_check
        %p394 = pneg %p261
      $region46: #{seq2seq_forward.17} parent=11 // pred_check_branch
        %396 = sbr.rel (%p394) target = $region48
      $region47: #{seq2seq_forward.17} parent=11 // pred_region
        _
      $region48: #{seq2seq_forward.17} parent=11 // pred_fallthru
        _
      // Predicated region
      $region49: #{seq2seq_forward.17} parent=11 // pred_check
        %p397 = pneg %p308
      $region50: #{seq2seq_forward.17} parent=11 // pred_check_branch
        %399 = sbr.rel (%p397) target = $region52
      $region51: #{seq2seq_forward.17} parent=11 // pred_region
        _
      $region52: #{seq2seq_forward.17} parent=11 // pred_fallthru
        _
      // Predicated region
      $region53: #{seq2seq_forward.17} parent=11 // pred_check
        %p400 = pneg %p329
      $region54: #{seq2seq_forward.17} parent=11 // pred_check_branch
        %402 = sbr.rel (%p400) target = $region56
      $region55: #{seq2seq_forward.17} parent=11 // pred_region
        _
      $region56: #{seq2seq_forward.17} parent=11 // pred_fallthru
        _
    $region12: #{seq2seq_forward.17} parent=5 // pred_fallthru
      _
    %p403 = scmp.lt.s32.totalorder %s20, 2
    // Predicated region
    $region57: #{seq2seq_forward.17} parent=5 // pred_check
      %p404 = pneg %p403
    $region58: #{seq2seq_forward.17} parent=5 // pred_check_branch
      %406 = sbr.rel (%p404) target = $region60
    $region59: #{seq2seq_forward.17} parent=5 // pred_region
      // Predicated region
      $region61: #{seq2seq_forward.17} parent=59 // pred_check
        %p407 = pneg %p40
      $region62: #{seq2seq_forward.17} parent=59 // pred_check_branch
        %409 = sbr.rel (%p407) target = $region64
      $region63: #{seq2seq_forward.17} parent=59 // pred_region
        %p410 = scmp.lt.s32.totalorder %s20, 1
        %s411 = scalar_select %p410, %s20, 1
        %s412 = smul.addr %s411, 8
        %s413 = scalar_lea.vmem %s0, %s412
      $region64: #{seq2seq_forward.17} parent=59 // pred_fallthru
        _
      // Predicated region
      $region65: #{seq2seq_forward.17} parent=59 // pred_check
        %p414 = pneg %p66
      $region66: #{seq2seq_forward.17} parent=59 // pred_check_branch
        %416 = sbr.rel (%p414) target = $region68
      $region67: #{seq2seq_forward.17} parent=59 // pred_region
        %p417 = scmp.lt.s32.totalorder %s20, 1
        %s418 = scalar_select %p417, %s20, 1
        %s419 = smul.addr %s418, 8
        %s420 = scalar_lea.vmem %s1, %s419
      $region68: #{seq2seq_forward.17} parent=59 // pred_fallthru
        _
      // Predicated region
      $region69: #{seq2seq_forward.17} parent=59 // pred_check
        %p421 = pneg %p281
      $region70: #{seq2seq_forward.17} parent=59 // pred_check_branch
        %423 = sbr.rel (%p421) target = $region72
      $region71: #{seq2seq_forward.17} parent=59 // pred_region
        %p424 = scmp.lt.s32.totalorder %s20, 1
        %s425 = scalar_select %p424, %s20, 1
        %s426 = scalar_lea.vmem %s11, %s425
      $region72: #{seq2seq_forward.17} parent=59 // pred_fallthru
        _
    $region60: #{seq2seq_forward.17} parent=5 // pred_fallthru
      _
    %p427 = scmp.le.s32.totalorder 1, %s20
    %p428 = scmp.lt.s32.totalorder %s20, 3
    %p429 = pnand %p427, %p428
    %p430 = pneg %p429
    // Predicated region
    $region73: #{seq2seq_forward.17} parent=5 // pred_check
      _
    $region74: #{seq2seq_forward.17} parent=5 // pred_check_branch
      %432 = sbr.rel (%p429) target = $region76
    $region75: #{seq2seq_forward.17} parent=5 // pred_region
      %s433 = ssub.s32 %s20, 1
      %p434 = scmp.lt.s32.totalorder %s25, 1
      %s435 = scalar_select %p434, %s25, 1
      %s436 = smul.addr %s435, 8
      %s437 = scalar_lea.vmem %s0, %s436
      %p438 = pneg %p46
      %p439 = pneg %p43
      %p440 = scmp.lt.s32.totalorder %s25, 1
      %s441 = scalar_select %p440, %s25, 1
      %s442 = smul.addr %s441, 8
      %s443 = scalar_lea.vmem %s1, %s442
      %p444 = pneg %p72
      %p445 = pneg %p69
      %p446 = pneg %p93
      %p447 = pneg %p90
      %p448 = pneg %p114
      %p449 = pneg %p111
      %p450 = pneg %p135
      %p451 = pneg %p132
      %p452 = pneg %p156
      %p453 = pneg %p153
      %p454 = pneg %p177
      %p455 = pneg %p174
      %p456 = pneg %p198
      %p457 = pneg %p195
      %p458 = pneg %p219
      %p459 = pneg %p216
      %p460 = pneg %p240
      %p461 = pneg %p237
      %p462 = pneg %p261
      %p463 = pneg %p258
      %p464 = scmp.lt.s32.totalorder %s25, 1
      %s465 = scalar_select %p464, %s25, 1
      %s466 = scalar_lea.vmem %s11, %s465
      %p467 = pneg %p287
      %p468 = pneg %p284
      %p469 = pneg %p308
      %p470 = pneg %p305
      %p471 = pneg %p329
      %p472 = pneg %p326
      %p473 = pneg %p355
      %p474 = pneg %p352
      %p475 = scmp.lt.s32.totalorder %s25, 1
      %s476 = scalar_select %p475, %s25, 1
      %s477 = smul.addr %s476, 8
      %s478 = scalar_lea.vmem %s14, %s477
      %p479 = scmp.lt.s32.totalorder %s25, 1
      %s480 = scalar_select %p479, %s25, 1
      %s481 = smul.addr %s480, 8
      %s482 = scalar_lea.vmem %s0, %s481
      %p483 = scmp.lt.s32.totalorder %s25, 1
      %s484 = scalar_select %p483, %s25, 1
      %s485 = smul.addr %s484, 8
      %s486 = scalar_lea.vmem %s1, %s485
      %p487 = scmp.lt.s32.totalorder %s25, 1
      %s488 = scalar_select %p487, %s25, 1
      %s489 = scalar_lea.vmem %s11, %s488
      %p490 = scmp.lt.s32.totalorder %s25, 1
      %s491 = scalar_select %p490, %s25, 1
      %s492 = smul.addr %s491, 8
      %s493 = scalar_lea.vmem %s14, %s492
      %v495 = vld [vmem:[%s482] sm:$0xff]
      %v496 = vpack.c.bf16 %v495, %v495
      %v497 = vld [vmem:[%s486] sm:$0xff]
      %v498 = vpack.c.bf16 %v497, %v497
      %v499 = vld [vmem:[%s10] sm:$0xff]
      %v500 = vld [vmem:[%s489] sm:$0x1]
      %v502 = vperm.slane %v500, 0
      %v504 = vadd.f32 %v499, %v502
      %v505 = vld [vmem:[%s2] sm:$0xf]
      %v506 = vld [vmem:[%s2 + $0x4] sm:$0xf]
      %v507 = vld [vmem:[%s2 + $0x8] sm:$0xf]
      %v508 = vld [vmem:[%s2 + $0xc] sm:$0xf]
      %v509 = vld [vmem:[%s3] sm:$0x1]
      %v511 = vperm.slane %v509, 0
      %v517 = vunpack.c.l.b16 %v505
      %v518 = vunpack.c.l.b16 %v506
      %v519 = vunpack.c.l.b16 %v507
      %v520 = vunpack.c.l.b16 %v508
      %v521 = vpack.c.b16 %v518, %v517
      %v522 = vpack.c.b16 %v520, %v519
      %vm525 = vcmask 261120
      %v527 = vsel %vm525, %v496, 0
      %529 = vmatpush.bf16.msra.mxu0 0
      %530 = vmatpush.bf16.msra.mxu0 0
      %531 = vmatpush.bf16.msra.mxu0 0
      %532 = vmatpush.bf16.msra.mxu0 0
      %533 = vmatpush.bf16.msra.mxu0 0
      %534 = vmatpush.bf16.msra.mxu0 0
      %535 = vmatpush.bf16.msra.mxu0 %v522
      %536 = vmatpush.bf16.msra.mxu0 %v521
      %537 = vmatmul.bf16.gmra.mxu0 %v527
      %v538 = vpop.f32.mrf.mxu0
      %v539 = vadd.f32 %v511, %v538
      %v540 = vpop.f32.mrf.mxu0
      %541 = vdwg.mxu0
      %v542 = vld [vmem:[%s4] sm:$0xf]
      %v543 = vld [vmem:[%s4 + $0x4] sm:$0xf]
      %v544 = vld [vmem:[%s4 + $0x8] sm:$0xf]
      %v545 = vld [vmem:[%s4 + $0xc] sm:$0xf]
      %v546 = vld [vmem:[%s5] sm:$0x1]
      %v548 = vperm.slane %v546, 0
      %v554 = vunpack.c.l.b16 %v542
      %v555 = vunpack.c.l.b16 %v543
      %v556 = vunpack.c.l.b16 %v544
      %v557 = vunpack.c.l.b16 %v545
      %v558 = vpack.c.b16 %v555, %v554
      %v559 = vpack.c.b16 %v557, %v556
      %v563 = vsel %vm525, %v498, 0
      %565 = vmatpush.bf16.msra.mxu0 0
      %566 = vmatpush.bf16.msra.mxu0 0
      %567 = vmatpush.bf16.msra.mxu0 0
      %568 = vmatpush.bf16.msra.mxu0 0
      %569 = vmatpush.bf16.msra.mxu0 0
      %570 = vmatpush.bf16.msra.mxu0 0
      %571 = vmatpush.bf16.msra.mxu0 %v559
      %572 = vmatpush.bf16.msra.mxu0 %v558
      %573 = vmatmul.bf16.gmra.mxu0 %v563
      %v574 = vpop.f32.mrf.mxu0
      %v575 = vadd.f32 %v548, %v574
      %v576 = vpop.f32.mrf.mxu0
      %577 = vdwg.mxu0
      %v578 = vld [vmem:[%s6] sm:$0xf]
      %v579 = vld [vmem:[%s6 + $0x4] sm:$0xf]
      %v580 = vld [vmem:[%s6 + $0x8] sm:$0xf]
      %v581 = vld [vmem:[%s6 + $0xc] sm:$0xf]
      %v582 = vld [vmem:[%s7] sm:$0x1]
      %v584 = vperm.slane %v582, 0
      %v590 = vunpack.c.l.b16 %v578
      %v591 = vunpack.c.l.b16 %v579
      %v592 = vunpack.c.l.b16 %v580
      %v593 = vunpack.c.l.b16 %v581
      %v594 = vpack.c.b16 %v591, %v590
      %v595 = vpack.c.b16 %v593, %v592
      %598 = vmatpush.bf16.msra.mxu0 0
      %599 = vmatpush.bf16.msra.mxu0 0
      %600 = vmatpush.bf16.msra.mxu0 0
      %601 = vmatpush.bf16.msra.mxu0 0
      %602 = vmatpush.bf16.msra.mxu0 0
      %603 = vmatpush.bf16.msra.mxu0 0
      %604 = vmatpush.bf16.msra.mxu0 %v595
      %605 = vmatpush.bf16.msra.mxu0 %v594
      %606 = vmatmul.bf16.gmra.mxu0 %v563
      %v607 = vpop.f32.mrf.mxu0
      %v608 = vadd.f32 %v584, %v607
      %v609 = vpop.f32.mrf.mxu0
      %610 = vdwg.mxu0
      %v611 = vpack.c.bf16 %v539, %v539
      %v612 = vpack.c.bf16 %v575, %v575
      %vm613 = vcmask 64512
      %v615 = vsel %vm613, %v611, 0
      %v618 = vsel %vm613, %v612, 0
      %620 = vmatpush.bf16.xpose.msra.mxu0 0
      %621 = vmatpush.bf16.xpose.msra.mxu0 0
      %622 = vmatpush.bf16.xpose.msra.mxu0 0
      %623 = vmatpush.bf16.xpose.msra.mxu0 0
      %624 = vmatpush.bf16.xpose.msra.mxu0 0
      %625 = vmatpush.bf16.xpose.msra.mxu0 0
      %626 = vmatpush.bf16.xpose.msra.mxu0 0
      %627 = vmatpush.bf16.xpose.msra.mxu0 %v618
      %628 = vmatmul.bf16.gmra.mxu0 %v615
      %v629 = vpop.f32.mrf.mxu0
      %v630 = vadd.f32 0.0, %v629
      %v631 = vpop.f32.mrf.mxu0
      %632 = vdwg.mxu0
      %v633 = vmul.f32 %v630, 0.35355338
      %v634 = vadd.f32 %v633, %v504
      %v635 = vsel %vm613, %v634, -inf
      %636 = vmax.xlane.f32.xlu0 %v635
      %v637 = vpop.xlane.xlu0 %636
      %v638 = vsub.f32 %v634, %v637
      %v639 = vmul.f32 %v638, 1.442695
      %v640 = vpow.pop %v639
      %v641 = vsel %vm613, %v640, 0.0
      %642 = vadd.xlane.f32.xlu0 %v641
      %v643 = vpop.xlane.xlu0 %642
      %v644 = vrcp.pop %v643
      %v645 = vmul.f32 %v640, %v644
      %v646 = vpack.c.bf16 %v645, %v645
      %v647 = vpack.c.bf16 %v608, %v608
      %v649 = vsel %vm613, %v646, 0
      %vm651 = vcmask 1043456
      %v653 = vsel %vm651, %v647, 0
      %655 = vmatpush.bf16.msra.mxu0 0
      %656 = vmatpush.bf16.msra.mxu0 0
      %657 = vmatpush.bf16.msra.mxu0 0
      %658 = vmatpush.bf16.msra.mxu0 0
      %659 = vmatpush.bf16.msra.mxu0 0
      %660 = vmatpush.bf16.msra.mxu0 0
      %661 = vmatpush.bf16.msra.mxu0 0
      %662 = vmatpush.bf16.msra.mxu0 %v653
      %663 = vmatmul.bf16.gmra.mxu0 %v649
      %v664 = vpop.f32.mrf.mxu0
      %v665 = vadd.f32 0.0, %v664
      %v666 = vpop.f32.mrf.mxu0
      %667 = vdwg.mxu0
      %v668 = vpack.c.bf16 %v665, %v665
      %v669 = vld [vmem:[%s8] sm:$0xf]
      %s670 = scalar_lea.vmem %s2, 16
      %v671 = vld [vmem:[%s670] sm:$0xf]
      %v672 = vld [vmem:[%s670 + $0x4] sm:$0xf]
      %v673 = vld [vmem:[%s670 + $0x8] sm:$0xf]
      %v674 = vld [vmem:[%s670 + $0xc] sm:$0xf]
      %s675 = scalar_lea.vmem %s3, 1
      %v676 = vld [vmem:[%s675] sm:$0x1]
      %v678 = vperm.slane %v676, 0
      %v684 = vunpack.c.l.b16 %v671
      %v685 = vunpack.c.l.b16 %v672
      %v686 = vunpack.c.l.b16 %v673
      %v687 = vunpack.c.l.b16 %v674
      %v688 = vpack.c.b16 %v685, %v684
      %v689 = vpack.c.b16 %v687, %v686
      %692 = vmatpush.bf16.msra.mxu0 0
      %693 = vmatpush.bf16.msra.mxu0 0
      %694 = vmatpush.bf16.msra.mxu0 0
      %695 = vmatpush.bf16.msra.mxu0 0
      %696 = vmatpush.bf16.msra.mxu0 0
      %697 = vmatpush.bf16.msra.mxu0 0
      %698 = vmatpush.bf16.msra.mxu0 %v689
      %699 = vmatpush.bf16.msra.mxu0 %v688
      %700 = vmatmul.bf16.gmra.mxu0 %v527
      %v701 = vpop.f32.mrf.mxu0
      %v702 = vadd.f32 %v678, %v701
      %v703 = vpop.f32.mrf.mxu0
      %704 = vdwg.mxu0
      %s705 = scalar_lea.vmem %s4, 16
      %v706 = vld [vmem:[%s705] sm:$0xf]
      %v707 = vld [vmem:[%s705 + $0x4] sm:$0xf]
      %v708 = vld [vmem:[%s705 + $0x8] sm:$0xf]
      %v709 = vld [vmem:[%s705 + $0xc] sm:$0xf]
      %s710 = scalar_lea.vmem %s5, 1
      %v711 = vld [vmem:[%s710] sm:$0x1]
      %v713 = vperm.slane %v711, 0
      %v719 = vunpack.c.l.b16 %v706
      %v720 = vunpack.c.l.b16 %v707
      %v721 = vunpack.c.l.b16 %v708
      %v722 = vunpack.c.l.b16 %v709
      %v723 = vpack.c.b16 %v720, %v719
      %v724 = vpack.c.b16 %v722, %v721
      %727 = vmatpush.bf16.msra.mxu0 0
      %728 = vmatpush.bf16.msra.mxu0 0
      %729 = vmatpush.bf16.msra.mxu0 0
      %730 = vmatpush.bf16.msra.mxu0 0
      %731 = vmatpush.bf16.msra.mxu0 0
      %732 = vmatpush.bf16.msra.mxu0 0
      %733 = vmatpush.bf16.msra.mxu0 %v724
      %734 = vmatpush.bf16.msra.mxu0 %v723
      %735 = vmatmul.bf16.gmra.mxu0 %v563
      %v736 = vpop.f32.mrf.mxu0
      %v737 = vadd.f32 %v713, %v736
      %v738 = vpop.f32.mrf.mxu0
      %739 = vdwg.mxu0
      %s740 = scalar_lea.vmem %s6, 16
      %v741 = vld [vmem:[%s740] sm:$0xf]
      %v742 = vld [vmem:[%s740 + $0x4] sm:$0xf]
      %v743 = vld [vmem:[%s740 + $0x8] sm:$0xf]
      %v744 = vld [vmem:[%s740 + $0xc] sm:$0xf]
      %s745 = scalar_lea.vmem %s7, 1
      %v746 = vld [vmem:[%s745] sm:$0x1]
      %v748 = vperm.slane %v746, 0
      %v754 = vunpack.c.l.b16 %v741
      %v755 = vunpack.c.l.b16 %v742
      %v756 = vunpack.c.l.b16 %v743
      %v757 = vunpack.c.l.b16 %v744
      %v758 = vpack.c.b16 %v755, %v754
      %v759 = vpack.c.b16 %v757, %v756
      %762 = vmatpush.bf16.msra.mxu0 0
      %763 = vmatpush.bf16.msra.mxu0 0
      %764 = vmatpush.bf16.msra.mxu0 0
      %765 = vmatpush.bf16.msra.mxu0 0
      %766 = vmatpush.bf16.msra.mxu0 0
      %767 = vmatpush.bf16.msra.mxu0 0
      %768 = vmatpush.bf16.msra.mxu0 %v759
      %769 = vmatpush.bf16.msra.mxu0 %v758
      %770 = vmatmul.bf16.gmra.mxu0 %v563
      %v771 = vpop.f32.mrf.mxu0
      %v772 = vadd.f32 %v748, %v771
      %v773 = vpop.f32.mrf.mxu0
      %774 = vdwg.mxu0
      %v775 = vpack.c.bf16 %v702, %v702
      %v776 = vpack.c.bf16 %v737, %v737
      %v778 = vsel %vm613, %v775, 0
      %v781 = vsel %vm613, %v776, 0
      %783 = vmatpush.bf16.xpose.msra.mxu0 0
      %784 = vmatpush.bf16.xpose.msra.mxu0 0
      %785 = vmatpush.bf16.xpose.msra.mxu0 0
      %786 = vmatpush.bf16.xpose.msra.mxu0 0
      %787 = vmatpush.bf16.xpose.msra.mxu0 0
      %788 = vmatpush.bf16.xpose.msra.mxu0 0
      %789 = vmatpush.bf16.xpose.msra.mxu0 0
      %790 = vmatpush.bf16.xpose.msra.mxu0 %v781
      %791 = vmatmul.bf16.gmra.mxu0 %v778
      %v792 = vpop.f32.mrf.mxu0
      %v793 = vadd.f32 0.0, %v792
      %v794 = vpop.f32.mrf.mxu0
      %795 = vdwg.mxu0
      %v796 = vmul.f32 %v793, 0.35355338
      %v797 = vadd.f32 %v796, %v504
      %v798 = vsel %vm613, %v797, -inf
      %799 = vmax.xlane.f32.xlu0 %v798
      %v800 = vpop.xlane.xlu0 %799
      %v801 = vsub.f32 %v797, %v800
      %v802 = vmul.f32 %v801, 1.442695
      %v803 = vpow.pop %v802
      %v804 = vsel %vm613, %v803, 0.0
      %805 = vadd.xlane.f32.xlu0 %v804
      %v806 = vpop.xlane.xlu0 %805
      %v807 = vrcp.pop %v806
      %v808 = vmul.f32 %v803, %v807
      %v809 = vpack.c.bf16 %v808, %v808
      %v810 = vpack.c.bf16 %v772, %v772
      %v812 = vsel %vm613, %v809, 0
      %v815 = vsel %vm651, %v810, 0
      %817 = vmatpush.bf16.msra.mxu0 0
      %818 = vmatpush.bf16.msra.mxu0 0
      %819 = vmatpush.bf16.msra.mxu0 0
      %820 = vmatpush.bf16.msra.mxu0 0
      %821 = vmatpush.bf16.msra.mxu0 0
      %822 = vmatpush.bf16.msra.mxu0 0
      %823 = vmatpush.bf16.msra.mxu0 0
      %824 = vmatpush.bf16.msra.mxu0 %v815
      %825 = vmatmul.bf16.gmra.mxu0 %v812
      %v826 = vpop.f32.mrf.mxu0
      %v827 = vadd.f32 0.0, %v826
      %v828 = vpop.f32.mrf.mxu0
      %829 = vdwg.mxu0
      %v830 = vpack.c.bf16 %v827, %v827
      %s831 = scalar_lea.vmem %s8, 4
      %v832 = vld [vmem:[%s831] sm:$0xf]
      %v834 = vsel %vm613, %v830, 0
      %v837 = vsel %vm651, %v832, 0
      %839 = vmatpush.bf16.msra.mxu0 0
      %840 = vmatpush.bf16.msra.mxu0 0
      %841 = vmatpush.bf16.msra.mxu0 0
      %842 = vmatpush.bf16.msra.mxu0 0
      %843 = vmatpush.bf16.msra.mxu0 0
      %844 = vmatpush.bf16.msra.mxu0 0
      %845 = vmatpush.bf16.msra.mxu0 0
      %846 = vmatpush.bf16.msra.mxu0 %v837
      %847 = vmatmul.bf16.gmra.mxu0 %v834
      %v848 = vpop.f32.mrf.mxu0
      %v849 = vadd.f32 0.0, %v848
      %v850 = vpop.f32.mrf.mxu0
      %851 = vdwg.mxu0
      %v853 = vsel %vm613, %v668, 0
      %v856 = vsel %vm651, %v669, 0
      %858 = vmatpush.bf16.msra.mxu0 0
      %859 = vmatpush.bf16.msra.mxu0 0
      %860 = vmatpush.bf16.msra.mxu0 0
      %861 = vmatpush.bf16.msra.mxu0 0
      %862 = vmatpush.bf16.msra.mxu0 0
      %863 = vmatpush.bf16.msra.mxu0 0
      %864 = vmatpush.bf16.msra.mxu0 0
      %865 = vmatpush.bf16.msra.mxu0 %v856
      %866 = vmatmul.bf16.gmra.mxu0 %v853
      %v867 = vpop.f32.mrf.mxu0
      %v868 = vadd.f32 %v849, %v867
      %v869 = vpop.f32.mrf.mxu0
      %870 = vdwg.mxu0
      %s871 = scalar_lea.vmem %s2, 32
      %v872 = vld [vmem:[%s871] sm:$0xf]
      %v873 = vld [vmem:[%s871 + $0x4] sm:$0xf]
      %v874 = vld [vmem:[%s871 + $0x8] sm:$0xf]
      %v875 = vld [vmem:[%s871 + $0xc] sm:$0xf]
      %s876 = scalar_lea.vmem %s3, 2
      %v877 = vld [vmem:[%s876] sm:$0x1]
      %v879 = vperm.slane %v877, 0
      %v885 = vunpack.c.l.b16 %v872
      %v886 = vunpack.c.l.b16 %v873
      %v887 = vunpack.c.l.b16 %v874
      %v888 = vunpack.c.l.b16 %v875
      %v889 = vpack.c.b16 %v886, %v885
      %v890 = vpack.c.b16 %v888, %v887
      %893 = vmatpush.bf16.msra.mxu0 0
      %894 = vmatpush.bf16.msra.mxu0 0
      %895 = vmatpush.bf16.msra.mxu0 0
      %896 = vmatpush.bf16.msra.mxu0 0
      %897 = vmatpush.bf16.msra.mxu0 0
      %898 = vmatpush.bf16.msra.mxu0 0
      %899 = vmatpush.bf16.msra.mxu0 %v890
      %900 = vmatpush.bf16.msra.mxu0 %v889
      %901 = vmatmul.bf16.gmra.mxu0 %v527
      %v902 = vpop.f32.mrf.mxu0
      %v903 = vadd.f32 %v879, %v902
      %v904 = vpop.f32.mrf.mxu0
      %905 = vdwg.mxu0
      %s906 = scalar_lea.vmem %s4, 32
      %v907 = vld [vmem:[%s906] sm:$0xf]
      %v908 = vld [vmem:[%s906 + $0x4] sm:$0xf]
      %v909 = vld [vmem:[%s906 + $0x8] sm:$0xf]
      %v910 = vld [vmem:[%s906 + $0xc] sm:$0xf]
      %s911 = scalar_lea.vmem %s5, 2
      %v912 = vld [vmem:[%s911] sm:$0x1]
      %v914 = vperm.slane %v912, 0
      %v920 = vunpack.c.l.b16 %v907
      %v921 = vunpack.c.l.b16 %v908
      %v922 = vunpack.c.l.b16 %v909
      %v923 = vunpack.c.l.b16 %v910
      %v924 = vpack.c.b16 %v921, %v920
      %v925 = vpack.c.b16 %v923, %v922
      %928 = vmatpush.bf16.msra.mxu0 0
      %929 = vmatpush.bf16.msra.mxu0 0
      %930 = vmatpush.bf16.msra.mxu0 0
      %931 = vmatpush.bf16.msra.mxu0 0
      %932 = vmatpush.bf16.msra.mxu0 0
      %933 = vmatpush.bf16.msra.mxu0 0
      %934 = vmatpush.bf16.msra.mxu0 %v925
      %935 = vmatpush.bf16.msra.mxu0 %v924
      %936 = vmatmul.bf16.gmra.mxu0 %v563
      %v937 = vpop.f32.mrf.mxu0
      %v938 = vadd.f32 %v914, %v937
      %v939 = vpop.f32.mrf.mxu0
      %940 = vdwg.mxu0
      %s941 = scalar_lea.vmem %s6, 32
      %v942 = vld [vmem:[%s941] sm:$0xf]
      %v943 = vld [vmem:[%s941 + $0x4] sm:$0xf]
      %v944 = vld [vmem:[%s941 + $0x8] sm:$0xf]
      %v945 = vld [vmem:[%s941 + $0xc] sm:$0xf]
      %s946 = scalar_lea.vmem %s7, 2
      %v947 = vld [vmem:[%s946] sm:$0x1]
      %v949 = vperm.slane %v947, 0
      %v955 = vunpack.c.l.b16 %v942
      %v956 = vunpack.c.l.b16 %v943
      %v957 = vunpack.c.l.b16 %v944
      %v958 = vunpack.c.l.b16 %v945
      %v959 = vpack.c.b16 %v956, %v955
      %v960 = vpack.c.b16 %v958, %v957
      %963 = vmatpush.bf16.msra.mxu0 0
      %964 = vmatpush.bf16.msra.mxu0 0
      %965 = vmatpush.bf16.msra.mxu0 0
      %966 = vmatpush.bf16.msra.mxu0 0
      %967 = vmatpush.bf16.msra.mxu0 0
      %968 = vmatpush.bf16.msra.mxu0 0
      %969 = vmatpush.bf16.msra.mxu0 %v960
      %970 = vmatpush.bf16.msra.mxu0 %v959
      %971 = vmatmul.bf16.gmra.mxu0 %v563
      %v972 = vpop.f32.mrf.mxu0
      %v973 = vadd.f32 %v949, %v972
      %v974 = vpop.f32.mrf.mxu0
      %975 = vdwg.mxu0
      %v976 = vpack.c.bf16 %v903, %v903
      %v977 = vpack.c.bf16 %v938, %v938
      %v979 = vsel %vm613, %v976, 0
      %v982 = vsel %vm613, %v977, 0
      %984 = vmatpush.bf16.xpose.msra.mxu0 0
      %985 = vmatpush.bf16.xpose.msra.mxu0 0
      %986 = vmatpush.bf16.xpose.msra.mxu0 0
      %987 = vmatpush.bf16.xpose.msra.mxu0 0
      %988 = vmatpush.bf16.xpose.msra.mxu0 0
      %989 = vmatpush.bf16.xpose.msra.mxu0 0
      %990 = vmatpush.bf16.xpose.msra.mxu0 0
      %991 = vmatpush.bf16.xpose.msra.mxu0 %v982
      %992 = vmatmul.bf16.gmra.mxu0 %v979
      %v993 = vpop.f32.mrf.mxu0
      %v994 = vadd.f32 0.0, %v993
      %v995 = vpop.f32.mrf.mxu0
      %996 = vdwg.mxu0
      %v997 = vmul.f32 %v994, 0.35355338
      %v998 = vadd.f32 %v997, %v504
      %v999 = vsel %vm613, %v998, -inf
      %1000 = vmax.xlane.f32.xlu0 %v999
      %v1001 = vpop.xlane.xlu0 %1000
      %v1002 = vsub.f32 %v998, %v1001
      %v1003 = vmul.f32 %v1002, 1.442695
      %v1004 = vpow.pop %v1003
      %v1005 = vsel %vm613, %v1004, 0.0
      %1006 = vadd.xlane.f32.xlu0 %v1005
      %v1007 = vpop.xlane.xlu0 %1006
      %v1008 = vrcp.pop %v1007
      %v1009 = vmul.f32 %v1004, %v1008
      %v1010 = vpack.c.bf16 %v1009, %v1009
      %v1011 = vpack.c.bf16 %v973, %v973
      %v1013 = vsel %vm613, %v1010, 0
      %v1016 = vsel %vm651, %v1011, 0
      %1018 = vmatpush.bf16.msra.mxu0 0
      %1019 = vmatpush.bf16.msra.mxu0 0
      %1020 = vmatpush.bf16.msra.mxu0 0
      %1021 = vmatpush.bf16.msra.mxu0 0
      %1022 = vmatpush.bf16.msra.mxu0 0
      %1023 = vmatpush.bf16.msra.mxu0 0
      %1024 = vmatpush.bf16.msra.mxu0 0
      %1025 = vmatpush.bf16.msra.mxu0 %v1016
      %1026 = vmatmul.bf16.gmra.mxu0 %v1013
      %v1027 = vpop.f32.mrf.mxu0
      %v1028 = vadd.f32 0.0, %v1027
      %v1029 = vpop.f32.mrf.mxu0
      %1030 = vdwg.mxu0
      %v1031 = vpack.c.bf16 %v1028, %v1028
      %s1032 = scalar_lea.vmem %s8, 8
      %v1033 = vld [vmem:[%s1032] sm:$0xf]
      %v1035 = vsel %vm613, %v1031, 0
      %v1038 = vsel %vm651, %v1033, 0
      %1040 = vmatpush.bf16.msra.mxu0 0
      %1041 = vmatpush.bf16.msra.mxu0 0
      %1042 = vmatpush.bf16.msra.mxu0 0
      %1043 = vmatpush.bf16.msra.mxu0 0
      %1044 = vmatpush.bf16.msra.mxu0 0
      %1045 = vmatpush.bf16.msra.mxu0 0
      %1046 = vmatpush.bf16.msra.mxu0 0
      %1047 = vmatpush.bf16.msra.mxu0 %v1038
      %1048 = vmatmul.bf16.gmra.mxu0 %v1035
      %v1049 = vpop.f32.mrf.mxu0
      %v1050 = vadd.f32 0.0, %v1049
      %v1051 = vpop.f32.mrf.mxu0
      %1052 = vdwg.mxu0
      %v1053 = vadd.f32 %v868, %v1050
      %s1054 = scalar_lea.vmem %s2, 48
      %v1055 = vld [vmem:[%s1054] sm:$0xf]
      %v1056 = vld [vmem:[%s1054 + $0x4] sm:$0xf]
      %v1057 = vld [vmem:[%s1054 + $0x8] sm:$0xf]
      %v1058 = vld [vmem:[%s1054 + $0xc] sm:$0xf]
      %s1059 = scalar_lea.vmem %s3, 3
      %v1060 = vld [vmem:[%s1059] sm:$0x1]
      %v1062 = vperm.slane %v1060, 0
      %v1068 = vunpack.c.l.b16 %v1055
      %v1069 = vunpack.c.l.b16 %v1056
      %v1070 = vunpack.c.l.b16 %v1057
      %v1071 = vunpack.c.l.b16 %v1058
      %v1072 = vpack.c.b16 %v1069, %v1068
      %v1073 = vpack.c.b16 %v1071, %v1070
      %1076 = vmatpush.bf16.msra.mxu0 0
      %1077 = vmatpush.bf16.msra.mxu0 0
      %1078 = vmatpush.bf16.msra.mxu0 0
      %1079 = vmatpush.bf16.msra.mxu0 0
      %1080 = vmatpush.bf16.msra.mxu0 0
      %1081 = vmatpush.bf16.msra.mxu0 0
      %1082 = vmatpush.bf16.msra.mxu0 %v1073
      %1083 = vmatpush.bf16.msra.mxu0 %v1072
      %1084 = vmatmul.bf16.gmra.mxu0 %v527
      %v1085 = vpop.f32.mrf.mxu0
      %v1086 = vadd.f32 %v1062, %v1085
      %v1087 = vpop.f32.mrf.mxu0
      %1088 = vdwg.mxu0
      %s1089 = scalar_lea.vmem %s4, 48
      %v1090 = vld [vmem:[%s1089] sm:$0xf]
      %v1091 = vld [vmem:[%s1089 + $0x4] sm:$0xf]
      %v1092 = vld [vmem:[%s1089 + $0x8] sm:$0xf]
      %v1093 = vld [vmem:[%s1089 + $0xc] sm:$0xf]
      %s1094 = scalar_lea.vmem %s5, 3
      %v1095 = vld [vmem:[%s1094] sm:$0x1]
      %v1097 = vperm.slane %v1095, 0
      %v1103 = vunpack.c.l.b16 %v1090
      %v1104 = vunpack.c.l.b16 %v1091
      %v1105 = vunpack.c.l.b16 %v1092
      %v1106 = vunpack.c.l.b16 %v1093
      %v1107 = vpack.c.b16 %v1104, %v1103
      %v1108 = vpack.c.b16 %v1106, %v1105
      %1111 = vmatpush.bf16.msra.mxu0 0
      %1112 = vmatpush.bf16.msra.mxu0 0
      %1113 = vmatpush.bf16.msra.mxu0 0
      %1114 = vmatpush.bf16.msra.mxu0 0
      %1115 = vmatpush.bf16.msra.mxu0 0
      %1116 = vmatpush.bf16.msra.mxu0 0
      %1117 = vmatpush.bf16.msra.mxu0 %v1108
      %1118 = vmatpush.bf16.msra.mxu0 %v1107
      %1119 = vmatmul.bf16.gmra.mxu0 %v563
      %v1120 = vpop.f32.mrf.mxu0
      %v1121 = vadd.f32 %v1097, %v1120
      %v1122 = vpop.f32.mrf.mxu0
      %1123 = vdwg.mxu0
      %s1124 = scalar_lea.vmem %s6, 48
      %v1125 = vld [vmem:[%s1124] sm:$0xf]
      %v1126 = vld [vmem:[%s1124 + $0x4] sm:$0xf]
      %v1127 = vld [vmem:[%s1124 + $0x8] sm:$0xf]
      %v1128 = vld [vmem:[%s1124 + $0xc] sm:$0xf]
      %s1129 = scalar_lea.vmem %s7, 3
      %v1130 = vld [vmem:[%s1129] sm:$0x1]
      %v1132 = vperm.slane %v1130, 0
      %v1138 = vunpack.c.l.b16 %v1125
      %v1139 = vunpack.c.l.b16 %v1126
      %v1140 = vunpack.c.l.b16 %v1127
      %v1141 = vunpack.c.l.b16 %v1128
      %v1142 = vpack.c.b16 %v1139, %v1138
      %v1143 = vpack.c.b16 %v1141, %v1140
      %1146 = vmatpush.bf16.msra.mxu0 0
      %1147 = vmatpush.bf16.msra.mxu0 0
      %1148 = vmatpush.bf16.msra.mxu0 0
      %1149 = vmatpush.bf16.msra.mxu0 0
      %1150 = vmatpush.bf16.msra.mxu0 0
      %1151 = vmatpush.bf16.msra.mxu0 0
      %1152 = vmatpush.bf16.msra.mxu0 %v1143
      %1153 = vmatpush.bf16.msra.mxu0 %v1142
      %1154 = vmatmul.bf16.gmra.mxu0 %v563
      %v1155 = vpop.f32.mrf.mxu0
      %v1156 = vadd.f32 %v1132, %v1155
      %v1157 = vpop.f32.mrf.mxu0
      %1158 = vdwg.mxu0
      %v1159 = vpack.c.bf16 %v1086, %v1086
      %v1160 = vpack.c.bf16 %v1121, %v1121
      %v1162 = vsel %vm613, %v1159, 0
      %v1165 = vsel %vm613, %v1160, 0
      %1167 = vmatpush.bf16.xpose.msra.mxu0 0
      %1168 = vmatpush.bf16.xpose.msra.mxu0 0
      %1169 = vmatpush.bf16.xpose.msra.mxu0 0
      %1170 = vmatpush.bf16.xpose.msra.mxu0 0
      %1171 = vmatpush.bf16.xpose.msra.mxu0 0
      %1172 = vmatpush.bf16.xpose.msra.mxu0 0
      %1173 = vmatpush.bf16.xpose.msra.mxu0 0
      %1174 = vmatpush.bf16.xpose.msra.mxu0 %v1165
      %1175 = vmatmul.bf16.gmra.mxu0 %v1162
      %v1176 = vpop.f32.mrf.mxu0
      %v1177 = vadd.f32 0.0, %v1176
      %v1178 = vpop.f32.mrf.mxu0
      %1179 = vdwg.mxu0
      %v1180 = vmul.f32 %v1177, 0.35355338
      %v1181 = vadd.f32 %v1180, %v504
      %v1182 = vsel %vm613, %v1181, -inf
      %1183 = vmax.xlane.f32.xlu0 %v1182
      %v1184 = vpop.xlane.xlu0 %1183
      %v1185 = vsub.f32 %v1181, %v1184
      %v1186 = vmul.f32 %v1185, 1.442695
      %v1187 = vpow.pop %v1186
      %v1188 = vsel %vm613, %v1187, 0.0
      %1189 = vadd.xlane.f32.xlu0 %v1188
      %v1190 = vpop.xlane.xlu0 %1189
      %v1191 = vrcp.pop %v1190
      %v1192 = vmul.f32 %v1187, %v1191
      %v1193 = vpack.c.bf16 %v1192, %v1192
      %v1194 = vpack.c.bf16 %v1156, %v1156
      %v1196 = vsel %vm613, %v1193, 0
      %v1199 = vsel %vm651, %v1194, 0
      %1201 = vmatpush.bf16.msra.mxu0 0
      %1202 = vmatpush.bf16.msra.mxu0 0
      %1203 = vmatpush.bf16.msra.mxu0 0
      %1204 = vmatpush.bf16.msra.mxu0 0
      %1205 = vmatpush.bf16.msra.mxu0 0
      %1206 = vmatpush.bf16.msra.mxu0 0
      %1207 = vmatpush.bf16.msra.mxu0 0
      %1208 = vmatpush.bf16.msra.mxu0 %v1199
      %1209 = vmatmul.bf16.gmra.mxu0 %v1196
      %v1210 = vpop.f32.mrf.mxu0
      %v1211 = vadd.f32 0.0, %v1210
      %v1212 = vpop.f32.mrf.mxu0
      %1213 = vdwg.mxu0
      %v1214 = vpack.c.bf16 %v1211, %v1211
      %s1215 = scalar_lea.vmem %s8, 12
      %v1216 = vld [vmem:[%s1215] sm:$0xf]
      %v1218 = vsel %vm613, %v1214, 0
      %v1221 = vsel %vm651, %v1216, 0
      %1223 = vmatpush.bf16.msra.mxu0 0
      %1224 = vmatpush.bf16.msra.mxu0 0
      %1225 = vmatpush.bf16.msra.mxu0 0
      %1226 = vmatpush.bf16.msra.mxu0 0
      %1227 = vmatpush.bf16.msra.mxu0 0
      %1228 = vmatpush.bf16.msra.mxu0 0
      %1229 = vmatpush.bf16.msra.mxu0 0
      %1230 = vmatpush.bf16.msra.mxu0 %v1221
      %1231 = vmatmul.bf16.gmra.mxu0 %v1218
      %v1232 = vpop.f32.mrf.mxu0
      %v1233 = vadd.f32 0.0, %v1232
      %v1234 = vpop.f32.mrf.mxu0
      %1235 = vdwg.mxu0
      %v1236 = vadd.f32 %v1053, %v1233
      %v1237 = vld [vmem:[%s9] sm:$0x1]
      %v1239 = vperm.slane %v1237, 0
      %v1241 = vadd.f32 %v1236, %v1239
      %v1242 = vadd.f32 %v495, %v1241
      %v1243 = vsel %vm525, %v1242, 0.0
      %1244 = vadd.xlane.f32.xlu0 %v1243
      %v1245 = vpop.xlane.xlu0 %1244
      %v1246 = vrcp.pop 32.0
      %v1247 = vmul.f32 32.0, %v1246
      %v1248 = vsub.f32 1.0, %v1247
      %v1249 = vmul.f32 %v1246, %v1248
      %v1250 = vadd.f32 %v1246, %v1249
      %vm1251 = vweird.f32 %v1246
      %v1252 = vsel %vm1251, %v1246, %v1250
      %v1253 = vmul.f32 %v1245, %v1252
      %v1254 = vsub.f32 %v1242, %v1253
      %v1255 = vmul.f32 %v1254, %v1254
      %v1256 = vsel %vm525, %v1255, 0.0
      %1257 = vadd.xlane.f32.xlu0 %v1256
      %v1258 = vpop.xlane.xlu0 %1257
      %v1259 = vmul.f32 %v1258, %v1252
      %v1260 = vadd.f32 %v1259, 1e-05
      %v1261 = vrsqrt.pop %v1260
      %v1262 = vmul.f32 %v1261, %v1260
      %v1263 = vmul.f32 %v1262, %v1261
      %v1264 = vmul.f32 0.5, %v1263
      %v1265 = vsub.f32 1.5, %v1264
      %v1266 = vmul.f32 %v1261, %v1265
      %vm1267 = vweird.f32 %v1260
      %vm1268 = vweird.f32 %v1261
      %vm1269 = vmor %vm1267, %vm1268
      %v1270 = vsel %vm1269, %v1261, %v1266
      %v1271 = vmul.f32 %v1254, %v1270
      %v1272 = vld [vmem:[%s12] sm:$0x1]
      %v1274 = vperm.slane %v1272, 0
      %v1276 = vmul.f32 %v1271, %v1274
      %v1277 = vld [vmem:[%s13] sm:$0x1]
      %v1279 = vperm.slane %v1277, 0
      %v1281 = vadd.f32 %v1276, %v1279
      %1282 = vst.msk [vmem:[%s493] sm:$0xff] %vm525, %v1281
      %p1283 = scmp.lt.s32.totalorder %s25, 1
      %s1284 = scalar_select %p1283, %s25, 1
      %s1285 = smul.addr %s1284, 8
      %s1286 = scalar_lea.vmem %s14, %s1285
      // Predicated region
      $region77: #{seq2seq_forward.17} parent=75 // pred_check
        %p1287 = pneg %p352
      $region78: #{seq2seq_forward.17} parent=75 // pred_check_branch
        %1289 = sbr.rel (%p1287) target = $region80
      $region79: #{seq2seq_forward.17} parent=75 // pred_region
        _
      $region80: #{seq2seq_forward.17} parent=75 // pred_fallthru
        _
    $region76: #{seq2seq_forward.17} parent=5 // pred_fallthru
      _
    %p1290 = scmp.le.s32.totalorder 2, %s20
    // Predicated region
    $region81: #{seq2seq_forward.17} parent=5 // pred_check
      %p1291 = pneg %p1290
    $region82: #{seq2seq_forward.17} parent=5 // pred_check_branch
      %1293 = sbr.rel (%p1291) target = $region84
    $region83: #{seq2seq_forward.17} parent=5 // pred_region
      %s1294 = ssub.s32 %s20, 2
      // Predicated region
      $region85: #{seq2seq_forward.17} parent=83 // pred_check
        %p1295 = pneg %p358
      $region86: #{seq2seq_forward.17} parent=83 // pred_check_branch
        %1297 = sbr.rel (%p1295) target = $region88
      $region87: #{seq2seq_forward.17} parent=83 // pred_region
        %p1298 = scmp.lt.s32.totalorder %s26, 1
        %s1299 = scalar_select %p1298, %s26, 1
        %s1300 = smul.addr %s1299, 8
        %s1301 = scalar_lea.vmem %s14, %s1300
      $region88: #{seq2seq_forward.17} parent=83 // pred_fallthru
        _
    $region84: #{seq2seq_forward.17} parent=5 // pred_fallthru
      _
  $region6: #{seq2seq_forward.17} parent=0 // loop_footer
    %s24 = sadd.s32 1, %s20
  $region7: #{seq2seq_forward.17} parent=0 // loop_footer_branch
    %19 = sbr.rel target = $region3
  $region8: #{seq2seq_forward.17} parent=0 // loop_exit
    _

// kernel: seq2seq_forward.18
$region0: #{seq2seq_forward.18}
  #allocation0 [shape = 'u32[]', space=smem, size = 0x4, offset = 0x4, fixed_abs, tag = 'smem constant byte address 0x4 - core index']
  #allocation1 [shape = 'u32[72,128]{1,0:T(1,128)}', space=vmem, size = 0x9000, scoped, tag = 'internal scratch']
  %s0 = inlined_call_operand.vmem [shape: f32[2,8,32], index: 0, kind: input, shape index: {}]
  %s1 = inlined_call_operand.vmem [shape: f32[2,10,32], index: 1, kind: input, shape index: {}]
  %s2 = inlined_call_operand.vmem [shape: bf16[4,32,8], index: 2, kind: input, shape index: {}]
  %s3 = inlined_call_operand.vmem [shape: f32[4,1,8], index: 3, kind: input, shape index: {}]
  %s4 = inlined_call_operand.vmem [shape: bf16[4,32,8], index: 4, kind: input, shape index: {}]
  %s5 = inlined_call_operand.vmem [shape: f32[4,1,8], index: 5, kind: input, shape index: {}]
  %s6 = inlined_call_operand.vmem [shape: bf16[4,32,8], index: 6, kind: input, shape index: {}]
  %s7 = inlined_call_operand.vmem [shape: f32[4,1,8], index: 7, kind: input, shape index: {}]
  %s8 = inlined_call_operand.vmem [shape: bf16[4,8,32], index: 8, kind: input, shape index: {}]
  %s9 = inlined_call_operand.vmem [shape: f32[1,32], index: 9, kind: input, shape index: {}]
  %s10 = inlined_call_operand.vmem [shape: f32[8,10], index: 10, kind: input, shape index: {}]
  %s11 = inlined_call_operand.vmem [shape: f32[2,1,10], index: 11, kind: input, shape index: {}]
  %s12 = inlined_call_operand.vmem [shape: f32[1,32], index: 12, kind: input, shape index: {}]
  %s13 = inlined_call_operand.vmem [shape: f32[1,32], index: 13, kind: input, shape index: {}]
  %s14 = inlined_call_operand.vmem [shape: f32[2,8,32], index: 14, kind: output, shape index: {}]
  %s15 = sld [smem:[#allocation0]]
  $region89: #{seq2seq_forward.18} parent=0
    _
  %s17 = ssub.s32 1, %s15
  %s18 = scalar_select 0, %s17, %s15
  loop: start=0, step=1, limit=4
  $region2: #{seq2seq_forward.18} parent=0 // loop_pre_header
    _
  $region3: #{seq2seq_forward.18} parent=0 // loop_header
    %s20 = sphi 0, %s24
    %p21 = scmp.ge.s32.totalorder %s20, 4
    %s30 = sphi 0, %s32
    %s33 = sphi 0, %s30
    %s34 = sphi 0, %s33
    %s50 = sphi 0, %s34
    %s56 = sphi 0, %s58
    %s59 = sphi 0, %s56
    %s60 = sphi 0, %s59
    %s76 = sphi 0, %s60
    %s80 = sphi 0, %s80
    %s82 = sphi 0, %s80
    %s83 = sphi 0, %s82
    %s97 = sphi 0, %s83
    %s101 = sphi 0, %s101
    %s103 = sphi 0, %s101
    %s104 = sphi 0, %s103
    %s118 = sphi 0, %s104
    %s122 = sphi 0, %s122
    %s124 = sphi 0, %s122
    %s125 = sphi 0, %s124
    %s139 = sphi 0, %s125
    %s143 = sphi 0, %s143
    %s145 = sphi 0, %s143
    %s146 = sphi 0, %s145
    %s160 = sphi 0, %s146
    %s164 = sphi 0, %s164
    %s166 = sphi 0, %s164
    %s167 = sphi 0, %s166
    %s181 = sphi 0, %s167
    %s185 = sphi 0, %s185
    %s187 = sphi 0, %s185
    %s188 = sphi 0, %s187
    %s202 = sphi 0, %s188
    %s206 = sphi 0, %s206
    %s208 = sphi 0, %s206
    %s209 = sphi 0, %s208
    %s223 = sphi 0, %s209
    %s227 = sphi 0, %s227
    %s229 = sphi 0, %s227
    %s230 = sphi 0, %s229
    %s244 = sphi 0, %s230
    %s248 = sphi 0, %s248
    %s250 = sphi 0, %s248
    %s251 = sphi 0, %s250
    %s265 = sphi 0, %s251
    %s271 = sphi 0, %s273
    %s274 = sphi 0, %s271
    %s275 = sphi 0, %s274
    %s291 = sphi 0, %s275
    %s295 = sphi 0, %s295
    %s297 = sphi 0, %s295
    %s298 = sphi 0, %s297
    %s312 = sphi 0, %s298
    %s316 = sphi 0, %s316
    %s318 = sphi 0, %s316
    %s319 = sphi 0, %s318
    %s333 = sphi 0, %s319
    %s339 = sphi 0, %s341
    %s342 = sphi 0, %s339
    %s343 = sphi 0, %s342
    %s359 = sphi 0, %s343
  $region4: #{seq2seq_forward.18} parent=0 // loop_header_branch
    %23 = sbr.rel (%p21) target = $region8
  $region5: #{seq2seq_forward.18} parent=0 // loop_body
    %s25 = ssub.s32 %s20, 1
    %s26 = ssub.s32 %s20, 2
    %s27 = sadd.s32 %s20, 1
    %s28 = ssub.s32 %s20, %s27
    %p29 = scmp.eq.s32.totalorder %s28, 0
    %s31 = sadd.s32 %s30, 1
    %s32 = scalar_select %p29, %s30, %s31
    %p35 = pneg %p29
    %p36 = scmp.eq.s32.totalorder %s20, 1
    %p37 = por %p35, %p36
    %p38 = scmp.ne.s32.totalorder %s30, %s33
    %p39 = scmp.eq.s32.totalorder %s20, 0
    %p40 = por %p38, %p39
    %p41 = scmp.ne.s32.totalorder %s30, %s33
    %p42 = scmp.eq.s32.totalorder %s25, 1
    %p43 = por %p41, %p42
    %p44 = scmp.ne.s32.totalorder %s33, %s34
    %p45 = scmp.eq.s32.totalorder %s25, 0
    %p46 = por %p44, %p45
    %p47 = scmp.ne.s32.totalorder %s33, %s34
    %p48 = scmp.eq.s32.totalorder %s26, 1
    %p49 = por %p47, %p48
    %p51 = scmp.ne.s32.totalorder %s34, %s50
    %p52 = scmp.eq.s32.totalorder %s26, 0
    %p53 = por %p51, %p52
    %s54 = ssub.s32 %s20, %s27
    %p55 = scmp.eq.s32.totalorder %s54, 0
    %s57 = sadd.s32 %s56, 1
    %s58 = scalar_select %p55, %s56, %s57
    %p61 = pneg %p55
    %p62 = scmp.eq.s32.totalorder %s20, 1
    %p63 = por %p61, %p62
    %p64 = scmp.ne.s32.totalorder %s56, %s59
    %p65 = scmp.eq.s32.totalorder %s20, 0
    %p66 = por %p64, %p65
    %p67 = scmp.ne.s32.totalorder %s56, %s59
    %p68 = scmp.eq.s32.totalorder %s25, 1
    %p69 = por %p67, %p68
    %p70 = scmp.ne.s32.totalorder %s59, %s60
    %p71 = scmp.eq.s32.totalorder %s25, 0
    %p72 = por %p70, %p71
    %p73 = scmp.ne.s32.totalorder %s59, %s60
    %p74 = scmp.eq.s32.totalorder %s26, 1
    %p75 = por %p73, %p74
    %p77 = scmp.ne.s32.totalorder %s60, %s76
    %p78 = scmp.eq.s32.totalorder %s26, 0
    %p79 = por %p77, %p78
    %s81 = sadd.s32 %s80, 1
    %p84 = scmp.eq.s32.totalorder %s20, 1
    %p85 = scmp.ne.s32.totalorder %s80, %s82
    %p86 = scmp.eq.s32.totalorder %s20, 0
    %p87 = por %p85, %p86
    %p88 = scmp.ne.s32.totalorder %s80, %s82
    %p89 = scmp.eq.s32.totalorder %s25, 1
    %p90 = por %p88, %p89
    %p91 = scmp.ne.s32.totalorder %s82, %s83
    %p92 = scmp.eq.s32.totalorder %s25, 0
    %p93 = por %p91, %p92
    %p94 = scmp.ne.s32.totalorder %s82, %s83
    %p95 = scmp.eq.s32.totalorder %s26, 1
    %p96 = por %p94, %p95
    %p98 = scmp.ne.s32.totalorder %s83, %s97
    %p99 = scmp.eq.s32.totalorder %s26, 0
    %p100 = por %p98, %p99
    %s102 = sadd.s32 %s101, 1
    %p105 = scmp.eq.s32.totalorder %s20, 1
    %p106 = scmp.ne.s32.totalorder %s101, %s103
    %p107 = scmp.eq.s32.totalorder %s20, 0
    %p108 = por %p106, %p107
    %p109 = scmp.ne.s32.totalorder %s101, %s103
    %p110 = scmp.eq.s32.totalorder %s25, 1
    %p111 = por %p109, %p110
    %p112 = scmp.ne.s32.totalorder %s103, %s104
    %p113 = scmp.eq.s32.totalorder %s25, 0
    %p114 = por %p112, %p113
    %p115 = scmp.ne.s32.totalorder %s103, %s104
    %p116 = scmp.eq.s32.totalorder %s26, 1
    %p117 = por %p115, %p116
    %p119 = scmp.ne.s32.totalorder %s104, %s118
    %p120 = scmp.eq.s32.totalorder %s26, 0
    %p121 = por %p119, %p120
    %s123 = sadd.s32 %s122, 1
    %p126 = scmp.eq.s32.totalorder %s20, 1
    %p127 = scmp.ne.s32.totalorder %s122, %s124
    %p128 = scmp.eq.s32.totalorder %s20, 0
    %p129 = por %p127, %p128
    %p130 = scmp.ne.s32.totalorder %s122, %s124
    %p131 = scmp.eq.s32.totalorder %s25, 1
    %p132 = por %p130, %p131
    %p133 = scmp.ne.s32.totalorder %s124, %s125
    %p134 = scmp.eq.s32.totalorder %s25, 0
    %p135 = por %p133, %p134
    %p136 = scmp.ne.s32.totalorder %s124, %s125
    %p137 = scmp.eq.s32.totalorder %s26, 1
    %p138 = por %p136, %p137
    %p140 = scmp.ne.s32.totalorder %s125, %s139
    %p141 = scmp.eq.s32.totalorder %s26, 0
    %p142 = por %p140, %p141
    %s144 = sadd.s32 %s143, 1
    %p147 = scmp.eq.s32.totalorder %s20, 1
    %p148 = scmp.ne.s32.totalorder %s143, %s145
    %p149 = scmp.eq.s32.totalorder %s20, 0
    %p150 = por %p148, %p149
    %p151 = scmp.ne.s32.totalorder %s143, %s145
    %p152 = scmp.eq.s32.totalorder %s25, 1
    %p153 = por %p151, %p152
    %p154 = scmp.ne.s32.totalorder %s145, %s146
    %p155 = scmp.eq.s32.totalorder %s25, 0
    %p156 = por %p154, %p155
    %p157 = scmp.ne.s32.totalorder %s145, %s146
    %p158 = scmp.eq.s32.totalorder %s26, 1
    %p159 = por %p157, %p158
    %p161 = scmp.ne.s32.totalorder %s146, %s160
    %p162 = scmp.eq.s32.totalorder %s26, 0
    %p163 = por %p161, %p162
    %s165 = sadd.s32 %s164, 1
    %p168 = scmp.eq.s32.totalorder %s20, 1
    %p169 = scmp.ne.s32.totalorder %s164, %s166
    %p170 = scmp.eq.s32.totalorder %s20, 0
    %p171 = por %p169, %p170
    %p172 = scmp.ne.s32.totalorder %s164, %s166
    %p173 = scmp.eq.s32.totalorder %s25, 1
    %p174 = por %p172, %p173
    %p175 = scmp.ne.s32.totalorder %s166, %s167
    %p176 = scmp.eq.s32.totalorder %s25, 0
    %p177 = por %p175, %p176
    %p178 = scmp.ne.s32.totalorder %s166, %s167
    %p179 = scmp.eq.s32.totalorder %s26, 1
    %p180 = por %p178, %p179
    %p182 = scmp.ne.s32.totalorder %s167, %s181
    %p183 = scmp.eq.s32.totalorder %s26, 0
    %p184 = por %p182, %p183
    %s186 = sadd.s32 %s185, 1
    %p189 = scmp.eq.s32.totalorder %s20, 1
    %p190 = scmp.ne.s32.totalorder %s185, %s187
    %p191 = scmp.eq.s32.totalorder %s20, 0
    %p192 = por %p190, %p191
    %p193 = scmp.ne.s32.totalorder %s185, %s187
    %p194 = scmp.eq.s32.totalorder %s25, 1
    %p195 = por %p193, %p194
    %p196 = scmp.ne.s32.totalorder %s187, %s188
    %p197 = scmp.eq.s32.totalorder %s25, 0
    %p198 = por %p196, %p197
    %p199 = scmp.ne.s32.totalorder %s187, %s188
    %p200 = scmp.eq.s32.totalorder %s26, 1
    %p201 = por %p199, %p200
    %p203 = scmp.ne.s32.totalorder %s188, %s202
    %p204 = scmp.eq.s32.totalorder %s26, 0
    %p205 = por %p203, %p204
    %s207 = sadd.s32 %s206, 1
    %p210 = scmp.eq.s32.totalorder %s20, 1
    %p211 = scmp.ne.s32.totalorder %s206, %s208
    %p212 = scmp.eq.s32.totalorder %s20, 0
    %p213 = por %p211, %p212
    %p214 = scmp.ne.s32.totalorder %s206, %s208
    %p215 = scmp.eq.s32.totalorder %s25, 1
    %p216 = por %p214, %p215
    %p217 = scmp.ne.s32.totalorder %s208, %s209
    %p218 = scmp.eq.s32.totalorder %s25, 0
    %p219 = por %p217, %p218
    %p220 = scmp.ne.s32.totalorder %s208, %s209
    %p221 = scmp.eq.s32.totalorder %s26, 1
    %p222 = por %p220, %p221
    %p224 = scmp.ne.s32.totalorder %s209, %s223
    %p225 = scmp.eq.s32.totalorder %s26, 0
    %p226 = por %p224, %p225
    %s228 = sadd.s32 %s227, 1
    %p231 = scmp.eq.s32.totalorder %s20, 1
    %p232 = scmp.ne.s32.totalorder %s227, %s229
    %p233 = scmp.eq.s32.totalorder %s20, 0
    %p234 = por %p232, %p233
    %p235 = scmp.ne.s32.totalorder %s227, %s229
    %p236 = scmp.eq.s32.totalorder %s25, 1
    %p237 = por %p235, %p236
    %p238 = scmp.ne.s32.totalorder %s229, %s230
    %p239 = scmp.eq.s32.totalorder %s25, 0
    %p240 = por %p238, %p239
    %p241 = scmp.ne.s32.totalorder %s229, %s230
    %p242 = scmp.eq.s32.totalorder %s26, 1
    %p243 = por %p241, %p242
    %p245 = scmp.ne.s32.totalorder %s230, %s244
    %p246 = scmp.eq.s32.totalorder %s26, 0
    %p247 = por %p245, %p246
    %s249 = sadd.s32 %s248, 1
    %p252 = scmp.eq.s32.totalorder %s20, 1
    %p253 = scmp.ne.s32.totalorder %s248, %s250
    %p254 = scmp.eq.s32.totalorder %s20, 0
    %p255 = por %p253, %p254
    %p256 = scmp.ne.s32.totalorder %s248, %s250
    %p257 = scmp.eq.s32.totalorder %s25, 1
    %p258 = por %p256, %p257
    %p259 = scmp.ne.s32.totalorder %s250, %s251
    %p260 = scmp.eq.s32.totalorder %s25, 0
    %p261 = por %p259, %p260
    %p262 = scmp.ne.s32.totalorder %s250, %s251
    %p263 = scmp.eq.s32.totalorder %s26, 1
    %p264 = por %p262, %p263
    %p266 = scmp.ne.s32.totalorder %s251, %s265
    %p267 = scmp.eq.s32.totalorder %s26, 0
    %p268 = por %p266, %p267
    %s269 = ssub.s32 %s20, %s27
    %p270 = scmp.eq.s32.totalorder %s269, 0
    %s272 = sadd.s32 %s271, 1
    %s273 = scalar_select %p270, %s271, %s272
    %p276 = pneg %p270
    %p277 = scmp.eq.s32.totalorder %s20, 1
    %p278 = por %p276, %p277
    %p279 = scmp.ne.s32.totalorder %s271, %s274
    %p280 = scmp.eq.s32.totalorder %s20, 0
    %p281 = por %p279, %p280
    %p282 = scmp.ne.s32.totalorder %s271, %s274
    %p283 = scmp.eq.s32.totalorder %s25, 1
    %p284 = por %p282, %p283
    %p285 = scmp.ne.s32.totalorder %s274, %s275
    %p286 = scmp.eq.s32.totalorder %s25, 0
    %p287 = por %p285, %p286
    %p288 = scmp.ne.s32.totalorder %s274, %s275
    %p289 = scmp.eq.s32.totalorder %s26, 1
    %p290 = por %p288, %p289
    %p292 = scmp.ne.s32.totalorder %s275, %s291
    %p293 = scmp.eq.s32.totalorder %s26, 0
    %p294 = por %p292, %p293
    %s296 = sadd.s32 %s295, 1
    %p299 = scmp.eq.s32.totalorder %s20, 1
    %p300 = scmp.ne.s32.totalorder %s295, %s297
    %p301 = scmp.eq.s32.totalorder %s20, 0
    %p302 = por %p300, %p301
    %p303 = scmp.ne.s32.totalorder %s295, %s297
    %p304 = scmp.eq.s32.totalorder %s25, 1
    %p305 = por %p303, %p304
    %p306 = scmp.ne.s32.totalorder %s297, %s298
    %p307 = scmp.eq.s32.totalorder %s25, 0
    %p308 = por %p306, %p307
    %p309 = scmp.ne.s32.totalorder %s297, %s298
    %p310 = scmp.eq.s32.totalorder %s26, 1
    %p311 = por %p309, %p310
    %p313 = scmp.ne.s32.totalorder %s298, %s312
    %p314 = scmp.eq.s32.totalorder %s26, 0
    %p315 = por %p313, %p314
    %s317 = sadd.s32 %s316, 1
    %p320 = scmp.eq.s32.totalorder %s20, 1
    %p321 = scmp.ne.s32.totalorder %s316, %s318
    %p322 = scmp.eq.s32.totalorder %s20, 0
    %p323 = por %p321, %p322
    %p324 = scmp.ne.s32.totalorder %s316, %s318
    %p325 = scmp.eq.s32.totalorder %s25, 1
    %p326 = por %p324, %p325
    %p327 = scmp.ne.s32.totalorder %s318, %s319
    %p328 = scmp.eq.s32.totalorder %s25, 0
    %p329 = por %p327, %p328
    %p330 = scmp.ne.s32.totalorder %s318, %s319
    %p331 = scmp.eq.s32.totalorder %s26, 1
    %p332 = por %p330, %p331
    %p334 = scmp.ne.s32.totalorder %s319, %s333
    %p335 = scmp.eq.s32.totalorder %s26, 0
    %p336 = por %p334, %p335
    %s337 = ssub.s32 %s20, %s27
    %p338 = scmp.eq.s32.totalorder %s337, 0
    %s340 = sadd.s32 %s339, 1
    %s341 = scalar_select %p338, %s339, %s340
    %p344 = pneg %p338
    %p345 = scmp.eq.s32.totalorder %s20, 1
    %p346 = por %p344, %p345
    %p347 = scmp.ne.s32.totalorder %s339, %s342
    %p348 = scmp.eq.s32.totalorder %s20, 0
    %p349 = por %p347, %p348
    %p350 = scmp.ne.s32.totalorder %s339, %s342
    %p351 = scmp.eq.s32.totalorder %s25, 1
    %p352 = por %p350, %p351
    %p353 = scmp.ne.s32.totalorder %s342, %s343
    %p354 = scmp.eq.s32.totalorder %s25, 0
    %p355 = por %p353, %p354
    %p356 = scmp.ne.s32.totalorder %s342, %s343
    %p357 = scmp.eq.s32.totalorder %s26, 1
    %p358 = por %p356, %p357
    %p360 = scmp.ne.s32.totalorder %s343, %s359
    %p361 = scmp.eq.s32.totalorder %s26, 0
    %p362 = por %p360, %p361
    %p363 = scmp.le.s32.totalorder 1, %s20
    %p364 = scmp.lt.s32.totalorder %s20, 3
    %p365 = pnand %p363, %p364
    %p366 = pneg %p365
    // Predicated region
    $region9: #{seq2seq_forward.18} parent=5 // pred_check
      _
    $region10: #{seq2seq_forward.18} parent=5 // pred_check_branch
      %368 = sbr.rel (%p365) target = $region12
    $region11: #{seq2seq_forward.18} parent=5 // pred_region
      %s369 = ssub.s32 %s20, 1
      // Predicated region
      $region13: #{seq2seq_forward.18} parent=11 // pred_check
        %p370 = pneg %p93
      $region14: #{seq2seq_forward.18} parent=11 // pred_check_branch
        %372 = sbr.rel (%p370) target = $region16
      $region15: #{seq2seq_forward.18} parent=11 // pred_region
        _
      $region16: #{seq2seq_forward.18} parent=11 // pred_fallthru
        _
      // Predicated region
      $region17: #{seq2seq_forward.18} parent=11 // pred_check
        %p373 = pneg %p114
      $region18: #{seq2seq_forward.18} parent=11 // pred_check_branch
        %375 = sbr.rel (%p373) target = $region20
      $region19: #{seq2seq_forward.18} parent=11 // pred_region
        _
      $region20: #{seq2seq_forward.18} parent=11 // pred_fallthru
        _
      // Predicated region
      $region21: #{seq2seq_forward.18} parent=11 // pred_check
        %p376 = pneg %p135
      $region22: #{seq2seq_forward.18} parent=11 // pred_check_branch
        %378 = sbr.rel (%p376) target = $region24
      $region23: #{seq2seq_forward.18} parent=11 // pred_region
        _
      $region24: #{seq2seq_forward.18} parent=11 // pred_fallthru
        _
      // Predicated region
      $region25: #{seq2seq_forward.18} parent=11 // pred_check
        %p379 = pneg %p156
      $region26: #{seq2seq_forward.18} parent=11 // pred_check_branch
        %381 = sbr.rel (%p379) target = $region28
      $region27: #{seq2seq_forward.18} parent=11 // pred_region
        _
      $region28: #{seq2seq_forward.18} parent=11 // pred_fallthru
        _
      // Predicated region
      $region29: #{seq2seq_forward.18} parent=11 // pred_check
        %p382 = pneg %p177
      $region30: #{seq2seq_forward.18} parent=11 // pred_check_branch
        %384 = sbr.rel (%p382) target = $region32
      $region31: #{seq2seq_forward.18} parent=11 // pred_region
        _
      $region32: #{seq2seq_forward.18} parent=11 // pred_fallthru
        _
      // Predicated region
      $region33: #{seq2seq_forward.18} parent=11 // pred_check
        %p385 = pneg %p198
      $region34: #{seq2seq_forward.18} parent=11 // pred_check_branch
        %387 = sbr.rel (%p385) target = $region36
      $region35: #{seq2seq_forward.18} parent=11 // pred_region
        _
      $region36: #{seq2seq_forward.18} parent=11 // pred_fallthru
        _
      // Predicated region
      $region37: #{seq2seq_forward.18} parent=11 // pred_check
        %p388 = pneg %p219
      $region38: #{seq2seq_forward.18} parent=11 // pred_check_branch
        %390 = sbr.rel (%p388) target = $region40
      $region39: #{seq2seq_forward.18} parent=11 // pred_region
        _
      $region40: #{seq2seq_forward.18} parent=11 // pred_fallthru
        _
      // Predicated region
      $region41: #{seq2seq_forward.18} parent=11 // pred_check
        %p391 = pneg %p240
      $region42: #{seq2seq_forward.18} parent=11 // pred_check_branch
        %393 = sbr.rel (%p391) target = $region44
      $region43: #{seq2seq_forward.18} parent=11 // pred_region
        _
      $region44: #{seq2seq_forward.18} parent=11 // pred_fallthru
        _
      // Predicated region
      $region45: #{seq2seq_forward.18} parent=11 // pred_check
        %p394 = pneg %p261
      $region46: #{seq2seq_forward.18} parent=11 // pred_check_branch
        %396 = sbr.rel (%p394) target = $region48
      $region47: #{seq2seq_forward.18} parent=11 // pred_region
        _
      $region48: #{seq2seq_forward.18} parent=11 // pred_fallthru
        _
      // Predicated region
      $region49: #{seq2seq_forward.18} parent=11 // pred_check
        %p397 = pneg %p308
      $region50: #{seq2seq_forward.18} parent=11 // pred_check_branch
        %399 = sbr.rel (%p397) target = $region52
      $region51: #{seq2seq_forward.18} parent=11 // pred_region
        _
      $region52: #{seq2seq_forward.18} parent=11 // pred_fallthru
        _
      // Predicated region
      $region53: #{seq2seq_forward.18} parent=11 // pred_check
        %p400 = pneg %p329
      $region54: #{seq2seq_forward.18} parent=11 // pred_check_branch
        %402 = sbr.rel (%p400) target = $region56
      $region55: #{seq2seq_forward.18} parent=11 // pred_region
        _
      $region56: #{seq2seq_forward.18} parent=11 // pred_fallthru
        _
    $region12: #{seq2seq_forward.18} parent=5 // pred_fallthru
      _
    %p403 = scmp.lt.s32.totalorder %s20, 2
    // Predicated region
    $region57: #{seq2seq_forward.18} parent=5 // pred_check
      %p404 = pneg %p403
    $region58: #{seq2seq_forward.18} parent=5 // pred_check_branch
      %406 = sbr.rel (%p404) target = $region60
    $region59: #{seq2seq_forward.18} parent=5 // pred_region
      // Predicated region
      $region61: #{seq2seq_forward.18} parent=59 // pred_check
        %p407 = pneg %p40
      $region62: #{seq2seq_forward.18} parent=59 // pred_check_branch
        %409 = sbr.rel (%p407) target = $region64
      $region63: #{seq2seq_forward.18} parent=59 // pred_region
        %p410 = scmp.lt.s32.totalorder %s20, 1
        %s411 = scalar_select %p410, %s20, 1
        %s412 = smul.addr %s411, 8
        %s413 = scalar_lea.vmem %s0, %s412
      $region64: #{seq2seq_forward.18} parent=59 // pred_fallthru
        _
      // Predicated region
      $region65: #{seq2seq_forward.18} parent=59 // pred_check
        %p414 = pneg %p66
      $region66: #{seq2seq_forward.18} parent=59 // pred_check_branch
        %416 = sbr.rel (%p414) target = $region68
      $region67: #{seq2seq_forward.18} parent=59 // pred_region
        %p417 = scmp.lt.s32.totalorder %s20, 1
        %s418 = scalar_select %p417, %s20, 1
        %s419 = smul.addr %s418, 2
        %s420 = smul.addr %s419, 8
        %s421 = scalar_lea.vmem %s1, %s420
      $region68: #{seq2seq_forward.18} parent=59 // pred_fallthru
        _
      // Predicated region
      $region69: #{seq2seq_forward.18} parent=59 // pred_check
        %p422 = pneg %p281
      $region70: #{seq2seq_forward.18} parent=59 // pred_check_branch
        %424 = sbr.rel (%p422) target = $region72
      $region71: #{seq2seq_forward.18} parent=59 // pred_region
        %p425 = scmp.lt.s32.totalorder %s20, 1
        %s426 = scalar_select %p425, %s20, 1
        %s427 = scalar_lea.vmem %s11, %s426
      $region72: #{seq2seq_forward.18} parent=59 // pred_fallthru
        _
    $region60: #{seq2seq_forward.18} parent=5 // pred_fallthru
      _
    %p428 = scmp.le.s32.totalorder 1, %s20
    %p429 = scmp.lt.s32.totalorder %s20, 3
    %p430 = pnand %p428, %p429
    %p431 = pneg %p430
    // Predicated region
    $region73: #{seq2seq_forward.18} parent=5 // pred_check
      _
    $region74: #{seq2seq_forward.18} parent=5 // pred_check_branch
      %433 = sbr.rel (%p430) target = $region76
    $region75: #{seq2seq_forward.18} parent=5 // pred_region
      %s434 = ssub.s32 %s20, 1
      %p435 = scmp.lt.s32.totalorder %s25, 1
      %s436 = scalar_select %p435, %s25, 1
      %s437 = smul.addr %s436, 8
      %s438 = scalar_lea.vmem %s0, %s437
      %p439 = pneg %p46
      %p440 = pneg %p43
      %p441 = scmp.lt.s32.totalorder %s25, 1
      %s442 = scalar_select %p441, %s25, 1
      %s443 = smul.addr %s442, 2
      %s444 = smul.addr %s443, 8
      %s445 = scalar_lea.vmem %s1, %s444
      %p446 = pneg %p72
      %p447 = pneg %p69
      %p448 = pneg %p93
      %p449 = pneg %p90
      %p450 = pneg %p114
      %p451 = pneg %p111
      %p452 = pneg %p135
      %p453 = pneg %p132
      %p454 = pneg %p156
      %p455 = pneg %p153
      %p456 = pneg %p177
      %p457 = pneg %p174
      %p458 = pneg %p198
      %p459 = pneg %p195
      %p460 = pneg %p219
      %p461 = pneg %p216
      %p462 = pneg %p240
      %p463 = pneg %p237
      %p464 = pneg %p261
      %p465 = pneg %p258
      %p466 = scmp.lt.s32.totalorder %s25, 1
      %s467 = scalar_select %p466, %s25, 1
      %s468 = scalar_lea.vmem %s11, %s467
      %p469 = pneg %p287
      %p470 = pneg %p284
      %p471 = pneg %p308
      %p472 = pneg %p305
      %p473 = pneg %p329
      %p474 = pneg %p326
      %p475 = pneg %p355
      %p476 = pneg %p352
      %p477 = scmp.lt.s32.totalorder %s25, 1
      %s478 = scalar_select %p477, %s25, 1
      %s479 = smul.addr %s478, 8
      %s480 = scalar_lea.vmem %s14, %s479
      %p481 = scmp.lt.s32.totalorder %s25, 1
      %s482 = scalar_select %p481, %s25, 1
      %s483 = smul.addr %s482, 8
      %s484 = scalar_lea.vmem %s0, %s483
      %p485 = scmp.lt.s32.totalorder %s25, 1
      %s486 = scalar_select %p485, %s25, 1
      %s487 = smul.addr %s486, 2
      %s488 = smul.addr %s487, 8
      %s489 = scalar_lea.vmem %s1, %s488
      %p490 = scmp.lt.s32.totalorder %s25, 1
      %s491 = scalar_select %p490, %s25, 1
      %s492 = scalar_lea.vmem %s11, %s491
      %p493 = scmp.lt.s32.totalorder %s25, 1
      %s494 = scalar_select %p493, %s25, 1
      %s495 = smul.addr %s494, 8
      %s496 = scalar_lea.vmem %s14, %s495
      %v498 = vld [vmem:[%s484] sm:$0xff]
      %v499 = vpack.c.bf16 %v498, %v498
      %v500 = vld [vmem:[%s489] sm:$0xff]
      %v501 = vld [vmem:[%s489 + $0x8] sm:$0x3]
      %v502 = vpack.c.bf16 %v501, %v500
      %v503 = vld [vmem:[%s10] sm:$0xff]
      %v504 = vld [vmem:[%s492] sm:$0x1]
      %v506 = vperm.slane %v504, 0
      %v508 = vadd.f32 %v503, %v506
      %v509 = vld [vmem:[%s2] sm:$0xf]
      %v510 = vld [vmem:[%s2 + $0x4] sm:$0xf]
      %v511 = vld [vmem:[%s2 + $0x8] sm:$0xf]
      %v512 = vld [vmem:[%s2 + $0xc] sm:$0xf]
      %v513 = vld [vmem:[%s3] sm:$0x1]
      %v515 = vperm.slane %v513, 0
      %v521 = vunpack.c.l.b16 %v509
      %v522 = vunpack.c.l.b16 %v510
      %v523 = vunpack.c.l.b16 %v511
      %v524 = vunpack.c.l.b16 %v512
      %v525 = vpack.c.b16 %v522, %v521
      %v526 = vpack.c.b16 %v524, %v523
      %vm529 = vcmask 261120
      %v531 = vsel %vm529, %v499, 0
      %533 = vmatpush.bf16.msra.mxu0 0
      %534 = vmatpush.bf16.msra.mxu0 0
      %535 = vmatpush.bf16.msra.mxu0 0
      %536 = vmatpush.bf16.msra.mxu0 0
      %537 = vmatpush.bf16.msra.mxu0 0
      %538 = vmatpush.bf16.msra.mxu0 0
      %539 = vmatpush.bf16.msra.mxu0 %v526
      %540 = vmatpush.bf16.msra.mxu0 %v525
      %541 = vmatmul.bf16.gmra.mxu0 %v531
      %v542 = vpop.f32.mrf.mxu0
      %v543 = vadd.f32 %v515, %v542
      %v544 = vpop.f32.mrf.mxu0
      %545 = vdwg.mxu0
      %v546 = vld [vmem:[%s4] sm:$0xf]
      %v547 = vld [vmem:[%s4 + $0x4] sm:$0xf]
      %v548 = vld [vmem:[%s4 + $0x8] sm:$0xf]
      %v549 = vld [vmem:[%s4 + $0xc] sm:$0xf]
      %v550 = vld [vmem:[%s5] sm:$0x1]
      %v552 = vperm.slane %v550, 0
      %v558 = vunpack.c.l.b16 %v546
      %v559 = vunpack.c.l.b16 %v547
      %v560 = vunpack.c.l.b16 %v548
      %v561 = vunpack.c.l.b16 %v549
      %v562 = vpack.c.b16 %v559, %v558
      %v563 = vpack.c.b16 %v561, %v560
      %v567 = vsel %vm529, %v502, 0
      %569 = vmatpush.bf16.msra.mxu0 0
      %570 = vmatpush.bf16.msra.mxu0 0
      %571 = vmatpush.bf16.msra.mxu0 0
      %572 = vmatpush.bf16.msra.mxu0 0
      %573 = vmatpush.bf16.msra.mxu0 0
      %574 = vmatpush.bf16.msra.mxu0 0
      %575 = vmatpush.bf16.msra.mxu0 %v563
      %576 = vmatpush.bf16.msra.mxu0 %v562
      %577 = vmatmul.bf16.gmra.mxu0 %v567
      %v578 = vpop.f32.mrf.mxu0
      %v579 = vadd.f32 %v552, %v578
      %v580 = vpop.f32.mrf.mxu0
      %v581 = vadd.f32 %v552, %v580
      %582 = vdwg.mxu0
      %v583 = vld [vmem:[%s6] sm:$0xf]
      %v584 = vld [vmem:[%s6 + $0x4] sm:$0xf]
      %v585 = vld [vmem:[%s6 + $0x8] sm:$0xf]
      %v586 = vld [vmem:[%s6 + $0xc] sm:$0xf]
      %v587 = vld [vmem:[%s7] sm:$0x1]
      %v589 = vperm.slane %v587, 0
      %v595 = vunpack.c.l.b16 %v583
      %v596 = vunpack.c.l.b16 %v584
      %v597 = vunpack.c.l.b16 %v585
      %v598 = vunpack.c.l.b16 %v586
      %v599 = vpack.c.b16 %v596, %v595
      %v600 = vpack.c.b16 %v598, %v597
      %603 = vmatpush.bf16.msra.mxu0 0
      %604 = vmatpush.bf16.msra.mxu0 0
      %605 = vmatpush.bf16.msra.mxu0 0
      %606 = vmatpush.bf16.msra.mxu0 0
      %607 = vmatpush.bf16.msra.mxu0 0
      %608 = vmatpush.bf16.msra.mxu0 0
      %609 = vmatpush.bf16.msra.mxu0 %v600
      %610 = vmatpush.bf16.msra.mxu0 %v599
      %611 = vmatmul.bf16.gmra.mxu0 %v567
      %v612 = vpop.f32.mrf.mxu0
      %v613 = vadd.f32 %v589, %v612
      %v614 = vpop.f32.mrf.mxu0
      %v615 = vadd.f32 %v589, %v614
      %616 = vdwg.mxu0
      %v617 = vpack.c.bf16 %v543, %v543
      %v618 = vpack.c.bf16 %v579, %v579
      %v619 = vpack.c.bf16 %v581, %v581
      %v622 = vunpack.c.l.b16 %v618
      %v623 = vunpack.c.l.b16 %v619
      %v624 = vpack.c.b16 %v623, %v622
      %vm625 = vcmask 64512
      %v627 = vsel %vm625, %v617, 0
      %v630 = vsel %vm625, %v624, 0
      %632 = vmatpush.bf16.xpose.msra.mxu0 0
      %633 = vmatpush.bf16.xpose.msra.mxu0 0
      %634 = vmatpush.bf16.xpose.msra.mxu0 0
      %635 = vmatpush.bf16.xpose.msra.mxu0 0
      %636 = vmatpush.bf16.xpose.msra.mxu0 0
      %637 = vmatpush.bf16.xpose.msra.mxu0 0
      %638 = vmatpush.bf16.xpose.msra.mxu0 0
      %639 = vmatpush.bf16.xpose.msra.mxu0 %v630
      %640 = vmatmul.bf16.gmra.mxu0 %v627
      %v641 = vpop.f32.mrf.mxu0
      %v642 = vadd.f32 0.0, %v641
      %v643 = vpop.f32.mrf.mxu0
      %644 = vdwg.mxu0
      %v645 = vmul.f32 %v642, 0.35355338
      %v646 = vadd.f32 %v645, %v508
      %vm647 = vcmask 80896
      %v648 = vsel %vm647, %v646, -inf
      %649 = vmax.xlane.f32.xlu0 %v648
      %v650 = vpop.xlane.xlu0 %649
      %v651 = vsub.f32 %v646, %v650
      %v652 = vmul.f32 %v651, 1.442695
      %v653 = vpow.pop %v652
      %v654 = vsel %vm647, %v653, 0.0
      %655 = vadd.xlane.f32.xlu0 %v654
      %v656 = vpop.xlane.xlu0 %655
      %v657 = vrcp.pop %v656
      %v658 = vmul.f32 %v653, %v657
      %v659 = vpack.c.bf16 %v658, %v658
      %v660 = vpack.c.bf16 %v613, %v613
      %v661 = vpack.c.bf16 %v615, %v615
      %v664 = vunpack.c.l.b16 %v660
      %v665 = vunpack.c.l.b16 %v661
      %v666 = vpack.c.b16 %v665, %v664
      %v668 = vsel %vm647, %v659, 0
      %vm670 = vcmask 1044480
      %v672 = vsel %vm670, %v666, 0
      %674 = vmatpush.bf16.msra.mxu0 0
      %675 = vmatpush.bf16.msra.mxu0 0
      %676 = vmatpush.bf16.msra.mxu0 0
      %677 = vmatpush.bf16.msra.mxu0 0
      %678 = vmatpush.bf16.msra.mxu0 0
      %679 = vmatpush.bf16.msra.mxu0 0
      %680 = vmatpush.bf16.msra.mxu0 0
      %681 = vmatpush.bf16.msra.mxu0 %v672
      %682 = vmatmul.bf16.gmra.mxu0 %v668
      %v683 = vpop.f32.mrf.mxu0
      %v684 = vadd.f32 0.0, %v683
      %v685 = vpop.f32.mrf.mxu0
      %686 = vdwg.mxu0
      %v687 = vpack.c.bf16 %v684, %v684
      %v688 = vld [vmem:[%s8] sm:$0xf]
      %s689 = scalar_lea.vmem %s2, 16
      %v690 = vld [vmem:[%s689] sm:$0xf]
      %v691 = vld [vmem:[%s689 + $0x4] sm:$0xf]
      %v692 = vld [vmem:[%s689 + $0x8] sm:$0xf]
      %v693 = vld [vmem:[%s689 + $0xc] sm:$0xf]
      %s694 = scalar_lea.vmem %s3, 1
      %v695 = vld [vmem:[%s694] sm:$0x1]
      %v697 = vperm.slane %v695, 0
      %v703 = vunpack.c.l.b16 %v690
      %v704 = vunpack.c.l.b16 %v691
      %v705 = vunpack.c.l.b16 %v692
      %v706 = vunpack.c.l.b16 %v693
      %v707 = vpack.c.b16 %v704, %v703
      %v708 = vpack.c.b16 %v706, %v705
      %711 = vmatpush.bf16.msra.mxu0 0
      %712 = vmatpush.bf16.msra.mxu0 0
      %713 = vmatpush.bf16.msra.mxu0 0
      %714 = vmatpush.bf16.msra.mxu0 0
      %715 = vmatpush.bf16.msra.mxu0 0
      %716 = vmatpush.bf16.msra.mxu0 0
      %717 = vmatpush.bf16.msra.mxu0 %v708
      %718 = vmatpush.bf16.msra.mxu0 %v707
      %719 = vmatmul.bf16.gmra.mxu0 %v531
      %v720 = vpop.f32.mrf.mxu0
      %v721 = vadd.f32 %v697, %v720
      %v722 = vpop.f32.mrf.mxu0
      %723 = vdwg.mxu0
      %s724 = scalar_lea.vmem %s4, 16
      %v725 = vld [vmem:[%s724] sm:$0xf]
      %v726 = vld [vmem:[%s724 + $0x4] sm:$0xf]
      %v727 = vld [vmem:[%s724 + $0x8] sm:$0xf]
      %v728 = vld [vmem:[%s724 + $0xc] sm:$0xf]
      %s729 = scalar_lea.vmem %s5, 1
      %v730 = vld [vmem:[%s729] sm:$0x1]
      %v732 = vperm.slane %v730, 0
      %v738 = vunpack.c.l.b16 %v725
      %v739 = vunpack.c.l.b16 %v726
      %v740 = vunpack.c.l.b16 %v727
      %v741 = vunpack.c.l.b16 %v728
      %v742 = vpack.c.b16 %v739, %v738
      %v743 = vpack.c.b16 %v741, %v740
      %746 = vmatpush.bf16.msra.mxu0 0
      %747 = vmatpush.bf16.msra.mxu0 0
      %748 = vmatpush.bf16.msra.mxu0 0
      %749 = vmatpush.bf16.msra.mxu0 0
      %750 = vmatpush.bf16.msra.mxu0 0
      %751 = vmatpush.bf16.msra.mxu0 0
      %752 = vmatpush.bf16.msra.mxu0 %v743
      %753 = vmatpush.bf16.msra.mxu0 %v742
      %754 = vmatmul.bf16.gmra.mxu0 %v567
      %v755 = vpop.f32.mrf.mxu0
      %v756 = vadd.f32 %v732, %v755
      %v757 = vpop.f32.mrf.mxu0
      %v758 = vadd.f32 %v732, %v757
      %759 = vdwg.mxu0
      %s760 = scalar_lea.vmem %s6, 16
      %v761 = vld [vmem:[%s760] sm:$0xf]
      %v762 = vld [vmem:[%s760 + $0x4] sm:$0xf]
      %v763 = vld [vmem:[%s760 + $0x8] sm:$0xf]
      %v764 = vld [vmem:[%s760 + $0xc] sm:$0xf]
      %s765 = scalar_lea.vmem %s7, 1
      %v766 = vld [vmem:[%s765] sm:$0x1]
      %v768 = vperm.slane %v766, 0
      %v774 = vunpack.c.l.b16 %v761
      %v775 = vunpack.c.l.b16 %v762
      %v776 = vunpack.c.l.b16 %v763
      %v777 = vunpack.c.l.b16 %v764
      %v778 = vpack.c.b16 %v775, %v774
      %v779 = vpack.c.b16 %v777, %v776
      %782 = vmatpush.bf16.msra.mxu0 0
      %783 = vmatpush.bf16.msra.mxu0 0
      %784 = vmatpush.bf16.msra.mxu0 0
      %785 = vmatpush.bf16.msra.mxu0 0
      %786 = vmatpush.bf16.msra.mxu0 0
      %787 = vmatpush.bf16.msra.mxu0 0
      %788 = vmatpush.bf16.msra.mxu0 %v779
      %789 = vmatpush.bf16.msra.mxu0 %v778
      %790 = vmatmul.bf16.gmra.mxu0 %v567
      %v791 = vpop.f32.mrf.mxu0
      %v792 = vadd.f32 %v768, %v791
      %v793 = vpop.f32.mrf.mxu0
      %v794 = vadd.f32 %v768, %v793
      %795 = vdwg.mxu0
      %v796 = vpack.c.bf16 %v721, %v721
      %v797 = vpack.c.bf16 %v756, %v756
      %v798 = vpack.c.bf16 %v758, %v758
      %v801 = vunpack.c.l.b16 %v797
      %v802 = vunpack.c.l.b16 %v798
      %v803 = vpack.c.b16 %v802, %v801
      %v805 = vsel %vm625, %v796, 0
      %v808 = vsel %vm625, %v803, 0
      %810 = vmatpush.bf16.xpose.msra.mxu0 0
      %811 = vmatpush.bf16.xpose.msra.mxu0 0
      %812 = vmatpush.bf16.xpose.msra.mxu0 0
      %813 = vmatpush.bf16.xpose.msra.mxu0 0
      %814 = vmatpush.bf16.xpose.msra.mxu0 0
      %815 = vmatpush.bf16.xpose.msra.mxu0 0
      %816 = vmatpush.bf16.xpose.msra.mxu0 0
      %817 = vmatpush.bf16.xpose.msra.mxu0 %v808
      %818 = vmatmul.bf16.gmra.mxu0 %v805
      %v819 = vpop.f32.mrf.mxu0
      %v820 = vadd.f32 0.0, %v819
      %v821 = vpop.f32.mrf.mxu0
      %822 = vdwg.mxu0
      %v823 = vmul.f32 %v820, 0.35355338
      %v824 = vadd.f32 %v823, %v508
      %v825 = vsel %vm647, %v824, -inf
      %826 = vmax.xlane.f32.xlu0 %v825
      %v827 = vpop.xlane.xlu0 %826
      %v828 = vsub.f32 %v824, %v827
      %v829 = vmul.f32 %v828, 1.442695
      %v830 = vpow.pop %v829
      %v831 = vsel %vm647, %v830, 0.0
      %832 = vadd.xlane.f32.xlu0 %v831
      %v833 = vpop.xlane.xlu0 %832
      %v834 = vrcp.pop %v833
      %v835 = vmul.f32 %v830, %v834
      %v836 = vpack.c.bf16 %v835, %v835
      %v837 = vpack.c.bf16 %v792, %v792
      %v838 = vpack.c.bf16 %v794, %v794
      %v841 = vunpack.c.l.b16 %v837
      %v842 = vunpack.c.l.b16 %v838
      %v843 = vpack.c.b16 %v842, %v841
      %v845 = vsel %vm647, %v836, 0
      %v848 = vsel %vm670, %v843, 0
      %850 = vmatpush.bf16.msra.mxu0 0
      %851 = vmatpush.bf16.msra.mxu0 0
      %852 = vmatpush.bf16.msra.mxu0 0
      %853 = vmatpush.bf16.msra.mxu0 0
      %854 = vmatpush.bf16.msra.mxu0 0
      %855 = vmatpush.bf16.msra.mxu0 0
      %856 = vmatpush.bf16.msra.mxu0 0
      %857 = vmatpush.bf16.msra.mxu0 %v848
      %858 = vmatmul.bf16.gmra.mxu0 %v845
      %v859 = vpop.f32.mrf.mxu0
      %v860 = vadd.f32 0.0, %v859
      %v861 = vpop.f32.mrf.mxu0
      %862 = vdwg.mxu0
      %v863 = vpack.c.bf16 %v860, %v860
      %s864 = scalar_lea.vmem %s8, 4
      %v865 = vld [vmem:[%s864] sm:$0xf]
      %v867 = vsel %vm625, %v863, 0
      %vm869 = vcmask 1043456
      %v871 = vsel %vm869, %v865, 0
      %873 = vmatpush.bf16.msra.mxu0 0
      %874 = vmatpush.bf16.msra.mxu0 0
      %875 = vmatpush.bf16.msra.mxu0 0
      %876 = vmatpush.bf16.msra.mxu0 0
      %877 = vmatpush.bf16.msra.mxu0 0
      %878 = vmatpush.bf16.msra.mxu0 0
      %879 = vmatpush.bf16.msra.mxu0 0
      %880 = vmatpush.bf16.msra.mxu0 %v871
      %881 = vmatmul.bf16.gmra.mxu0 %v867
      %v882 = vpop.f32.mrf.mxu0
      %v883 = vadd.f32 0.0, %v882
      %v884 = vpop.f32.mrf.mxu0
      %885 = vdwg.mxu0
      %v887 = vsel %vm625, %v687, 0
      %v890 = vsel %vm869, %v688, 0
      %892 = vmatpush.bf16.msra.mxu0 0
      %893 = vmatpush.bf16.msra.mxu0 0
      %894 = vmatpush.bf16.msra.mxu0 0
      %895 = vmatpush.bf16.msra.mxu0 0
      %896 = vmatpush.bf16.msra.mxu0 0
      %897 = vmatpush.bf16.msra.mxu0 0
      %898 = vmatpush.bf16.msra.mxu0 0
      %899 = vmatpush.bf16.msra.mxu0 %v890
      %900 = vmatmul.bf16.gmra.mxu0 %v887
      %v901 = vpop.f32.mrf.mxu0
      %v902 = vadd.f32 %v883, %v901
      %v903 = vpop.f32.mrf.mxu0
      %904 = vdwg.mxu0
      %s905 = scalar_lea.vmem %s2, 32
      %v906 = vld [vmem:[%s905] sm:$0xf]
      %v907 = vld [vmem:[%s905 + $0x4] sm:$0xf]
      %v908 = vld [vmem:[%s905 + $0x8] sm:$0xf]
      %v909 = vld [vmem:[%s905 + $0xc] sm:$0xf]
      %s910 = scalar_lea.vmem %s3, 2
      %v911 = vld [vmem:[%s910] sm:$0x1]
      %v913 = vperm.slane %v911, 0
      %v919 = vunpack.c.l.b16 %v906
      %v920 = vunpack.c.l.b16 %v907
      %v921 = vunpack.c.l.b16 %v908
      %v922 = vunpack.c.l.b16 %v909
      %v923 = vpack.c.b16 %v920, %v919
      %v924 = vpack.c.b16 %v922, %v921
      %927 = vmatpush.bf16.msra.mxu0 0
      %928 = vmatpush.bf16.msra.mxu0 0
      %929 = vmatpush.bf16.msra.mxu0 0
      %930 = vmatpush.bf16.msra.mxu0 0
      %931 = vmatpush.bf16.msra.mxu0 0
      %932 = vmatpush.bf16.msra.mxu0 0
      %933 = vmatpush.bf16.msra.mxu0 %v924
      %934 = vmatpush.bf16.msra.mxu0 %v923
      %935 = vmatmul.bf16.gmra.mxu0 %v531
      %v936 = vpop.f32.mrf.mxu0
      %v937 = vadd.f32 %v913, %v936
      %v938 = vpop.f32.mrf.mxu0
      %939 = vdwg.mxu0
      %s940 = scalar_lea.vmem %s4, 32
      %v941 = vld [vmem:[%s940] sm:$0xf]
      %v942 = vld [vmem:[%s940 + $0x4] sm:$0xf]
      %v943 = vld [vmem:[%s940 + $0x8] sm:$0xf]
      %v944 = vld [vmem:[%s940 + $0xc] sm:$0xf]
      %s945 = scalar_lea.vmem %s5, 2
      %v946 = vld [vmem:[%s945] sm:$0x1]
      %v948 = vperm.slane %v946, 0
      %v954 = vunpack.c.l.b16 %v941
      %v955 = vunpack.c.l.b16 %v942
      %v956 = vunpack.c.l.b16 %v943
      %v957 = vunpack.c.l.b16 %v944
      %v958 = vpack.c.b16 %v955, %v954
      %v959 = vpack.c.b16 %v957, %v956
      %962 = vmatpush.bf16.msra.mxu0 0
      %963 = vmatpush.bf16.msra.mxu0 0
      %964 = vmatpush.bf16.msra.mxu0 0
      %965 = vmatpush.bf16.msra.mxu0 0
      %966 = vmatpush.bf16.msra.mxu0 0
      %967 = vmatpush.bf16.msra.mxu0 0
      %968 = vmatpush.bf16.msra.mxu0 %v959
      %969 = vmatpush.bf16.msra.mxu0 %v958
      %970 = vmatmul.bf16.gmra.mxu0 %v567
      %v971 = vpop.f32.mrf.mxu0
      %v972 = vadd.f32 %v948, %v971
      %v973 = vpop.f32.mrf.mxu0
      %v974 = vadd.f32 %v948, %v973
      %975 = vdwg.mxu0
      %s976 = scalar_lea.vmem %s6, 32
      %v977 = vld [vmem:[%s976] sm:$0xf]
      %v978 = vld [vmem:[%s976 + $0x4] sm:$0xf]
      %v979 = vld [vmem:[%s976 + $0x8] sm:$0xf]
      %v980 = vld [vmem:[%s976 + $0xc] sm:$0xf]
      %s981 = scalar_lea.vmem %s7, 2
      %v982 = vld [vmem:[%s981] sm:$0x1]
      %v984 = vperm.slane %v982, 0
      %v990 = vunpack.c.l.b16 %v977
      %v991 = vunpack.c.l.b16 %v978
      %v992 = vunpack.c.l.b16 %v979
      %v993 = vunpack.c.l.b16 %v980
      %v994 = vpack.c.b16 %v991, %v990
      %v995 = vpack.c.b16 %v993, %v992
      %998 = vmatpush.bf16.msra.mxu0 0
      %999 = vmatpush.bf16.msra.mxu0 0
      %1000 = vmatpush.bf16.msra.mxu0 0
      %1001 = vmatpush.bf16.msra.mxu0 0
      %1002 = vmatpush.bf16.msra.mxu0 0
      %1003 = vmatpush.bf16.msra.mxu0 0
      %1004 = vmatpush.bf16.msra.mxu0 %v995
      %1005 = vmatpush.bf16.msra.mxu0 %v994
      %1006 = vmatmul.bf16.gmra.mxu0 %v567
      %v1007 = vpop.f32.mrf.mxu0
      %v1008 = vadd.f32 %v984, %v1007
      %v1009 = vpop.f32.mrf.mxu0
      %v1010 = vadd.f32 %v984, %v1009
      %1011 = vdwg.mxu0
      %v1012 = vpack.c.bf16 %v937, %v937
      %v1013 = vpack.c.bf16 %v972, %v972
      %v1014 = vpack.c.bf16 %v974, %v974
      %v1017 = vunpack.c.l.b16 %v1013
      %v1018 = vunpack.c.l.b16 %v1014
      %v1019 = vpack.c.b16 %v1018, %v1017
      %v1021 = vsel %vm625, %v1012, 0
      %v1024 = vsel %vm625, %v1019, 0
      %1026 = vmatpush.bf16.xpose.msra.mxu0 0
      %1027 = vmatpush.bf16.xpose.msra.mxu0 0
      %1028 = vmatpush.bf16.xpose.msra.mxu0 0
      %1029 = vmatpush.bf16.xpose.msra.mxu0 0
      %1030 = vmatpush.bf16.xpose.msra.mxu0 0
      %1031 = vmatpush.bf16.xpose.msra.mxu0 0
      %1032 = vmatpush.bf16.xpose.msra.mxu0 0
      %1033 = vmatpush.bf16.xpose.msra.mxu0 %v1024
      %1034 = vmatmul.bf16.gmra.mxu0 %v1021
      %v1035 = vpop.f32.mrf.mxu0
      %v1036 = vadd.f32 0.0, %v1035
      %v1037 = vpop.f32.mrf.mxu0
      %1038 = vdwg.mxu0
      %v1039 = vmul.f32 %v1036, 0.35355338
      %v1040 = vadd.f32 %v1039, %v508
      %v1041 = vsel %vm647, %v1040, -inf
      %1042 = vmax.xlane.f32.xlu0 %v1041
      %v1043 = vpop.xlane.xlu0 %1042
      %v1044 = vsub.f32 %v1040, %v1043
      %v1045 = vmul.f32 %v1044, 1.442695
      %v1046 = vpow.pop %v1045
      %v1047 = vsel %vm647, %v1046, 0.0
      %1048 = vadd.xlane.f32.xlu0 %v1047
      %v1049 = vpop.xlane.xlu0 %1048
      %v1050 = vrcp.pop %v1049
      %v1051 = vmul.f32 %v1046, %v1050
      %v1052 = vpack.c.bf16 %v1051, %v1051
      %v1053 = vpack.c.bf16 %v1008, %v1008
      %v1054 = vpack.c.bf16 %v1010, %v1010
      %v1057 = vunpack.c.l.b16 %v1053
      %v1058 = vunpack.c.l.b16 %v1054
      %v1059 = vpack.c.b16 %v1058, %v1057
      %v1061 = vsel %vm647, %v1052, 0
      %v1064 = vsel %vm670, %v1059, 0
      %1066 = vmatpush.bf16.msra.mxu0 0
      %1067 = vmatpush.bf16.msra.mxu0 0
      %1068 = vmatpush.bf16.msra.mxu0 0
      %1069 = vmatpush.bf16.msra.mxu0 0
      %1070 = vmatpush.bf16.msra.mxu0 0
      %1071 = vmatpush.bf16.msra.mxu0 0
      %1072 = vmatpush.bf16.msra.mxu0 0
      %1073 = vmatpush.bf16.msra.mxu0 %v1064
      %1074 = vmatmul.bf16.gmra.mxu0 %v1061
      %v1075 = vpop.f32.mrf.mxu0
      %v1076 = vadd.f32 0.0, %v1075
      %v1077 = vpop.f32.mrf.mxu0
      %1078 = vdwg.mxu0
      %v1079 = vpack.c.bf16 %v1076, %v1076
      %s1080 = scalar_lea.vmem %s8, 8
      %v1081 = vld [vmem:[%s1080] sm:$0xf]
      %v1083 = vsel %vm625, %v1079, 0
      %v1086 = vsel %vm869, %v1081, 0
      %1088 = vmatpush.bf16.msra.mxu0 0
      %1089 = vmatpush.bf16.msra.mxu0 0
      %1090 = vmatpush.bf16.msra.mxu0 0
      %1091 = vmatpush.bf16.msra.mxu0 0
      %1092 = vmatpush.bf16.msra.mxu0 0
      %1093 = vmatpush.bf16.msra.mxu0 0
      %1094 = vmatpush.bf16.msra.mxu0 0
      %1095 = vmatpush.bf16.msra.mxu0 %v1086
      %1096 = vmatmul.bf16.gmra.mxu0 %v1083
      %v1097 = vpop.f32.mrf.mxu0
      %v1098 = vadd.f32 0.0, %v1097
      %v1099 = vpop.f32.mrf.mxu0
      %1100 = vdwg.mxu0
      %v1101 = vadd.f32 %v902, %v1098
      %s1102 = scalar_lea.vmem %s2, 48
      %v1103 = vld [vmem:[%s1102] sm:$0xf]
      %v1104 = vld [vmem:[%s1102 + $0x4] sm:$0xf]
      %v1105 = vld [vmem:[%s1102 + $0x8] sm:$0xf]
      %v1106 = vld [vmem:[%s1102 + $0xc] sm:$0xf]
      %s1107 = scalar_lea.vmem %s3, 3
      %v1108 = vld [vmem:[%s1107] sm:$0x1]
      %v1110 = vperm.slane %v1108, 0
      %v1116 = vunpack.c.l.b16 %v1103
      %v1117 = vunpack.c.l.b16 %v1104
      %v1118 = vunpack.c.l.b16 %v1105
      %v1119 = vunpack.c.l.b16 %v1106
      %v1120 = vpack.c.b16 %v1117, %v1116
      %v1121 = vpack.c.b16 %v1119, %v1118
      %1124 = vmatpush.bf16.msra.mxu0 0
      %1125 = vmatpush.bf16.msra.mxu0 0
      %1126 = vmatpush.bf16.msra.mxu0 0
      %1127 = vmatpush.bf16.msra.mxu0 0
      %1128 = vmatpush.bf16.msra.mxu0 0
      %1129 = vmatpush.bf16.msra.mxu0 0
      %1130 = vmatpush.bf16.msra.mxu0 %v1121
      %1131 = vmatpush.bf16.msra.mxu0 %v1120
      %1132 = vmatmul.bf16.gmra.mxu0 %v531
      %v1133 = vpop.f32.mrf.mxu0
      %v1134 = vadd.f32 %v1110, %v1133
      %v1135 = vpop.f32.mrf.mxu0
      %1136 = vdwg.mxu0
      %s1137 = scalar_lea.vmem %s4, 48
      %v1138 = vld [vmem:[%s1137] sm:$0xf]
      %v1139 = vld [vmem:[%s1137 + $0x4] sm:$0xf]
      %v1140 = vld [vmem:[%s1137 + $0x8] sm:$0xf]
      %v1141 = vld [vmem:[%s1137 + $0xc] sm:$0xf]
      %s1142 = scalar_lea.vmem %s5, 3
      %v1143 = vld [vmem:[%s1142] sm:$0x1]
      %v1145 = vperm.slane %v1143, 0
      %v1151 = vunpack.c.l.b16 %v1138
      %v1152 = vunpack.c.l.b16 %v1139
      %v1153 = vunpack.c.l.b16 %v1140
      %v1154 = vunpack.c.l.b16 %v1141
      %v1155 = vpack.c.b16 %v1152, %v1151
      %v1156 = vpack.c.b16 %v1154, %v1153
      %1159 = vmatpush.bf16.msra.mxu0 0
      %1160 = vmatpush.bf16.msra.mxu0 0
      %1161 = vmatpush.bf16.msra.mxu0 0
      %1162 = vmatpush.bf16.msra.mxu0 0
      %1163 = vmatpush.bf16.msra.mxu0 0
      %1164 = vmatpush.bf16.msra.mxu0 0
      %1165 = vmatpush.bf16.msra.mxu0 %v1156
      %1166 = vmatpush.bf16.msra.mxu0 %v1155
      %1167 = vmatmul.bf16.gmra.mxu0 %v567
      %v1168 = vpop.f32.mrf.mxu0
      %v1169 = vadd.f32 %v1145, %v1168
      %v1170 = vpop.f32.mrf.mxu0
      %v1171 = vadd.f32 %v1145, %v1170
      %1172 = vdwg.mxu0
      %s1173 = scalar_lea.vmem %s6, 48
      %v1174 = vld [vmem:[%s1173] sm:$0xf]
      %v1175 = vld [vmem:[%s1173 + $0x4] sm:$0xf]
      %v1176 = vld [vmem:[%s1173 + $0x8] sm:$0xf]
      %v1177 = vld [vmem:[%s1173 + $0xc] sm:$0xf]
      %s1178 = scalar_lea.vmem %s7, 3
      %v1179 = vld [vmem:[%s1178] sm:$0x1]
      %v1181 = vperm.slane %v1179, 0
      %v1187 = vunpack.c.l.b16 %v1174
      %v1188 = vunpack.c.l.b16 %v1175
      %v1189 = vunpack.c.l.b16 %v1176
      %v1190 = vunpack.c.l.b16 %v1177
      %v1191 = vpack.c.b16 %v1188, %v1187
      %v1192 = vpack.c.b16 %v1190, %v1189
      %1195 = vmatpush.bf16.msra.mxu0 0
      %1196 = vmatpush.bf16.msra.mxu0 0
      %1197 = vmatpush.bf16.msra.mxu0 0
      %1198 = vmatpush.bf16.msra.mxu0 0
      %1199 = vmatpush.bf16.msra.mxu0 0
      %1200 = vmatpush.bf16.msra.mxu0 0
      %1201 = vmatpush.bf16.msra.mxu0 %v1192
      %1202 = vmatpush.bf16.msra.mxu0 %v1191
      %1203 = vmatmul.bf16.gmra.mxu0 %v567
      %v1204 = vpop.f32.mrf.mxu0
      %v1205 = vadd.f32 %v1181, %v1204
      %v1206 = vpop.f32.mrf.mxu0
      %v1207 = vadd.f32 %v1181, %v1206
      %1208 = vdwg.mxu0
      %v1209 = vpack.c.bf16 %v1134, %v1134
      %v1210 = vpack.c.bf16 %v1169, %v1169
      %v1211 = vpack.c.bf16 %v1171, %v1171
      %v1214 = vunpack.c.l.b16 %v1210
      %v1215 = vunpack.c.l.b16 %v1211
      %v1216 = vpack.c.b16 %v1215, %v1214
      %v1218 = vsel %vm625, %v1209, 0
      %v1221 = vsel %vm625, %v1216, 0
      %1223 = vmatpush.bf16.xpose.msra.mxu0 0
      %1224 = vmatpush.bf16.xpose.msra.mxu0 0
      %1225 = vmatpush.bf16.xpose.msra.mxu0 0
      %1226 = vmatpush.bf16.xpose.msra.mxu0 0
      %1227 = vmatpush.bf16.xpose.msra.mxu0 0
      %1228 = vmatpush.bf16.xpose.msra.mxu0 0
      %1229 = vmatpush.bf16.xpose.msra.mxu0 0
      %1230 = vmatpush.bf16.xpose.msra.mxu0 %v1221
      %1231 = vmatmul.bf16.gmra.mxu0 %v1218
      %v1232 = vpop.f32.mrf.mxu0
      %v1233 = vadd.f32 0.0, %v1232
      %v1234 = vpop.f32.mrf.mxu0
      %1235 = vdwg.mxu0
      %v1236 = vmul.f32 %v1233, 0.35355338
      %v1237 = vadd.f32 %v1236, %v508
      %v1238 = vsel %vm647, %v1237, -inf
      %1239 = vmax.xlane.f32.xlu0 %v1238
      %v1240 = vpop.xlane.xlu0 %1239
      %v1241 = vsub.f32 %v1237, %v1240
      %v1242 = vmul.f32 %v1241, 1.442695
      %v1243 = vpow.pop %v1242
      %v1244 = vsel %vm647, %v1243, 0.0
      %1245 = vadd.xlane.f32.xlu0 %v1244
      %v1246 = vpop.xlane.xlu0 %1245
      %v1247 = vrcp.pop %v1246
      %v1248 = vmul.f32 %v1243, %v1247
      %v1249 = vpack.c.bf16 %v1248, %v1248
      %v1250 = vpack.c.bf16 %v1205, %v1205
      %v1251 = vpack.c.bf16 %v1207, %v1207
      %v1254 = vunpack.c.l.b16 %v1250
      %v1255 = vunpack.c.l.b16 %v1251
      %v1256 = vpack.c.b16 %v1255, %v1254
      %v1258 = vsel %vm647, %v1249, 0
      %v1261 = vsel %vm670, %v1256, 0
      %1263 = vmatpush.bf16.msra.mxu0 0
      %1264 = vmatpush.bf16.msra.mxu0 0
      %1265 = vmatpush.bf16.msra.mxu0 0
      %1266 = vmatpush.bf16.msra.mxu0 0
      %1267 = vmatpush.bf16.msra.mxu0 0
      %1268 = vmatpush.bf16.msra.mxu0 0
      %1269 = vmatpush.bf16.msra.mxu0 0
      %1270 = vmatpush.bf16.msra.mxu0 %v1261
      %1271 = vmatmul.bf16.gmra.mxu0 %v1258
      %v1272 = vpop.f32.mrf.mxu0
      %v1273 = vadd.f32 0.0, %v1272
      %v1274 = vpop.f32.mrf.mxu0
      %1275 = vdwg.mxu0
      %v1276 = vpack.c.bf16 %v1273, %v1273
      %s1277 = scalar_lea.vmem %s8, 12
      %v1278 = vld [vmem:[%s1277] sm:$0xf]
      %v1280 = vsel %vm625, %v1276, 0
      %v1283 = vsel %vm869, %v1278, 0
      %1285 = vmatpush.bf16.msra.mxu0 0
      %1286 = vmatpush.bf16.msra.mxu0 0
      %1287 = vmatpush.bf16.msra.mxu0 0
      %1288 = vmatpush.bf16.msra.mxu0 0
      %1289 = vmatpush.bf16.msra.mxu0 0
      %1290 = vmatpush.bf16.msra.mxu0 0
      %1291 = vmatpush.bf16.msra.mxu0 0
      %1292 = vmatpush.bf16.msra.mxu0 %v1283
      %1293 = vmatmul.bf16.gmra.mxu0 %v1280
      %v1294 = vpop.f32.mrf.mxu0
      %v1295 = vadd.f32 0.0, %v1294
      %v1296 = vpop.f32.mrf.mxu0
      %1297 = vdwg.mxu0
      %v1298 = vadd.f32 %v1101, %v1295
      %v1299 = vld [vmem:[%s9] sm:$0x1]
      %v1301 = vperm.slane %v1299, 0
      %v1303 = vadd.f32 %v1298, %v1301
      %v1304 = vadd.f32 %v498, %v1303
      %v1305 = vsel %vm529, %v1304, 0.0
      %1306 = vadd.xlane.f32.xlu0 %v1305
      %v1307 = vpop.xlane.xlu0 %1306
      %v1308 = vrcp.pop 32.0
      %v1309 = vmul.f32 32.0, %v1308
      %v1310 = vsub.f32 1.0, %v1309
      %v1311 = vmul.f32 %v1308, %v1310
      %v1312 = vadd.f32 %v1308, %v1311
      %vm1313 = vweird.f32 %v1308
      %v1314 = vsel %vm1313, %v1308, %v1312
      %v1315 = vmul.f32 %v1307, %v1314
      %v1316 = vsub.f32 %v1304, %v1315
      %v1317 = vmul.f32 %v1316, %v1316
      %v1318 = vsel %vm529, %v1317, 0.0
      %1319 = vadd.xlane.f32.xlu0 %v1318
      %v1320 = vpop.xlane.xlu0 %1319
      %v1321 = vmul.f32 %v1320, %v1314
      %v1322 = vadd.f32 %v1321, 1e-05
      %v1323 = vrsqrt.pop %v1322
      %v1324 = vmul.f32 %v1323, %v1322
      %v1325 = vmul.f32 %v1324, %v1323
      %v1326 = vmul.f32 0.5, %v1325
      %v1327 = vsub.f32 1.5, %v1326
      %v1328 = vmul.f32 %v1323, %v1327
      %vm1329 = vweird.f32 %v1322
      %vm1330 = vweird.f32 %v1323
      %vm1331 = vmor %vm1329, %vm1330
      %v1332 = vsel %vm1331, %v1323, %v1328
      %v1333 = vmul.f32 %v1316, %v1332
      %v1334 = vld [vmem:[%s12] sm:$0x1]
      %v1336 = vperm.slane %v1334, 0
      %v1338 = vmul.f32 %v1333, %v1336
      %v1339 = vld [vmem:[%s13] sm:$0x1]
      %v1341 = vperm.slane %v1339, 0
      %v1343 = vadd.f32 %v1338, %v1341
      %1344 = vst.msk [vmem:[%s496] sm:$0xff] %vm529, %v1343
      %p1345 = scmp.lt.s32.totalorder %s25, 1
      %s1346 = scalar_select %p1345, %s25, 1
      %s1347 = smul.addr %s1346, 8
      %s1348 = scalar_lea.vmem %s14, %s1347
      // Predicated region
      $region77: #{seq2seq_forward.18} parent=75 // pred_check
        %p1349 = pneg %p352
      $region78: #{seq2seq_forward.18} parent=75 // pred_check_branch
        %1351 = sbr.rel (%p1349) target = $region80
      $region79: #{seq2seq_forward.18} parent=75 // pred_region
        _
      $region80: #{seq2seq_forward.18} parent=75 // pred_fallthru
        _
    $region76: #{seq2seq_forward.18} parent=5 // pred_fallthru
      _
    %p1352 = scmp.le.s32.totalorder 2, %s20
    // Predicated region
    $region81: #{seq2seq_forward.18} parent=5 // pred_check
      %p1353 = pneg %p1352
    $region82: #{seq2seq_forward.18} parent=5 // pred_check_branch
      %1355 = sbr.rel (%p1353) target = $region84
    $region83: #{seq2seq_forward.18} parent=5 // pred_region
      %s1356 = ssub.s32 %s20, 2
      // Predicated region
      $region85: #{seq2seq_forward.18} parent=83 // pred_check
        %p1357 = pneg %p358
      $region86: #{seq2seq_forward.18} parent=83 // pred_check_branch
        %1359 = sbr.rel (%p1357) target = $region88
      $region87: #{seq2seq_forward.18} parent=83 // pred_region
        %p1360 = scmp.lt.s32.totalorder %s26, 1
        %s1361 = scalar_select %p1360, %s26, 1
        %s1362 = smul.addr %s1361, 8
        %s1363 = scalar_lea.vmem %s14, %s1362
      $region88: #{seq2seq_forward.18} parent=83 // pred_fallthru
        _
    $region84: #{seq2seq_forward.18} parent=5 // pred_fallthru
      _
  $region6: #{seq2seq_forward.18} parent=0 // loop_footer
    %s24 = sadd.s32 1, %s20
  $region7: #{seq2seq_forward.18} parent=0 // loop_footer_branch
    %19 = sbr.rel target = $region3
  $region8: #{seq2seq_forward.18} parent=0 // loop_exit
    _

</llo_original>
